<compile_context>
chip_gen: v5e
topology: v5e:2x2
jax: 0.10.0
libtpu: 0.0.40
codegen_flags: <defaults>
</compile_context>

<pallas_src>
import functools

import jax
import jax.numpy as jnp
import numpy as np
from jax import lax
from jax.experimental import pallas as pl
from jax.experimental.pallas import tpu as pltpu

_BLOCK_B = 8  # images per grid step


# ----------------------------------------------------------------------------
# The fused kernel: block_b images per grid step, all weights resident in VMEM.
# ----------------------------------------------------------------------------
def _lenet_fused_kernel(x_ref, w1e_ref, w1o_ref, b1_ref,
                        w2e_ref, w2o_ref, b2_ref,
                        wf1_ref, bf1_ref, wf2_ref, bf2_ref, wf3_ref, bf3_ref,
                        se14_ref, so14_ref, se5_ref, so5_ref,
                        out_ref, *, block_b):
    f32, bf16 = jnp.float32, jnp.bfloat16

    x = x_ref[...]                                          # (B, 3, 32, 32) f32
    # NCHW -> channel-planar [h, c*32 + w] for the whole block (lane concat);
    # replaces the wrapper-side transpose.
    xp = jnp.concatenate([x[:, 0], x[:, 1], x[:, 2]], axis=-1)   # (B, 32, 96)

    w1e = w1e_ref[...]; w1o = w1o_ref[...]                  # (480, 84) bf16
    w2e = w2e_ref[...]; w2o = w2o_ref[...]                  # (420, 80) bf16
    se14 = se14_ref[...]; so14 = so14_ref[...]              # (14, 28) f32
    se5 = se5_ref[...]; so5 = so5_ref[...]                  # (5, 10) f32
    b1 = b1_ref[...]; b2 = b2_ref[...]                      # (1, 84) / (1, 80)

    fc_rows = []
    for b in range(block_b):
        xb = xp[b]                                          # (32, 96) f32

        # ---- conv1 (3->6, k=5) + ReLU + 2x2 max-pool, fused -----------------
        # K-packed LHS: all 5 kernel-row shifts concatenated along lanes.
        lhs1 = jnp.concatenate([xb[ki:ki + 28, :] for ki in range(5)],
                               axis=-1).astype(bf16)        # (28, 480)
        h1e = jnp.dot(lhs1, w1e, preferred_element_type=f32)    # even conv cols
        h1o = jnp.dot(lhs1, w1o, preferred_element_type=f32)    # odd conv cols
        cmax1 = jnp.maximum(h1e, h1o)                       # width-pooled (28, 84)
        rmax1 = jnp.maximum(                                # height pooling
            jnp.dot(se14, cmax1, preferred_element_type=f32),
            jnp.dot(so14, cmax1, preferred_element_type=f32))
        a1 = jnp.maximum(rmax1 + b1, 0.0)                   # (14, 84) = (H, C*W)

        # ---- conv2 (6->16, k=5) + ReLU + 2x2 max-pool, fused ----------------
        lhs2 = jnp.concatenate([a1[ki:ki + 10, :] for ki in range(5)],
                               axis=-1).astype(bf16)        # (10, 420)
        h2e = jnp.dot(lhs2, w2e, preferred_element_type=f32)
        h2o = jnp.dot(lhs2, w2o, preferred_element_type=f32)
        cmax2 = jnp.maximum(h2e, h2o)                       # (10, 80)
        rmax2 = jnp.maximum(
            jnp.dot(se5, cmax2, preferred_element_type=f32),
            jnp.dot(so5, cmax2, preferred_element_type=f32))
        a2 = jnp.maximum(rmax2 + b2, 0.0)                   # (5, 80) = (H, C*W)

        # torch's NCHW flatten is folded into the wf1 packing (row = h*80+c*5+w)
        fc_rows.append(jnp.concatenate([a2[h:h + 1, :] for h in range(5)],
                                       axis=-1))            # (1, 400)

    # ---- fc1(relu) -> fc2(relu) -> fc3 with a real M = block_b --------------
    z = jnp.concatenate(fc_rows, axis=0).astype(bf16)       # (B, 400)
    z = jnp.maximum(jnp.dot(z, wf1_ref[...],
                            preferred_element_type=f32) + bf1_ref[...], 0.0)
    z = jnp.maximum(jnp.dot(z.astype(bf16), wf2_ref[...],
                            preferred_element_type=f32) + bf2_ref[...], 0.0)
    z = jnp.dot(z.astype(bf16), wf3_ref[...],
                preferred_element_type=f32) + bf3_ref[...]
    out_ref[...] = z.astype(out_ref.dtype)                  # (B, 15)


def net_forward(x_nchw, pk, *, block_b=_BLOCK_B):
    """Forward pass of the Net module.  x_nchw: (N, 3, 32, 32) float32."""
    assert x_nchw.shape[1:] == (3, 32, 32), x_nchw.shape
    N = x_nchw.shape[0]
    pad = (-N) % block_b
    if pad:
        x_nchw = jnp.concatenate(
            [x_nchw, jnp.zeros((pad,) + x_nchw.shape[1:], x_nchw.dtype)], axis=0)
    n_pad = N + pad

    def resident(shape):
        r = len(shape)
        return pl.BlockSpec(shape, lambda n: (0,) * r)

    flops_per_img = (2 * 2 * 28 * 480 * 84 + 2 * 2 * 14 * 28 * 84 +
                     2 * 2 * 10 * 420 * 80 + 2 * 2 * 5 * 10 * 80 +
                     2 * 400 * 120 + 2 * 120 * 84 + 2 * 84 * 15)
    weight_bytes = (2 * (480 * 84 + 420 * 80 + 400 * 120 + 120 * 84 + 84 * 15) +
                    4 * (84 + 80 + 120 + 84 + 15 + 2 * 14 * 28 + 2 * 5 * 10))
    extra = {}
    if hasattr(pl, "CostEstimate"):
        extra["cost_estimate"] = pl.CostEstimate(
            flops=flops_per_img * n_pad, transcendentals=0,
            bytes_accessed=weight_bytes + n_pad * (3 * 32 * 32 + 15) * 4)

    kernel = functools.partial(_lenet_fused_kernel, block_b=block_b)
    out = pl.pallas_call(
        kernel,
        out_shape=jax.ShapeDtypeStruct((n_pad, 15), jnp.float32),
        grid=(n_pad // block_b,),
        in_specs=[
            pl.BlockSpec((block_b, 3, 32, 32), lambda n: (n, 0, 0, 0)),
            resident((480, 84)), resident((480, 84)), resident((1, 84)),
            resident((420, 80)), resident((420, 80)), resident((1, 80)),
            resident((400, 120)), resident((1, 120)),
            resident((120, 84)), resident((1, 84)),
            resident((84, 15)), resident((1, 15)),
            resident((14, 28)), resident((14, 28)),
            resident((5, 10)), resident((5, 10)),
        ],
        out_specs=pl.BlockSpec((block_b, 15), lambda n: (n, 0)),
        compiler_params=pltpu.CompilerParams(
            dimension_semantics=("parallel",)),
        **extra,
    )(x_nchw,
      pk["w1e"], pk["w1o"], pk["b1"],
      pk["w2e"], pk["w2o"], pk["b2"],
      pk["wf1"], pk["bf1"], pk["wf2"], pk["bf2"], pk["wf3"], pk["bf3"],
      pk["se14"], pk["so14"], pk["se5"], pk["so5"])
    return out[:N]


# ----------------------------------------------------------------------------
# Parameter init (PyTorch layouts) + packing into the kernel's layouts.
# ----------------------------------------------------------------------------
def init_torch_params(key):
    """Synthetic params in PyTorch layouts (uniform +-1/sqrt(fan_in))."""
    ks = jax.random.split(key, 10)

    def u(k, shape, fan_in):
        bound = 1.0 / np.sqrt(float(fan_in))
        return jax.random.uniform(k, shape, jnp.float32, -bound, bound)

    return {
        "conv1_w": u(ks[0], (6, 3, 5, 5), 3 * 5 * 5),
        "conv1_b": u(ks[1], (6,), 3 * 5 * 5),
        "conv2_w": u(ks[2], (16, 6, 5, 5), 6 * 5 * 5),
        "conv2_b": u(ks[3], (16,), 6 * 5 * 5),
        "fc1_w": u(ks[4], (120, 400), 400), "fc1_b": u(ks[5], (120,), 400),
        "fc2_w": u(ks[6], (84, 120), 120),  "fc2_b": u(ks[7], (84,), 120),
        "fc3_w": u(ks[8], (15, 84), 84),    "fc3_b": u(ks[9], (15,), 84),
    }


def pack_params(p):
    """Pack torch-layout weights into the fused kernel's GEMM layouts (once)."""
    w1 = np.asarray(p["conv1_w"], np.float32)   # (6, 3, 5, 5)  OIHW
    b1 = np.asarray(p["conv1_b"], np.float32)
    w2 = np.asarray(p["conv2_w"], np.float32)   # (16, 6, 5, 5)
    b2 = np.asarray(p["conv2_b"], np.float32)
    f1w = np.asarray(p["fc1_w"], np.float32)    # (120, 400)
    f2w = np.asarray(p["fc2_w"], np.float32)    # (84, 120)
    f3w = np.asarray(p["fc3_w"], np.float32)    # (15, 84)

    # conv1 block-Toeplitz weights, K-packed over the 5 kernel rows.  LHS cols
    # of the (28, 480) GEMM: ki*96 + c*32 + (2*j2 [+1] + kj) -- the in-kernel
    # channel-planar layout [h, c*32+w].  Output cols: co*14 + j2 for even/odd
    # conv columns, so the width half of the 2x2 pool is an elementwise max.
    w1e = np.zeros((5, 96, 84), np.float32)
    w1o = np.zeros((5, 96, 84), np.float32)
    for ki in range(5):
        for co in range(6):
            for j2 in range(14):
                for kj in range(5):
                    for c in range(3):
                        w1e[ki, c * 32 + 2 * j2 + kj, co * 14 + j2] = w1[co, c, ki, kj]
                        w1o[ki, c * 32 + 2 * j2 + 1 + kj, co * 14 + j2] = w1[co, c, ki, kj]
    w1e = w1e.reshape(480, 84)
    w1o = w1o.reshape(480, 84)

    # conv2 consumes the (14, 6*14) planar stage-1 activations (cols = c*14+w).
    w2e = np.zeros((5, 84, 80), np.float32)
    w2o = np.zeros((5, 84, 80), np.float32)
    for ki in range(5):
        for f in range(16):
            for j2 in range(5):
                for kj in range(5):
                    for c in range(6):
                        w2e[ki, c * 14 + 2 * j2 + kj, f * 5 + j2] = w2[f, c, ki, kj]
                        w2o[ki, c * 14 + 2 * j2 + 1 + kj, f * 5 + j2] = w2[f, c, ki, kj]
    w2e = w2e.reshape(420, 80)
    w2o = w2o.reshape(420, 80)

    # fc1: fold torch's NCHW flatten (view(-1, 16*5*5)) so rows match the
    # kernel's h-major flatten of the (5, 16*5) planar pool-2 activations.
    wf1 = f1w.T.reshape(16, 5, 5, 120).transpose(1, 0, 2, 3).reshape(400, 120)

    # 0/1 row-selection matrices implementing the height half of the 2x2 pool.
    se14 = np.zeros((14, 28), np.float32); se14[np.arange(14), 2 * np.arange(14)] = 1.0
    so14 = np.zeros((14, 28), np.float32); so14[np.arange(14), 2 * np.arange(14) + 1] = 1.0
    se5 = np.zeros((5, 10), np.float32);   se5[np.arange(5), 2 * np.arange(5)] = 1.0
    so5 = np.zeros((5, 10), np.float32);   so5[np.arange(5), 2 * np.arange(5) + 1] = 1.0

    bf16, f32 = jnp.bfloat16, jnp.float32
    return {
        "w1e": jnp.asarray(w1e, bf16), "w1o": jnp.asarray(w1o, bf16),
        "b1": jnp.asarray(np.repeat(b1, 14)[None, :], f32),
        "w2e": jnp.asarray(w2e, bf16), "w2o": jnp.asarray(w2o, bf16),
        "b2": jnp.asarray(np.repeat(b2, 5)[None, :], f32),
        "wf1": jnp.asarray(wf1, bf16),
        "bf1": jnp.asarray(np.asarray(p["fc1_b"], np.float32)[None, :], f32),
        "wf2": jnp.asarray(f2w.T, bf16),
        "bf2": jnp.asarray(np.asarray(p["fc2_b"], np.float32)[None, :], f32),
        "wf3": jnp.asarray(f3w.T, bf16),
        "bf3": jnp.asarray(np.asarray(p["fc3_b"], np.float32)[None, :], f32),
        "se14": jnp.asarray(se14, f32), "so14": jnp.asarray(so14, f32),
        "se5": jnp.asarray(se5, f32), "so5": jnp.asarray(so5, f32),
    }


# ----------------------------------------------------------------------------
# Plain-XLA reference of the original torch module (for a numerical check).
# ----------------------------------------------------------------------------
def net_reference(x_nchw, p):
    y = lax.conv_general_dilated(x_nchw, p["conv1_w"], (1, 1), "VALID",
                                 dimension_numbers=("NCHW", "OIHW", "NCHW"))
    y = jax.nn.relu(y + p["conv1_b"][None, :, None, None])
    y = lax.reduce_window(y, -jnp.inf, lax.max, (1, 1, 2, 2), (1, 1, 2, 2), "VALID")
    y = lax.conv_general_dilated(y, p["conv2_w"], (1, 1), "VALID",
                                 dimension_numbers=("NCHW", "OIHW", "NCHW"))
    y = jax.nn.relu(y + p["conv2_b"][None, :, None, None])
    y = lax.reduce_window(y, -jnp.inf, lax.max, (1, 1, 2, 2), (1, 1, 2, 2), "VALID")
    y = y.reshape(y.shape[0], 16 * 5 * 5)            # torch's NCHW flatten order
    y = jax.nn.relu(y @ p["fc1_w"].T + p["fc1_b"])
    y = jax.nn.relu(y @ p["fc2_w"].T + p["fc2_b"])
    return y @ p["fc3_w"].T + p["fc3_b"]


if __name__ == "__main__":
    key = jax.random.PRNGKey(0)
    k_x, k_p = jax.random.split(key)
    # forward implies 32x32 spatial input (conv5->28, pool->14, conv5->10, pool->5)
    # N=16 -> two grid steps of 8 images (even, >=2, for v7x's two TensorCores).
    x = jax.random.normal(k_x, (16, 3, 32, 32), jnp.float32)
    torch_params = init_torch_params(k_p)
    packed = pack_params(torch_params)

    out = jax.block_until_ready(jax.jit(net_forward)(x, packed))
    assert out.shape == (16, 15), out.shape

    # numerical cross-check against the plain-XLA reference of the module
    # (tolerance chosen deliberately for the bf16 GEMM path).
    ref = jax.block_until_ready(jax.jit(net_reference)(x, torch_params))
    np.testing.assert_allclose(np.asarray(out), np.asarray(ref),
                               rtol=2e-2, atol=2e-2)

    print("KERNEL_OK")
</pallas_src>

<mosaic_0001>
module attributes {stable_mosaic.version = 11 : i64} {
  func.func @_lenet_fused_kernel(%arg0: i32, %arg1: memref<8x3x32x32xf32, #tpu.memory_space<vmem>>, %arg2: memref<480x84xbf16, #tpu.memory_space<vmem>>, %arg3: memref<480x84xbf16, #tpu.memory_space<vmem>>, %arg4: memref<1x84xf32, #tpu.memory_space<vmem>>, %arg5: memref<420x80xbf16, #tpu.memory_space<vmem>>, %arg6: memref<420x80xbf16, #tpu.memory_space<vmem>>, %arg7: memref<1x80xf32, #tpu.memory_space<vmem>>, %arg8: memref<400x120xbf16, #tpu.memory_space<vmem>>, %arg9: memref<1x120xf32, #tpu.memory_space<vmem>>, %arg10: memref<120x84xbf16, #tpu.memory_space<vmem>>, %arg11: memref<1x84xf32, #tpu.memory_space<vmem>>, %arg12: memref<84x15xbf16, #tpu.memory_space<vmem>>, %arg13: memref<1x15xf32, #tpu.memory_space<vmem>>, %arg14: memref<14x28xf32, #tpu.memory_space<vmem>>, %arg15: memref<14x28xf32, #tpu.memory_space<vmem>>, %arg16: memref<5x10xf32, #tpu.memory_space<vmem>>, %arg17: memref<5x10xf32, #tpu.memory_space<vmem>>, %arg18: memref<8x15xf32, #tpu.memory_space<vmem>>) attributes {dimension_semantics = [#tpu.dimension_semantics<parallel>], iteration_bounds = array<i64: 2>, scalar_prefetch = 0 : i64, scratch_operands = 0 : i64, tpu.core_type = #tpu.core_type<tc>, window_params = [{transform_indices = @transform_0, window_bounds = array<i64: 8, 3, 32, 32>}, {pipeline_mode = #tpu.pipeline_mode<synchronous>, transform_indices = @transform_1, window_bounds = array<i64: 480, 84>}, {pipeline_mode = #tpu.pipeline_mode<synchronous>, transform_indices = @transform_2, window_bounds = array<i64: 480, 84>}, {pipeline_mode = #tpu.pipeline_mode<synchronous>, transform_indices = @transform_3, window_bounds = array<i64: 1, 84>}, {pipeline_mode = #tpu.pipeline_mode<synchronous>, transform_indices = @transform_4, window_bounds = array<i64: 420, 80>}, {pipeline_mode = #tpu.pipeline_mode<synchronous>, transform_indices = @transform_5, window_bounds = array<i64: 420, 80>}, {pipeline_mode = #tpu.pipeline_mode<synchronous>, transform_indices = @transform_6, window_bounds = array<i64: 1, 80>}, {pipeline_mode = #tpu.pipeline_mode<synchronous>, transform_indices = @transform_7, window_bounds = array<i64: 400, 120>}, {pipeline_mode = #tpu.pipeline_mode<synchronous>, transform_indices = @transform_8, window_bounds = array<i64: 1, 120>}, {pipeline_mode = #tpu.pipeline_mode<synchronous>, transform_indices = @transform_9, window_bounds = array<i64: 120, 84>}, {pipeline_mode = #tpu.pipeline_mode<synchronous>, transform_indices = @transform_10, window_bounds = array<i64: 1, 84>}, {pipeline_mode = #tpu.pipeline_mode<synchronous>, transform_indices = @transform_11, window_bounds = array<i64: 84, 15>}, {pipeline_mode = #tpu.pipeline_mode<synchronous>, transform_indices = @transform_12, window_bounds = array<i64: 1, 15>}, {pipeline_mode = #tpu.pipeline_mode<synchronous>, transform_indices = @transform_13, window_bounds = array<i64: 14, 28>}, {pipeline_mode = #tpu.pipeline_mode<synchronous>, transform_indices = @transform_14, window_bounds = array<i64: 14, 28>}, {pipeline_mode = #tpu.pipeline_mode<synchronous>, transform_indices = @transform_15, window_bounds = array<i64: 5, 10>}, {pipeline_mode = #tpu.pipeline_mode<synchronous>, transform_indices = @transform_16, window_bounds = array<i64: 5, 10>}, {transform_indices = @transform_17, window_bounds = array<i64: 8, 15>}]} {
    %c0 = arith.constant 0 : index
    %c0_0 = arith.constant 0 : index
    %c0_1 = arith.constant 0 : index
    %c0_2 = arith.constant 0 : index
    %0 = vector.load %arg1[%c0, %c0_0, %c0_1, %c0_2] : memref<8x3x32x32xf32, #tpu.memory_space<vmem>>, vector<8x3x32x32xf32>
    %1 = vector.extract_strided_slice %0 {offsets = [0, 0, 0, 0], sizes = [8, 1, 32, 32], strides = [1, 1, 1, 1]} : vector<8x3x32x32xf32> to vector<8x1x32x32xf32>
    %2 = vector.shape_cast %1 : vector<8x1x32x32xf32> to vector<8x32x32xf32>
    %3 = vector.extract_strided_slice %0 {offsets = [0, 1, 0, 0], sizes = [8, 1, 32, 32], strides = [1, 1, 1, 1]} : vector<8x3x32x32xf32> to vector<8x1x32x32xf32>
    %4 = vector.shape_cast %3 : vector<8x1x32x32xf32> to vector<8x32x32xf32>
    %5 = vector.extract_strided_slice %0 {offsets = [0, 2, 0, 0], sizes = [8, 1, 32, 32], strides = [1, 1, 1, 1]} : vector<8x3x32x32xf32> to vector<8x1x32x32xf32>
    %6 = vector.shape_cast %5 : vector<8x1x32x32xf32> to vector<8x32x32xf32>
    %7 = tpu.concatenate %2, %4, %6 in 2 : vector<8x32x32xf32>, vector<8x32x32xf32>, vector<8x32x32xf32> -> vector<8x32x96xf32>
    %c0_3 = arith.constant 0 : index
    %c0_4 = arith.constant 0 : index
    %8 = vector.load %arg2[%c0_3, %c0_4] : memref<480x84xbf16, #tpu.memory_space<vmem>>, vector<480x84xbf16>
    %c0_5 = arith.constant 0 : index
    %c0_6 = arith.constant 0 : index
    %9 = vector.load %arg3[%c0_5, %c0_6] : memref<480x84xbf16, #tpu.memory_space<vmem>>, vector<480x84xbf16>
    %c0_7 = arith.constant 0 : index
    %c0_8 = arith.constant 0 : index
    %10 = vector.load %arg5[%c0_7, %c0_8] : memref<420x80xbf16, #tpu.memory_space<vmem>>, vector<420x80xbf16>
    %c0_9 = arith.constant 0 : index
    %c0_10 = arith.constant 0 : index
    %11 = vector.load %arg6[%c0_9, %c0_10] : memref<420x80xbf16, #tpu.memory_space<vmem>>, vector<420x80xbf16>
    %c0_11 = arith.constant 0 : index
    %c0_12 = arith.constant 0 : index
    %12 = vector.load %arg14[%c0_11, %c0_12] : memref<14x28xf32, #tpu.memory_space<vmem>>, vector<14x28xf32>
    %c0_13 = arith.constant 0 : index
    %c0_14 = arith.constant 0 : index
    %13 = vector.load %arg15[%c0_13, %c0_14] : memref<14x28xf32, #tpu.memory_space<vmem>>, vector<14x28xf32>
    %c0_15 = arith.constant 0 : index
    %c0_16 = arith.constant 0 : index
    %14 = vector.load %arg16[%c0_15, %c0_16] : memref<5x10xf32, #tpu.memory_space<vmem>>, vector<5x10xf32>
    %c0_17 = arith.constant 0 : index
    %c0_18 = arith.constant 0 : index
    %15 = vector.load %arg17[%c0_17, %c0_18] : memref<5x10xf32, #tpu.memory_space<vmem>>, vector<5x10xf32>
    %c0_19 = arith.constant 0 : index
    %c0_20 = arith.constant 0 : index
    %16 = vector.load %arg4[%c0_19, %c0_20] : memref<1x84xf32, #tpu.memory_space<vmem>>, vector<1x84xf32>
    %c0_21 = arith.constant 0 : index
    %c0_22 = arith.constant 0 : index
    %17 = vector.load %arg7[%c0_21, %c0_22] : memref<1x80xf32, #tpu.memory_space<vmem>>, vector<1x80xf32>
    %18 = vector.extract_strided_slice %7 {offsets = [0, 0, 0], sizes = [1, 32, 96], strides = [1, 1, 1]} : vector<8x32x96xf32> to vector<1x32x96xf32>
    %19 = vector.shape_cast %18 : vector<1x32x96xf32> to vector<32x96xf32>
    %20 = vector.extract_strided_slice %19 {offsets = [0, 0], sizes = [28, 96], strides = [1, 1]} : vector<32x96xf32> to vector<28x96xf32>
    %21 = vector.extract_strided_slice %19 {offsets = [1, 0], sizes = [28, 96], strides = [1, 1]} : vector<32x96xf32> to vector<28x96xf32>
    %22 = vector.extract_strided_slice %19 {offsets = [2, 0], sizes = [28, 96], strides = [1, 1]} : vector<32x96xf32> to vector<28x96xf32>
    %23 = vector.extract_strided_slice %19 {offsets = [3, 0], sizes = [28, 96], strides = [1, 1]} : vector<32x96xf32> to vector<28x96xf32>
    %24 = vector.extract_strided_slice %19 {offsets = [4, 0], sizes = [28, 96], strides = [1, 1]} : vector<32x96xf32> to vector<28x96xf32>
    %25 = tpu.concatenate %20, %21, %22, %23, %24 in 1 : vector<28x96xf32>, vector<28x96xf32>, vector<28x96xf32>, vector<28x96xf32>, vector<28x96xf32> -> vector<28x480xf32>
    %26 = arith.truncf %25 : vector<28x480xf32> to vector<28x480xbf16>
    %cst = arith.constant dense<0.000000e+00> : vector<28x84xf32>
    %27 = tpu.matmul %26, %8, %cst {dimension_numbers = #tpu.dot_dimension_numbers<[1], [0], [0], [1], [0, 0, 1, 1], [], []>} : vector<28x480xbf16>, vector<480x84xbf16>, vector<28x84xf32> -> vector<28x84xf32>
    %cst_23 = arith.constant dense<0.000000e+00> : vector<28x84xf32>
    %28 = tpu.matmul %26, %9, %cst_23 {dimension_numbers = #tpu.dot_dimension_numbers<[1], [0], [0], [1], [0, 0, 1, 1], [], []>} : vector<28x480xbf16>, vector<480x84xbf16>, vector<28x84xf32> -> vector<28x84xf32>
    %29 = arith.maximumf %27, %28 : vector<28x84xf32>
    %cst_24 = arith.constant dense<0.000000e+00> : vector<14x84xf32>
    %30 = tpu.matmul %12, %29, %cst_24 {dimension_numbers = #tpu.dot_dimension_numbers<[1], [0], [0], [1], [0, 0, 1, 1], [], []>} : vector<14x28xf32>, vector<28x84xf32>, vector<14x84xf32> -> vector<14x84xf32>
    %cst_25 = arith.constant dense<0.000000e+00> : vector<14x84xf32>
    %31 = tpu.matmul %13, %29, %cst_25 {dimension_numbers = #tpu.dot_dimension_numbers<[1], [0], [0], [1], [0, 0, 1, 1], [], []>} : vector<14x28xf32>, vector<28x84xf32>, vector<14x84xf32> -> vector<14x84xf32>
    %32 = arith.maximumf %30, %31 : vector<14x84xf32>
    %33 = vector.broadcast %16 : vector<1x84xf32> to vector<14x84xf32>
    %34 = arith.addf %32, %33 : vector<14x84xf32>
    %cst_26 = arith.constant 0.000000e+00 : f32
    %35 = vector.broadcast %cst_26 : f32 to vector<14x84xf32>
    %36 = arith.maximumf %34, %35 : vector<14x84xf32>
    %37 = vector.extract_strided_slice %36 {offsets = [0, 0], sizes = [10, 84], strides = [1, 1]} : vector<14x84xf32> to vector<10x84xf32>
    %38 = vector.extract_strided_slice %36 {offsets = [1, 0], sizes = [10, 84], strides = [1, 1]} : vector<14x84xf32> to vector<10x84xf32>
    %39 = vector.extract_strided_slice %36 {offsets = [2, 0], sizes = [10, 84], strides = [1, 1]} : vector<14x84xf32> to vector<10x84xf32>
    %40 = vector.extract_strided_slice %36 {offsets = [3, 0], sizes = [10, 84], strides = [1, 1]} : vector<14x84xf32> to vector<10x84xf32>
    %41 = vector.extract_strided_slice %36 {offsets = [4, 0], sizes = [10, 84], strides = [1, 1]} : vector<14x84xf32> to vector<10x84xf32>
    %42 = tpu.concatenate %37, %38, %39, %40, %41 in 1 : vector<10x84xf32>, vector<10x84xf32>, vector<10x84xf32>, vector<10x84xf32>, vector<10x84xf32> -> vector<10x420xf32>
    %43 = arith.truncf %42 : vector<10x420xf32> to vector<10x420xbf16>
    %cst_27 = arith.constant dense<0.000000e+00> : vector<10x80xf32>
    %44 = tpu.matmul %43, %10, %cst_27 {dimension_numbers = #tpu.dot_dimension_numbers<[1], [0], [0], [1], [0, 0, 1, 1], [], []>} : vector<10x420xbf16>, vector<420x80xbf16>, vector<10x80xf32> -> vector<10x80xf32>
    %cst_28 = arith.constant dense<0.000000e+00> : vector<10x80xf32>
    %45 = tpu.matmul %43, %11, %cst_28 {dimension_numbers = #tpu.dot_dimension_numbers<[1], [0], [0], [1], [0, 0, 1, 1], [], []>} : vector<10x420xbf16>, vector<420x80xbf16>, vector<10x80xf32> -> vector<10x80xf32>
    %46 = arith.maximumf %44, %45 : vector<10x80xf32>
    %cst_29 = arith.constant dense<0.000000e+00> : vector<5x80xf32>
    %47 = tpu.matmul %14, %46, %cst_29 {dimension_numbers = #tpu.dot_dimension_numbers<[1], [0], [0], [1], [0, 0, 1, 1], [], []>} : vector<5x10xf32>, vector<10x80xf32>, vector<5x80xf32> -> vector<5x80xf32>
    %cst_30 = arith.constant dense<0.000000e+00> : vector<5x80xf32>
    %48 = tpu.matmul %15, %46, %cst_30 {dimension_numbers = #tpu.dot_dimension_numbers<[1], [0], [0], [1], [0, 0, 1, 1], [], []>} : vector<5x10xf32>, vector<10x80xf32>, vector<5x80xf32> -> vector<5x80xf32>
    %49 = arith.maximumf %47, %48 : vector<5x80xf32>
    %50 = vector.broadcast %17 : vector<1x80xf32> to vector<5x80xf32>
    %51 = arith.addf %49, %50 : vector<5x80xf32>
    %cst_31 = arith.constant 0.000000e+00 : f32
    %52 = vector.broadcast %cst_31 : f32 to vector<5x80xf32>
    %53 = arith.maximumf %51, %52 : vector<5x80xf32>
    %54 = vector.extract_strided_slice %53 {offsets = [0, 0], sizes = [1, 80], strides = [1, 1]} : vector<5x80xf32> to vector<1x80xf32>
    %55 = vector.extract_strided_slice %53 {offsets = [1, 0], sizes = [1, 80], strides = [1, 1]} : vector<5x80xf32> to vector<1x80xf32>
    %56 = vector.extract_strided_slice %53 {offsets = [2, 0], sizes = [1, 80], strides = [1, 1]} : vector<5x80xf32> to vector<1x80xf32>
    %57 = vector.extract_strided_slice %53 {offsets = [3, 0], sizes = [1, 80], strides = [1, 1]} : vector<5x80xf32> to vector<1x80xf32>
    %58 = vector.extract_strided_slice %53 {offsets = [4, 0], sizes = [1, 80], strides = [1, 1]} : vector<5x80xf32> to vector<1x80xf32>
    %59 = tpu.concatenate %54, %55, %56, %57, %58 in 1 : vector<1x80xf32>, vector<1x80xf32>, vector<1x80xf32>, vector<1x80xf32>, vector<1x80xf32> -> vector<1x400xf32>
    %60 = vector.extract_strided_slice %7 {offsets = [1, 0, 0], sizes = [1, 32, 96], strides = [1, 1, 1]} : vector<8x32x96xf32> to vector<1x32x96xf32>
    %61 = vector.shape_cast %60 : vector<1x32x96xf32> to vector<32x96xf32>
    %62 = vector.extract_strided_slice %61 {offsets = [0, 0], sizes = [28, 96], strides = [1, 1]} : vector<32x96xf32> to vector<28x96xf32>
    %63 = vector.extract_strided_slice %61 {offsets = [1, 0], sizes = [28, 96], strides = [1, 1]} : vector<32x96xf32> to vector<28x96xf32>
    %64 = vector.extract_strided_slice %61 {offsets = [2, 0], sizes = [28, 96], strides = [1, 1]} : vector<32x96xf32> to vector<28x96xf32>
    %65 = vector.extract_strided_slice %61 {offsets = [3, 0], sizes = [28, 96], strides = [1, 1]} : vector<32x96xf32> to vector<28x96xf32>
    %66 = vector.extract_strided_slice %61 {offsets = [4, 0], sizes = [28, 96], strides = [1, 1]} : vector<32x96xf32> to vector<28x96xf32>
    %67 = tpu.concatenate %62, %63, %64, %65, %66 in 1 : vector<28x96xf32>, vector<28x96xf32>, vector<28x96xf32>, vector<28x96xf32>, vector<28x96xf32> -> vector<28x480xf32>
    %68 = arith.truncf %67 : vector<28x480xf32> to vector<28x480xbf16>
    %cst_32 = arith.constant dense<0.000000e+00> : vector<28x84xf32>
    %69 = tpu.matmul %68, %8, %cst_32 {dimension_numbers = #tpu.dot_dimension_numbers<[1], [0], [0], [1], [0, 0, 1, 1], [], []>} : vector<28x480xbf16>, vector<480x84xbf16>, vector<28x84xf32> -> vector<28x84xf32>
    %cst_33 = arith.constant dense<0.000000e+00> : vector<28x84xf32>
    %70 = tpu.matmul %68, %9, %cst_33 {dimension_numbers = #tpu.dot_dimension_numbers<[1], [0], [0], [1], [0, 0, 1, 1], [], []>} : vector<28x480xbf16>, vector<480x84xbf16>, vector<28x84xf32> -> vector<28x84xf32>
    %71 = arith.maximumf %69, %70 : vector<28x84xf32>
    %cst_34 = arith.constant dense<0.000000e+00> : vector<14x84xf32>
    %72 = tpu.matmul %12, %71, %cst_34 {dimension_numbers = #tpu.dot_dimension_numbers<[1], [0], [0], [1], [0, 0, 1, 1], [], []>} : vector<14x28xf32>, vector<28x84xf32>, vector<14x84xf32> -> vector<14x84xf32>
    %cst_35 = arith.constant dense<0.000000e+00> : vector<14x84xf32>
    %73 = tpu.matmul %13, %71, %cst_35 {dimension_numbers = #tpu.dot_dimension_numbers<[1], [0], [0], [1], [0, 0, 1, 1], [], []>} : vector<14x28xf32>, vector<28x84xf32>, vector<14x84xf32> -> vector<14x84xf32>
    %74 = arith.maximumf %72, %73 : vector<14x84xf32>
    %75 = vector.broadcast %16 : vector<1x84xf32> to vector<14x84xf32>
    %76 = arith.addf %74, %75 : vector<14x84xf32>
    %cst_36 = arith.constant 0.000000e+00 : f32
    %77 = vector.broadcast %cst_36 : f32 to vector<14x84xf32>
    %78 = arith.maximumf %76, %77 : vector<14x84xf32>
    %79 = vector.extract_strided_slice %78 {offsets = [0, 0], sizes = [10, 84], strides = [1, 1]} : vector<14x84xf32> to vector<10x84xf32>
    %80 = vector.extract_strided_slice %78 {offsets = [1, 0], sizes = [10, 84], strides = [1, 1]} : vector<14x84xf32> to vector<10x84xf32>
    %81 = vector.extract_strided_slice %78 {offsets = [2, 0], sizes = [10, 84], strides = [1, 1]} : vector<14x84xf32> to vector<10x84xf32>
    %82 = vector.extract_strided_slice %78 {offsets = [3, 0], sizes = [10, 84], strides = [1, 1]} : vector<14x84xf32> to vector<10x84xf32>
    %83 = vector.extract_strided_slice %78 {offsets = [4, 0], sizes = [10, 84], strides = [1, 1]} : vector<14x84xf32> to vector<10x84xf32>
    %84 = tpu.concatenate %79, %80, %81, %82, %83 in 1 : vector<10x84xf32>, vector<10x84xf32>, vector<10x84xf32>, vector<10x84xf32>, vector<10x84xf32> -> vector<10x420xf32>
    %85 = arith.truncf %84 : vector<10x420xf32> to vector<10x420xbf16>
    %cst_37 = arith.constant dense<0.000000e+00> : vector<10x80xf32>
    %86 = tpu.matmul %85, %10, %cst_37 {dimension_numbers = #tpu.dot_dimension_numbers<[1], [0], [0], [1], [0, 0, 1, 1], [], []>} : vector<10x420xbf16>, vector<420x80xbf16>, vector<10x80xf32> -> vector<10x80xf32>
    %cst_38 = arith.constant dense<0.000000e+00> : vector<10x80xf32>
    %87 = tpu.matmul %85, %11, %cst_38 {dimension_numbers = #tpu.dot_dimension_numbers<[1], [0], [0], [1], [0, 0, 1, 1], [], []>} : vector<10x420xbf16>, vector<420x80xbf16>, vector<10x80xf32> -> vector<10x80xf32>
    %88 = arith.maximumf %86, %87 : vector<10x80xf32>
    %cst_39 = arith.constant dense<0.000000e+00> : vector<5x80xf32>
    %89 = tpu.matmul %14, %88, %cst_39 {dimension_numbers = #tpu.dot_dimension_numbers<[1], [0], [0], [1], [0, 0, 1, 1], [], []>} : vector<5x10xf32>, vector<10x80xf32>, vector<5x80xf32> -> vector<5x80xf32>
    %cst_40 = arith.constant dense<0.000000e+00> : vector<5x80xf32>
    %90 = tpu.matmul %15, %88, %cst_40 {dimension_numbers = #tpu.dot_dimension_numbers<[1], [0], [0], [1], [0, 0, 1, 1], [], []>} : vector<5x10xf32>, vector<10x80xf32>, vector<5x80xf32> -> vector<5x80xf32>
    %91 = arith.maximumf %89, %90 : vector<5x80xf32>
    %92 = vector.broadcast %17 : vector<1x80xf32> to vector<5x80xf32>
    %93 = arith.addf %91, %92 : vector<5x80xf32>
    %cst_41 = arith.constant 0.000000e+00 : f32
    %94 = vector.broadcast %cst_41 : f32 to vector<5x80xf32>
    %95 = arith.maximumf %93, %94 : vector<5x80xf32>
    %96 = vector.extract_strided_slice %95 {offsets = [0, 0], sizes = [1, 80], strides = [1, 1]} : vector<5x80xf32> to vector<1x80xf32>
    %97 = vector.extract_strided_slice %95 {offsets = [1, 0], sizes = [1, 80], strides = [1, 1]} : vector<5x80xf32> to vector<1x80xf32>
    %98 = vector.extract_strided_slice %95 {offsets = [2, 0], sizes = [1, 80], strides = [1, 1]} : vector<5x80xf32> to vector<1x80xf32>
    %99 = vector.extract_strided_slice %95 {offsets = [3, 0], sizes = [1, 80], strides = [1, 1]} : vector<5x80xf32> to vector<1x80xf32>
    %100 = vector.extract_strided_slice %95 {offsets = [4, 0], sizes = [1, 80], strides = [1, 1]} : vector<5x80xf32> to vector<1x80xf32>
    %101 = tpu.concatenate %96, %97, %98, %99, %100 in 1 : vector<1x80xf32>, vector<1x80xf32>, vector<1x80xf32>, vector<1x80xf32>, vector<1x80xf32> -> vector<1x400xf32>
    %102 = vector.extract_strided_slice %7 {offsets = [2, 0, 0], sizes = [1, 32, 96], strides = [1, 1, 1]} : vector<8x32x96xf32> to vector<1x32x96xf32>
    %103 = vector.shape_cast %102 : vector<1x32x96xf32> to vector<32x96xf32>
    %104 = vector.extract_strided_slice %103 {offsets = [0, 0], sizes = [28, 96], strides = [1, 1]} : vector<32x96xf32> to vector<28x96xf32>
    %105 = vector.extract_strided_slice %103 {offsets = [1, 0], sizes = [28, 96], strides = [1, 1]} : vector<32x96xf32> to vector<28x96xf32>
    %106 = vector.extract_strided_slice %103 {offsets = [2, 0], sizes = [28, 96], strides = [1, 1]} : vector<32x96xf32> to vector<28x96xf32>
    %107 = vector.extract_strided_slice %103 {offsets = [3, 0], sizes = [28, 96], strides = [1, 1]} : vector<32x96xf32> to vector<28x96xf32>
    %108 = vector.extract_strided_slice %103 {offsets = [4, 0], sizes = [28, 96], strides = [1, 1]} : vector<32x96xf32> to vector<28x96xf32>
    %109 = tpu.concatenate %104, %105, %106, %107, %108 in 1 : vector<28x96xf32>, vector<28x96xf32>, vector<28x96xf32>, vector<28x96xf32>, vector<28x96xf32> -> vector<28x480xf32>
    %110 = arith.truncf %109 : vector<28x480xf32> to vector<28x480xbf16>
    %cst_42 = arith.constant dense<0.000000e+00> : vector<28x84xf32>
    %111 = tpu.matmul %110, %8, %cst_42 {dimension_numbers = #tpu.dot_dimension_numbers<[1], [0], [0], [1], [0, 0, 1, 1], [], []>} : vector<28x480xbf16>, vector<480x84xbf16>, vector<28x84xf32> -> vector<28x84xf32>
    %cst_43 = arith.constant dense<0.000000e+00> : vector<28x84xf32>
    %112 = tpu.matmul %110, %9, %cst_43 {dimension_numbers = #tpu.dot_dimension_numbers<[1], [0], [0], [1], [0, 0, 1, 1], [], []>} : vector<28x480xbf16>, vector<480x84xbf16>, vector<28x84xf32> -> vector<28x84xf32>
    %113 = arith.maximumf %111, %112 : vector<28x84xf32>
    %cst_44 = arith.constant dense<0.000000e+00> : vector<14x84xf32>
    %114 = tpu.matmul %12, %113, %cst_44 {dimension_numbers = #tpu.dot_dimension_numbers<[1], [0], [0], [1], [0, 0, 1, 1], [], []>} : vector<14x28xf32>, vector<28x84xf32>, vector<14x84xf32> -> vector<14x84xf32>
    %cst_45 = arith.constant dense<0.000000e+00> : vector<14x84xf32>
    %115 = tpu.matmul %13, %113, %cst_45 {dimension_numbers = #tpu.dot_dimension_numbers<[1], [0], [0], [1], [0, 0, 1, 1], [], []>} : vector<14x28xf32>, vector<28x84xf32>, vector<14x84xf32> -> vector<14x84xf32>
    %116 = arith.maximumf %114, %115 : vector<14x84xf32>
    %117 = vector.broadcast %16 : vector<1x84xf32> to vector<14x84xf32>
    %118 = arith.addf %116, %117 : vector<14x84xf32>
    %cst_46 = arith.constant 0.000000e+00 : f32
    %119 = vector.broadcast %cst_46 : f32 to vector<14x84xf32>
    %120 = arith.maximumf %118, %119 : vector<14x84xf32>
    %121 = vector.extract_strided_slice %120 {offsets = [0, 0], sizes = [10, 84], strides = [1, 1]} : vector<14x84xf32> to vector<10x84xf32>
    %122 = vector.extract_strided_slice %120 {offsets = [1, 0], sizes = [10, 84], strides = [1, 1]} : vector<14x84xf32> to vector<10x84xf32>
    %123 = vector.extract_strided_slice %120 {offsets = [2, 0], sizes = [10, 84], strides = [1, 1]} : vector<14x84xf32> to vector<10x84xf32>
    %124 = vector.extract_strided_slice %120 {offsets = [3, 0], sizes = [10, 84], strides = [1, 1]} : vector<14x84xf32> to vector<10x84xf32>
    %125 = vector.extract_strided_slice %120 {offsets = [4, 0], sizes = [10, 84], strides = [1, 1]} : vector<14x84xf32> to vector<10x84xf32>
    %126 = tpu.concatenate %121, %122, %123, %124, %125 in 1 : vector<10x84xf32>, vector<10x84xf32>, vector<10x84xf32>, vector<10x84xf32>, vector<10x84xf32> -> vector<10x420xf32>
    %127 = arith.truncf %126 : vector<10x420xf32> to vector<10x420xbf16>
    %cst_47 = arith.constant dense<0.000000e+00> : vector<10x80xf32>
    %128 = tpu.matmul %127, %10, %cst_47 {dimension_numbers = #tpu.dot_dimension_numbers<[1], [0], [0], [1], [0, 0, 1, 1], [], []>} : vector<10x420xbf16>, vector<420x80xbf16>, vector<10x80xf32> -> vector<10x80xf32>
    %cst_48 = arith.constant dense<0.000000e+00> : vector<10x80xf32>
    %129 = tpu.matmul %127, %11, %cst_48 {dimension_numbers = #tpu.dot_dimension_numbers<[1], [0], [0], [1], [0, 0, 1, 1], [], []>} : vector<10x420xbf16>, vector<420x80xbf16>, vector<10x80xf32> -> vector<10x80xf32>
    %130 = arith.maximumf %128, %129 : vector<10x80xf32>
    %cst_49 = arith.constant dense<0.000000e+00> : vector<5x80xf32>
    %131 = tpu.matmul %14, %130, %cst_49 {dimension_numbers = #tpu.dot_dimension_numbers<[1], [0], [0], [1], [0, 0, 1, 1], [], []>} : vector<5x10xf32>, vector<10x80xf32>, vector<5x80xf32> -> vector<5x80xf32>
    %cst_50 = arith.constant dense<0.000000e+00> : vector<5x80xf32>
    %132 = tpu.matmul %15, %130, %cst_50 {dimension_numbers = #tpu.dot_dimension_numbers<[1], [0], [0], [1], [0, 0, 1, 1], [], []>} : vector<5x10xf32>, vector<10x80xf32>, vector<5x80xf32> -> vector<5x80xf32>
    %133 = arith.maximumf %131, %132 : vector<5x80xf32>
    %134 = vector.broadcast %17 : vector<1x80xf32> to vector<5x80xf32>
    %135 = arith.addf %133, %134 : vector<5x80xf32>
    %cst_51 = arith.constant 0.000000e+00 : f32
    %136 = vector.broadcast %cst_51 : f32 to vector<5x80xf32>
    %137 = arith.maximumf %135, %136 : vector<5x80xf32>
    %138 = vector.extract_strided_slice %137 {offsets = [0, 0], sizes = [1, 80], strides = [1, 1]} : vector<5x80xf32> to vector<1x80xf32>
    %139 = vector.extract_strided_slice %137 {offsets = [1, 0], sizes = [1, 80], strides = [1, 1]} : vector<5x80xf32> to vector<1x80xf32>
    %140 = vector.extract_strided_slice %137 {offsets = [2, 0], sizes = [1, 80], strides = [1, 1]} : vector<5x80xf32> to vector<1x80xf32>
    %141 = vector.extract_strided_slice %137 {offsets = [3, 0], sizes = [1, 80], strides = [1, 1]} : vector<5x80xf32> to vector<1x80xf32>
    %142 = vector.extract_strided_slice %137 {offsets = [4, 0], sizes = [1, 80], strides = [1, 1]} : vector<5x80xf32> to vector<1x80xf32>
    %143 = tpu.concatenate %138, %139, %140, %141, %142 in 1 : vector<1x80xf32>, vector<1x80xf32>, vector<1x80xf32>, vector<1x80xf32>, vector<1x80xf32> -> vector<1x400xf32>
    %144 = vector.extract_strided_slice %7 {offsets = [3, 0, 0], sizes = [1, 32, 96], strides = [1, 1, 1]} : vector<8x32x96xf32> to vector<1x32x96xf32>
    %145 = vector.shape_cast %144 : vector<1x32x96xf32> to vector<32x96xf32>
    %146 = vector.extract_strided_slice %145 {offsets = [0, 0], sizes = [28, 96], strides = [1, 1]} : vector<32x96xf32> to vector<28x96xf32>
    %147 = vector.extract_strided_slice %145 {offsets = [1, 0], sizes = [28, 96], strides = [1, 1]} : vector<32x96xf32> to vector<28x96xf32>
    %148 = vector.extract_strided_slice %145 {offsets = [2, 0], sizes = [28, 96], strides = [1, 1]} : vector<32x96xf32> to vector<28x96xf32>
    %149 = vector.extract_strided_slice %145 {offsets = [3, 0], sizes = [28, 96], strides = [1, 1]} : vector<32x96xf32> to vector<28x96xf32>
    %150 = vector.extract_strided_slice %145 {offsets = [4, 0], sizes = [28, 96], strides = [1, 1]} : vector<32x96xf32> to vector<28x96xf32>
    %151 = tpu.concatenate %146, %147, %148, %149, %150 in 1 : vector<28x96xf32>, vector<28x96xf32>, vector<28x96xf32>, vector<28x96xf32>, vector<28x96xf32> -> vector<28x480xf32>
    %152 = arith.truncf %151 : vector<28x480xf32> to vector<28x480xbf16>
    %cst_52 = arith.constant dense<0.000000e+00> : vector<28x84xf32>
    %153 = tpu.matmul %152, %8, %cst_52 {dimension_numbers = #tpu.dot_dimension_numbers<[1], [0], [0], [1], [0, 0, 1, 1], [], []>} : vector<28x480xbf16>, vector<480x84xbf16>, vector<28x84xf32> -> vector<28x84xf32>
    %cst_53 = arith.constant dense<0.000000e+00> : vector<28x84xf32>
    %154 = tpu.matmul %152, %9, %cst_53 {dimension_numbers = #tpu.dot_dimension_numbers<[1], [0], [0], [1], [0, 0, 1, 1], [], []>} : vector<28x480xbf16>, vector<480x84xbf16>, vector<28x84xf32> -> vector<28x84xf32>
    %155 = arith.maximumf %153, %154 : vector<28x84xf32>
    %cst_54 = arith.constant dense<0.000000e+00> : vector<14x84xf32>
    %156 = tpu.matmul %12, %155, %cst_54 {dimension_numbers = #tpu.dot_dimension_numbers<[1], [0], [0], [1], [0, 0, 1, 1], [], []>} : vector<14x28xf32>, vector<28x84xf32>, vector<14x84xf32> -> vector<14x84xf32>
    %cst_55 = arith.constant dense<0.000000e+00> : vector<14x84xf32>
    %157 = tpu.matmul %13, %155, %cst_55 {dimension_numbers = #tpu.dot_dimension_numbers<[1], [0], [0], [1], [0, 0, 1, 1], [], []>} : vector<14x28xf32>, vector<28x84xf32>, vector<14x84xf32> -> vector<14x84xf32>
    %158 = arith.maximumf %156, %157 : vector<14x84xf32>
    %159 = vector.broadcast %16 : vector<1x84xf32> to vector<14x84xf32>
    %160 = arith.addf %158, %159 : vector<14x84xf32>
    %cst_56 = arith.constant 0.000000e+00 : f32
    %161 = vector.broadcast %cst_56 : f32 to vector<14x84xf32>
    %162 = arith.maximumf %160, %161 : vector<14x84xf32>
    %163 = vector.extract_strided_slice %162 {offsets = [0, 0], sizes = [10, 84], strides = [1, 1]} : vector<14x84xf32> to vector<10x84xf32>
    %164 = vector.extract_strided_slice %162 {offsets = [1, 0], sizes = [10, 84], strides = [1, 1]} : vector<14x84xf32> to vector<10x84xf32>
    %165 = vector.extract_strided_slice %162 {offsets = [2, 0], sizes = [10, 84], strides = [1, 1]} : vector<14x84xf32> to vector<10x84xf32>
    %166 = vector.extract_strided_slice %162 {offsets = [3, 0], sizes = [10, 84], strides = [1, 1]} : vector<14x84xf32> to vector<10x84xf32>
    %167 = vector.extract_strided_slice %162 {offsets = [4, 0], sizes = [10, 84], strides = [1, 1]} : vector<14x84xf32> to vector<10x84xf32>
    %168 = tpu.concatenate %163, %164, %165, %166, %167 in 1 : vector<10x84xf32>, vector<10x84xf32>, vector<10x84xf32>, vector<10x84xf32>, vector<10x84xf32> -> vector<10x420xf32>
    %169 = arith.truncf %168 : vector<10x420xf32> to vector<10x420xbf16>
    %cst_57 = arith.constant dense<0.000000e+00> : vector<10x80xf32>
    %170 = tpu.matmul %169, %10, %cst_57 {dimension_numbers = #tpu.dot_dimension_numbers<[1], [0], [0], [1], [0, 0, 1, 1], [], []>} : vector<10x420xbf16>, vector<420x80xbf16>, vector<10x80xf32> -> vector<10x80xf32>
    %cst_58 = arith.constant dense<0.000000e+00> : vector<10x80xf32>
    %171 = tpu.matmul %169, %11, %cst_58 {dimension_numbers = #tpu.dot_dimension_numbers<[1], [0], [0], [1], [0, 0, 1, 1], [], []>} : vector<10x420xbf16>, vector<420x80xbf16>, vector<10x80xf32> -> vector<10x80xf32>
    %172 = arith.maximumf %170, %171 : vector<10x80xf32>
    %cst_59 = arith.constant dense<0.000000e+00> : vector<5x80xf32>
    %173 = tpu.matmul %14, %172, %cst_59 {dimension_numbers = #tpu.dot_dimension_numbers<[1], [0], [0], [1], [0, 0, 1, 1], [], []>} : vector<5x10xf32>, vector<10x80xf32>, vector<5x80xf32> -> vector<5x80xf32>
    %cst_60 = arith.constant dense<0.000000e+00> : vector<5x80xf32>
    %174 = tpu.matmul %15, %172, %cst_60 {dimension_numbers = #tpu.dot_dimension_numbers<[1], [0], [0], [1], [0, 0, 1, 1], [], []>} : vector<5x10xf32>, vector<10x80xf32>, vector<5x80xf32> -> vector<5x80xf32>
    %175 = arith.maximumf %173, %174 : vector<5x80xf32>
    %176 = vector.broadcast %17 : vector<1x80xf32> to vector<5x80xf32>
    %177 = arith.addf %175, %176 : vector<5x80xf32>
    %cst_61 = arith.constant 0.000000e+00 : f32
    %178 = vector.broadcast %cst_61 : f32 to vector<5x80xf32>
    %179 = arith.maximumf %177, %178 : vector<5x80xf32>
    %180 = vector.extract_strided_slice %179 {offsets = [0, 0], sizes = [1, 80], strides = [1, 1]} : vector<5x80xf32> to vector<1x80xf32>
    %181 = vector.extract_strided_slice %179 {offsets = [1, 0], sizes = [1, 80], strides = [1, 1]} : vector<5x80xf32> to vector<1x80xf32>
    %182 = vector.extract_strided_slice %179 {offsets = [2, 0], sizes = [1, 80], strides = [1, 1]} : vector<5x80xf32> to vector<1x80xf32>
    %183 = vector.extract_strided_slice %179 {offsets = [3, 0], sizes = [1, 80], strides = [1, 1]} : vector<5x80xf32> to vector<1x80xf32>
    %184 = vector.extract_strided_slice %179 {offsets = [4, 0], sizes = [1, 80], strides = [1, 1]} : vector<5x80xf32> to vector<1x80xf32>
    %185 = tpu.concatenate %180, %181, %182, %183, %184 in 1 : vector<1x80xf32>, vector<1x80xf32>, vector<1x80xf32>, vector<1x80xf32>, vector<1x80xf32> -> vector<1x400xf32>
    %186 = vector.extract_strided_slice %7 {offsets = [4, 0, 0], sizes = [1, 32, 96], strides = [1, 1, 1]} : vector<8x32x96xf32> to vector<1x32x96xf32>
    %187 = vector.shape_cast %186 : vector<1x32x96xf32> to vector<32x96xf32>
    %188 = vector.extract_strided_slice %187 {offsets = [0, 0], sizes = [28, 96], strides = [1, 1]} : vector<32x96xf32> to vector<28x96xf32>
    %189 = vector.extract_strided_slice %187 {offsets = [1, 0], sizes = [28, 96], strides = [1, 1]} : vector<32x96xf32> to vector<28x96xf32>
    %190 = vector.extract_strided_slice %187 {offsets = [2, 0], sizes = [28, 96], strides = [1, 1]} : vector<32x96xf32> to vector<28x96xf32>
    %191 = vector.extract_strided_slice %187 {offsets = [3, 0], sizes = [28, 96], strides = [1, 1]} : vector<32x96xf32> to vector<28x96xf32>
    %192 = vector.extract_strided_slice %187 {offsets = [4, 0], sizes = [28, 96], strides = [1, 1]} : vector<32x96xf32> to vector<28x96xf32>
    %193 = tpu.concatenate %188, %189, %190, %191, %192 in 1 : vector<28x96xf32>, vector<28x96xf32>, vector<28x96xf32>, vector<28x96xf32>, vector<28x96xf32> -> vector<28x480xf32>
    %194 = arith.truncf %193 : vector<28x480xf32> to vector<28x480xbf16>
    %cst_62 = arith.constant dense<0.000000e+00> : vector<28x84xf32>
    %195 = tpu.matmul %194, %8, %cst_62 {dimension_numbers = #tpu.dot_dimension_numbers<[1], [0], [0], [1], [0, 0, 1, 1], [], []>} : vector<28x480xbf16>, vector<480x84xbf16>, vector<28x84xf32> -> vector<28x84xf32>
    %cst_63 = arith.constant dense<0.000000e+00> : vector<28x84xf32>
    %196 = tpu.matmul %194, %9, %cst_63 {dimension_numbers = #tpu.dot_dimension_numbers<[1], [0], [0], [1], [0, 0, 1, 1], [], []>} : vector<28x480xbf16>, vector<480x84xbf16>, vector<28x84xf32> -> vector<28x84xf32>
    %197 = arith.maximumf %195, %196 : vector<28x84xf32>
    %cst_64 = arith.constant dense<0.000000e+00> : vector<14x84xf32>
    %198 = tpu.matmul %12, %197, %cst_64 {dimension_numbers = #tpu.dot_dimension_numbers<[1], [0], [0], [1], [0, 0, 1, 1], [], []>} : vector<14x28xf32>, vector<28x84xf32>, vector<14x84xf32> -> vector<14x84xf32>
    %cst_65 = arith.constant dense<0.000000e+00> : vector<14x84xf32>
    %199 = tpu.matmul %13, %197, %cst_65 {dimension_numbers = #tpu.dot_dimension_numbers<[1], [0], [0], [1], [0, 0, 1, 1], [], []>} : vector<14x28xf32>, vector<28x84xf32>, vector<14x84xf32> -> vector<14x84xf32>
    %200 = arith.maximumf %198, %199 : vector<14x84xf32>
    %201 = vector.broadcast %16 : vector<1x84xf32> to vector<14x84xf32>
    %202 = arith.addf %200, %201 : vector<14x84xf32>
    %cst_66 = arith.constant 0.000000e+00 : f32
    %203 = vector.broadcast %cst_66 : f32 to vector<14x84xf32>
    %204 = arith.maximumf %202, %203 : vector<14x84xf32>
    %205 = vector.extract_strided_slice %204 {offsets = [0, 0], sizes = [10, 84], strides = [1, 1]} : vector<14x84xf32> to vector<10x84xf32>
    %206 = vector.extract_strided_slice %204 {offsets = [1, 0], sizes = [10, 84], strides = [1, 1]} : vector<14x84xf32> to vector<10x84xf32>
    %207 = vector.extract_strided_slice %204 {offsets = [2, 0], sizes = [10, 84], strides = [1, 1]} : vector<14x84xf32> to vector<10x84xf32>
    %208 = vector.extract_strided_slice %204 {offsets = [3, 0], sizes = [10, 84], strides = [1, 1]} : vector<14x84xf32> to vector<10x84xf32>
    %209 = vector.extract_strided_slice %204 {offsets = [4, 0], sizes = [10, 84], strides = [1, 1]} : vector<14x84xf32> to vector<10x84xf32>
    %210 = tpu.concatenate %205, %206, %207, %208, %209 in 1 : vector<10x84xf32>, vector<10x84xf32>, vector<10x84xf32>, vector<10x84xf32>, vector<10x84xf32> -> vector<10x420xf32>
    %211 = arith.truncf %210 : vector<10x420xf32> to vector<10x420xbf16>
    %cst_67 = arith.constant dense<0.000000e+00> : vector<10x80xf32>
    %212 = tpu.matmul %211, %10, %cst_67 {dimension_numbers = #tpu.dot_dimension_numbers<[1], [0], [0], [1], [0, 0, 1, 1], [], []>} : vector<10x420xbf16>, vector<420x80xbf16>, vector<10x80xf32> -> vector<10x80xf32>
    %cst_68 = arith.constant dense<0.000000e+00> : vector<10x80xf32>
    %213 = tpu.matmul %211, %11, %cst_68 {dimension_numbers = #tpu.dot_dimension_numbers<[1], [0], [0], [1], [0, 0, 1, 1], [], []>} : vector<10x420xbf16>, vector<420x80xbf16>, vector<10x80xf32> -> vector<10x80xf32>
    %214 = arith.maximumf %212, %213 : vector<10x80xf32>
    %cst_69 = arith.constant dense<0.000000e+00> : vector<5x80xf32>
    %215 = tpu.matmul %14, %214, %cst_69 {dimension_numbers = #tpu.dot_dimension_numbers<[1], [0], [0], [1], [0, 0, 1, 1], [], []>} : vector<5x10xf32>, vector<10x80xf32>, vector<5x80xf32> -> vector<5x80xf32>
    %cst_70 = arith.constant dense<0.000000e+00> : vector<5x80xf32>
    %216 = tpu.matmul %15, %214, %cst_70 {dimension_numbers = #tpu.dot_dimension_numbers<[1], [0], [0], [1], [0, 0, 1, 1], [], []>} : vector<5x10xf32>, vector<10x80xf32>, vector<5x80xf32> -> vector<5x80xf32>
    %217 = arith.maximumf %215, %216 : vector<5x80xf32>
    %218 = vector.broadcast %17 : vector<1x80xf32> to vector<5x80xf32>
    %219 = arith.addf %217, %218 : vector<5x80xf32>
    %cst_71 = arith.constant 0.000000e+00 : f32
    %220 = vector.broadcast %cst_71 : f32 to vector<5x80xf32>
    %221 = arith.maximumf %219, %220 : vector<5x80xf32>
    %222 = vector.extract_strided_slice %221 {offsets = [0, 0], sizes = [1, 80], strides = [1, 1]} : vector<5x80xf32> to vector<1x80xf32>
    %223 = vector.extract_strided_slice %221 {offsets = [1, 0], sizes = [1, 80], strides = [1, 1]} : vector<5x80xf32> to vector<1x80xf32>
    %224 = vector.extract_strided_slice %221 {offsets = [2, 0], sizes = [1, 80], strides = [1, 1]} : vector<5x80xf32> to vector<1x80xf32>
    %225 = vector.extract_strided_slice %221 {offsets = [3, 0], sizes = [1, 80], strides = [1, 1]} : vector<5x80xf32> to vector<1x80xf32>
    %226 = vector.extract_strided_slice %221 {offsets = [4, 0], sizes = [1, 80], strides = [1, 1]} : vector<5x80xf32> to vector<1x80xf32>
    %227 = tpu.concatenate %222, %223, %224, %225, %226 in 1 : vector<1x80xf32>, vector<1x80xf32>, vector<1x80xf32>, vector<1x80xf32>, vector<1x80xf32> -> vector<1x400xf32>
    %228 = vector.extract_strided_slice %7 {offsets = [5, 0, 0], sizes = [1, 32, 96], strides = [1, 1, 1]} : vector<8x32x96xf32> to vector<1x32x96xf32>
    %229 = vector.shape_cast %228 : vector<1x32x96xf32> to vector<32x96xf32>
    %230 = vector.extract_strided_slice %229 {offsets = [0, 0], sizes = [28, 96], strides = [1, 1]} : vector<32x96xf32> to vector<28x96xf32>
    %231 = vector.extract_strided_slice %229 {offsets = [1, 0], sizes = [28, 96], strides = [1, 1]} : vector<32x96xf32> to vector<28x96xf32>
    %232 = vector.extract_strided_slice %229 {offsets = [2, 0], sizes = [28, 96], strides = [1, 1]} : vector<32x96xf32> to vector<28x96xf32>
    %233 = vector.extract_strided_slice %229 {offsets = [3, 0], sizes = [28, 96], strides = [1, 1]} : vector<32x96xf32> to vector<28x96xf32>
    %234 = vector.extract_strided_slice %229 {offsets = [4, 0], sizes = [28, 96], strides = [1, 1]} : vector<32x96xf32> to vector<28x96xf32>
    %235 = tpu.concatenate %230, %231, %232, %233, %234 in 1 : vector<28x96xf32>, vector<28x96xf32>, vector<28x96xf32>, vector<28x96xf32>, vector<28x96xf32> -> vector<28x480xf32>
    %236 = arith.truncf %235 : vector<28x480xf32> to vector<28x480xbf16>
    %cst_72 = arith.constant dense<0.000000e+00> : vector<28x84xf32>
    %237 = tpu.matmul %236, %8, %cst_72 {dimension_numbers = #tpu.dot_dimension_numbers<[1], [0], [0], [1], [0, 0, 1, 1], [], []>} : vector<28x480xbf16>, vector<480x84xbf16>, vector<28x84xf32> -> vector<28x84xf32>
    %cst_73 = arith.constant dense<0.000000e+00> : vector<28x84xf32>
    %238 = tpu.matmul %236, %9, %cst_73 {dimension_numbers = #tpu.dot_dimension_numbers<[1], [0], [0], [1], [0, 0, 1, 1], [], []>} : vector<28x480xbf16>, vector<480x84xbf16>, vector<28x84xf32> -> vector<28x84xf32>
    %239 = arith.maximumf %237, %238 : vector<28x84xf32>
    %cst_74 = arith.constant dense<0.000000e+00> : vector<14x84xf32>
    %240 = tpu.matmul %12, %239, %cst_74 {dimension_numbers = #tpu.dot_dimension_numbers<[1], [0], [0], [1], [0, 0, 1, 1], [], []>} : vector<14x28xf32>, vector<28x84xf32>, vector<14x84xf32> -> vector<14x84xf32>
    %cst_75 = arith.constant dense<0.000000e+00> : vector<14x84xf32>
    %241 = tpu.matmul %13, %239, %cst_75 {dimension_numbers = #tpu.dot_dimension_numbers<[1], [0], [0], [1], [0, 0, 1, 1], [], []>} : vector<14x28xf32>, vector<28x84xf32>, vector<14x84xf32> -> vector<14x84xf32>
    %242 = arith.maximumf %240, %241 : vector<14x84xf32>
    %243 = vector.broadcast %16 : vector<1x84xf32> to vector<14x84xf32>
    %244 = arith.addf %242, %243 : vector<14x84xf32>
    %cst_76 = arith.constant 0.000000e+00 : f32
    %245 = vector.broadcast %cst_76 : f32 to vector<14x84xf32>
    %246 = arith.maximumf %244, %245 : vector<14x84xf32>
    %247 = vector.extract_strided_slice %246 {offsets = [0, 0], sizes = [10, 84], strides = [1, 1]} : vector<14x84xf32> to vector<10x84xf32>
    %248 = vector.extract_strided_slice %246 {offsets = [1, 0], sizes = [10, 84], strides = [1, 1]} : vector<14x84xf32> to vector<10x84xf32>
    %249 = vector.extract_strided_slice %246 {offsets = [2, 0], sizes = [10, 84], strides = [1, 1]} : vector<14x84xf32> to vector<10x84xf32>
    %250 = vector.extract_strided_slice %246 {offsets = [3, 0], sizes = [10, 84], strides = [1, 1]} : vector<14x84xf32> to vector<10x84xf32>
    %251 = vector.extract_strided_slice %246 {offsets = [4, 0], sizes = [10, 84], strides = [1, 1]} : vector<14x84xf32> to vector<10x84xf32>
    %252 = tpu.concatenate %247, %248, %249, %250, %251 in 1 : vector<10x84xf32>, vector<10x84xf32>, vector<10x84xf32>, vector<10x84xf32>, vector<10x84xf32> -> vector<10x420xf32>
    %253 = arith.truncf %252 : vector<10x420xf32> to vector<10x420xbf16>
    %cst_77 = arith.constant dense<0.000000e+00> : vector<10x80xf32>
    %254 = tpu.matmul %253, %10, %cst_77 {dimension_numbers = #tpu.dot_dimension_numbers<[1], [0], [0], [1], [0, 0, 1, 1], [], []>} : vector<10x420xbf16>, vector<420x80xbf16>, vector<10x80xf32> -> vector<10x80xf32>
    %cst_78 = arith.constant dense<0.000000e+00> : vector<10x80xf32>
    %255 = tpu.matmul %253, %11, %cst_78 {dimension_numbers = #tpu.dot_dimension_numbers<[1], [0], [0], [1], [0, 0, 1, 1], [], []>} : vector<10x420xbf16>, vector<420x80xbf16>, vector<10x80xf32> -> vector<10x80xf32>
    %256 = arith.maximumf %254, %255 : vector<10x80xf32>
    %cst_79 = arith.constant dense<0.000000e+00> : vector<5x80xf32>
    %257 = tpu.matmul %14, %256, %cst_79 {dimension_numbers = #tpu.dot_dimension_numbers<[1], [0], [0], [1], [0, 0, 1, 1], [], []>} : vector<5x10xf32>, vector<10x80xf32>, vector<5x80xf32> -> vector<5x80xf32>
    %cst_80 = arith.constant dense<0.000000e+00> : vector<5x80xf32>
    %258 = tpu.matmul %15, %256, %cst_80 {dimension_numbers = #tpu.dot_dimension_numbers<[1], [0], [0], [1], [0, 0, 1, 1], [], []>} : vector<5x10xf32>, vector<10x80xf32>, vector<5x80xf32> -> vector<5x80xf32>
    %259 = arith.maximumf %257, %258 : vector<5x80xf32>
    %260 = vector.broadcast %17 : vector<1x80xf32> to vector<5x80xf32>
    %261 = arith.addf %259, %260 : vector<5x80xf32>
    %cst_81 = arith.constant 0.000000e+00 : f32
    %262 = vector.broadcast %cst_81 : f32 to vector<5x80xf32>
    %263 = arith.maximumf %261, %262 : vector<5x80xf32>
    %264 = vector.extract_strided_slice %263 {offsets = [0, 0], sizes = [1, 80], strides = [1, 1]} : vector<5x80xf32> to vector<1x80xf32>
    %265 = vector.extract_strided_slice %263 {offsets = [1, 0], sizes = [1, 80], strides = [1, 1]} : vector<5x80xf32> to vector<1x80xf32>
    %266 = vector.extract_strided_slice %263 {offsets = [2, 0], sizes = [1, 80], strides = [1, 1]} : vector<5x80xf32> to vector<1x80xf32>
    %267 = vector.extract_strided_slice %263 {offsets = [3, 0], sizes = [1, 80], strides = [1, 1]} : vector<5x80xf32> to vector<1x80xf32>
    %268 = vector.extract_strided_slice %263 {offsets = [4, 0], sizes = [1, 80], strides = [1, 1]} : vector<5x80xf32> to vector<1x80xf32>
    %269 = tpu.concatenate %264, %265, %266, %267, %268 in 1 : vector<1x80xf32>, vector<1x80xf32>, vector<1x80xf32>, vector<1x80xf32>, vector<1x80xf32> -> vector<1x400xf32>
    %270 = vector.extract_strided_slice %7 {offsets = [6, 0, 0], sizes = [1, 32, 96], strides = [1, 1, 1]} : vector<8x32x96xf32> to vector<1x32x96xf32>
    %271 = vector.shape_cast %270 : vector<1x32x96xf32> to vector<32x96xf32>
    %272 = vector.extract_strided_slice %271 {offsets = [0, 0], sizes = [28, 96], strides = [1, 1]} : vector<32x96xf32> to vector<28x96xf32>
    %273 = vector.extract_strided_slice %271 {offsets = [1, 0], sizes = [28, 96], strides = [1, 1]} : vector<32x96xf32> to vector<28x96xf32>
    %274 = vector.extract_strided_slice %271 {offsets = [2, 0], sizes = [28, 96], strides = [1, 1]} : vector<32x96xf32> to vector<28x96xf32>
    %275 = vector.extract_strided_slice %271 {offsets = [3, 0], sizes = [28, 96], strides = [1, 1]} : vector<32x96xf32> to vector<28x96xf32>
    %276 = vector.extract_strided_slice %271 {offsets = [4, 0], sizes = [28, 96], strides = [1, 1]} : vector<32x96xf32> to vector<28x96xf32>
    %277 = tpu.concatenate %272, %273, %274, %275, %276 in 1 : vector<28x96xf32>, vector<28x96xf32>, vector<28x96xf32>, vector<28x96xf32>, vector<28x96xf32> -> vector<28x480xf32>
    %278 = arith.truncf %277 : vector<28x480xf32> to vector<28x480xbf16>
    %cst_82 = arith.constant dense<0.000000e+00> : vector<28x84xf32>
    %279 = tpu.matmul %278, %8, %cst_82 {dimension_numbers = #tpu.dot_dimension_numbers<[1], [0], [0], [1], [0, 0, 1, 1], [], []>} : vector<28x480xbf16>, vector<480x84xbf16>, vector<28x84xf32> -> vector<28x84xf32>
    %cst_83 = arith.constant dense<0.000000e+00> : vector<28x84xf32>
    %280 = tpu.matmul %278, %9, %cst_83 {dimension_numbers = #tpu.dot_dimension_numbers<[1], [0], [0], [1], [0, 0, 1, 1], [], []>} : vector<28x480xbf16>, vector<480x84xbf16>, vector<28x84xf32> -> vector<28x84xf32>
    %281 = arith.maximumf %279, %280 : vector<28x84xf32>
    %cst_84 = arith.constant dense<0.000000e+00> : vector<14x84xf32>
    %282 = tpu.matmul %12, %281, %cst_84 {dimension_numbers = #tpu.dot_dimension_numbers<[1], [0], [0], [1], [0, 0, 1, 1], [], []>} : vector<14x28xf32>, vector<28x84xf32>, vector<14x84xf32> -> vector<14x84xf32>
    %cst_85 = arith.constant dense<0.000000e+00> : vector<14x84xf32>
    %283 = tpu.matmul %13, %281, %cst_85 {dimension_numbers = #tpu.dot_dimension_numbers<[1], [0], [0], [1], [0, 0, 1, 1], [], []>} : vector<14x28xf32>, vector<28x84xf32>, vector<14x84xf32> -> vector<14x84xf32>
    %284 = arith.maximumf %282, %283 : vector<14x84xf32>
    %285 = vector.broadcast %16 : vector<1x84xf32> to vector<14x84xf32>
    %286 = arith.addf %284, %285 : vector<14x84xf32>
    %cst_86 = arith.constant 0.000000e+00 : f32
    %287 = vector.broadcast %cst_86 : f32 to vector<14x84xf32>
    %288 = arith.maximumf %286, %287 : vector<14x84xf32>
    %289 = vector.extract_strided_slice %288 {offsets = [0, 0], sizes = [10, 84], strides = [1, 1]} : vector<14x84xf32> to vector<10x84xf32>
    %290 = vector.extract_strided_slice %288 {offsets = [1, 0], sizes = [10, 84], strides = [1, 1]} : vector<14x84xf32> to vector<10x84xf32>
    %291 = vector.extract_strided_slice %288 {offsets = [2, 0], sizes = [10, 84], strides = [1, 1]} : vector<14x84xf32> to vector<10x84xf32>
    %292 = vector.extract_strided_slice %288 {offsets = [3, 0], sizes = [10, 84], strides = [1, 1]} : vector<14x84xf32> to vector<10x84xf32>
    %293 = vector.extract_strided_slice %288 {offsets = [4, 0], sizes = [10, 84], strides = [1, 1]} : vector<14x84xf32> to vector<10x84xf32>
    %294 = tpu.concatenate %289, %290, %291, %292, %293 in 1 : vector<10x84xf32>, vector<10x84xf32>, vector<10x84xf32>, vector<10x84xf32>, vector<10x84xf32> -> vector<10x420xf32>
    %295 = arith.truncf %294 : vector<10x420xf32> to vector<10x420xbf16>
    %cst_87 = arith.constant dense<0.000000e+00> : vector<10x80xf32>
    %296 = tpu.matmul %295, %10, %cst_87 {dimension_numbers = #tpu.dot_dimension_numbers<[1], [0], [0], [1], [0, 0, 1, 1], [], []>} : vector<10x420xbf16>, vector<420x80xbf16>, vector<10x80xf32> -> vector<10x80xf32>
    %cst_88 = arith.constant dense<0.000000e+00> : vector<10x80xf32>
    %297 = tpu.matmul %295, %11, %cst_88 {dimension_numbers = #tpu.dot_dimension_numbers<[1], [0], [0], [1], [0, 0, 1, 1], [], []>} : vector<10x420xbf16>, vector<420x80xbf16>, vector<10x80xf32> -> vector<10x80xf32>
    %298 = arith.maximumf %296, %297 : vector<10x80xf32>
    %cst_89 = arith.constant dense<0.000000e+00> : vector<5x80xf32>
    %299 = tpu.matmul %14, %298, %cst_89 {dimension_numbers = #tpu.dot_dimension_numbers<[1], [0], [0], [1], [0, 0, 1, 1], [], []>} : vector<5x10xf32>, vector<10x80xf32>, vector<5x80xf32> -> vector<5x80xf32>
    %cst_90 = arith.constant dense<0.000000e+00> : vector<5x80xf32>
    %300 = tpu.matmul %15, %298, %cst_90 {dimension_numbers = #tpu.dot_dimension_numbers<[1], [0], [0], [1], [0, 0, 1, 1], [], []>} : vector<5x10xf32>, vector<10x80xf32>, vector<5x80xf32> -> vector<5x80xf32>
    %301 = arith.maximumf %299, %300 : vector<5x80xf32>
    %302 = vector.broadcast %17 : vector<1x80xf32> to vector<5x80xf32>
    %303 = arith.addf %301, %302 : vector<5x80xf32>
    %cst_91 = arith.constant 0.000000e+00 : f32
    %304 = vector.broadcast %cst_91 : f32 to vector<5x80xf32>
    %305 = arith.maximumf %303, %304 : vector<5x80xf32>
    %306 = vector.extract_strided_slice %305 {offsets = [0, 0], sizes = [1, 80], strides = [1, 1]} : vector<5x80xf32> to vector<1x80xf32>
    %307 = vector.extract_strided_slice %305 {offsets = [1, 0], sizes = [1, 80], strides = [1, 1]} : vector<5x80xf32> to vector<1x80xf32>
    %308 = vector.extract_strided_slice %305 {offsets = [2, 0], sizes = [1, 80], strides = [1, 1]} : vector<5x80xf32> to vector<1x80xf32>
    %309 = vector.extract_strided_slice %305 {offsets = [3, 0], sizes = [1, 80], strides = [1, 1]} : vector<5x80xf32> to vector<1x80xf32>
    %310 = vector.extract_strided_slice %305 {offsets = [4, 0], sizes = [1, 80], strides = [1, 1]} : vector<5x80xf32> to vector<1x80xf32>
    %311 = tpu.concatenate %306, %307, %308, %309, %310 in 1 : vector<1x80xf32>, vector<1x80xf32>, vector<1x80xf32>, vector<1x80xf32>, vector<1x80xf32> -> vector<1x400xf32>
    %312 = vector.extract_strided_slice %7 {offsets = [7, 0, 0], sizes = [1, 32, 96], strides = [1, 1, 1]} : vector<8x32x96xf32> to vector<1x32x96xf32>
    %313 = vector.shape_cast %312 : vector<1x32x96xf32> to vector<32x96xf32>
    %314 = vector.extract_strided_slice %313 {offsets = [0, 0], sizes = [28, 96], strides = [1, 1]} : vector<32x96xf32> to vector<28x96xf32>
    %315 = vector.extract_strided_slice %313 {offsets = [1, 0], sizes = [28, 96], strides = [1, 1]} : vector<32x96xf32> to vector<28x96xf32>
    %316 = vector.extract_strided_slice %313 {offsets = [2, 0], sizes = [28, 96], strides = [1, 1]} : vector<32x96xf32> to vector<28x96xf32>
    %317 = vector.extract_strided_slice %313 {offsets = [3, 0], sizes = [28, 96], strides = [1, 1]} : vector<32x96xf32> to vector<28x96xf32>
    %318 = vector.extract_strided_slice %313 {offsets = [4, 0], sizes = [28, 96], strides = [1, 1]} : vector<32x96xf32> to vector<28x96xf32>
    %319 = tpu.concatenate %314, %315, %316, %317, %318 in 1 : vector<28x96xf32>, vector<28x96xf32>, vector<28x96xf32>, vector<28x96xf32>, vector<28x96xf32> -> vector<28x480xf32>
    %320 = arith.truncf %319 : vector<28x480xf32> to vector<28x480xbf16>
    %cst_92 = arith.constant dense<0.000000e+00> : vector<28x84xf32>
    %321 = tpu.matmul %320, %8, %cst_92 {dimension_numbers = #tpu.dot_dimension_numbers<[1], [0], [0], [1], [0, 0, 1, 1], [], []>} : vector<28x480xbf16>, vector<480x84xbf16>, vector<28x84xf32> -> vector<28x84xf32>
    %cst_93 = arith.constant dense<0.000000e+00> : vector<28x84xf32>
    %322 = tpu.matmul %320, %9, %cst_93 {dimension_numbers = #tpu.dot_dimension_numbers<[1], [0], [0], [1], [0, 0, 1, 1], [], []>} : vector<28x480xbf16>, vector<480x84xbf16>, vector<28x84xf32> -> vector<28x84xf32>
    %323 = arith.maximumf %321, %322 : vector<28x84xf32>
    %cst_94 = arith.constant dense<0.000000e+00> : vector<14x84xf32>
    %324 = tpu.matmul %12, %323, %cst_94 {dimension_numbers = #tpu.dot_dimension_numbers<[1], [0], [0], [1], [0, 0, 1, 1], [], []>} : vector<14x28xf32>, vector<28x84xf32>, vector<14x84xf32> -> vector<14x84xf32>
    %cst_95 = arith.constant dense<0.000000e+00> : vector<14x84xf32>
    %325 = tpu.matmul %13, %323, %cst_95 {dimension_numbers = #tpu.dot_dimension_numbers<[1], [0], [0], [1], [0, 0, 1, 1], [], []>} : vector<14x28xf32>, vector<28x84xf32>, vector<14x84xf32> -> vector<14x84xf32>
    %326 = arith.maximumf %324, %325 : vector<14x84xf32>
    %327 = vector.broadcast %16 : vector<1x84xf32> to vector<14x84xf32>
    %328 = arith.addf %326, %327 : vector<14x84xf32>
    %cst_96 = arith.constant 0.000000e+00 : f32
    %329 = vector.broadcast %cst_96 : f32 to vector<14x84xf32>
    %330 = arith.maximumf %328, %329 : vector<14x84xf32>
    %331 = vector.extract_strided_slice %330 {offsets = [0, 0], sizes = [10, 84], strides = [1, 1]} : vector<14x84xf32> to vector<10x84xf32>
    %332 = vector.extract_strided_slice %330 {offsets = [1, 0], sizes = [10, 84], strides = [1, 1]} : vector<14x84xf32> to vector<10x84xf32>
    %333 = vector.extract_strided_slice %330 {offsets = [2, 0], sizes = [10, 84], strides = [1, 1]} : vector<14x84xf32> to vector<10x84xf32>
    %334 = vector.extract_strided_slice %330 {offsets = [3, 0], sizes = [10, 84], strides = [1, 1]} : vector<14x84xf32> to vector<10x84xf32>
    %335 = vector.extract_strided_slice %330 {offsets = [4, 0], sizes = [10, 84], strides = [1, 1]} : vector<14x84xf32> to vector<10x84xf32>
    %336 = tpu.concatenate %331, %332, %333, %334, %335 in 1 : vector<10x84xf32>, vector<10x84xf32>, vector<10x84xf32>, vector<10x84xf32>, vector<10x84xf32> -> vector<10x420xf32>
    %337 = arith.truncf %336 : vector<10x420xf32> to vector<10x420xbf16>
    %cst_97 = arith.constant dense<0.000000e+00> : vector<10x80xf32>
    %338 = tpu.matmul %337, %10, %cst_97 {dimension_numbers = #tpu.dot_dimension_numbers<[1], [0], [0], [1], [0, 0, 1, 1], [], []>} : vector<10x420xbf16>, vector<420x80xbf16>, vector<10x80xf32> -> vector<10x80xf32>
    %cst_98 = arith.constant dense<0.000000e+00> : vector<10x80xf32>
    %339 = tpu.matmul %337, %11, %cst_98 {dimension_numbers = #tpu.dot_dimension_numbers<[1], [0], [0], [1], [0, 0, 1, 1], [], []>} : vector<10x420xbf16>, vector<420x80xbf16>, vector<10x80xf32> -> vector<10x80xf32>
    %340 = arith.maximumf %338, %339 : vector<10x80xf32>
    %cst_99 = arith.constant dense<0.000000e+00> : vector<5x80xf32>
    %341 = tpu.matmul %14, %340, %cst_99 {dimension_numbers = #tpu.dot_dimension_numbers<[1], [0], [0], [1], [0, 0, 1, 1], [], []>} : vector<5x10xf32>, vector<10x80xf32>, vector<5x80xf32> -> vector<5x80xf32>
    %cst_100 = arith.constant dense<0.000000e+00> : vector<5x80xf32>
    %342 = tpu.matmul %15, %340, %cst_100 {dimension_numbers = #tpu.dot_dimension_numbers<[1], [0], [0], [1], [0, 0, 1, 1], [], []>} : vector<5x10xf32>, vector<10x80xf32>, vector<5x80xf32> -> vector<5x80xf32>
    %343 = arith.maximumf %341, %342 : vector<5x80xf32>
    %344 = vector.broadcast %17 : vector<1x80xf32> to vector<5x80xf32>
    %345 = arith.addf %343, %344 : vector<5x80xf32>
    %cst_101 = arith.constant 0.000000e+00 : f32
    %346 = vector.broadcast %cst_101 : f32 to vector<5x80xf32>
    %347 = arith.maximumf %345, %346 : vector<5x80xf32>
    %348 = vector.extract_strided_slice %347 {offsets = [0, 0], sizes = [1, 80], strides = [1, 1]} : vector<5x80xf32> to vector<1x80xf32>
    %349 = vector.extract_strided_slice %347 {offsets = [1, 0], sizes = [1, 80], strides = [1, 1]} : vector<5x80xf32> to vector<1x80xf32>
    %350 = vector.extract_strided_slice %347 {offsets = [2, 0], sizes = [1, 80], strides = [1, 1]} : vector<5x80xf32> to vector<1x80xf32>
    %351 = vector.extract_strided_slice %347 {offsets = [3, 0], sizes = [1, 80], strides = [1, 1]} : vector<5x80xf32> to vector<1x80xf32>
    %352 = vector.extract_strided_slice %347 {offsets = [4, 0], sizes = [1, 80], strides = [1, 1]} : vector<5x80xf32> to vector<1x80xf32>
    %353 = tpu.concatenate %348, %349, %350, %351, %352 in 1 : vector<1x80xf32>, vector<1x80xf32>, vector<1x80xf32>, vector<1x80xf32>, vector<1x80xf32> -> vector<1x400xf32>
    %354 = tpu.concatenate %59, %101, %143, %185, %227, %269, %311, %353 in 0 : vector<1x400xf32>, vector<1x400xf32>, vector<1x400xf32>, vector<1x400xf32>, vector<1x400xf32>, vector<1x400xf32>, vector<1x400xf32>, vector<1x400xf32> -> vector<8x400xf32>
    %355 = arith.truncf %354 : vector<8x400xf32> to vector<8x400xbf16>
    %c0_102 = arith.constant 0 : index
    %c0_103 = arith.constant 0 : index
    %356 = vector.load %arg8[%c0_102, %c0_103] : memref<400x120xbf16, #tpu.memory_space<vmem>>, vector<400x120xbf16>
    %cst_104 = arith.constant dense<0.000000e+00> : vector<8x120xf32>
    %357 = tpu.matmul %355, %356, %cst_104 {dimension_numbers = #tpu.dot_dimension_numbers<[1], [0], [0], [1], [0, 0, 1, 1], [], []>} : vector<8x400xbf16>, vector<400x120xbf16>, vector<8x120xf32> -> vector<8x120xf32>
    %c0_105 = arith.constant 0 : index
    %c0_106 = arith.constant 0 : index
    %358 = vector.load %arg9[%c0_105, %c0_106] : memref<1x120xf32, #tpu.memory_space<vmem>>, vector<1x120xf32>
    %359 = vector.broadcast %358 : vector<1x120xf32> to vector<8x120xf32>
    %360 = arith.addf %357, %359 : vector<8x120xf32>
    %cst_107 = arith.constant 0.000000e+00 : f32
    %361 = vector.broadcast %cst_107 : f32 to vector<8x120xf32>
    %362 = arith.maximumf %360, %361 : vector<8x120xf32>
    %363 = arith.truncf %362 : vector<8x120xf32> to vector<8x120xbf16>
    %c0_108 = arith.constant 0 : index
    %c0_109 = arith.constant 0 : index
    %364 = vector.load %arg10[%c0_108, %c0_109] : memref<120x84xbf16, #tpu.memory_space<vmem>>, vector<120x84xbf16>
    %cst_110 = arith.constant dense<0.000000e+00> : vector<8x84xf32>
    %365 = tpu.matmul %363, %364, %cst_110 {dimension_numbers = #tpu.dot_dimension_numbers<[1], [0], [0], [1], [0, 0, 1, 1], [], []>} : vector<8x120xbf16>, vector<120x84xbf16>, vector<8x84xf32> -> vector<8x84xf32>
    %c0_111 = arith.constant 0 : index
    %c0_112 = arith.constant 0 : index
    %366 = vector.load %arg11[%c0_111, %c0_112] : memref<1x84xf32, #tpu.memory_space<vmem>>, vector<1x84xf32>
    %367 = vector.broadcast %366 : vector<1x84xf32> to vector<8x84xf32>
    %368 = arith.addf %365, %367 : vector<8x84xf32>
    %cst_113 = arith.constant 0.000000e+00 : f32
    %369 = vector.broadcast %cst_113 : f32 to vector<8x84xf32>
    %370 = arith.maximumf %368, %369 : vector<8x84xf32>
    %371 = arith.truncf %370 : vector<8x84xf32> to vector<8x84xbf16>
    %c0_114 = arith.constant 0 : index
    %c0_115 = arith.constant 0 : index
    %372 = vector.load %arg12[%c0_114, %c0_115] : memref<84x15xbf16, #tpu.memory_space<vmem>>, vector<84x15xbf16>
    %cst_116 = arith.constant dense<0.000000e+00> : vector<8x15xf32>
    %373 = tpu.matmul %371, %372, %cst_116 {dimension_numbers = #tpu.dot_dimension_numbers<[1], [0], [0], [1], [0, 0, 1, 1], [], []>} : vector<8x84xbf16>, vector<84x15xbf16>, vector<8x15xf32> -> vector<8x15xf32>
    %c0_117 = arith.constant 0 : index
    %c0_118 = arith.constant 0 : index
    %374 = vector.load %arg13[%c0_117, %c0_118] : memref<1x15xf32, #tpu.memory_space<vmem>>, vector<1x15xf32>
    %375 = vector.broadcast %374 : vector<1x15xf32> to vector<8x15xf32>
    %376 = arith.addf %373, %375 : vector<8x15xf32>
    %c0_119 = arith.constant 0 : index
    %c0_120 = arith.constant 0 : index
    %377 = vector.load %arg18[%c0_119, %c0_120] : memref<8x15xf32, #tpu.memory_space<vmem>>, vector<8x15xf32>
    tpu.vector_store %arg18[%c0_119, %c0_120], %376 {strides = array<i32>} : memref<8x15xf32, #tpu.memory_space<vmem>>, vector<8x15xf32>,
    return
  }
  func.func @transform_0(%arg0: i32) -> (i32, i32, i32, i32) {
    %c0_i32 = arith.constant 0 : i32
    %c0_i32_0 = arith.constant 0 : i32
    %c0_i32_1 = arith.constant 0 : i32
    %c0_i32_2 = arith.constant 0 : i32
    return %arg0, %c0_i32, %c0_i32_0, %c0_i32_1 : i32, i32, i32, i32
  }
  func.func @transform_1(%arg0: i32) -> (i32, i32) {
    %c0_i32 = arith.constant 0 : i32
    %c0_i32_0 = arith.constant 0 : i32
    %c0_i32_1 = arith.constant 0 : i32
    return %c0_i32, %c0_i32_0 : i32, i32
  }
  func.func @transform_2(%arg0: i32) -> (i32, i32) {
    %c0_i32 = arith.constant 0 : i32
    %c0_i32_0 = arith.constant 0 : i32
    %c0_i32_1 = arith.constant 0 : i32
    return %c0_i32, %c0_i32_0 : i32, i32
  }
  func.func @transform_3(%arg0: i32) -> (i32, i32) {
    %c0_i32 = arith.constant 0 : i32
    %c0_i32_0 = arith.constant 0 : i32
    %c0_i32_1 = arith.constant 0 : i32
    return %c0_i32, %c0_i32_0 : i32, i32
  }
  func.func @transform_4(%arg0: i32) -> (i32, i32) {
    %c0_i32 = arith.constant 0 : i32
    %c0_i32_0 = arith.constant 0 : i32
    %c0_i32_1 = arith.constant 0 : i32
    return %c0_i32, %c0_i32_0 : i32, i32
  }
  func.func @transform_5(%arg0: i32) -> (i32, i32) {
    %c0_i32 = arith.constant 0 : i32
    %c0_i32_0 = arith.constant 0 : i32
    %c0_i32_1 = arith.constant 0 : i32
    return %c0_i32, %c0_i32_0 : i32, i32
  }
  func.func @transform_6(%arg0: i32) -> (i32, i32) {
    %c0_i32 = arith.constant 0 : i32
    %c0_i32_0 = arith.constant 0 : i32
    %c0_i32_1 = arith.constant 0 : i32
    return %c0_i32, %c0_i32_0 : i32, i32
  }
  func.func @transform_7(%arg0: i32) -> (i32, i32) {
    %c0_i32 = arith.constant 0 : i32
    %c0_i32_0 = arith.constant 0 : i32
    %c0_i32_1 = arith.constant 0 : i32
    return %c0_i32, %c0_i32_0 : i32, i32
  }
  func.func @transform_8(%arg0: i32) -> (i32, i32) {
    %c0_i32 = arith.constant 0 : i32
    %c0_i32_0 = arith.constant 0 : i32
    %c0_i32_1 = arith.constant 0 : i32
    return %c0_i32, %c0_i32_0 : i32, i32
  }
  func.func @transform_9(%arg0: i32) -> (i32, i32) {
    %c0_i32 = arith.constant 0 : i32
    %c0_i32_0 = arith.constant 0 : i32
    %c0_i32_1 = arith.constant 0 : i32
    return %c0_i32, %c0_i32_0 : i32, i32
  }
  func.func @transform_10(%arg0: i32) -> (i32, i32) {
    %c0_i32 = arith.constant 0 : i32
    %c0_i32_0 = arith.constant 0 : i32
    %c0_i32_1 = arith.constant 0 : i32
    return %c0_i32, %c0_i32_0 : i32, i32
  }
  func.func @transform_11(%arg0: i32) -> (i32, i32) {
    %c0_i32 = arith.constant 0 : i32
    %c0_i32_0 = arith.constant 0 : i32
    %c0_i32_1 = arith.constant 0 : i32
    return %c0_i32, %c0_i32_0 : i32, i32
  }
  func.func @transform_12(%arg0: i32) -> (i32, i32) {
    %c0_i32 = arith.constant 0 : i32
    %c0_i32_0 = arith.constant 0 : i32
    %c0_i32_1 = arith.constant 0 : i32
    return %c0_i32, %c0_i32_0 : i32, i32
  }
  func.func @transform_13(%arg0: i32) -> (i32, i32) {
    %c0_i32 = arith.constant 0 : i32
    %c0_i32_0 = arith.constant 0 : i32
    %c0_i32_1 = arith.constant 0 : i32
    return %c0_i32, %c0_i32_0 : i32, i32
  }
  func.func @transform_14(%arg0: i32) -> (i32, i32) {
    %c0_i32 = arith.constant 0 : i32
    %c0_i32_0 = arith.constant 0 : i32
    %c0_i32_1 = arith.constant 0 : i32
    return %c0_i32, %c0_i32_0 : i32, i32
  }
  func.func @transform_15(%arg0: i32) -> (i32, i32) {
    %c0_i32 = arith.constant 0 : i32
    %c0_i32_0 = arith.constant 0 : i32
    %c0_i32_1 = arith.constant 0 : i32
    return %c0_i32, %c0_i32_0 : i32, i32
  }
  func.func @transform_16(%arg0: i32) -> (i32, i32) {
    %c0_i32 = arith.constant 0 : i32
    %c0_i32_0 = arith.constant 0 : i32
    %c0_i32_1 = arith.constant 0 : i32
    return %c0_i32, %c0_i32_0 : i32, i32
  }
  func.func @transform_17(%arg0: i32) -> (i32, i32) {
    %c0_i32 = arith.constant 0 : i32
    %c0_i32_0 = arith.constant 0 : i32
    return %arg0, %c0_i32 : i32, i32
  }
}

</mosaic_0001>

<llo_original>
// kernel: net_forward.1
$region0: #{net_forward.1}
  #allocation0 [shape = 'u32[]', space=smem, size = 0x4, offset = 0x4, fixed_abs, tag = 'smem constant byte address 0x4 - core index']
  #allocation1 [shape = 'u32[72,128]{1,0:T(1,128)}', space=vmem, size = 0x9000, scoped, tag = 'internal scratch']
  %s0 = inlined_call_operand.vmem [shape: f32[16,3,32,32], index: 0, kind: input, shape index: {}]
  %s1 = inlined_call_operand.vmem [shape: bf16[480,84], index: 1, kind: input, shape index: {}]
  %s2 = inlined_call_operand.vmem [shape: bf16[480,84], index: 2, kind: input, shape index: {}]
  %s3 = inlined_call_operand.vmem [shape: f32[1,84], index: 3, kind: input, shape index: {}]
  %s4 = inlined_call_operand.vmem [shape: bf16[420,80], index: 4, kind: input, shape index: {}]
  %s5 = inlined_call_operand.vmem [shape: bf16[420,80], index: 5, kind: input, shape index: {}]
  %s6 = inlined_call_operand.vmem [shape: f32[1,80], index: 6, kind: input, shape index: {}]
  %s7 = inlined_call_operand.hbm [shape: bf16[400,120], index: 7, kind: input, shape index: {}]
  %s8 = inlined_call_operand.vmem [shape: f32[1,120], index: 8, kind: input, shape index: {}]
  %s9 = inlined_call_operand.vmem [shape: bf16[120,84], index: 9, kind: input, shape index: {}]
  %s10 = inlined_call_operand.hbm [shape: f32[1,84], index: 10, kind: input, shape index: {}]
  %s11 = inlined_call_operand.vmem [shape: bf16[84,15], index: 11, kind: input, shape index: {}]
  %s12 = inlined_call_operand.hbm [shape: f32[1,15], index: 12, kind: input, shape index: {}]
  %s13 = inlined_call_operand.vmem [shape: f32[14,28], index: 13, kind: input, shape index: {}]
  %s14 = inlined_call_operand.hbm [shape: f32[14,28], index: 14, kind: input, shape index: {}]
  %s15 = inlined_call_operand.vmem [shape: f32[5,10], index: 15, kind: input, shape index: {}]
  %s16 = inlined_call_operand.hbm [shape: f32[5,10], index: 16, kind: input, shape index: {}]
  %s17 = inlined_call_operand.hbm [shape: f32[16,15], index: 17, kind: output, shape index: {}]
  %s18 = sld [smem:[#allocation0]]
  $region121: #{net_forward.1} parent=0
    _
  %s20 = ssub.s32 1, %s18
  %s21 = scalar_select 0, %s20, %s18
  $region1: #{net_forward.1} parent=0
    #allocation2 [shape = 'u8[102400]{0}', space=vmem, size = 0x19000, scoped, tag = 'input window, operand 7, single buffered']
    #allocation3 [shape = 's32[2]{0}', space=sflag, size = 0x8, scoped, tag = 'scoped memory for net_forward.1']
    #allocation4 [shape = 's32[2]{0}', space=sflag, size = 0x8, scoped, tag = 'scoped memory for net_forward.1']
    #allocation5 [shape = 'u8[512]{0}', space=vmem, size = 0x400, scoped, tag = 'input window, operand 10, single buffered']
    #allocation6 [shape = 's32[1]{0}', space=sflag, size = 0x4, scoped, tag = 'scoped memory for net_forward.1']
    #allocation7 [shape = 'u8[512]{0}', space=vmem, size = 0x400, scoped, tag = 'input window, operand 12, single buffered']
    #allocation8 [shape = 'u8[8192]{0}', space=vmem, size = 0x2000, scoped, tag = 'input window, operand 14, single buffered']
    #allocation9 [shape = 's32[1]{0}', space=sflag, size = 0x4, scoped, tag = 'scoped memory for net_forward.1']
    #allocation10 [shape = 'u8[4096]{0}', space=vmem, size = 0x1000, scoped, tag = 'input window, operand 16, single buffered']
    #allocation11 [shape = 'u8[8192]{0}', space=vmem, size = 0x2000, scoped, tag = 'output window, operand 0']
    %22 = vsyncpa [#allocation3], 0
    %23 = vsyncpa [#allocation6], 0
    %24 = vsyncpa [#allocation9], 0
    %25 = vsyncpa [#allocation4], 0
    %s26 = scalar_lea.sflag [#allocation4], 1
    %27 = vsyncpa %s26, 0
    loop: start=0, step=1, limit=4
    $region2: #{net_forward.1} parent=1 // loop_pre_header
      _
    $region3: #{net_forward.1} parent=1 // loop_header
      %s29 = sphi 0, %s33
      %p30 = scmp.ge.s32.totalorder %s29, 4
      %s39 = sphi 0, %s41
      %s42 = sphi 0, %s39
      %s43 = sphi 0, %s42
      %s59 = sphi 0, %s43
      %s63 = sphi 0, %s63
      %s65 = sphi 0, %s63
      %s66 = sphi 0, %s65
      %s80 = sphi 0, %s66
      %s84 = sphi 0, %s84
      %s86 = sphi 0, %s84
      %s87 = sphi 0, %s86
      %s101 = sphi 0, %s87
      %s105 = sphi 0, %s105
      %s107 = sphi 0, %s105
      %s108 = sphi 0, %s107
      %s122 = sphi 0, %s108
      %s126 = sphi 0, %s126
      %s128 = sphi 0, %s126
      %s129 = sphi 0, %s128
      %s143 = sphi 0, %s129
      %s147 = sphi 0, %s147
      %s149 = sphi 0, %s147
      %s150 = sphi 0, %s149
      %s164 = sphi 0, %s150
      %s168 = sphi 0, %s168
      %s170 = sphi 0, %s168
      %s171 = sphi 0, %s170
      %s185 = sphi 0, %s171
      %s189 = sphi 0, %s189
      %s191 = sphi 0, %s189
      %s192 = sphi 0, %s191
      %s206 = sphi 0, %s192
      %s210 = sphi 0, %s210
      %s212 = sphi 0, %s210
      %s213 = sphi 0, %s212
      %s227 = sphi 0, %s213
      %s231 = sphi 0, %s231
      %s233 = sphi 0, %s231
      %s234 = sphi 0, %s233
      %s248 = sphi 0, %s234
      %s252 = sphi 0, %s252
      %s254 = sphi 0, %s252
      %s255 = sphi 0, %s254
      %s269 = sphi 0, %s255
      %s273 = sphi 0, %s273
      %s275 = sphi 0, %s273
      %s276 = sphi 0, %s275
      %s290 = sphi 0, %s276
      %s294 = sphi 0, %s294
      %s296 = sphi 0, %s294
      %s297 = sphi 0, %s296
      %s311 = sphi 0, %s297
      %s315 = sphi 0, %s315
      %s317 = sphi 0, %s315
      %s318 = sphi 0, %s317
      %s332 = sphi 0, %s318
      %s336 = sphi 0, %s336
      %s338 = sphi 0, %s336
      %s339 = sphi 0, %s338
      %s353 = sphi 0, %s339
      %s357 = sphi 0, %s357
      %s359 = sphi 0, %s357
      %s360 = sphi 0, %s359
      %s374 = sphi 0, %s360
      %s378 = sphi 0, %s378
      %s380 = sphi 0, %s378
      %s381 = sphi 0, %s380
      %s395 = sphi 0, %s381
      %s401 = sphi 0, %s403
      %s404 = sphi 0, %s401
      %s405 = sphi 0, %s404
      %s421 = sphi 0, %s405
    $region4: #{net_forward.1} parent=1 // loop_header_branch
      %32 = sbr.rel (%p30) target = $region8
    $region5: #{net_forward.1} parent=1 // loop_body
      %s34 = ssub.s32 %s29, 1
      %s35 = ssub.s32 %s29, 2
      %s36 = sadd.s32 %s29, 1
      %s37 = ssub.s32 %s29, %s36
      %p38 = scmp.eq.s32.totalorder %s37, 0
      %s40 = sadd.s32 %s39, 1
      %s41 = scalar_select %p38, %s39, %s40
      %p44 = pneg %p38
      %p45 = scmp.eq.s32.totalorder %s29, 1
      %p46 = por %p44, %p45
      %p47 = scmp.ne.s32.totalorder %s39, %s42
      %p48 = scmp.eq.s32.totalorder %s29, 0
      %p49 = por %p47, %p48
      %p50 = scmp.ne.s32.totalorder %s39, %s42
      %p51 = scmp.eq.s32.totalorder %s34, 1
      %p52 = por %p50, %p51
      %p53 = scmp.ne.s32.totalorder %s42, %s43
      %p54 = scmp.eq.s32.totalorder %s34, 0
      %p55 = por %p53, %p54
      %p56 = scmp.ne.s32.totalorder %s42, %s43
      %p57 = scmp.eq.s32.totalorder %s35, 1
      %p58 = por %p56, %p57
      %p60 = scmp.ne.s32.totalorder %s43, %s59
      %p61 = scmp.eq.s32.totalorder %s35, 0
      %p62 = por %p60, %p61
      %s64 = sadd.s32 %s63, 1
      %p67 = scmp.eq.s32.totalorder %s29, 1
      %p68 = scmp.ne.s32.totalorder %s63, %s65
      %p69 = scmp.eq.s32.totalorder %s29, 0
      %p70 = por %p68, %p69
      %p71 = scmp.ne.s32.totalorder %s63, %s65
      %p72 = scmp.eq.s32.totalorder %s34, 1
      %p73 = por %p71, %p72
      %p74 = scmp.ne.s32.totalorder %s65, %s66
      %p75 = scmp.eq.s32.totalorder %s34, 0
      %p76 = por %p74, %p75
      %p77 = scmp.ne.s32.totalorder %s65, %s66
      %p78 = scmp.eq.s32.totalorder %s35, 1
      %p79 = por %p77, %p78
      %p81 = scmp.ne.s32.totalorder %s66, %s80
      %p82 = scmp.eq.s32.totalorder %s35, 0
      %p83 = por %p81, %p82
      %s85 = sadd.s32 %s84, 1
      %p88 = scmp.eq.s32.totalorder %s29, 1
      %p89 = scmp.ne.s32.totalorder %s84, %s86
      %p90 = scmp.eq.s32.totalorder %s29, 0
      %p91 = por %p89, %p90
      %p92 = scmp.ne.s32.totalorder %s84, %s86
      %p93 = scmp.eq.s32.totalorder %s34, 1
      %p94 = por %p92, %p93
      %p95 = scmp.ne.s32.totalorder %s86, %s87
      %p96 = scmp.eq.s32.totalorder %s34, 0
      %p97 = por %p95, %p96
      %p98 = scmp.ne.s32.totalorder %s86, %s87
      %p99 = scmp.eq.s32.totalorder %s35, 1
      %p100 = por %p98, %p99
      %p102 = scmp.ne.s32.totalorder %s87, %s101
      %p103 = scmp.eq.s32.totalorder %s35, 0
      %p104 = por %p102, %p103
      %s106 = sadd.s32 %s105, 1
      %p109 = scmp.eq.s32.totalorder %s29, 1
      %p110 = scmp.ne.s32.totalorder %s105, %s107
      %p111 = scmp.eq.s32.totalorder %s29, 0
      %p112 = por %p110, %p111
      %p113 = scmp.ne.s32.totalorder %s105, %s107
      %p114 = scmp.eq.s32.totalorder %s34, 1
      %p115 = por %p113, %p114
      %p116 = scmp.ne.s32.totalorder %s107, %s108
      %p117 = scmp.eq.s32.totalorder %s34, 0
      %p118 = por %p116, %p117
      %p119 = scmp.ne.s32.totalorder %s107, %s108
      %p120 = scmp.eq.s32.totalorder %s35, 1
      %p121 = por %p119, %p120
      %p123 = scmp.ne.s32.totalorder %s108, %s122
      %p124 = scmp.eq.s32.totalorder %s35, 0
      %p125 = por %p123, %p124
      %s127 = sadd.s32 %s126, 1
      %p130 = scmp.eq.s32.totalorder %s29, 1
      %p131 = scmp.ne.s32.totalorder %s126, %s128
      %p132 = scmp.eq.s32.totalorder %s29, 0
      %p133 = por %p131, %p132
      %p134 = scmp.ne.s32.totalorder %s126, %s128
      %p135 = scmp.eq.s32.totalorder %s34, 1
      %p136 = por %p134, %p135
      %p137 = scmp.ne.s32.totalorder %s128, %s129
      %p138 = scmp.eq.s32.totalorder %s34, 0
      %p139 = por %p137, %p138
      %p140 = scmp.ne.s32.totalorder %s128, %s129
      %p141 = scmp.eq.s32.totalorder %s35, 1
      %p142 = por %p140, %p141
      %p144 = scmp.ne.s32.totalorder %s129, %s143
      %p145 = scmp.eq.s32.totalorder %s35, 0
      %p146 = por %p144, %p145
      %s148 = sadd.s32 %s147, 1
      %p151 = scmp.eq.s32.totalorder %s29, 1
      %p152 = scmp.ne.s32.totalorder %s147, %s149
      %p153 = scmp.eq.s32.totalorder %s29, 0
      %p154 = por %p152, %p153
      %p155 = scmp.ne.s32.totalorder %s147, %s149
      %p156 = scmp.eq.s32.totalorder %s34, 1
      %p157 = por %p155, %p156
      %p158 = scmp.ne.s32.totalorder %s149, %s150
      %p159 = scmp.eq.s32.totalorder %s34, 0
      %p160 = por %p158, %p159
      %p161 = scmp.ne.s32.totalorder %s149, %s150
      %p162 = scmp.eq.s32.totalorder %s35, 1
      %p163 = por %p161, %p162
      %p165 = scmp.ne.s32.totalorder %s150, %s164
      %p166 = scmp.eq.s32.totalorder %s35, 0
      %p167 = por %p165, %p166
      %s169 = sadd.s32 %s168, 1
      %p172 = scmp.eq.s32.totalorder %s29, 1
      %p173 = scmp.ne.s32.totalorder %s168, %s170
      %p174 = scmp.eq.s32.totalorder %s29, 0
      %p175 = por %p173, %p174
      %p176 = scmp.ne.s32.totalorder %s168, %s170
      %p177 = scmp.eq.s32.totalorder %s34, 1
      %p178 = por %p176, %p177
      %p179 = scmp.ne.s32.totalorder %s170, %s171
      %p180 = scmp.eq.s32.totalorder %s34, 0
      %p181 = por %p179, %p180
      %p182 = scmp.ne.s32.totalorder %s170, %s171
      %p183 = scmp.eq.s32.totalorder %s35, 1
      %p184 = por %p182, %p183
      %p186 = scmp.ne.s32.totalorder %s171, %s185
      %p187 = scmp.eq.s32.totalorder %s35, 0
      %p188 = por %p186, %p187
      %s190 = sadd.s32 %s189, 1
      %p193 = scmp.eq.s32.totalorder %s29, 1
      %p194 = scmp.ne.s32.totalorder %s189, %s191
      %p195 = scmp.eq.s32.totalorder %s29, 0
      %p196 = por %p194, %p195
      %p197 = scmp.ne.s32.totalorder %s189, %s191
      %p198 = scmp.eq.s32.totalorder %s34, 1
      %p199 = por %p197, %p198
      %p200 = scmp.ne.s32.totalorder %s191, %s192
      %p201 = scmp.eq.s32.totalorder %s34, 0
      %p202 = por %p200, %p201
      %p203 = scmp.ne.s32.totalorder %s191, %s192
      %p204 = scmp.eq.s32.totalorder %s35, 1
      %p205 = por %p203, %p204
      %p207 = scmp.ne.s32.totalorder %s192, %s206
      %p208 = scmp.eq.s32.totalorder %s35, 0
      %p209 = por %p207, %p208
      %s211 = sadd.s32 %s210, 1
      %p214 = scmp.eq.s32.totalorder %s29, 1
      %p215 = scmp.ne.s32.totalorder %s210, %s212
      %p216 = scmp.eq.s32.totalorder %s29, 0
      %p217 = por %p215, %p216
      %p218 = scmp.ne.s32.totalorder %s210, %s212
      %p219 = scmp.eq.s32.totalorder %s34, 1
      %p220 = por %p218, %p219
      %p221 = scmp.ne.s32.totalorder %s212, %s213
      %p222 = scmp.eq.s32.totalorder %s34, 0
      %p223 = por %p221, %p222
      %p224 = scmp.ne.s32.totalorder %s212, %s213
      %p225 = scmp.eq.s32.totalorder %s35, 1
      %p226 = por %p224, %p225
      %p228 = scmp.ne.s32.totalorder %s213, %s227
      %p229 = scmp.eq.s32.totalorder %s35, 0
      %p230 = por %p228, %p229
      %s232 = sadd.s32 %s231, 1
      %p235 = scmp.eq.s32.totalorder %s29, 1
      %p236 = scmp.ne.s32.totalorder %s231, %s233
      %p237 = scmp.eq.s32.totalorder %s29, 0
      %p238 = por %p236, %p237
      %p239 = scmp.ne.s32.totalorder %s231, %s233
      %p240 = scmp.eq.s32.totalorder %s34, 1
      %p241 = por %p239, %p240
      %p242 = scmp.ne.s32.totalorder %s233, %s234
      %p243 = scmp.eq.s32.totalorder %s34, 0
      %p244 = por %p242, %p243
      %p245 = scmp.ne.s32.totalorder %s233, %s234
      %p246 = scmp.eq.s32.totalorder %s35, 1
      %p247 = por %p245, %p246
      %p249 = scmp.ne.s32.totalorder %s234, %s248
      %p250 = scmp.eq.s32.totalorder %s35, 0
      %p251 = por %p249, %p250
      %s253 = sadd.s32 %s252, 1
      %p256 = scmp.eq.s32.totalorder %s29, 1
      %p257 = scmp.ne.s32.totalorder %s252, %s254
      %p258 = scmp.eq.s32.totalorder %s29, 0
      %p259 = por %p257, %p258
      %p260 = scmp.ne.s32.totalorder %s252, %s254
      %p261 = scmp.eq.s32.totalorder %s34, 1
      %p262 = por %p260, %p261
      %p263 = scmp.ne.s32.totalorder %s254, %s255
      %p264 = scmp.eq.s32.totalorder %s34, 0
      %p265 = por %p263, %p264
      %p266 = scmp.ne.s32.totalorder %s254, %s255
      %p267 = scmp.eq.s32.totalorder %s35, 1
      %p268 = por %p266, %p267
      %p270 = scmp.ne.s32.totalorder %s255, %s269
      %p271 = scmp.eq.s32.totalorder %s35, 0
      %p272 = por %p270, %p271
      %s274 = sadd.s32 %s273, 1
      %p277 = scmp.eq.s32.totalorder %s29, 1
      %p278 = scmp.ne.s32.totalorder %s273, %s275
      %p279 = scmp.eq.s32.totalorder %s29, 0
      %p280 = por %p278, %p279
      %p281 = scmp.ne.s32.totalorder %s273, %s275
      %p282 = scmp.eq.s32.totalorder %s34, 1
      %p283 = por %p281, %p282
      %p284 = scmp.ne.s32.totalorder %s275, %s276
      %p285 = scmp.eq.s32.totalorder %s34, 0
      %p286 = por %p284, %p285
      %p287 = scmp.ne.s32.totalorder %s275, %s276
      %p288 = scmp.eq.s32.totalorder %s35, 1
      %p289 = por %p287, %p288
      %p291 = scmp.ne.s32.totalorder %s276, %s290
      %p292 = scmp.eq.s32.totalorder %s35, 0
      %p293 = por %p291, %p292
      %s295 = sadd.s32 %s294, 1
      %p298 = scmp.eq.s32.totalorder %s29, 1
      %p299 = scmp.ne.s32.totalorder %s294, %s296
      %p300 = scmp.eq.s32.totalorder %s29, 0
      %p301 = por %p299, %p300
      %p302 = scmp.ne.s32.totalorder %s294, %s296
      %p303 = scmp.eq.s32.totalorder %s34, 1
      %p304 = por %p302, %p303
      %p305 = scmp.ne.s32.totalorder %s296, %s297
      %p306 = scmp.eq.s32.totalorder %s34, 0
      %p307 = por %p305, %p306
      %p308 = scmp.ne.s32.totalorder %s296, %s297
      %p309 = scmp.eq.s32.totalorder %s35, 1
      %p310 = por %p308, %p309
      %p312 = scmp.ne.s32.totalorder %s297, %s311
      %p313 = scmp.eq.s32.totalorder %s35, 0
      %p314 = por %p312, %p313
      %s316 = sadd.s32 %s315, 1
      %p319 = scmp.eq.s32.totalorder %s29, 1
      %p320 = scmp.ne.s32.totalorder %s315, %s317
      %p321 = scmp.eq.s32.totalorder %s29, 0
      %p322 = por %p320, %p321
      %p323 = scmp.ne.s32.totalorder %s315, %s317
      %p324 = scmp.eq.s32.totalorder %s34, 1
      %p325 = por %p323, %p324
      %p326 = scmp.ne.s32.totalorder %s317, %s318
      %p327 = scmp.eq.s32.totalorder %s34, 0
      %p328 = por %p326, %p327
      %p329 = scmp.ne.s32.totalorder %s317, %s318
      %p330 = scmp.eq.s32.totalorder %s35, 1
      %p331 = por %p329, %p330
      %p333 = scmp.ne.s32.totalorder %s318, %s332
      %p334 = scmp.eq.s32.totalorder %s35, 0
      %p335 = por %p333, %p334
      %s337 = sadd.s32 %s336, 1
      %p340 = scmp.eq.s32.totalorder %s29, 1
      %p341 = scmp.ne.s32.totalorder %s336, %s338
      %p342 = scmp.eq.s32.totalorder %s29, 0
      %p343 = por %p341, %p342
      %p344 = scmp.ne.s32.totalorder %s336, %s338
      %p345 = scmp.eq.s32.totalorder %s34, 1
      %p346 = por %p344, %p345
      %p347 = scmp.ne.s32.totalorder %s338, %s339
      %p348 = scmp.eq.s32.totalorder %s34, 0
      %p349 = por %p347, %p348
      %p350 = scmp.ne.s32.totalorder %s338, %s339
      %p351 = scmp.eq.s32.totalorder %s35, 1
      %p352 = por %p350, %p351
      %p354 = scmp.ne.s32.totalorder %s339, %s353
      %p355 = scmp.eq.s32.totalorder %s35, 0
      %p356 = por %p354, %p355
      %s358 = sadd.s32 %s357, 1
      %p361 = scmp.eq.s32.totalorder %s29, 1
      %p362 = scmp.ne.s32.totalorder %s357, %s359
      %p363 = scmp.eq.s32.totalorder %s29, 0
      %p364 = por %p362, %p363
      %p365 = scmp.ne.s32.totalorder %s357, %s359
      %p366 = scmp.eq.s32.totalorder %s34, 1
      %p367 = por %p365, %p366
      %p368 = scmp.ne.s32.totalorder %s359, %s360
      %p369 = scmp.eq.s32.totalorder %s34, 0
      %p370 = por %p368, %p369
      %p371 = scmp.ne.s32.totalorder %s359, %s360
      %p372 = scmp.eq.s32.totalorder %s35, 1
      %p373 = por %p371, %p372
      %p375 = scmp.ne.s32.totalorder %s360, %s374
      %p376 = scmp.eq.s32.totalorder %s35, 0
      %p377 = por %p375, %p376
      %s379 = sadd.s32 %s378, 1
      %p382 = scmp.eq.s32.totalorder %s29, 1
      %p383 = scmp.ne.s32.totalorder %s378, %s380
      %p384 = scmp.eq.s32.totalorder %s29, 0
      %p385 = por %p383, %p384
      %p386 = scmp.ne.s32.totalorder %s378, %s380
      %p387 = scmp.eq.s32.totalorder %s34, 1
      %p388 = por %p386, %p387
      %p389 = scmp.ne.s32.totalorder %s380, %s381
      %p390 = scmp.eq.s32.totalorder %s34, 0
      %p391 = por %p389, %p390
      %p392 = scmp.ne.s32.totalorder %s380, %s381
      %p393 = scmp.eq.s32.totalorder %s35, 1
      %p394 = por %p392, %p393
      %p396 = scmp.ne.s32.totalorder %s381, %s395
      %p397 = scmp.eq.s32.totalorder %s35, 0
      %p398 = por %p396, %p397
      %s399 = ssub.s32 %s29, %s36
      %p400 = scmp.eq.s32.totalorder %s399, 0
      %s402 = sadd.s32 %s401, 1
      %s403 = scalar_select %p400, %s401, %s402
      %p406 = pneg %p400
      %p407 = scmp.eq.s32.totalorder %s29, 1
      %p408 = por %p406, %p407
      %p409 = scmp.ne.s32.totalorder %s401, %s404
      %p410 = scmp.eq.s32.totalorder %s29, 0
      %p411 = por %p409, %p410
      %p412 = scmp.ne.s32.totalorder %s401, %s404
      %p413 = scmp.eq.s32.totalorder %s34, 1
      %p414 = por %p412, %p413
      %p415 = scmp.ne.s32.totalorder %s404, %s405
      %p416 = scmp.eq.s32.totalorder %s34, 0
      %p417 = por %p415, %p416
      %p418 = scmp.ne.s32.totalorder %s404, %s405
      %p419 = scmp.eq.s32.totalorder %s35, 1
      %p420 = por %p418, %p419
      %p422 = scmp.ne.s32.totalorder %s405, %s421
      %p423 = scmp.eq.s32.totalorder %s35, 0
      %p424 = por %p422, %p423
      %p425 = scmp.le.s32.totalorder 1, %s29
      %p426 = scmp.lt.s32.totalorder %s29, 3
      %p427 = pnand %p425, %p426
      %p428 = pneg %p427
      // Predicated region
      $region9: #{net_forward.1} parent=5 // pred_check
        _
      $region10: #{net_forward.1} parent=5 // pred_check_branch
        %430 = sbr.rel (%p427) target = $region12
      $region11: #{net_forward.1} parent=5 // pred_region
        %s431 = ssub.s32 %s29, 1
        // Predicated region
        $region13: #{net_forward.1} parent=11 // pred_check
          %p432 = pneg %p76
        $region14: #{net_forward.1} parent=11 // pred_check_branch
          %434 = sbr.rel (%p432) target = $region16
        $region15: #{net_forward.1} parent=11 // pred_region
          _
        $region16: #{net_forward.1} parent=11 // pred_fallthru
          _
        // Predicated region
        $region17: #{net_forward.1} parent=11 // pred_check
          %p435 = pneg %p97
        $region18: #{net_forward.1} parent=11 // pred_check_branch
          %437 = sbr.rel (%p435) target = $region20
        $region19: #{net_forward.1} parent=11 // pred_region
          _
        $region20: #{net_forward.1} parent=11 // pred_fallthru
          _
        // Predicated region
        $region21: #{net_forward.1} parent=11 // pred_check
          %p438 = pneg %p118
        $region22: #{net_forward.1} parent=11 // pred_check_branch
          %440 = sbr.rel (%p438) target = $region24
        $region23: #{net_forward.1} parent=11 // pred_region
          _
        $region24: #{net_forward.1} parent=11 // pred_fallthru
          _
        // Predicated region
        $region25: #{net_forward.1} parent=11 // pred_check
          %p441 = pneg %p139
        $region26: #{net_forward.1} parent=11 // pred_check_branch
          %443 = sbr.rel (%p441) target = $region28
        $region27: #{net_forward.1} parent=11 // pred_region
          _
        $region28: #{net_forward.1} parent=11 // pred_fallthru
          _
        // Predicated region
        $region29: #{net_forward.1} parent=11 // pred_check
          %p444 = pneg %p160
        $region30: #{net_forward.1} parent=11 // pred_check_branch
          %446 = sbr.rel (%p444) target = $region32
        $region31: #{net_forward.1} parent=11 // pred_region
          _
        $region32: #{net_forward.1} parent=11 // pred_fallthru
          _
        // Predicated region
        $region33: #{net_forward.1} parent=11 // pred_check
          %p447 = pneg %p181
        $region34: #{net_forward.1} parent=11 // pred_check_branch
          %449 = sbr.rel (%p447) target = $region36
        $region35: #{net_forward.1} parent=11 // pred_region
          _
        $region36: #{net_forward.1} parent=11 // pred_fallthru
          _
        // Predicated region
        $region37: #{net_forward.1} parent=11 // pred_check
          %p450 = pneg %p202
        $region38: #{net_forward.1} parent=11 // pred_check_branch
          %452 = sbr.rel (%p450) target = $region40
        $region39: #{net_forward.1} parent=11 // pred_region
          %454 = vsyncadd [#allocation3], 0
          %s455 = sshll.u32 %s7, 4
          %s456 = int_to_ptr.hbm [resolvable:$true] %s455
          %s457 = sshll.u32 [#allocation2], 4
          %s458 = int_to_ptr.vmem [resolvable:$true] %s457
          %463 = dma.hbm_to_vmem [thread:$0]  %s456, 3200, %s458, [#allocation3], 64, 64, 4
        $region40: #{net_forward.1} parent=11 // pred_fallthru
          _
        // Predicated region
        $region41: #{net_forward.1} parent=11 // pred_check
          %p464 = pneg %p223
        $region42: #{net_forward.1} parent=11 // pred_check_branch
          %466 = sbr.rel (%p464) target = $region44
        $region43: #{net_forward.1} parent=11 // pred_region
          _
        $region44: #{net_forward.1} parent=11 // pred_fallthru
          _
        // Predicated region
        $region45: #{net_forward.1} parent=11 // pred_check
          %p467 = pneg %p244
        $region46: #{net_forward.1} parent=11 // pred_check_branch
          %469 = sbr.rel (%p467) target = $region48
        $region47: #{net_forward.1} parent=11 // pred_region
          _
        $region48: #{net_forward.1} parent=11 // pred_fallthru
          _
        // Predicated region
        $region49: #{net_forward.1} parent=11 // pred_check
          %p470 = pneg %p265
        $region50: #{net_forward.1} parent=11 // pred_check_branch
          %472 = sbr.rel (%p470) target = $region52
        $region51: #{net_forward.1} parent=11 // pred_region
          %474 = vsyncadd [#allocation6], 0
          %s476 = sshll.u32 %s10, 4
          %s477 = int_to_ptr.hbm [resolvable:$true] %s476
          %s478 = sshll.u32 [#allocation5], 4
          %s479 = int_to_ptr.vmem [resolvable:$true] %s478
          %481 = dma.hbm_to_vmem [thread:$0]  %s477, 16, %s479, [#allocation6]
        $region52: #{net_forward.1} parent=11 // pred_fallthru
          _
        // Predicated region
        $region53: #{net_forward.1} parent=11 // pred_check
          %p482 = pneg %p286
        $region54: #{net_forward.1} parent=11 // pred_check_branch
          %484 = sbr.rel (%p482) target = $region56
        $region55: #{net_forward.1} parent=11 // pred_region
          _
        $region56: #{net_forward.1} parent=11 // pred_fallthru
          _
        // Predicated region
        $region57: #{net_forward.1} parent=11 // pred_check
          %p485 = pneg %p307
        $region58: #{net_forward.1} parent=11 // pred_check_branch
          %487 = sbr.rel (%p485) target = $region60
        $region59: #{net_forward.1} parent=11 // pred_region
          %489 = vsyncadd [#allocation6], 0
          %s491 = sshll.u32 %s12, 4
          %s492 = int_to_ptr.hbm [resolvable:$true] %s491
          %s493 = sshll.u32 [#allocation7], 4
          %s494 = int_to_ptr.vmem [resolvable:$true] %s493
          %496 = dma.hbm_to_vmem [thread:$0]  %s492, 16, %s494, [#allocation6]
        $region60: #{net_forward.1} parent=11 // pred_fallthru
          _
        // Predicated region
        $region61: #{net_forward.1} parent=11 // pred_check
          %p497 = pneg %p328
        $region62: #{net_forward.1} parent=11 // pred_check_branch
          %499 = sbr.rel (%p497) target = $region64
        $region63: #{net_forward.1} parent=11 // pred_region
          _
        $region64: #{net_forward.1} parent=11 // pred_fallthru
          _
        // Predicated region
        $region65: #{net_forward.1} parent=11 // pred_check
          %p500 = pneg %p349
        $region66: #{net_forward.1} parent=11 // pred_check_branch
          %502 = sbr.rel (%p500) target = $region68
        $region67: #{net_forward.1} parent=11 // pred_region
          %504 = vsyncadd [#allocation9], 0
          %s505 = sshll.u32 %s14, 4
          %s506 = int_to_ptr.hbm [resolvable:$true] %s505
          %s507 = sshll.u32 [#allocation8], 4
          %s508 = int_to_ptr.vmem [resolvable:$true] %s507
          %513 = dma.hbm_to_vmem [thread:$0]  %s506, 256, %s508, [#allocation9], 128, 128, 8
        $region68: #{net_forward.1} parent=11 // pred_fallthru
          _
        // Predicated region
        $region69: #{net_forward.1} parent=11 // pred_check
          %p514 = pneg %p370
        $region70: #{net_forward.1} parent=11 // pred_check_branch
          %516 = sbr.rel (%p514) target = $region72
        $region71: #{net_forward.1} parent=11 // pred_region
          _
        $region72: #{net_forward.1} parent=11 // pred_fallthru
          _
        // Predicated region
        $region73: #{net_forward.1} parent=11 // pred_check
          %p517 = pneg %p391
        $region74: #{net_forward.1} parent=11 // pred_check_branch
          %519 = sbr.rel (%p517) target = $region76
        $region75: #{net_forward.1} parent=11 // pred_region
          %521 = vsyncadd [#allocation9], 0
          %s523 = sshll.u32 %s16, 4
          %s524 = int_to_ptr.hbm [resolvable:$true] %s523
          %s525 = sshll.u32 [#allocation10], 4
          %s526 = int_to_ptr.vmem [resolvable:$true] %s525
          %528 = dma.hbm_to_vmem [thread:$0]  %s524, 128, %s526, [#allocation9]
        $region76: #{net_forward.1} parent=11 // pred_fallthru
          _
      $region12: #{net_forward.1} parent=5 // pred_fallthru
        _
      %p529 = scmp.lt.s32.totalorder %s29, 2
      // Predicated region
      $region77: #{net_forward.1} parent=5 // pred_check
        %p530 = pneg %p529
      $region78: #{net_forward.1} parent=5 // pred_check_branch
        %532 = sbr.rel (%p530) target = $region80
      $region79: #{net_forward.1} parent=5 // pred_region
        // Predicated region
        $region81: #{net_forward.1} parent=79 // pred_check
          %p533 = pneg %p49
        $region82: #{net_forward.1} parent=79 // pred_check_branch
          %535 = sbr.rel (%p533) target = $region84
        $region83: #{net_forward.1} parent=79 // pred_region
          %s536 = smul.u32 8, %s29
          %p537 = scmp.lt.s32.totalorder %s536, 15
          %s538 = scalar_select %p537, %s536, 15
          %s539 = smul.addr %s538, 12
          %s540 = smul.addr %s539, 8
          %s541 = scalar_lea.vmem %s0, %s540
          %s542 = smul.u32 8, %s29
        $region84: #{net_forward.1} parent=79 // pred_fallthru
          _
      $region80: #{net_forward.1} parent=5 // pred_fallthru
        _
      %p543 = scmp.le.s32.totalorder 1, %s29
      %p544 = scmp.lt.s32.totalorder %s29, 3
      %p545 = pnand %p543, %p544
      %p546 = pneg %p545
      // Predicated region
      $region85: #{net_forward.1} parent=5 // pred_check
        _
      $region86: #{net_forward.1} parent=5 // pred_check_branch
        %548 = sbr.rel (%p545) target = $region88
      $region87: #{net_forward.1} parent=5 // pred_region
        %s549 = ssub.s32 %s29, 1
        // Predicated region
        $region89: #{net_forward.1} parent=87 // pred_check
          %p550 = pneg %p202
        $region90: #{net_forward.1} parent=87 // pred_check_branch
          %552 = sbr.rel (%p550) target = $region92
        $region91: #{net_forward.1} parent=87 // pred_region
          %554 = dma.done [#allocation3], 3200
        $region92: #{net_forward.1} parent=87 // pred_fallthru
          _
        // Predicated region
        $region93: #{net_forward.1} parent=87 // pred_check
          %p555 = pneg %p265
        $region94: #{net_forward.1} parent=87 // pred_check_branch
          %557 = sbr.rel (%p555) target = $region96
        $region95: #{net_forward.1} parent=87 // pred_region
          %559 = dma.done [#allocation6], 16
        $region96: #{net_forward.1} parent=87 // pred_fallthru
          _
        // Predicated region
        $region97: #{net_forward.1} parent=87 // pred_check
          %p560 = pneg %p307
        $region98: #{net_forward.1} parent=87 // pred_check_branch
          %562 = sbr.rel (%p560) target = $region100
        $region99: #{net_forward.1} parent=87 // pred_region
          %564 = dma.done [#allocation6], 16
        $region100: #{net_forward.1} parent=87 // pred_fallthru
          _
        // Predicated region
        $region101: #{net_forward.1} parent=87 // pred_check
          %p565 = pneg %p349
        $region102: #{net_forward.1} parent=87 // pred_check_branch
          %567 = sbr.rel (%p565) target = $region104
        $region103: #{net_forward.1} parent=87 // pred_region
          %569 = dma.done [#allocation9], 256
        $region104: #{net_forward.1} parent=87 // pred_fallthru
          _
        // Predicated region
        $region105: #{net_forward.1} parent=87 // pred_check
          %p570 = pneg %p391
        $region106: #{net_forward.1} parent=87 // pred_check_branch
          %572 = sbr.rel (%p570) target = $region108
        $region107: #{net_forward.1} parent=87 // pred_region
          %574 = dma.done [#allocation9], 128
        $region108: #{net_forward.1} parent=87 // pred_fallthru
          _
        %s575 = smul.u32 8, %s34
        %p576 = scmp.lt.s32.totalorder %s575, 15
        %s577 = scalar_select %p576, %s575, 15
        %s578 = smul.addr %s577, 12
        %s579 = smul.addr %s578, 8
        %s580 = scalar_lea.vmem %s0, %s579
        %p581 = pneg %p55
        %p582 = pneg %p52
        %p583 = pneg %p76
        %p584 = pneg %p73
        %p585 = pneg %p97
        %p586 = pneg %p94
        %p587 = pneg %p118
        %p588 = pneg %p115
        %p589 = pneg %p139
        %p590 = pneg %p136
        %p591 = pneg %p160
        %p592 = pneg %p157
        %p593 = pneg %p181
        %p594 = pneg %p178
        %p595 = pneg %p202
        %p596 = pneg %p199
        %p597 = pneg %p223
        %p598 = pneg %p220
        %p599 = pneg %p244
        %p600 = pneg %p241
        %p601 = pneg %p265
        %p602 = pneg %p262
        %p603 = pneg %p286
        %p604 = pneg %p283
        %p605 = pneg %p307
        %p606 = pneg %p304
        %p607 = pneg %p328
        %p608 = pneg %p325
        %p609 = pneg %p349
        %p610 = pneg %p346
        %p611 = pneg %p370
        %p612 = pneg %p367
        %p613 = pneg %p391
        %p614 = pneg %p388
        %p615 = pneg %p417
        %p616 = pneg %p414
        %s617 = sand.u32 %s404, 1
        %s618 = scalar_lea.sflag [#allocation4], %s617
        %s619 = sand.u32 %s404, 1
        %s620 = smul.addr %s619, 8
        %s621 = scalar_lea.vmem [#allocation11], %s620
        %s622 = smul.u32 8, %s34
        %p623 = scmp.lt.s32.totalorder %s622, 15
        %s624 = scalar_select %p623, %s622, 15
        %s625 = smul.addr %s624, 12
        %s626 = smul.addr %s625, 8
        %s627 = scalar_lea.vmem %s0, %s626
        %s628 = smul.u32 8, %s34
        %v630 = vld [vmem:[%s627] sm:$0xff]
        %v631 = vld [vmem:[%s627 + $0x8] sm:$0xff]
        %v632 = vld [vmem:[%s627 + $0x10] sm:$0xff]
        %v633 = vld [vmem:[%s627 + $0x18] sm:$0xff]
        %v634 = vld [vmem:[%s627 + $0x20] sm:$0xff]
        %v635 = vld [vmem:[%s627 + $0x28] sm:$0xff]
        %v636 = vld [vmem:[%s627 + $0x30] sm:$0xff]
        %v637 = vld [vmem:[%s627 + $0x38] sm:$0xff]
        %v638 = vld [vmem:[%s627 + $0x40] sm:$0xff]
        %v639 = vld [vmem:[%s627 + $0x48] sm:$0xff]
        %v640 = vld [vmem:[%s627 + $0x50] sm:$0xff]
        %v641 = vld [vmem:[%s627 + $0x58] sm:$0xff]
        %v642 = vld [vmem:[%s627 + $0x60] sm:$0xff]
        %v643 = vld [vmem:[%s627 + $0x68] sm:$0xff]
        %v644 = vld [vmem:[%s627 + $0x70] sm:$0xff]
        %v645 = vld [vmem:[%s627 + $0x78] sm:$0xff]
        %v646 = vld [vmem:[%s627 + $0x80] sm:$0xff]
        %v647 = vld [vmem:[%s627 + $0x88] sm:$0xff]
        %v648 = vld [vmem:[%s627 + $0x90] sm:$0xff]
        %v649 = vld [vmem:[%s627 + $0x98] sm:$0xff]
        %v650 = vld [vmem:[%s627 + $0xa0] sm:$0xff]
        %v651 = vld [vmem:[%s627 + $0xa8] sm:$0xff]
        %v652 = vld [vmem:[%s627 + $0xb0] sm:$0xff]
        %v653 = vld [vmem:[%s627 + $0xb8] sm:$0xff]
        %v654 = vld [vmem:[%s627 + $0xc0] sm:$0xff]
        %v655 = vld [vmem:[%s627 + $0xc8] sm:$0xff]
        %v656 = vld [vmem:[%s627 + $0xd0] sm:$0xff]
        %v657 = vld [vmem:[%s627 + $0xd8] sm:$0xff]
        %v658 = vld [vmem:[%s627 + $0xe0] sm:$0xff]
        %v659 = vld [vmem:[%s627 + $0xe8] sm:$0xff]
        %v660 = vld [vmem:[%s627 + $0xf0] sm:$0xff]
        %v661 = vld [vmem:[%s627 + $0xf8] sm:$0xff]
        %v662 = vld [vmem:[%s627 + $0x100] sm:$0xff]
        %v663 = vld [vmem:[%s627 + $0x108] sm:$0xff]
        %v664 = vld [vmem:[%s627 + $0x110] sm:$0xff]
        %v665 = vld [vmem:[%s627 + $0x118] sm:$0xff]
        %v666 = vld [vmem:[%s627 + $0x120] sm:$0xff]
        %v667 = vld [vmem:[%s627 + $0x128] sm:$0xff]
        %v668 = vld [vmem:[%s627 + $0x130] sm:$0xff]
        %v669 = vld [vmem:[%s627 + $0x138] sm:$0xff]
        %v670 = vld [vmem:[%s627 + $0x140] sm:$0xff]
        %v671 = vld [vmem:[%s627 + $0x148] sm:$0xff]
        %v672 = vld [vmem:[%s627 + $0x150] sm:$0xff]
        %v673 = vld [vmem:[%s627 + $0x158] sm:$0xff]
        %v674 = vld [vmem:[%s627 + $0x160] sm:$0xff]
        %v675 = vld [vmem:[%s627 + $0x168] sm:$0xff]
        %v676 = vld [vmem:[%s627 + $0x170] sm:$0xff]
        %v677 = vld [vmem:[%s627 + $0x178] sm:$0xff]
        %v678 = vld [vmem:[%s627 + $0x180] sm:$0xff]
        %v679 = vld [vmem:[%s627 + $0x188] sm:$0xff]
        %v680 = vld [vmem:[%s627 + $0x190] sm:$0xff]
        %v681 = vld [vmem:[%s627 + $0x198] sm:$0xff]
        %v682 = vld [vmem:[%s627 + $0x1a0] sm:$0xff]
        %v683 = vld [vmem:[%s627 + $0x1a8] sm:$0xff]
        %v684 = vld [vmem:[%s627 + $0x1b0] sm:$0xff]
        %v685 = vld [vmem:[%s627 + $0x1b8] sm:$0xff]
        %v686 = vld [vmem:[%s627 + $0x1c0] sm:$0xff]
        %v687 = vld [vmem:[%s627 + $0x1c8] sm:$0xff]
        %v688 = vld [vmem:[%s627 + $0x1d0] sm:$0xff]
        %v689 = vld [vmem:[%s627 + $0x1d8] sm:$0xff]
        %v690 = vld [vmem:[%s627 + $0x1e0] sm:$0xff]
        %v691 = vld [vmem:[%s627 + $0x1e8] sm:$0xff]
        %v692 = vld [vmem:[%s627 + $0x1f0] sm:$0xff]
        %v693 = vld [vmem:[%s627 + $0x1f8] sm:$0xff]
        %v694 = vld [vmem:[%s627 + $0x200] sm:$0xff]
        %v695 = vld [vmem:[%s627 + $0x208] sm:$0xff]
        %v696 = vld [vmem:[%s627 + $0x210] sm:$0xff]
        %v697 = vld [vmem:[%s627 + $0x218] sm:$0xff]
        %v698 = vld [vmem:[%s627 + $0x220] sm:$0xff]
        %v699 = vld [vmem:[%s627 + $0x228] sm:$0xff]
        %v700 = vld [vmem:[%s627 + $0x230] sm:$0xff]
        %v701 = vld [vmem:[%s627 + $0x238] sm:$0xff]
        %v702 = vld [vmem:[%s627 + $0x240] sm:$0xff]
        %v703 = vld [vmem:[%s627 + $0x248] sm:$0xff]
        %v704 = vld [vmem:[%s627 + $0x250] sm:$0xff]
        %v705 = vld [vmem:[%s627 + $0x258] sm:$0xff]
        %v706 = vld [vmem:[%s627 + $0x260] sm:$0xff]
        %v707 = vld [vmem:[%s627 + $0x268] sm:$0xff]
        %v708 = vld [vmem:[%s627 + $0x270] sm:$0xff]
        %v709 = vld [vmem:[%s627 + $0x278] sm:$0xff]
        %v710 = vld [vmem:[%s627 + $0x280] sm:$0xff]
        %v711 = vld [vmem:[%s627 + $0x288] sm:$0xff]
        %v712 = vld [vmem:[%s627 + $0x290] sm:$0xff]
        %v713 = vld [vmem:[%s627 + $0x298] sm:$0xff]
        %v714 = vld [vmem:[%s627 + $0x2a0] sm:$0xff]
        %v715 = vld [vmem:[%s627 + $0x2a8] sm:$0xff]
        %v716 = vld [vmem:[%s627 + $0x2b0] sm:$0xff]
        %v717 = vld [vmem:[%s627 + $0x2b8] sm:$0xff]
        %v718 = vld [vmem:[%s627 + $0x2c0] sm:$0xff]
        %v719 = vld [vmem:[%s627 + $0x2c8] sm:$0xff]
        %v720 = vld [vmem:[%s627 + $0x2d0] sm:$0xff]
        %v721 = vld [vmem:[%s627 + $0x2d8] sm:$0xff]
        %v722 = vld [vmem:[%s627 + $0x2e0] sm:$0xff]
        %v723 = vld [vmem:[%s627 + $0x2e8] sm:$0xff]
        %v724 = vld [vmem:[%s627 + $0x2f0] sm:$0xff]
        %v725 = vld [vmem:[%s627 + $0x2f8] sm:$0xff]
        %758 = vrot.lane.b32.xlu0 %v634, 32
        %v759 = vpop.permute.xlu0 %758
        %760 = vrot.lane.b32.xlu0 %v635, 32
        %v761 = vpop.permute.xlu0 %760
        %762 = vrot.lane.b32.xlu0 %v636, 32
        %v763 = vpop.permute.xlu0 %762
        %764 = vrot.lane.b32.xlu0 %v637, 32
        %v765 = vpop.permute.xlu0 %764
        %766 = vrot.lane.b32.xlu0 %v646, 32
        %v767 = vpop.permute.xlu0 %766
        %768 = vrot.lane.b32.xlu0 %v647, 32
        %v769 = vpop.permute.xlu0 %768
        %770 = vrot.lane.b32.xlu0 %v648, 32
        %v771 = vpop.permute.xlu0 %770
        %772 = vrot.lane.b32.xlu0 %v649, 32
        %v773 = vpop.permute.xlu0 %772
        %774 = vrot.lane.b32.xlu0 %v658, 32
        %v775 = vpop.permute.xlu0 %774
        %776 = vrot.lane.b32.xlu0 %v659, 32
        %v777 = vpop.permute.xlu0 %776
        %778 = vrot.lane.b32.xlu0 %v660, 32
        %v779 = vpop.permute.xlu0 %778
        %780 = vrot.lane.b32.xlu0 %v661, 32
        %v781 = vpop.permute.xlu0 %780
        %782 = vrot.lane.b32.xlu0 %v670, 32
        %v783 = vpop.permute.xlu0 %782
        %784 = vrot.lane.b32.xlu0 %v671, 32
        %v785 = vpop.permute.xlu0 %784
        %786 = vrot.lane.b32.xlu0 %v672, 32
        %v787 = vpop.permute.xlu0 %786
        %788 = vrot.lane.b32.xlu0 %v673, 32
        %v789 = vpop.permute.xlu0 %788
        %790 = vrot.lane.b32.xlu0 %v682, 32
        %v791 = vpop.permute.xlu0 %790
        %792 = vrot.lane.b32.xlu0 %v683, 32
        %v793 = vpop.permute.xlu0 %792
        %794 = vrot.lane.b32.xlu0 %v684, 32
        %v795 = vpop.permute.xlu0 %794
        %796 = vrot.lane.b32.xlu0 %v685, 32
        %v797 = vpop.permute.xlu0 %796
        %798 = vrot.lane.b32.xlu0 %v694, 32
        %v799 = vpop.permute.xlu0 %798
        %800 = vrot.lane.b32.xlu0 %v695, 32
        %v801 = vpop.permute.xlu0 %800
        %802 = vrot.lane.b32.xlu0 %v696, 32
        %v803 = vpop.permute.xlu0 %802
        %804 = vrot.lane.b32.xlu0 %v697, 32
        %v805 = vpop.permute.xlu0 %804
        %806 = vrot.lane.b32.xlu0 %v706, 32
        %v807 = vpop.permute.xlu0 %806
        %808 = vrot.lane.b32.xlu0 %v707, 32
        %v809 = vpop.permute.xlu0 %808
        %810 = vrot.lane.b32.xlu0 %v708, 32
        %v811 = vpop.permute.xlu0 %810
        %812 = vrot.lane.b32.xlu0 %v709, 32
        %v813 = vpop.permute.xlu0 %812
        %814 = vrot.lane.b32.xlu0 %v718, 32
        %v815 = vpop.permute.xlu0 %814
        %816 = vrot.lane.b32.xlu0 %v719, 32
        %v817 = vpop.permute.xlu0 %816
        %818 = vrot.lane.b32.xlu0 %v720, 32
        %v819 = vpop.permute.xlu0 %818
        %820 = vrot.lane.b32.xlu0 %v721, 32
        %v821 = vpop.permute.xlu0 %820
        %886 = vrot.lane.b32.xlu0 %v638, 64
        %v887 = vpop.permute.xlu0 %886
        %888 = vrot.lane.b32.xlu0 %v639, 64
        %v889 = vpop.permute.xlu0 %888
        %890 = vrot.lane.b32.xlu0 %v640, 64
        %v891 = vpop.permute.xlu0 %890
        %892 = vrot.lane.b32.xlu0 %v641, 64
        %v893 = vpop.permute.xlu0 %892
        %894 = vrot.lane.b32.xlu0 %v650, 64
        %v895 = vpop.permute.xlu0 %894
        %896 = vrot.lane.b32.xlu0 %v651, 64
        %v897 = vpop.permute.xlu0 %896
        %898 = vrot.lane.b32.xlu0 %v652, 64
        %v899 = vpop.permute.xlu0 %898
        %900 = vrot.lane.b32.xlu0 %v653, 64
        %v901 = vpop.permute.xlu0 %900
        %902 = vrot.lane.b32.xlu0 %v662, 64
        %v903 = vpop.permute.xlu0 %902
        %904 = vrot.lane.b32.xlu0 %v663, 64
        %v905 = vpop.permute.xlu0 %904
        %906 = vrot.lane.b32.xlu0 %v664, 64
        %v907 = vpop.permute.xlu0 %906
        %908 = vrot.lane.b32.xlu0 %v665, 64
        %v909 = vpop.permute.xlu0 %908
        %910 = vrot.lane.b32.xlu0 %v674, 64
        %v911 = vpop.permute.xlu0 %910
        %912 = vrot.lane.b32.xlu0 %v675, 64
        %v913 = vpop.permute.xlu0 %912
        %914 = vrot.lane.b32.xlu0 %v676, 64
        %v915 = vpop.permute.xlu0 %914
        %916 = vrot.lane.b32.xlu0 %v677, 64
        %v917 = vpop.permute.xlu0 %916
        %918 = vrot.lane.b32.xlu0 %v686, 64
        %v919 = vpop.permute.xlu0 %918
        %920 = vrot.lane.b32.xlu0 %v687, 64
        %v921 = vpop.permute.xlu0 %920
        %922 = vrot.lane.b32.xlu0 %v688, 64
        %v923 = vpop.permute.xlu0 %922
        %924 = vrot.lane.b32.xlu0 %v689, 64
        %v925 = vpop.permute.xlu0 %924
        %926 = vrot.lane.b32.xlu0 %v698, 64
        %v927 = vpop.permute.xlu0 %926
        %928 = vrot.lane.b32.xlu0 %v699, 64
        %v929 = vpop.permute.xlu0 %928
        %930 = vrot.lane.b32.xlu0 %v700, 64
        %v931 = vpop.permute.xlu0 %930
        %932 = vrot.lane.b32.xlu0 %v701, 64
        %v933 = vpop.permute.xlu0 %932
        %934 = vrot.lane.b32.xlu0 %v710, 64
        %v935 = vpop.permute.xlu0 %934
        %936 = vrot.lane.b32.xlu0 %v711, 64
        %v937 = vpop.permute.xlu0 %936
        %938 = vrot.lane.b32.xlu0 %v712, 64
        %v939 = vpop.permute.xlu0 %938
        %940 = vrot.lane.b32.xlu0 %v713, 64
        %v941 = vpop.permute.xlu0 %940
        %942 = vrot.lane.b32.xlu0 %v722, 64
        %v943 = vpop.permute.xlu0 %942
        %944 = vrot.lane.b32.xlu0 %v723, 64
        %v945 = vpop.permute.xlu0 %944
        %946 = vrot.lane.b32.xlu0 %v724, 64
        %v947 = vpop.permute.xlu0 %946
        %948 = vrot.lane.b32.xlu0 %v725, 64
        %v949 = vpop.permute.xlu0 %948
        %vm982 = vcmask 261120
        %v983 = vsel %vm982, %v630, %v759
        %v984 = vsel %vm982, %v631, %v761
        %v985 = vsel %vm982, %v632, %v763
        %v986 = vsel %vm982, %v633, %v765
        %v987 = vsel %vm982, %v642, %v767
        %v988 = vsel %vm982, %v643, %v769
        %v989 = vsel %vm982, %v644, %v771
        %v990 = vsel %vm982, %v645, %v773
        %v991 = vsel %vm982, %v654, %v775
        %v992 = vsel %vm982, %v655, %v777
        %v993 = vsel %vm982, %v656, %v779
        %v994 = vsel %vm982, %v657, %v781
        %v995 = vsel %vm982, %v666, %v783
        %v996 = vsel %vm982, %v667, %v785
        %v997 = vsel %vm982, %v668, %v787
        %v998 = vsel %vm982, %v669, %v789
        %v999 = vsel %vm982, %v678, %v791
        %v1000 = vsel %vm982, %v679, %v793
        %v1001 = vsel %vm982, %v680, %v795
        %v1002 = vsel %vm982, %v681, %v797
        %v1003 = vsel %vm982, %v690, %v799
        %v1004 = vsel %vm982, %v691, %v801
        %v1005 = vsel %vm982, %v692, %v803
        %v1006 = vsel %vm982, %v693, %v805
        %v1007 = vsel %vm982, %v702, %v807
        %v1008 = vsel %vm982, %v703, %v809
        %v1009 = vsel %vm982, %v704, %v811
        %v1010 = vsel %vm982, %v705, %v813
        %v1011 = vsel %vm982, %v714, %v815
        %v1012 = vsel %vm982, %v715, %v817
        %v1013 = vsel %vm982, %v716, %v819
        %v1014 = vsel %vm982, %v717, %v821
        %vm1015 = vcmask 523264
        %v1016 = vsel %vm1015, %v983, %v887
        %v1017 = vsel %vm1015, %v984, %v889
        %v1018 = vsel %vm1015, %v985, %v891
        %v1019 = vsel %vm1015, %v986, %v893
        %v1020 = vsel %vm1015, %v987, %v895
        %v1021 = vsel %vm1015, %v988, %v897
        %v1022 = vsel %vm1015, %v989, %v899
        %v1023 = vsel %vm1015, %v990, %v901
        %v1024 = vsel %vm1015, %v991, %v903
        %v1025 = vsel %vm1015, %v992, %v905
        %v1026 = vsel %vm1015, %v993, %v907
        %v1027 = vsel %vm1015, %v994, %v909
        %v1028 = vsel %vm1015, %v995, %v911
        %v1029 = vsel %vm1015, %v996, %v913
        %v1030 = vsel %vm1015, %v997, %v915
        %v1031 = vsel %vm1015, %v998, %v917
        %v1032 = vsel %vm1015, %v999, %v919
        %v1033 = vsel %vm1015, %v1000, %v921
        %v1034 = vsel %vm1015, %v1001, %v923
        %v1035 = vsel %vm1015, %v1002, %v925
        %v1036 = vsel %vm1015, %v1003, %v927
        %v1037 = vsel %vm1015, %v1004, %v929
        %v1038 = vsel %vm1015, %v1005, %v931
        %v1039 = vsel %vm1015, %v1006, %v933
        %v1040 = vsel %vm1015, %v1007, %v935
        %v1041 = vsel %vm1015, %v1008, %v937
        %v1042 = vsel %vm1015, %v1009, %v939
        %v1043 = vsel %vm1015, %v1010, %v941
        %v1044 = vsel %vm1015, %v1011, %v943
        %v1045 = vsel %vm1015, %v1012, %v945
        %v1046 = vsel %vm1015, %v1013, %v947
        %v1047 = vsel %vm1015, %v1014, %v949
        %v1048 = vld [vmem:[%s1] sm:$0xf]
        %v1049 = vld [vmem:[%s1 + $0x4] sm:$0xf]
        %v1050 = vld [vmem:[%s1 + $0x8] sm:$0xf]
        %v1051 = vld [vmem:[%s1 + $0xc] sm:$0xf]
        %v1052 = vld [vmem:[%s1 + $0x10] sm:$0xf]
        %v1053 = vld [vmem:[%s1 + $0x14] sm:$0xf]
        %v1054 = vld [vmem:[%s1 + $0x18] sm:$0xf]
        %v1055 = vld [vmem:[%s1 + $0x1c] sm:$0xf]
        %v1056 = vld [vmem:[%s1 + $0x20] sm:$0xf]
        %v1057 = vld [vmem:[%s1 + $0x24] sm:$0xf]
        %v1058 = vld [vmem:[%s1 + $0x28] sm:$0xf]
        %v1059 = vld [vmem:[%s1 + $0x2c] sm:$0xf]
        %v1060 = vld [vmem:[%s1 + $0x30] sm:$0xf]
        %v1061 = vld [vmem:[%s1 + $0x34] sm:$0xf]
        %v1062 = vld [vmem:[%s1 + $0x38] sm:$0xf]
        %v1063 = vld [vmem:[%s1 + $0x3c] sm:$0xf]
        %v1064 = vld [vmem:[%s1 + $0x40] sm:$0xf]
        %v1065 = vld [vmem:[%s1 + $0x44] sm:$0xf]
        %v1066 = vld [vmem:[%s1 + $0x48] sm:$0xf]
        %v1067 = vld [vmem:[%s1 + $0x4c] sm:$0xf]
        %v1068 = vld [vmem:[%s1 + $0x50] sm:$0xf]
        %v1069 = vld [vmem:[%s1 + $0x54] sm:$0xf]
        %v1070 = vld [vmem:[%s1 + $0x58] sm:$0xf]
        %v1071 = vld [vmem:[%s1 + $0x5c] sm:$0xf]
        %v1072 = vld [vmem:[%s1 + $0x60] sm:$0xf]
        %v1073 = vld [vmem:[%s1 + $0x64] sm:$0xf]
        %v1074 = vld [vmem:[%s1 + $0x68] sm:$0xf]
        %v1075 = vld [vmem:[%s1 + $0x6c] sm:$0xf]
        %v1076 = vld [vmem:[%s1 + $0x70] sm:$0xf]
        %v1077 = vld [vmem:[%s1 + $0x74] sm:$0xf]
        %v1078 = vld [vmem:[%s1 + $0x78] sm:$0xf]
        %v1079 = vld [vmem:[%s1 + $0x7c] sm:$0xf]
        %v1080 = vld [vmem:[%s1 + $0x80] sm:$0xf]
        %v1081 = vld [vmem:[%s1 + $0x84] sm:$0xf]
        %v1082 = vld [vmem:[%s1 + $0x88] sm:$0xf]
        %v1083 = vld [vmem:[%s1 + $0x8c] sm:$0xf]
        %v1084 = vld [vmem:[%s1 + $0x90] sm:$0xf]
        %v1085 = vld [vmem:[%s1 + $0x94] sm:$0xf]
        %v1086 = vld [vmem:[%s1 + $0x98] sm:$0xf]
        %v1087 = vld [vmem:[%s1 + $0x9c] sm:$0xf]
        %v1088 = vld [vmem:[%s1 + $0xa0] sm:$0xf]
        %v1089 = vld [vmem:[%s1 + $0xa4] sm:$0xf]
        %v1090 = vld [vmem:[%s1 + $0xa8] sm:$0xf]
        %v1091 = vld [vmem:[%s1 + $0xac] sm:$0xf]
        %v1092 = vld [vmem:[%s1 + $0xb0] sm:$0xf]
        %v1093 = vld [vmem:[%s1 + $0xb4] sm:$0xf]
        %v1094 = vld [vmem:[%s1 + $0xb8] sm:$0xf]
        %v1095 = vld [vmem:[%s1 + $0xbc] sm:$0xf]
        %v1096 = vld [vmem:[%s1 + $0xc0] sm:$0xf]
        %v1097 = vld [vmem:[%s1 + $0xc4] sm:$0xf]
        %v1098 = vld [vmem:[%s1 + $0xc8] sm:$0xf]
        %v1099 = vld [vmem:[%s1 + $0xcc] sm:$0xf]
        %v1100 = vld [vmem:[%s1 + $0xd0] sm:$0xf]
        %v1101 = vld [vmem:[%s1 + $0xd4] sm:$0xf]
        %v1102 = vld [vmem:[%s1 + $0xd8] sm:$0xf]
        %v1103 = vld [vmem:[%s1 + $0xdc] sm:$0xf]
        %v1104 = vld [vmem:[%s1 + $0xe0] sm:$0xf]
        %v1105 = vld [vmem:[%s1 + $0xe4] sm:$0xf]
        %v1106 = vld [vmem:[%s1 + $0xe8] sm:$0xf]
        %v1107 = vld [vmem:[%s1 + $0xec] sm:$0xf]
        %v1108 = vld [vmem:[%s2] sm:$0xf]
        %v1109 = vld [vmem:[%s2 + $0x4] sm:$0xf]
        %v1110 = vld [vmem:[%s2 + $0x8] sm:$0xf]
        %v1111 = vld [vmem:[%s2 + $0xc] sm:$0xf]
        %v1112 = vld [vmem:[%s2 + $0x10] sm:$0xf]
        %v1113 = vld [vmem:[%s2 + $0x14] sm:$0xf]
        %v1114 = vld [vmem:[%s2 + $0x18] sm:$0xf]
        %v1115 = vld [vmem:[%s2 + $0x1c] sm:$0xf]
        %v1116 = vld [vmem:[%s2 + $0x20] sm:$0xf]
        %v1117 = vld [vmem:[%s2 + $0x24] sm:$0xf]
        %v1118 = vld [vmem:[%s2 + $0x28] sm:$0xf]
        %v1119 = vld [vmem:[%s2 + $0x2c] sm:$0xf]
        %v1120 = vld [vmem:[%s2 + $0x30] sm:$0xf]
        %v1121 = vld [vmem:[%s2 + $0x34] sm:$0xf]
        %v1122 = vld [vmem:[%s2 + $0x38] sm:$0xf]
        %v1123 = vld [vmem:[%s2 + $0x3c] sm:$0xf]
        %v1124 = vld [vmem:[%s2 + $0x40] sm:$0xf]
        %v1125 = vld [vmem:[%s2 + $0x44] sm:$0xf]
        %v1126 = vld [vmem:[%s2 + $0x48] sm:$0xf]
        %v1127 = vld [vmem:[%s2 + $0x4c] sm:$0xf]
        %v1128 = vld [vmem:[%s2 + $0x50] sm:$0xf]
        %v1129 = vld [vmem:[%s2 + $0x54] sm:$0xf]
        %v1130 = vld [vmem:[%s2 + $0x58] sm:$0xf]
        %v1131 = vld [vmem:[%s2 + $0x5c] sm:$0xf]
        %v1132 = vld [vmem:[%s2 + $0x60] sm:$0xf]
        %v1133 = vld [vmem:[%s2 + $0x64] sm:$0xf]
        %v1134 = vld [vmem:[%s2 + $0x68] sm:$0xf]
        %v1135 = vld [vmem:[%s2 + $0x6c] sm:$0xf]
        %v1136 = vld [vmem:[%s2 + $0x70] sm:$0xf]
        %v1137 = vld [vmem:[%s2 + $0x74] sm:$0xf]
        %v1138 = vld [vmem:[%s2 + $0x78] sm:$0xf]
        %v1139 = vld [vmem:[%s2 + $0x7c] sm:$0xf]
        %v1140 = vld [vmem:[%s2 + $0x80] sm:$0xf]
        %v1141 = vld [vmem:[%s2 + $0x84] sm:$0xf]
        %v1142 = vld [vmem:[%s2 + $0x88] sm:$0xf]
        %v1143 = vld [vmem:[%s2 + $0x8c] sm:$0xf]
        %v1144 = vld [vmem:[%s2 + $0x90] sm:$0xf]
        %v1145 = vld [vmem:[%s2 + $0x94] sm:$0xf]
        %v1146 = vld [vmem:[%s2 + $0x98] sm:$0xf]
        %v1147 = vld [vmem:[%s2 + $0x9c] sm:$0xf]
        %v1148 = vld [vmem:[%s2 + $0xa0] sm:$0xf]
        %v1149 = vld [vmem:[%s2 + $0xa4] sm:$0xf]
        %v1150 = vld [vmem:[%s2 + $0xa8] sm:$0xf]
        %v1151 = vld [vmem:[%s2 + $0xac] sm:$0xf]
        %v1152 = vld [vmem:[%s2 + $0xb0] sm:$0xf]
        %v1153 = vld [vmem:[%s2 + $0xb4] sm:$0xf]
        %v1154 = vld [vmem:[%s2 + $0xb8] sm:$0xf]
        %v1155 = vld [vmem:[%s2 + $0xbc] sm:$0xf]
        %v1156 = vld [vmem:[%s2 + $0xc0] sm:$0xf]
        %v1157 = vld [vmem:[%s2 + $0xc4] sm:$0xf]
        %v1158 = vld [vmem:[%s2 + $0xc8] sm:$0xf]
        %v1159 = vld [vmem:[%s2 + $0xcc] sm:$0xf]
        %v1160 = vld [vmem:[%s2 + $0xd0] sm:$0xf]
        %v1161 = vld [vmem:[%s2 + $0xd4] sm:$0xf]
        %v1162 = vld [vmem:[%s2 + $0xd8] sm:$0xf]
        %v1163 = vld [vmem:[%s2 + $0xdc] sm:$0xf]
        %v1164 = vld [vmem:[%s2 + $0xe0] sm:$0xf]
        %v1165 = vld [vmem:[%s2 + $0xe4] sm:$0xf]
        %v1166 = vld [vmem:[%s2 + $0xe8] sm:$0xf]
        %v1167 = vld [vmem:[%s2 + $0xec] sm:$0xf]
        %v1168 = vld [vmem:[%s4] sm:$0xf]
        %v1169 = vld [vmem:[%s4 + $0x4] sm:$0xf]
        %v1170 = vld [vmem:[%s4 + $0x8] sm:$0xf]
        %v1171 = vld [vmem:[%s4 + $0xc] sm:$0xf]
        %v1172 = vld [vmem:[%s4 + $0x10] sm:$0xf]
        %v1173 = vld [vmem:[%s4 + $0x14] sm:$0xf]
        %v1174 = vld [vmem:[%s4 + $0x18] sm:$0xf]
        %v1175 = vld [vmem:[%s4 + $0x1c] sm:$0xf]
        %v1176 = vld [vmem:[%s4 + $0x20] sm:$0xf]
        %v1177 = vld [vmem:[%s4 + $0x24] sm:$0xf]
        %v1178 = vld [vmem:[%s4 + $0x28] sm:$0xf]
        %v1179 = vld [vmem:[%s4 + $0x2c] sm:$0xf]
        %v1180 = vld [vmem:[%s4 + $0x30] sm:$0xf]
        %v1181 = vld [vmem:[%s4 + $0x34] sm:$0xf]
        %v1182 = vld [vmem:[%s4 + $0x38] sm:$0xf]
        %v1183 = vld [vmem:[%s4 + $0x3c] sm:$0xf]
        %v1184 = vld [vmem:[%s4 + $0x40] sm:$0xf]
        %v1185 = vld [vmem:[%s4 + $0x44] sm:$0xf]
        %v1186 = vld [vmem:[%s4 + $0x48] sm:$0xf]
        %v1187 = vld [vmem:[%s4 + $0x4c] sm:$0xf]
        %v1188 = vld [vmem:[%s4 + $0x50] sm:$0xf]
        %v1189 = vld [vmem:[%s4 + $0x54] sm:$0xf]
        %v1190 = vld [vmem:[%s4 + $0x58] sm:$0xf]
        %v1191 = vld [vmem:[%s4 + $0x5c] sm:$0xf]
        %v1192 = vld [vmem:[%s4 + $0x60] sm:$0xf]
        %v1193 = vld [vmem:[%s4 + $0x64] sm:$0xf]
        %v1194 = vld [vmem:[%s4 + $0x68] sm:$0xf]
        %v1195 = vld [vmem:[%s4 + $0x6c] sm:$0xf]
        %v1196 = vld [vmem:[%s4 + $0x70] sm:$0xf]
        %v1197 = vld [vmem:[%s4 + $0x74] sm:$0xf]
        %v1198 = vld [vmem:[%s4 + $0x78] sm:$0xf]
        %v1199 = vld [vmem:[%s4 + $0x7c] sm:$0xf]
        %v1200 = vld [vmem:[%s4 + $0x80] sm:$0xf]
        %v1201 = vld [vmem:[%s4 + $0x84] sm:$0xf]
        %v1202 = vld [vmem:[%s4 + $0x88] sm:$0xf]
        %v1203 = vld [vmem:[%s4 + $0x8c] sm:$0xf]
        %v1204 = vld [vmem:[%s4 + $0x90] sm:$0xf]
        %v1205 = vld [vmem:[%s4 + $0x94] sm:$0xf]
        %v1206 = vld [vmem:[%s4 + $0x98] sm:$0xf]
        %v1207 = vld [vmem:[%s4 + $0x9c] sm:$0xf]
        %v1208 = vld [vmem:[%s4 + $0xa0] sm:$0xf]
        %v1209 = vld [vmem:[%s4 + $0xa4] sm:$0xf]
        %v1210 = vld [vmem:[%s4 + $0xa8] sm:$0xf]
        %v1211 = vld [vmem:[%s4 + $0xac] sm:$0xf]
        %v1212 = vld [vmem:[%s4 + $0xb0] sm:$0xf]
        %v1213 = vld [vmem:[%s4 + $0xb4] sm:$0xf]
        %v1214 = vld [vmem:[%s4 + $0xb8] sm:$0xf]
        %v1215 = vld [vmem:[%s4 + $0xbc] sm:$0xf]
        %v1216 = vld [vmem:[%s4 + $0xc0] sm:$0xf]
        %v1217 = vld [vmem:[%s4 + $0xc4] sm:$0xf]
        %v1218 = vld [vmem:[%s4 + $0xc8] sm:$0xf]
        %v1219 = vld [vmem:[%s4 + $0xcc] sm:$0xf]
        %v1220 = vld [vmem:[%s4 + $0xd0] sm:$0x3]
        %v1221 = vld [vmem:[%s5] sm:$0xf]
        %v1222 = vld [vmem:[%s5 + $0x4] sm:$0xf]
        %v1223 = vld [vmem:[%s5 + $0x8] sm:$0xf]
        %v1224 = vld [vmem:[%s5 + $0xc] sm:$0xf]
        %v1225 = vld [vmem:[%s5 + $0x10] sm:$0xf]
        %v1226 = vld [vmem:[%s5 + $0x14] sm:$0xf]
        %v1227 = vld [vmem:[%s5 + $0x18] sm:$0xf]
        %v1228 = vld [vmem:[%s5 + $0x1c] sm:$0xf]
        %v1229 = vld [vmem:[%s5 + $0x20] sm:$0xf]
        %v1230 = vld [vmem:[%s5 + $0x24] sm:$0xf]
        %v1231 = vld [vmem:[%s5 + $0x28] sm:$0xf]
        %v1232 = vld [vmem:[%s5 + $0x2c] sm:$0xf]
        %v1233 = vld [vmem:[%s5 + $0x30] sm:$0xf]
        %v1234 = vld [vmem:[%s5 + $0x34] sm:$0xf]
        %v1235 = vld [vmem:[%s5 + $0x38] sm:$0xf]
        %v1236 = vld [vmem:[%s5 + $0x3c] sm:$0xf]
        %v1237 = vld [vmem:[%s5 + $0x40] sm:$0xf]
        %v1238 = vld [vmem:[%s5 + $0x44] sm:$0xf]
        %v1239 = vld [vmem:[%s5 + $0x48] sm:$0xf]
        %v1240 = vld [vmem:[%s5 + $0x4c] sm:$0xf]
        %v1241 = vld [vmem:[%s5 + $0x50] sm:$0xf]
        %v1242 = vld [vmem:[%s5 + $0x54] sm:$0xf]
        %v1243 = vld [vmem:[%s5 + $0x58] sm:$0xf]
        %v1244 = vld [vmem:[%s5 + $0x5c] sm:$0xf]
        %v1245 = vld [vmem:[%s5 + $0x60] sm:$0xf]
        %v1246 = vld [vmem:[%s5 + $0x64] sm:$0xf]
        %v1247 = vld [vmem:[%s5 + $0x68] sm:$0xf]
        %v1248 = vld [vmem:[%s5 + $0x6c] sm:$0xf]
        %v1249 = vld [vmem:[%s5 + $0x70] sm:$0xf]
        %v1250 = vld [vmem:[%s5 + $0x74] sm:$0xf]
        %v1251 = vld [vmem:[%s5 + $0x78] sm:$0xf]
        %v1252 = vld [vmem:[%s5 + $0x7c] sm:$0xf]
        %v1253 = vld [vmem:[%s5 + $0x80] sm:$0xf]
        %v1254 = vld [vmem:[%s5 + $0x84] sm:$0xf]
        %v1255 = vld [vmem:[%s5 + $0x88] sm:$0xf]
        %v1256 = vld [vmem:[%s5 + $0x8c] sm:$0xf]
        %v1257 = vld [vmem:[%s5 + $0x90] sm:$0xf]
        %v1258 = vld [vmem:[%s5 + $0x94] sm:$0xf]
        %v1259 = vld [vmem:[%s5 + $0x98] sm:$0xf]
        %v1260 = vld [vmem:[%s5 + $0x9c] sm:$0xf]
        %v1261 = vld [vmem:[%s5 + $0xa0] sm:$0xf]
        %v1262 = vld [vmem:[%s5 + $0xa4] sm:$0xf]
        %v1263 = vld [vmem:[%s5 + $0xa8] sm:$0xf]
        %v1264 = vld [vmem:[%s5 + $0xac] sm:$0xf]
        %v1265 = vld [vmem:[%s5 + $0xb0] sm:$0xf]
        %v1266 = vld [vmem:[%s5 + $0xb4] sm:$0xf]
        %v1267 = vld [vmem:[%s5 + $0xb8] sm:$0xf]
        %v1268 = vld [vmem:[%s5 + $0xbc] sm:$0xf]
        %v1269 = vld [vmem:[%s5 + $0xc0] sm:$0xf]
        %v1270 = vld [vmem:[%s5 + $0xc4] sm:$0xf]
        %v1271 = vld [vmem:[%s5 + $0xc8] sm:$0xf]
        %v1272 = vld [vmem:[%s5 + $0xcc] sm:$0xf]
        %v1273 = vld [vmem:[%s5 + $0xd0] sm:$0x3]
        %v1274 = vld [vmem:[%s13] sm:$0xff]
        %v1275 = vld [vmem:[%s13 + $0x8] sm:$0x3f]
        %v1276 = vld [vmem:[#allocation8] sm:$0xff]
        %v1277 = vld [vmem:[#allocation8 + $0x8] sm:$0x3f]
        %v1278 = vld [vmem:[%s15] sm:$0x1f]
        %v1279 = vld [vmem:[#allocation10] sm:$0x1f]
        %v1280 = vld [vmem:[%s3] sm:$0x1]
        %v1281 = vld [vmem:[%s6] sm:$0x1]
        %vm1286 = vcmask 1046528
        %v1287 = vrot.slane %v1016, 1
        %v1288 = vrot.slane %v1017, 1
        %v1289 = vsel %vm1286, %v1287, %v1288
        %v1290 = vrot.slane %v1018, 1
        %v1291 = vsel %vm1286, %v1288, %v1290
        %v1292 = vrot.slane %v1019, 1
        %v1293 = vsel %vm1286, %v1290, %v1292
        %1294 = vrot.lane.b32.xlu0 %v1289, 96
        %v1295 = vpop.permute.xlu0 %1294
        %1296 = vrot.lane.b32.xlu0 %v1291, 96
        %v1297 = vpop.permute.xlu0 %1296
        %1298 = vrot.lane.b32.xlu0 %v1293, 96
        %v1299 = vpop.permute.xlu0 %1298
        %1300 = vrot.lane.b32.xlu0 %v1292, 96
        %v1301 = vpop.permute.xlu0 %1300
        %vm1306 = vcmask 1045504
        %v1307 = vrot.slane %v1016, 2
        %v1308 = vrot.slane %v1017, 2
        %v1309 = vsel %vm1306, %v1307, %v1308
        %v1310 = vrot.slane %v1018, 2
        %v1311 = vsel %vm1306, %v1308, %v1310
        %v1312 = vrot.slane %v1019, 2
        %v1313 = vsel %vm1306, %v1310, %v1312
        %1314 = vrot.lane.b32.xlu0 %v1309, 64
        %v1315 = vpop.permute.xlu0 %1314
        %1316 = vrot.lane.b32.xlu0 %v1311, 64
        %v1317 = vpop.permute.xlu0 %1316
        %1318 = vrot.lane.b32.xlu0 %v1313, 64
        %v1319 = vpop.permute.xlu0 %1318
        %1320 = vrot.lane.b32.xlu0 %v1312, 64
        %v1321 = vpop.permute.xlu0 %1320
        %vm1326 = vcmask 1044480
        %v1327 = vrot.slane %v1016, 3
        %v1328 = vrot.slane %v1017, 3
        %v1329 = vsel %vm1326, %v1327, %v1328
        %v1330 = vrot.slane %v1018, 3
        %v1331 = vsel %vm1326, %v1328, %v1330
        %v1332 = vrot.slane %v1019, 3
        %v1333 = vsel %vm1326, %v1330, %v1332
        %1334 = vrot.lane.b32.xlu0 %v1329, 32
        %v1335 = vpop.permute.xlu0 %1334
        %1336 = vrot.lane.b32.xlu0 %v1331, 32
        %v1337 = vpop.permute.xlu0 %1336
        %1338 = vrot.lane.b32.xlu0 %v1333, 32
        %v1339 = vpop.permute.xlu0 %1338
        %1340 = vrot.lane.b32.xlu0 %v1332, 32
        %v1341 = vpop.permute.xlu0 %1340
        %vm1346 = vcmask 1043456
        %v1347 = vrot.slane %v1016, 4
        %v1348 = vrot.slane %v1017, 4
        %v1349 = vsel %vm1346, %v1347, %v1348
        %v1350 = vrot.slane %v1018, 4
        %v1351 = vsel %vm1346, %v1348, %v1350
        %v1352 = vrot.slane %v1019, 4
        %v1353 = vsel %vm1346, %v1350, %v1352
        %vm1358 = vcmask 785408
        %v1359 = vsel %vm1358, %v1016, %v1295
        %v1360 = vsel %vm1358, %v1017, %v1297
        %v1361 = vsel %vm1358, %v1018, %v1299
        %v1362 = vsel %vm1358, %v1019, %v1301
        %v1363 = vsel %vm1015, %v1295, %v1315
        %v1364 = vsel %vm1015, %v1297, %v1317
        %v1365 = vsel %vm1015, %v1299, %v1319
        %v1366 = vsel %vm1015, %v1301, %v1321
        %v1367 = vsel %vm982, %v1315, %v1335
        %v1368 = vsel %vm982, %v1317, %v1337
        %v1369 = vsel %vm982, %v1319, %v1339
        %v1370 = vsel %vm982, %v1321, %v1341
        %v1371 = vpack.c.bf16 %v1360, %v1359
        %v1372 = vpack.c.bf16 %v1364, %v1363
        %v1373 = vpack.c.bf16 %v1368, %v1367
        %v1374 = vpack.c.bf16 %v1351, %v1349
        %v1375 = vpack.c.bf16 %v1362, %v1361
        %v1376 = vpack.c.bf16 %v1366, %v1365
        %v1377 = vpack.c.bf16 %v1370, %v1369
        %v1378 = vpack.c.bf16 %v1352, %v1353
        %v1439 = vunpack.c.l.b16 %v1048
        %v1440 = vunpack.c.l.b16 %v1049
        %v1441 = vunpack.c.l.b16 %v1050
        %v1442 = vunpack.c.l.b16 %v1051
        %v1443 = vunpack.c.l.b16 %v1052
        %v1444 = vunpack.c.l.b16 %v1053
        %v1445 = vunpack.c.l.b16 %v1054
        %v1446 = vunpack.c.l.b16 %v1055
        %v1447 = vunpack.c.l.b16 %v1056
        %v1448 = vunpack.c.l.b16 %v1057
        %v1449 = vunpack.c.l.b16 %v1058
        %v1450 = vunpack.c.l.b16 %v1059
        %v1451 = vunpack.c.l.b16 %v1060
        %v1452 = vunpack.c.l.b16 %v1061
        %v1453 = vunpack.c.l.b16 %v1062
        %v1454 = vunpack.c.l.b16 %v1063
        %v1455 = vunpack.c.l.b16 %v1064
        %v1456 = vunpack.c.l.b16 %v1065
        %v1457 = vunpack.c.l.b16 %v1066
        %v1458 = vunpack.c.l.b16 %v1067
        %v1459 = vunpack.c.l.b16 %v1068
        %v1460 = vunpack.c.l.b16 %v1069
        %v1461 = vunpack.c.l.b16 %v1070
        %v1462 = vunpack.c.l.b16 %v1071
        %v1463 = vunpack.c.l.b16 %v1072
        %v1464 = vunpack.c.l.b16 %v1073
        %v1465 = vunpack.c.l.b16 %v1074
        %v1466 = vunpack.c.l.b16 %v1075
        %v1467 = vunpack.c.l.b16 %v1076
        %v1468 = vunpack.c.l.b16 %v1077
        %v1469 = vunpack.c.l.b16 %v1078
        %v1470 = vunpack.c.l.b16 %v1079
        %v1471 = vunpack.c.l.b16 %v1080
        %v1472 = vunpack.c.l.b16 %v1081
        %v1473 = vunpack.c.l.b16 %v1082
        %v1474 = vunpack.c.l.b16 %v1083
        %v1475 = vunpack.c.l.b16 %v1084
        %v1476 = vunpack.c.l.b16 %v1085
        %v1477 = vunpack.c.l.b16 %v1086
        %v1478 = vunpack.c.l.b16 %v1087
        %v1479 = vunpack.c.l.b16 %v1088
        %v1480 = vunpack.c.l.b16 %v1089
        %v1481 = vunpack.c.l.b16 %v1090
        %v1482 = vunpack.c.l.b16 %v1091
        %v1483 = vunpack.c.l.b16 %v1092
        %v1484 = vunpack.c.l.b16 %v1093
        %v1485 = vunpack.c.l.b16 %v1094
        %v1486 = vunpack.c.l.b16 %v1095
        %v1487 = vunpack.c.l.b16 %v1096
        %v1488 = vunpack.c.l.b16 %v1097
        %v1489 = vunpack.c.l.b16 %v1098
        %v1490 = vunpack.c.l.b16 %v1099
        %v1491 = vunpack.c.l.b16 %v1100
        %v1492 = vunpack.c.l.b16 %v1101
        %v1493 = vunpack.c.l.b16 %v1102
        %v1494 = vunpack.c.l.b16 %v1103
        %v1495 = vunpack.c.l.b16 %v1104
        %v1496 = vunpack.c.l.b16 %v1105
        %v1497 = vunpack.c.l.b16 %v1106
        %v1498 = vunpack.c.l.b16 %v1107
        %v1499 = vpack.c.b16 %v1440, %v1439
        %v1500 = vpack.c.b16 %v1442, %v1441
        %v1501 = vpack.c.b16 %v1444, %v1443
        %v1502 = vpack.c.b16 %v1446, %v1445
        %v1503 = vpack.c.b16 %v1448, %v1447
        %v1504 = vpack.c.b16 %v1450, %v1449
        %v1505 = vpack.c.b16 %v1452, %v1451
        %v1506 = vpack.c.b16 %v1454, %v1453
        %v1507 = vpack.c.b16 %v1456, %v1455
        %v1508 = vpack.c.b16 %v1458, %v1457
        %v1509 = vpack.c.b16 %v1460, %v1459
        %v1510 = vpack.c.b16 %v1462, %v1461
        %v1511 = vpack.c.b16 %v1464, %v1463
        %v1512 = vpack.c.b16 %v1466, %v1465
        %v1513 = vpack.c.b16 %v1468, %v1467
        %v1514 = vpack.c.b16 %v1470, %v1469
        %v1515 = vpack.c.b16 %v1472, %v1471
        %v1516 = vpack.c.b16 %v1474, %v1473
        %v1517 = vpack.c.b16 %v1476, %v1475
        %v1518 = vpack.c.b16 %v1478, %v1477
        %v1519 = vpack.c.b16 %v1480, %v1479
        %v1520 = vpack.c.b16 %v1482, %v1481
        %v1521 = vpack.c.b16 %v1484, %v1483
        %v1522 = vpack.c.b16 %v1486, %v1485
        %v1523 = vpack.c.b16 %v1488, %v1487
        %v1524 = vpack.c.b16 %v1490, %v1489
        %v1525 = vpack.c.b16 %v1492, %v1491
        %v1526 = vpack.c.b16 %v1494, %v1493
        %v1527 = vpack.c.b16 %v1496, %v1495
        %v1528 = vpack.c.b16 %v1498, %v1497
        %v1560 = vsel %vm1358, %v1374, 0
        %v1563 = vsel %vm1358, %v1378, 0
        %1565 = vmatpush.bf16.msra.mxu0 %v1506
        %1566 = vmatpush.bf16.msra.mxu0 %v1505
        %1567 = vmatpush.bf16.msra.mxu0 %v1504
        %1568 = vmatpush.bf16.msra.mxu0 %v1503
        %1569 = vmatpush.bf16.msra.mxu0 %v1502
        %1570 = vmatpush.bf16.msra.mxu0 %v1501
        %1571 = vmatpush.bf16.msra.mxu0 %v1500
        %1572 = vmatpush.bf16.msra.mxu0 %v1499
        %1573 = vmatmul.bf16.gmra.mxu0 %v1371
        %v1574 = vpop.f32.mrf.mxu0
        %v1575 = vadd.f32 0.0, %v1574
        %v1576 = vpop.f32.mrf.mxu0
        %v1577 = vadd.f32 0.0, %v1576
        %1578 = vmatmul.bf16.gmra.mxu0 %v1375
        %v1579 = vpop.f32.mrf.mxu0
        %v1580 = vadd.f32 0.0, %v1579
        %v1581 = vpop.f32.mrf.mxu0
        %v1582 = vadd.f32 0.0, %v1581
        %1583 = vdwg.mxu0
        %1584 = vmatpush.bf16.msra.mxu0 %v1514
        %1585 = vmatpush.bf16.msra.mxu0 %v1513
        %1586 = vmatpush.bf16.msra.mxu0 %v1512
        %1587 = vmatpush.bf16.msra.mxu0 %v1511
        %1588 = vmatpush.bf16.msra.mxu0 %v1510
        %1589 = vmatpush.bf16.msra.mxu0 %v1509
        %1590 = vmatpush.bf16.msra.mxu0 %v1508
        %1591 = vmatpush.bf16.msra.mxu0 %v1507
        %1592 = vmatmul.bf16.gmra.mxu0 %v1372
        %v1593 = vpop.f32.mrf.mxu0
        %v1594 = vadd.f32 %v1575, %v1593
        %v1595 = vpop.f32.mrf.mxu0
        %v1596 = vadd.f32 %v1577, %v1595
        %1597 = vmatmul.bf16.gmra.mxu0 %v1376
        %v1598 = vpop.f32.mrf.mxu0
        %v1599 = vadd.f32 %v1580, %v1598
        %v1600 = vpop.f32.mrf.mxu0
        %v1601 = vadd.f32 %v1582, %v1600
        %1602 = vdwg.mxu0
        %1603 = vmatpush.bf16.msra.mxu0 %v1522
        %1604 = vmatpush.bf16.msra.mxu0 %v1521
        %1605 = vmatpush.bf16.msra.mxu0 %v1520
        %1606 = vmatpush.bf16.msra.mxu0 %v1519
        %1607 = vmatpush.bf16.msra.mxu0 %v1518
        %1608 = vmatpush.bf16.msra.mxu0 %v1517
        %1609 = vmatpush.bf16.msra.mxu0 %v1516
        %1610 = vmatpush.bf16.msra.mxu0 %v1515
        %1611 = vmatmul.bf16.gmra.mxu0 %v1373
        %v1612 = vpop.f32.mrf.mxu0
        %v1613 = vadd.f32 %v1594, %v1612
        %v1614 = vpop.f32.mrf.mxu0
        %v1615 = vadd.f32 %v1596, %v1614
        %1616 = vmatmul.bf16.gmra.mxu0 %v1377
        %v1617 = vpop.f32.mrf.mxu0
        %v1618 = vadd.f32 %v1599, %v1617
        %v1619 = vpop.f32.mrf.mxu0
        %v1620 = vadd.f32 %v1601, %v1619
        %1621 = vdwg.mxu0
        %1622 = vmatpush.bf16.msra.mxu0 0
        %1623 = vmatpush.bf16.msra.mxu0 0
        %1624 = vmatpush.bf16.msra.mxu0 %v1528
        %1625 = vmatpush.bf16.msra.mxu0 %v1527
        %1626 = vmatpush.bf16.msra.mxu0 %v1526
        %1627 = vmatpush.bf16.msra.mxu0 %v1525
        %1628 = vmatpush.bf16.msra.mxu0 %v1524
        %1629 = vmatpush.bf16.msra.mxu0 %v1523
        %1630 = vmatmul.bf16.gmra.mxu0 %v1560
        %v1631 = vpop.f32.mrf.mxu0
        %v1632 = vadd.f32 %v1613, %v1631
        %v1633 = vpop.f32.mrf.mxu0
        %v1634 = vadd.f32 %v1615, %v1633
        %1635 = vmatmul.bf16.gmra.mxu0 %v1563
        %v1636 = vpop.f32.mrf.mxu0
        %v1637 = vadd.f32 %v1618, %v1636
        %v1638 = vpop.f32.mrf.mxu0
        %v1639 = vadd.f32 %v1620, %v1638
        %1640 = vdwg.mxu0
        %v1701 = vunpack.c.l.b16 %v1108
        %v1702 = vunpack.c.l.b16 %v1109
        %v1703 = vunpack.c.l.b16 %v1110
        %v1704 = vunpack.c.l.b16 %v1111
        %v1705 = vunpack.c.l.b16 %v1112
        %v1706 = vunpack.c.l.b16 %v1113
        %v1707 = vunpack.c.l.b16 %v1114
        %v1708 = vunpack.c.l.b16 %v1115
        %v1709 = vunpack.c.l.b16 %v1116
        %v1710 = vunpack.c.l.b16 %v1117
        %v1711 = vunpack.c.l.b16 %v1118
        %v1712 = vunpack.c.l.b16 %v1119
        %v1713 = vunpack.c.l.b16 %v1120
        %v1714 = vunpack.c.l.b16 %v1121
        %v1715 = vunpack.c.l.b16 %v1122
        %v1716 = vunpack.c.l.b16 %v1123
        %v1717 = vunpack.c.l.b16 %v1124
        %v1718 = vunpack.c.l.b16 %v1125
        %v1719 = vunpack.c.l.b16 %v1126
        %v1720 = vunpack.c.l.b16 %v1127
        %v1721 = vunpack.c.l.b16 %v1128
        %v1722 = vunpack.c.l.b16 %v1129
        %v1723 = vunpack.c.l.b16 %v1130
        %v1724 = vunpack.c.l.b16 %v1131
        %v1725 = vunpack.c.l.b16 %v1132
        %v1726 = vunpack.c.l.b16 %v1133
        %v1727 = vunpack.c.l.b16 %v1134
        %v1728 = vunpack.c.l.b16 %v1135
        %v1729 = vunpack.c.l.b16 %v1136
        %v1730 = vunpack.c.l.b16 %v1137
        %v1731 = vunpack.c.l.b16 %v1138
        %v1732 = vunpack.c.l.b16 %v1139
        %v1733 = vunpack.c.l.b16 %v1140
        %v1734 = vunpack.c.l.b16 %v1141
        %v1735 = vunpack.c.l.b16 %v1142
        %v1736 = vunpack.c.l.b16 %v1143
        %v1737 = vunpack.c.l.b16 %v1144
        %v1738 = vunpack.c.l.b16 %v1145
        %v1739 = vunpack.c.l.b16 %v1146
        %v1740 = vunpack.c.l.b16 %v1147
        %v1741 = vunpack.c.l.b16 %v1148
        %v1742 = vunpack.c.l.b16 %v1149
        %v1743 = vunpack.c.l.b16 %v1150
        %v1744 = vunpack.c.l.b16 %v1151
        %v1745 = vunpack.c.l.b16 %v1152
        %v1746 = vunpack.c.l.b16 %v1153
        %v1747 = vunpack.c.l.b16 %v1154
        %v1748 = vunpack.c.l.b16 %v1155
        %v1749 = vunpack.c.l.b16 %v1156
        %v1750 = vunpack.c.l.b16 %v1157
        %v1751 = vunpack.c.l.b16 %v1158
        %v1752 = vunpack.c.l.b16 %v1159
        %v1753 = vunpack.c.l.b16 %v1160
        %v1754 = vunpack.c.l.b16 %v1161
        %v1755 = vunpack.c.l.b16 %v1162
        %v1756 = vunpack.c.l.b16 %v1163
        %v1757 = vunpack.c.l.b16 %v1164
        %v1758 = vunpack.c.l.b16 %v1165
        %v1759 = vunpack.c.l.b16 %v1166
        %v1760 = vunpack.c.l.b16 %v1167
        %v1761 = vpack.c.b16 %v1702, %v1701
        %v1762 = vpack.c.b16 %v1704, %v1703
        %v1763 = vpack.c.b16 %v1706, %v1705
        %v1764 = vpack.c.b16 %v1708, %v1707
        %v1765 = vpack.c.b16 %v1710, %v1709
        %v1766 = vpack.c.b16 %v1712, %v1711
        %v1767 = vpack.c.b16 %v1714, %v1713
        %v1768 = vpack.c.b16 %v1716, %v1715
        %v1769 = vpack.c.b16 %v1718, %v1717
        %v1770 = vpack.c.b16 %v1720, %v1719
        %v1771 = vpack.c.b16 %v1722, %v1721
        %v1772 = vpack.c.b16 %v1724, %v1723
        %v1773 = vpack.c.b16 %v1726, %v1725
        %v1774 = vpack.c.b16 %v1728, %v1727
        %v1775 = vpack.c.b16 %v1730, %v1729
        %v1776 = vpack.c.b16 %v1732, %v1731
        %v1777 = vpack.c.b16 %v1734, %v1733
        %v1778 = vpack.c.b16 %v1736, %v1735
        %v1779 = vpack.c.b16 %v1738, %v1737
        %v1780 = vpack.c.b16 %v1740, %v1739
        %v1781 = vpack.c.b16 %v1742, %v1741
        %v1782 = vpack.c.b16 %v1744, %v1743
        %v1783 = vpack.c.b16 %v1746, %v1745
        %v1784 = vpack.c.b16 %v1748, %v1747
        %v1785 = vpack.c.b16 %v1750, %v1749
        %v1786 = vpack.c.b16 %v1752, %v1751
        %v1787 = vpack.c.b16 %v1754, %v1753
        %v1788 = vpack.c.b16 %v1756, %v1755
        %v1789 = vpack.c.b16 %v1758, %v1757
        %v1790 = vpack.c.b16 %v1760, %v1759
        %1821 = vmatpush.bf16.msra.mxu0 %v1768
        %1822 = vmatpush.bf16.msra.mxu0 %v1767
        %1823 = vmatpush.bf16.msra.mxu0 %v1766
        %1824 = vmatpush.bf16.msra.mxu0 %v1765
        %1825 = vmatpush.bf16.msra.mxu0 %v1764
        %1826 = vmatpush.bf16.msra.mxu0 %v1763
        %1827 = vmatpush.bf16.msra.mxu0 %v1762
        %1828 = vmatpush.bf16.msra.mxu0 %v1761
        %1829 = vmatmul.bf16.gmra.mxu0 %v1371
        %v1830 = vpop.f32.mrf.mxu0
        %v1831 = vadd.f32 0.0, %v1830
        %v1832 = vpop.f32.mrf.mxu0
        %v1833 = vadd.f32 0.0, %v1832
        %1834 = vmatmul.bf16.gmra.mxu0 %v1375
        %v1835 = vpop.f32.mrf.mxu0
        %v1836 = vadd.f32 0.0, %v1835
        %v1837 = vpop.f32.mrf.mxu0
        %v1838 = vadd.f32 0.0, %v1837
        %1839 = vdwg.mxu0
        %1840 = vmatpush.bf16.msra.mxu0 %v1776
        %1841 = vmatpush.bf16.msra.mxu0 %v1775
        %1842 = vmatpush.bf16.msra.mxu0 %v1774
        %1843 = vmatpush.bf16.msra.mxu0 %v1773
        %1844 = vmatpush.bf16.msra.mxu0 %v1772
        %1845 = vmatpush.bf16.msra.mxu0 %v1771
        %1846 = vmatpush.bf16.msra.mxu0 %v1770
        %1847 = vmatpush.bf16.msra.mxu0 %v1769
        %1848 = vmatmul.bf16.gmra.mxu0 %v1372
        %v1849 = vpop.f32.mrf.mxu0
        %v1850 = vadd.f32 %v1831, %v1849
        %v1851 = vpop.f32.mrf.mxu0
        %v1852 = vadd.f32 %v1833, %v1851
        %1853 = vmatmul.bf16.gmra.mxu0 %v1376
        %v1854 = vpop.f32.mrf.mxu0
        %v1855 = vadd.f32 %v1836, %v1854
        %v1856 = vpop.f32.mrf.mxu0
        %v1857 = vadd.f32 %v1838, %v1856
        %1858 = vdwg.mxu0
        %1859 = vmatpush.bf16.msra.mxu0 %v1784
        %1860 = vmatpush.bf16.msra.mxu0 %v1783
        %1861 = vmatpush.bf16.msra.mxu0 %v1782
        %1862 = vmatpush.bf16.msra.mxu0 %v1781
        %1863 = vmatpush.bf16.msra.mxu0 %v1780
        %1864 = vmatpush.bf16.msra.mxu0 %v1779
        %1865 = vmatpush.bf16.msra.mxu0 %v1778
        %1866 = vmatpush.bf16.msra.mxu0 %v1777
        %1867 = vmatmul.bf16.gmra.mxu0 %v1373
        %v1868 = vpop.f32.mrf.mxu0
        %v1869 = vadd.f32 %v1850, %v1868
        %v1870 = vpop.f32.mrf.mxu0
        %v1871 = vadd.f32 %v1852, %v1870
        %1872 = vmatmul.bf16.gmra.mxu0 %v1377
        %v1873 = vpop.f32.mrf.mxu0
        %v1874 = vadd.f32 %v1855, %v1873
        %v1875 = vpop.f32.mrf.mxu0
        %v1876 = vadd.f32 %v1857, %v1875
        %1877 = vdwg.mxu0
        %1878 = vmatpush.bf16.msra.mxu0 0
        %1879 = vmatpush.bf16.msra.mxu0 0
        %1880 = vmatpush.bf16.msra.mxu0 %v1790
        %1881 = vmatpush.bf16.msra.mxu0 %v1789
        %1882 = vmatpush.bf16.msra.mxu0 %v1788
        %1883 = vmatpush.bf16.msra.mxu0 %v1787
        %1884 = vmatpush.bf16.msra.mxu0 %v1786
        %1885 = vmatpush.bf16.msra.mxu0 %v1785
        %1886 = vmatmul.bf16.gmra.mxu0 %v1560
        %v1887 = vpop.f32.mrf.mxu0
        %v1888 = vadd.f32 %v1869, %v1887
        %v1889 = vpop.f32.mrf.mxu0
        %v1890 = vadd.f32 %v1871, %v1889
        %1891 = vmatmul.bf16.gmra.mxu0 %v1563
        %v1892 = vpop.f32.mrf.mxu0
        %v1893 = vadd.f32 %v1874, %v1892
        %v1894 = vpop.f32.mrf.mxu0
        %v1895 = vadd.f32 %v1876, %v1894
        %1896 = vdwg.mxu0
        %v1897 = vmax.f32 %v1632, %v1888
        %v1898 = vmax.f32 %v1634, %v1890
        %v1899 = vmax.f32 %v1637, %v1893
        %v1900 = vmax.f32 %v1639, %v1895
        %vm1901 = vcmask 228352
        %v1903 = vsel %vm1901, %v1274, 0
        %v1906 = vsel %vm1901, %v1275, 0
        %v1909 = vsel %vm1346, %v1900, 0
        %1911 = vmatpush.msra.mxu0 0.0
        %1912 = vmatpush.msra.mxu0 0.0
        %1913 = vmatpush.msra.mxu0 0.0
        %1914 = vmatpush.msra.mxu0 0.0
        %1915 = vmatpush.msra.mxu0 0.0
        %1916 = vmatpush.msra.mxu0 0.0
        %1917 = vmatpush.msra.mxu0 0.0
        %1918 = vmatpush.msra.mxu0 0.0
        %1919 = vmatpush.msra.mxu0 0.0
        %1920 = vmatpush.msra.mxu0 0.0
        %1921 = vmatpush.msra.mxu0 0.0
        %1922 = vmatpush.msra.mxu0 0.0
        %1923 = vmatpush.msra.mxu0 %v1909
        %1924 = vmatpush.msra.mxu0 %v1899
        %1925 = vmatpush.msra.mxu0 %v1898
        %1926 = vmatpush.msra.mxu0 %v1897
        %1927 = vmatmul.f32.gmra.mxu0 %v1903
        %v1928 = vpop.f32.mrf.mxu0
        %v1929 = vadd.f32 0.0, %v1928
        %1930 = vmatmul.f32.gmra.mxu0 %v1906
        %v1931 = vpop.f32.mrf.mxu0
        %v1932 = vadd.f32 0.0, %v1931
        %1933 = vdwg.mxu0
        %v1935 = vsel %vm1901, %v1276, 0
        %v1938 = vsel %vm1901, %v1277, 0
        %1940 = vmatpush.msra.mxu0 0.0
        %1941 = vmatpush.msra.mxu0 0.0
        %1942 = vmatpush.msra.mxu0 0.0
        %1943 = vmatpush.msra.mxu0 0.0
        %1944 = vmatpush.msra.mxu0 0.0
        %1945 = vmatpush.msra.mxu0 0.0
        %1946 = vmatpush.msra.mxu0 0.0
        %1947 = vmatpush.msra.mxu0 0.0
        %1948 = vmatpush.msra.mxu0 0.0
        %1949 = vmatpush.msra.mxu0 0.0
        %1950 = vmatpush.msra.mxu0 0.0
        %1951 = vmatpush.msra.mxu0 0.0
        %1952 = vmatpush.msra.mxu0 %v1909
        %1953 = vmatpush.msra.mxu0 %v1899
        %1954 = vmatpush.msra.mxu0 %v1898
        %1955 = vmatpush.msra.mxu0 %v1897
        %1956 = vmatmul.f32.gmra.mxu0 %v1935
        %v1957 = vpop.f32.mrf.mxu0
        %v1958 = vadd.f32 0.0, %v1957
        %1959 = vmatmul.f32.gmra.mxu0 %v1938
        %v1960 = vpop.f32.mrf.mxu0
        %v1961 = vadd.f32 0.0, %v1960
        %1962 = vdwg.mxu0
        %v1963 = vmax.f32 %v1929, %v1958
        %v1964 = vmax.f32 %v1932, %v1961
        %v1966 = vperm.slane %v1280, 0
        %v1968 = vadd.f32 %v1963, %v1966
        %v1969 = vadd.f32 %v1964, %v1966
        %v1970 = vmax.f32 %v1968, 0.0
        %v1971 = vmax.f32 %v1969, 0.0
        %v1974 = vrot.slane %v1970, 1
        %v1975 = vrot.slane %v1971, 1
        %v1976 = vsel %vm1286, %v1974, %v1975
        %1977 = vrot.lane.b32.xlu0 %v1976, 84
        %v1978 = vpop.permute.xlu0 %1977
        %1979 = vrot.lane.b32.xlu0 %v1975, 84
        %v1980 = vpop.permute.xlu0 %1979
        %v1983 = vrot.slane %v1970, 2
        %v1984 = vrot.slane %v1971, 2
        %v1985 = vsel %vm1306, %v1983, %v1984
        %1986 = vrot.lane.b32.xlu0 %v1985, 40
        %v1987 = vpop.permute.xlu0 %1986
        %1988 = vrot.lane.b32.xlu0 %v1984, 40
        %v1989 = vpop.permute.xlu0 %1988
        %v1992 = vrot.slane %v1970, 3
        %v1993 = vrot.slane %v1971, 3
        %v1994 = vsel %vm1326, %v1992, %v1993
        %1995 = vrot.lane.b32.xlu0 %v1994, 124
        %v1996 = vpop.permute.xlu0 %1995
        %1997 = vrot.lane.b32.xlu0 %v1993, 124
        %v1998 = vpop.permute.xlu0 %1997
        %v2001 = vrot.slane %v1970, 4
        %v2002 = vrot.slane %v1971, 4
        %v2003 = vsel %vm1346, %v2001, %v2002
        %2004 = vrot.lane.b32.xlu0 %v2003, 80
        %v2005 = vpop.permute.xlu0 %2004
        %2006 = vrot.lane.b32.xlu0 %v2002, 80
        %v2007 = vpop.permute.xlu0 %2006
        %vm2010 = vcmask 687104
        %v2011 = vsel %vm2010, %v1970, %v1978
        %v2012 = vsel %vm2010, %v1971, %v1980
        %vm2013 = vcmask 326656
        %v2014 = vsel %vm2013, %v1978, %v1987
        %v2015 = vsel %vm2013, %v1980, %v1989
        %vm2016 = vcmask 1014784
        %v2017 = vsel %vm2016, %v2014, %v1996
        %v2018 = vsel %vm2016, %v2015, %v1998
        %vm2019 = vcmask 654336
        %v2020 = vsel %vm2019, %v1996, %v2005
        %v2021 = vsel %vm2019, %v1998, %v2007
        %v2022 = vpack.c.bf16 %v2012, %v2011
        %v2023 = vpack.c.bf16 %v2018, %v2017
        %v2024 = vpack.c.bf16 %v2021, %v2020
        %v2025 = vpack.c.bf16 %v2007, %v2005
        %v2079 = vunpack.c.l.b16 %v1168
        %v2080 = vunpack.c.l.b16 %v1169
        %v2081 = vunpack.c.l.b16 %v1170
        %v2082 = vunpack.c.l.b16 %v1171
        %v2083 = vunpack.c.l.b16 %v1172
        %v2084 = vunpack.c.l.b16 %v1173
        %v2085 = vunpack.c.l.b16 %v1174
        %v2086 = vunpack.c.l.b16 %v1175
        %v2087 = vunpack.c.l.b16 %v1176
        %v2088 = vunpack.c.l.b16 %v1177
        %v2089 = vunpack.c.l.b16 %v1178
        %v2090 = vunpack.c.l.b16 %v1179
        %v2091 = vunpack.c.l.b16 %v1180
        %v2092 = vunpack.c.l.b16 %v1181
        %v2093 = vunpack.c.l.b16 %v1182
        %v2094 = vunpack.c.l.b16 %v1183
        %v2095 = vunpack.c.l.b16 %v1184
        %v2096 = vunpack.c.l.b16 %v1185
        %v2097 = vunpack.c.l.b16 %v1186
        %v2098 = vunpack.c.l.b16 %v1187
        %v2099 = vunpack.c.l.b16 %v1188
        %v2100 = vunpack.c.l.b16 %v1189
        %v2101 = vunpack.c.l.b16 %v1190
        %v2102 = vunpack.c.l.b16 %v1191
        %v2103 = vunpack.c.l.b16 %v1192
        %v2104 = vunpack.c.l.b16 %v1193
        %v2105 = vunpack.c.l.b16 %v1194
        %v2106 = vunpack.c.l.b16 %v1195
        %v2107 = vunpack.c.l.b16 %v1196
        %v2108 = vunpack.c.l.b16 %v1197
        %v2109 = vunpack.c.l.b16 %v1198
        %v2110 = vunpack.c.l.b16 %v1199
        %v2111 = vunpack.c.l.b16 %v1200
        %v2112 = vunpack.c.l.b16 %v1201
        %v2113 = vunpack.c.l.b16 %v1202
        %v2114 = vunpack.c.l.b16 %v1203
        %v2115 = vunpack.c.l.b16 %v1204
        %v2116 = vunpack.c.l.b16 %v1205
        %v2117 = vunpack.c.l.b16 %v1206
        %v2118 = vunpack.c.l.b16 %v1207
        %v2119 = vunpack.c.l.b16 %v1208
        %v2120 = vunpack.c.l.b16 %v1209
        %v2121 = vunpack.c.l.b16 %v1210
        %v2122 = vunpack.c.l.b16 %v1211
        %v2123 = vunpack.c.l.b16 %v1212
        %v2124 = vunpack.c.l.b16 %v1213
        %v2125 = vunpack.c.l.b16 %v1214
        %v2126 = vunpack.c.l.b16 %v1215
        %v2127 = vunpack.c.l.b16 %v1216
        %v2128 = vunpack.c.l.b16 %v1217
        %v2129 = vunpack.c.l.b16 %v1218
        %v2130 = vunpack.c.l.b16 %v1219
        %v2131 = vunpack.c.l.b16 %v1220
        %v2132 = vpack.c.b16 %v2080, %v2079
        %v2133 = vpack.c.b16 %v2082, %v2081
        %v2134 = vpack.c.b16 %v2084, %v2083
        %v2135 = vpack.c.b16 %v2086, %v2085
        %v2136 = vpack.c.b16 %v2088, %v2087
        %v2137 = vpack.c.b16 %v2090, %v2089
        %v2138 = vpack.c.b16 %v2092, %v2091
        %v2139 = vpack.c.b16 %v2094, %v2093
        %v2140 = vpack.c.b16 %v2096, %v2095
        %v2141 = vpack.c.b16 %v2098, %v2097
        %v2142 = vpack.c.b16 %v2100, %v2099
        %v2143 = vpack.c.b16 %v2102, %v2101
        %v2144 = vpack.c.b16 %v2104, %v2103
        %v2145 = vpack.c.b16 %v2106, %v2105
        %v2146 = vpack.c.b16 %v2108, %v2107
        %v2147 = vpack.c.b16 %v2110, %v2109
        %v2148 = vpack.c.b16 %v2112, %v2111
        %v2149 = vpack.c.b16 %v2114, %v2113
        %v2150 = vpack.c.b16 %v2116, %v2115
        %v2151 = vpack.c.b16 %v2118, %v2117
        %v2152 = vpack.c.b16 %v2120, %v2119
        %v2153 = vpack.c.b16 %v2122, %v2121
        %v2154 = vpack.c.b16 %v2124, %v2123
        %v2155 = vpack.c.b16 %v2126, %v2125
        %v2156 = vpack.c.b16 %v2128, %v2127
        %v2157 = vpack.c.b16 %v2130, %v2129
        %v2158 = vpack.c.b16 %v2131, %v2131
        %vm2185 = vcmask 293888
        %v2187 = vsel %vm2185, %v2025, 0
        %vm2189 = vcmask 1041408
        %v2191 = vsel %vm2189, %v2158, 0
        %2193 = vmatpush.bf16.msra.mxu0 %v2139
        %2194 = vmatpush.bf16.msra.mxu0 %v2138
        %2195 = vmatpush.bf16.msra.mxu0 %v2137
        %2196 = vmatpush.bf16.msra.mxu0 %v2136
        %2197 = vmatpush.bf16.msra.mxu0 %v2135
        %2198 = vmatpush.bf16.msra.mxu0 %v2134
        %2199 = vmatpush.bf16.msra.mxu0 %v2133
        %2200 = vmatpush.bf16.msra.mxu0 %v2132
        %2201 = vmatmul.bf16.gmra.mxu0 %v2022
        %v2202 = vpop.f32.mrf.mxu0
        %v2203 = vadd.f32 0.0, %v2202
        %v2204 = vpop.f32.mrf.mxu0
        %v2205 = vadd.f32 0.0, %v2204
        %2206 = vdwg.mxu0
        %2207 = vmatpush.bf16.msra.mxu0 %v2147
        %2208 = vmatpush.bf16.msra.mxu0 %v2146
        %2209 = vmatpush.bf16.msra.mxu0 %v2145
        %2210 = vmatpush.bf16.msra.mxu0 %v2144
        %2211 = vmatpush.bf16.msra.mxu0 %v2143
        %2212 = vmatpush.bf16.msra.mxu0 %v2142
        %2213 = vmatpush.bf16.msra.mxu0 %v2141
        %2214 = vmatpush.bf16.msra.mxu0 %v2140
        %2215 = vmatmul.bf16.gmra.mxu0 %v2023
        %v2216 = vpop.f32.mrf.mxu0
        %v2217 = vadd.f32 %v2203, %v2216
        %v2218 = vpop.f32.mrf.mxu0
        %v2219 = vadd.f32 %v2205, %v2218
        %2220 = vdwg.mxu0
        %2221 = vmatpush.bf16.msra.mxu0 %v2155
        %2222 = vmatpush.bf16.msra.mxu0 %v2154
        %2223 = vmatpush.bf16.msra.mxu0 %v2153
        %2224 = vmatpush.bf16.msra.mxu0 %v2152
        %2225 = vmatpush.bf16.msra.mxu0 %v2151
        %2226 = vmatpush.bf16.msra.mxu0 %v2150
        %2227 = vmatpush.bf16.msra.mxu0 %v2149
        %2228 = vmatpush.bf16.msra.mxu0 %v2148
        %2229 = vmatmul.bf16.gmra.mxu0 %v2024
        %v2230 = vpop.f32.mrf.mxu0
        %v2231 = vadd.f32 %v2217, %v2230
        %v2232 = vpop.f32.mrf.mxu0
        %v2233 = vadd.f32 %v2219, %v2232
        %2234 = vdwg.mxu0
        %2235 = vmatpush.bf16.msra.mxu0 0
        %2236 = vmatpush.bf16.msra.mxu0 0
        %2237 = vmatpush.bf16.msra.mxu0 0
        %2238 = vmatpush.bf16.msra.mxu0 0
        %2239 = vmatpush.bf16.msra.mxu0 0
        %2240 = vmatpush.bf16.msra.mxu0 %v2191
        %2241 = vmatpush.bf16.msra.mxu0 %v2157
        %2242 = vmatpush.bf16.msra.mxu0 %v2156
        %2243 = vmatmul.bf16.gmra.mxu0 %v2187
        %v2244 = vpop.f32.mrf.mxu0
        %v2245 = vadd.f32 %v2231, %v2244
        %v2246 = vpop.f32.mrf.mxu0
        %v2247 = vadd.f32 %v2233, %v2246
        %2248 = vdwg.mxu0
        %v2302 = vunpack.c.l.b16 %v1221
        %v2303 = vunpack.c.l.b16 %v1222
        %v2304 = vunpack.c.l.b16 %v1223
        %v2305 = vunpack.c.l.b16 %v1224
        %v2306 = vunpack.c.l.b16 %v1225
        %v2307 = vunpack.c.l.b16 %v1226
        %v2308 = vunpack.c.l.b16 %v1227
        %v2309 = vunpack.c.l.b16 %v1228
        %v2310 = vunpack.c.l.b16 %v1229
        %v2311 = vunpack.c.l.b16 %v1230
        %v2312 = vunpack.c.l.b16 %v1231
        %v2313 = vunpack.c.l.b16 %v1232
        %v2314 = vunpack.c.l.b16 %v1233
        %v2315 = vunpack.c.l.b16 %v1234
        %v2316 = vunpack.c.l.b16 %v1235
        %v2317 = vunpack.c.l.b16 %v1236
        %v2318 = vunpack.c.l.b16 %v1237
        %v2319 = vunpack.c.l.b16 %v1238
        %v2320 = vunpack.c.l.b16 %v1239
        %v2321 = vunpack.c.l.b16 %v1240
        %v2322 = vunpack.c.l.b16 %v1241
        %v2323 = vunpack.c.l.b16 %v1242
        %v2324 = vunpack.c.l.b16 %v1243
        %v2325 = vunpack.c.l.b16 %v1244
        %v2326 = vunpack.c.l.b16 %v1245
        %v2327 = vunpack.c.l.b16 %v1246
        %v2328 = vunpack.c.l.b16 %v1247
        %v2329 = vunpack.c.l.b16 %v1248
        %v2330 = vunpack.c.l.b16 %v1249
        %v2331 = vunpack.c.l.b16 %v1250
        %v2332 = vunpack.c.l.b16 %v1251
        %v2333 = vunpack.c.l.b16 %v1252
        %v2334 = vunpack.c.l.b16 %v1253
        %v2335 = vunpack.c.l.b16 %v1254
        %v2336 = vunpack.c.l.b16 %v1255
        %v2337 = vunpack.c.l.b16 %v1256
        %v2338 = vunpack.c.l.b16 %v1257
        %v2339 = vunpack.c.l.b16 %v1258
        %v2340 = vunpack.c.l.b16 %v1259
        %v2341 = vunpack.c.l.b16 %v1260
        %v2342 = vunpack.c.l.b16 %v1261
        %v2343 = vunpack.c.l.b16 %v1262
        %v2344 = vunpack.c.l.b16 %v1263
        %v2345 = vunpack.c.l.b16 %v1264
        %v2346 = vunpack.c.l.b16 %v1265
        %v2347 = vunpack.c.l.b16 %v1266
        %v2348 = vunpack.c.l.b16 %v1267
        %v2349 = vunpack.c.l.b16 %v1268
        %v2350 = vunpack.c.l.b16 %v1269
        %v2351 = vunpack.c.l.b16 %v1270
        %v2352 = vunpack.c.l.b16 %v1271
        %v2353 = vunpack.c.l.b16 %v1272
        %v2354 = vunpack.c.l.b16 %v1273
        %v2355 = vpack.c.b16 %v2303, %v2302
        %v2356 = vpack.c.b16 %v2305, %v2304
        %v2357 = vpack.c.b16 %v2307, %v2306
        %v2358 = vpack.c.b16 %v2309, %v2308
        %v2359 = vpack.c.b16 %v2311, %v2310
        %v2360 = vpack.c.b16 %v2313, %v2312
        %v2361 = vpack.c.b16 %v2315, %v2314
        %v2362 = vpack.c.b16 %v2317, %v2316
        %v2363 = vpack.c.b16 %v2319, %v2318
        %v2364 = vpack.c.b16 %v2321, %v2320
        %v2365 = vpack.c.b16 %v2323, %v2322
        %v2366 = vpack.c.b16 %v2325, %v2324
        %v2367 = vpack.c.b16 %v2327, %v2326
        %v2368 = vpack.c.b16 %v2329, %v2328
        %v2369 = vpack.c.b16 %v2331, %v2330
        %v2370 = vpack.c.b16 %v2333, %v2332
        %v2371 = vpack.c.b16 %v2335, %v2334
        %v2372 = vpack.c.b16 %v2337, %v2336
        %v2373 = vpack.c.b16 %v2339, %v2338
        %v2374 = vpack.c.b16 %v2341, %v2340
        %v2375 = vpack.c.b16 %v2343, %v2342
        %v2376 = vpack.c.b16 %v2345, %v2344
        %v2377 = vpack.c.b16 %v2347, %v2346
        %v2378 = vpack.c.b16 %v2349, %v2348
        %v2379 = vpack.c.b16 %v2351, %v2350
        %v2380 = vpack.c.b16 %v2353, %v2352
        %v2381 = vpack.c.b16 %v2354, %v2354
        %v2409 = vsel %vm2189, %v2381, 0
        %2411 = vmatpush.bf16.msra.mxu0 %v2362
        %2412 = vmatpush.bf16.msra.mxu0 %v2361
        %2413 = vmatpush.bf16.msra.mxu0 %v2360
        %2414 = vmatpush.bf16.msra.mxu0 %v2359
        %2415 = vmatpush.bf16.msra.mxu0 %v2358
        %2416 = vmatpush.bf16.msra.mxu0 %v2357
        %2417 = vmatpush.bf16.msra.mxu0 %v2356
        %2418 = vmatpush.bf16.msra.mxu0 %v2355
        %2419 = vmatmul.bf16.gmra.mxu0 %v2022
        %v2420 = vpop.f32.mrf.mxu0
        %v2421 = vadd.f32 0.0, %v2420
        %v2422 = vpop.f32.mrf.mxu0
        %v2423 = vadd.f32 0.0, %v2422
        %2424 = vdwg.mxu0
        %2425 = vmatpush.bf16.msra.mxu0 %v2370
        %2426 = vmatpush.bf16.msra.mxu0 %v2369
        %2427 = vmatpush.bf16.msra.mxu0 %v2368
        %2428 = vmatpush.bf16.msra.mxu0 %v2367
        %2429 = vmatpush.bf16.msra.mxu0 %v2366
        %2430 = vmatpush.bf16.msra.mxu0 %v2365
        %2431 = vmatpush.bf16.msra.mxu0 %v2364
        %2432 = vmatpush.bf16.msra.mxu0 %v2363
        %2433 = vmatmul.bf16.gmra.mxu0 %v2023
        %v2434 = vpop.f32.mrf.mxu0
        %v2435 = vadd.f32 %v2421, %v2434
        %v2436 = vpop.f32.mrf.mxu0
        %v2437 = vadd.f32 %v2423, %v2436
        %2438 = vdwg.mxu0
        %2439 = vmatpush.bf16.msra.mxu0 %v2378
        %2440 = vmatpush.bf16.msra.mxu0 %v2377
        %2441 = vmatpush.bf16.msra.mxu0 %v2376
        %2442 = vmatpush.bf16.msra.mxu0 %v2375
        %2443 = vmatpush.bf16.msra.mxu0 %v2374
        %2444 = vmatpush.bf16.msra.mxu0 %v2373
        %2445 = vmatpush.bf16.msra.mxu0 %v2372
        %2446 = vmatpush.bf16.msra.mxu0 %v2371
        %2447 = vmatmul.bf16.gmra.mxu0 %v2024
        %v2448 = vpop.f32.mrf.mxu0
        %v2449 = vadd.f32 %v2435, %v2448
        %v2450 = vpop.f32.mrf.mxu0
        %v2451 = vadd.f32 %v2437, %v2450
        %2452 = vdwg.mxu0
        %2453 = vmatpush.bf16.msra.mxu0 0
        %2454 = vmatpush.bf16.msra.mxu0 0
        %2455 = vmatpush.bf16.msra.mxu0 0
        %2456 = vmatpush.bf16.msra.mxu0 0
        %2457 = vmatpush.bf16.msra.mxu0 0
        %2458 = vmatpush.bf16.msra.mxu0 %v2409
        %2459 = vmatpush.bf16.msra.mxu0 %v2380
        %2460 = vmatpush.bf16.msra.mxu0 %v2379
        %2461 = vmatmul.bf16.gmra.mxu0 %v2187
        %v2462 = vpop.f32.mrf.mxu0
        %v2463 = vadd.f32 %v2449, %v2462
        %v2464 = vpop.f32.mrf.mxu0
        %v2465 = vadd.f32 %v2451, %v2464
        %2466 = vdwg.mxu0
        %v2467 = vmax.f32 %v2245, %v2463
        %v2468 = vmax.f32 %v2247, %v2465
        %vm2469 = vcmask 80896
        %v2471 = vsel %vm2469, %v1278, 0
        %v2474 = vsel %vm2189, %v2468, 0
        %2476 = vmatpush.msra.mxu0 0.0
        %2477 = vmatpush.msra.mxu0 0.0
        %2478 = vmatpush.msra.mxu0 0.0
        %2479 = vmatpush.msra.mxu0 0.0
        %2480 = vmatpush.msra.mxu0 0.0
        %2481 = vmatpush.msra.mxu0 0.0
        %2482 = vmatpush.msra.mxu0 0.0
        %2483 = vmatpush.msra.mxu0 0.0
        %2484 = vmatpush.msra.mxu0 0.0
        %2485 = vmatpush.msra.mxu0 0.0
        %2486 = vmatpush.msra.mxu0 0.0
        %2487 = vmatpush.msra.mxu0 0.0
        %2488 = vmatpush.msra.mxu0 0.0
        %2489 = vmatpush.msra.mxu0 0.0
        %2490 = vmatpush.msra.mxu0 %v2474
        %2491 = vmatpush.msra.mxu0 %v2467
        %2492 = vmatmul.f32.gmra.mxu0 %v2471
        %v2493 = vpop.f32.mrf.mxu0
        %v2494 = vadd.f32 0.0, %v2493
        %2495 = vdwg.mxu0
        %v2497 = vsel %vm2469, %v1279, 0
        %2499 = vmatpush.msra.mxu0 0.0
        %2500 = vmatpush.msra.mxu0 0.0
        %2501 = vmatpush.msra.mxu0 0.0
        %2502 = vmatpush.msra.mxu0 0.0
        %2503 = vmatpush.msra.mxu0 0.0
        %2504 = vmatpush.msra.mxu0 0.0
        %2505 = vmatpush.msra.mxu0 0.0
        %2506 = vmatpush.msra.mxu0 0.0
        %2507 = vmatpush.msra.mxu0 0.0
        %2508 = vmatpush.msra.mxu0 0.0
        %2509 = vmatpush.msra.mxu0 0.0
        %2510 = vmatpush.msra.mxu0 0.0
        %2511 = vmatpush.msra.mxu0 0.0
        %2512 = vmatpush.msra.mxu0 0.0
        %2513 = vmatpush.msra.mxu0 %v2474
        %2514 = vmatpush.msra.mxu0 %v2467
        %2515 = vmatmul.f32.gmra.mxu0 %v2497
        %v2516 = vpop.f32.mrf.mxu0
        %v2517 = vadd.f32 0.0, %v2516
        %2518 = vdwg.mxu0
        %v2519 = vmax.f32 %v2494, %v2517
        %v2521 = vperm.slane %v1281, 0
        %v2523 = vadd.f32 %v2519, %v2521
        %v2524 = vmax.f32 %v2523, 0.0
        %v2526 = vrot.slane %v2524, 1
        %2527 = vrot.lane.b32.xlu0 %v2526, 80
        %v2528 = vpop.permute.xlu0 %2527
        %v2530 = vrot.slane %v2524, 2
        %2531 = vrot.lane.b32.xlu0 %v2530, 32
        %v2532 = vpop.permute.xlu0 %2531
        %v2534 = vrot.slane %v2524, 3
        %2535 = vrot.lane.b32.xlu0 %v2534, 112
        %v2536 = vpop.permute.xlu0 %2535
        %v2538 = vrot.slane %v2524, 4
        %2539 = vrot.lane.b32.xlu0 %v2538, 64
        %v2540 = vpop.permute.xlu0 %2539
        %v2542 = vsel %vm2019, %v2524, %v2528
        %v2543 = vsel %vm982, %v2528, %v2532
        %vm2544 = vcmask 916480
        %v2545 = vsel %vm2544, %v2543, %v2536
        %v2546 = vsel %vm1015, %v2536, %v2540
        %v2551 = vrot.slane %v1020, 1
        %v2552 = vrot.slane %v1021, 1
        %v2553 = vsel %vm1286, %v2551, %v2552
        %v2554 = vrot.slane %v1022, 1
        %v2555 = vsel %vm1286, %v2552, %v2554
        %v2556 = vrot.slane %v1023, 1
        %v2557 = vsel %vm1286, %v2554, %v2556
        %2558 = vrot.lane.b32.xlu0 %v2553, 96
        %v2559 = vpop.permute.xlu0 %2558
        %2560 = vrot.lane.b32.xlu0 %v2555, 96
        %v2561 = vpop.permute.xlu0 %2560
        %2562 = vrot.lane.b32.xlu0 %v2557, 96
        %v2563 = vpop.permute.xlu0 %2562
        %2564 = vrot.lane.b32.xlu0 %v2556, 96
        %v2565 = vpop.permute.xlu0 %2564
        %v2570 = vrot.slane %v1020, 2
        %v2571 = vrot.slane %v1021, 2
        %v2572 = vsel %vm1306, %v2570, %v2571
        %v2573 = vrot.slane %v1022, 2
        %v2574 = vsel %vm1306, %v2571, %v2573
        %v2575 = vrot.slane %v1023, 2
        %v2576 = vsel %vm1306, %v2573, %v2575
        %2577 = vrot.lane.b32.xlu0 %v2572, 64
        %v2578 = vpop.permute.xlu0 %2577
        %2579 = vrot.lane.b32.xlu0 %v2574, 64
        %v2580 = vpop.permute.xlu0 %2579
        %2581 = vrot.lane.b32.xlu0 %v2576, 64
        %v2582 = vpop.permute.xlu0 %2581
        %2583 = vrot.lane.b32.xlu0 %v2575, 64
        %v2584 = vpop.permute.xlu0 %2583
        %v2589 = vrot.slane %v1020, 3
        %v2590 = vrot.slane %v1021, 3
        %v2591 = vsel %vm1326, %v2589, %v2590
        %v2592 = vrot.slane %v1022, 3
        %v2593 = vsel %vm1326, %v2590, %v2592
        %v2594 = vrot.slane %v1023, 3
        %v2595 = vsel %vm1326, %v2592, %v2594
        %2596 = vrot.lane.b32.xlu0 %v2591, 32
        %v2597 = vpop.permute.xlu0 %2596
        %2598 = vrot.lane.b32.xlu0 %v2593, 32
        %v2599 = vpop.permute.xlu0 %2598
        %2600 = vrot.lane.b32.xlu0 %v2595, 32
        %v2601 = vpop.permute.xlu0 %2600
        %2602 = vrot.lane.b32.xlu0 %v2594, 32
        %v2603 = vpop.permute.xlu0 %2602
        %v2608 = vrot.slane %v1020, 4
        %v2609 = vrot.slane %v1021, 4
        %v2610 = vsel %vm1346, %v2608, %v2609
        %v2611 = vrot.slane %v1022, 4
        %v2612 = vsel %vm1346, %v2609, %v2611
        %v2613 = vrot.slane %v1023, 4
        %v2614 = vsel %vm1346, %v2611, %v2613
        %v2619 = vsel %vm1358, %v1020, %v2559
        %v2620 = vsel %vm1358, %v1021, %v2561
        %v2621 = vsel %vm1358, %v1022, %v2563
        %v2622 = vsel %vm1358, %v1023, %v2565
        %v2623 = vsel %vm1015, %v2559, %v2578
        %v2624 = vsel %vm1015, %v2561, %v2580
        %v2625 = vsel %vm1015, %v2563, %v2582
        %v2626 = vsel %vm1015, %v2565, %v2584
        %v2627 = vsel %vm982, %v2578, %v2597
        %v2628 = vsel %vm982, %v2580, %v2599
        %v2629 = vsel %vm982, %v2582, %v2601
        %v2630 = vsel %vm982, %v2584, %v2603
        %v2631 = vpack.c.bf16 %v2620, %v2619
        %v2632 = vpack.c.bf16 %v2624, %v2623
        %v2633 = vpack.c.bf16 %v2628, %v2627
        %v2634 = vpack.c.bf16 %v2612, %v2610
        %v2635 = vpack.c.bf16 %v2622, %v2621
        %v2636 = vpack.c.bf16 %v2626, %v2625
        %v2637 = vpack.c.bf16 %v2630, %v2629
        %v2638 = vpack.c.bf16 %v2613, %v2614
        %v2640 = vsel %vm1358, %v2634, 0
        %v2643 = vsel %vm1358, %v2638, 0
        %2645 = vmatpush.bf16.msra.mxu0 %v1506
        %2646 = vmatpush.bf16.msra.mxu0 %v1505
        %2647 = vmatpush.bf16.msra.mxu0 %v1504
        %2648 = vmatpush.bf16.msra.mxu0 %v1503
        %2649 = vmatpush.bf16.msra.mxu0 %v1502
        %2650 = vmatpush.bf16.msra.mxu0 %v1501
        %2651 = vmatpush.bf16.msra.mxu0 %v1500
        %2652 = vmatpush.bf16.msra.mxu0 %v1499
        %2653 = vmatmul.bf16.gmra.mxu0 %v2631
        %v2654 = vpop.f32.mrf.mxu0
        %v2655 = vadd.f32 0.0, %v2654
        %v2656 = vpop.f32.mrf.mxu0
        %v2657 = vadd.f32 0.0, %v2656
        %2658 = vmatmul.bf16.gmra.mxu0 %v2635
        %v2659 = vpop.f32.mrf.mxu0
        %v2660 = vadd.f32 0.0, %v2659
        %v2661 = vpop.f32.mrf.mxu0
        %v2662 = vadd.f32 0.0, %v2661
        %2663 = vdwg.mxu0
        %2664 = vmatpush.bf16.msra.mxu0 %v1514
        %2665 = vmatpush.bf16.msra.mxu0 %v1513
        %2666 = vmatpush.bf16.msra.mxu0 %v1512
        %2667 = vmatpush.bf16.msra.mxu0 %v1511
        %2668 = vmatpush.bf16.msra.mxu0 %v1510
        %2669 = vmatpush.bf16.msra.mxu0 %v1509
        %2670 = vmatpush.bf16.msra.mxu0 %v1508
        %2671 = vmatpush.bf16.msra.mxu0 %v1507
        %2672 = vmatmul.bf16.gmra.mxu0 %v2632
        %v2673 = vpop.f32.mrf.mxu0
        %v2674 = vadd.f32 %v2655, %v2673
        %v2675 = vpop.f32.mrf.mxu0
        %v2676 = vadd.f32 %v2657, %v2675
        %2677 = vmatmul.bf16.gmra.mxu0 %v2636
        %v2678 = vpop.f32.mrf.mxu0
        %v2679 = vadd.f32 %v2660, %v2678
        %v2680 = vpop.f32.mrf.mxu0
        %v2681 = vadd.f32 %v2662, %v2680
        %2682 = vdwg.mxu0
        %2683 = vmatpush.bf16.msra.mxu0 %v1522
        %2684 = vmatpush.bf16.msra.mxu0 %v1521
        %2685 = vmatpush.bf16.msra.mxu0 %v1520
        %2686 = vmatpush.bf16.msra.mxu0 %v1519
        %2687 = vmatpush.bf16.msra.mxu0 %v1518
        %2688 = vmatpush.bf16.msra.mxu0 %v1517
        %2689 = vmatpush.bf16.msra.mxu0 %v1516
        %2690 = vmatpush.bf16.msra.mxu0 %v1515
        %2691 = vmatmul.bf16.gmra.mxu0 %v2633
        %v2692 = vpop.f32.mrf.mxu0
        %v2693 = vadd.f32 %v2674, %v2692
        %v2694 = vpop.f32.mrf.mxu0
        %v2695 = vadd.f32 %v2676, %v2694
        %2696 = vmatmul.bf16.gmra.mxu0 %v2637
        %v2697 = vpop.f32.mrf.mxu0
        %v2698 = vadd.f32 %v2679, %v2697
        %v2699 = vpop.f32.mrf.mxu0
        %v2700 = vadd.f32 %v2681, %v2699
        %2701 = vdwg.mxu0
        %2702 = vmatpush.bf16.msra.mxu0 0
        %2703 = vmatpush.bf16.msra.mxu0 0
        %2704 = vmatpush.bf16.msra.mxu0 %v1528
        %2705 = vmatpush.bf16.msra.mxu0 %v1527
        %2706 = vmatpush.bf16.msra.mxu0 %v1526
        %2707 = vmatpush.bf16.msra.mxu0 %v1525
        %2708 = vmatpush.bf16.msra.mxu0 %v1524
        %2709 = vmatpush.bf16.msra.mxu0 %v1523
        %2710 = vmatmul.bf16.gmra.mxu0 %v2640
        %v2711 = vpop.f32.mrf.mxu0
        %v2712 = vadd.f32 %v2693, %v2711
        %v2713 = vpop.f32.mrf.mxu0
        %v2714 = vadd.f32 %v2695, %v2713
        %2715 = vmatmul.bf16.gmra.mxu0 %v2643
        %v2716 = vpop.f32.mrf.mxu0
        %v2717 = vadd.f32 %v2698, %v2716
        %v2718 = vpop.f32.mrf.mxu0
        %v2719 = vadd.f32 %v2700, %v2718
        %2720 = vdwg.mxu0
        %2721 = vmatpush.bf16.msra.mxu0 %v1768
        %2722 = vmatpush.bf16.msra.mxu0 %v1767
        %2723 = vmatpush.bf16.msra.mxu0 %v1766
        %2724 = vmatpush.bf16.msra.mxu0 %v1765
        %2725 = vmatpush.bf16.msra.mxu0 %v1764
        %2726 = vmatpush.bf16.msra.mxu0 %v1763
        %2727 = vmatpush.bf16.msra.mxu0 %v1762
        %2728 = vmatpush.bf16.msra.mxu0 %v1761
        %2729 = vmatmul.bf16.gmra.mxu0 %v2631
        %v2730 = vpop.f32.mrf.mxu0
        %v2731 = vadd.f32 0.0, %v2730
        %v2732 = vpop.f32.mrf.mxu0
        %v2733 = vadd.f32 0.0, %v2732
        %2734 = vmatmul.bf16.gmra.mxu0 %v2635
        %v2735 = vpop.f32.mrf.mxu0
        %v2736 = vadd.f32 0.0, %v2735
        %v2737 = vpop.f32.mrf.mxu0
        %v2738 = vadd.f32 0.0, %v2737
        %2739 = vdwg.mxu0
        %2740 = vmatpush.bf16.msra.mxu0 %v1776
        %2741 = vmatpush.bf16.msra.mxu0 %v1775
        %2742 = vmatpush.bf16.msra.mxu0 %v1774
        %2743 = vmatpush.bf16.msra.mxu0 %v1773
        %2744 = vmatpush.bf16.msra.mxu0 %v1772
        %2745 = vmatpush.bf16.msra.mxu0 %v1771
        %2746 = vmatpush.bf16.msra.mxu0 %v1770
        %2747 = vmatpush.bf16.msra.mxu0 %v1769
        %2748 = vmatmul.bf16.gmra.mxu0 %v2632
        %v2749 = vpop.f32.mrf.mxu0
        %v2750 = vadd.f32 %v2731, %v2749
        %v2751 = vpop.f32.mrf.mxu0
        %v2752 = vadd.f32 %v2733, %v2751
        %2753 = vmatmul.bf16.gmra.mxu0 %v2636
        %v2754 = vpop.f32.mrf.mxu0
        %v2755 = vadd.f32 %v2736, %v2754
        %v2756 = vpop.f32.mrf.mxu0
        %v2757 = vadd.f32 %v2738, %v2756
        %2758 = vdwg.mxu0
        %2759 = vmatpush.bf16.msra.mxu0 %v1784
        %2760 = vmatpush.bf16.msra.mxu0 %v1783
        %2761 = vmatpush.bf16.msra.mxu0 %v1782
        %2762 = vmatpush.bf16.msra.mxu0 %v1781
        %2763 = vmatpush.bf16.msra.mxu0 %v1780
        %2764 = vmatpush.bf16.msra.mxu0 %v1779
        %2765 = vmatpush.bf16.msra.mxu0 %v1778
        %2766 = vmatpush.bf16.msra.mxu0 %v1777
        %2767 = vmatmul.bf16.gmra.mxu0 %v2633
        %v2768 = vpop.f32.mrf.mxu0
        %v2769 = vadd.f32 %v2750, %v2768
        %v2770 = vpop.f32.mrf.mxu0
        %v2771 = vadd.f32 %v2752, %v2770
        %2772 = vmatmul.bf16.gmra.mxu0 %v2637
        %v2773 = vpop.f32.mrf.mxu0
        %v2774 = vadd.f32 %v2755, %v2773
        %v2775 = vpop.f32.mrf.mxu0
        %v2776 = vadd.f32 %v2757, %v2775
        %2777 = vdwg.mxu0
        %2778 = vmatpush.bf16.msra.mxu0 0
        %2779 = vmatpush.bf16.msra.mxu0 0
        %2780 = vmatpush.bf16.msra.mxu0 %v1790
        %2781 = vmatpush.bf16.msra.mxu0 %v1789
        %2782 = vmatpush.bf16.msra.mxu0 %v1788
        %2783 = vmatpush.bf16.msra.mxu0 %v1787
        %2784 = vmatpush.bf16.msra.mxu0 %v1786
        %2785 = vmatpush.bf16.msra.mxu0 %v1785
        %2786 = vmatmul.bf16.gmra.mxu0 %v2640
        %v2787 = vpop.f32.mrf.mxu0
        %v2788 = vadd.f32 %v2769, %v2787
        %v2789 = vpop.f32.mrf.mxu0
        %v2790 = vadd.f32 %v2771, %v2789
        %2791 = vmatmul.bf16.gmra.mxu0 %v2643
        %v2792 = vpop.f32.mrf.mxu0
        %v2793 = vadd.f32 %v2774, %v2792
        %v2794 = vpop.f32.mrf.mxu0
        %v2795 = vadd.f32 %v2776, %v2794
        %2796 = vdwg.mxu0
        %v2797 = vmax.f32 %v2712, %v2788
        %v2798 = vmax.f32 %v2714, %v2790
        %v2799 = vmax.f32 %v2717, %v2793
        %v2800 = vmax.f32 %v2719, %v2795
        %v2802 = vsel %vm1346, %v2800, 0
        %2804 = vmatpush.msra.mxu0 0.0
        %2805 = vmatpush.msra.mxu0 0.0
        %2806 = vmatpush.msra.mxu0 0.0
        %2807 = vmatpush.msra.mxu0 0.0
        %2808 = vmatpush.msra.mxu0 0.0
        %2809 = vmatpush.msra.mxu0 0.0
        %2810 = vmatpush.msra.mxu0 0.0
        %2811 = vmatpush.msra.mxu0 0.0
        %2812 = vmatpush.msra.mxu0 0.0
        %2813 = vmatpush.msra.mxu0 0.0
        %2814 = vmatpush.msra.mxu0 0.0
        %2815 = vmatpush.msra.mxu0 0.0
        %2816 = vmatpush.msra.mxu0 %v2802
        %2817 = vmatpush.msra.mxu0 %v2799
        %2818 = vmatpush.msra.mxu0 %v2798
        %2819 = vmatpush.msra.mxu0 %v2797
        %2820 = vmatmul.f32.gmra.mxu0 %v1903
        %v2821 = vpop.f32.mrf.mxu0
        %v2822 = vadd.f32 0.0, %v2821
        %2823 = vmatmul.f32.gmra.mxu0 %v1906
        %v2824 = vpop.f32.mrf.mxu0
        %v2825 = vadd.f32 0.0, %v2824
        %2826 = vdwg.mxu0
        %2827 = vmatpush.msra.mxu0 0.0
        %2828 = vmatpush.msra.mxu0 0.0
        %2829 = vmatpush.msra.mxu0 0.0
        %2830 = vmatpush.msra.mxu0 0.0
        %2831 = vmatpush.msra.mxu0 0.0
        %2832 = vmatpush.msra.mxu0 0.0
        %2833 = vmatpush.msra.mxu0 0.0
        %2834 = vmatpush.msra.mxu0 0.0
        %2835 = vmatpush.msra.mxu0 0.0
        %2836 = vmatpush.msra.mxu0 0.0
        %2837 = vmatpush.msra.mxu0 0.0
        %2838 = vmatpush.msra.mxu0 0.0
        %2839 = vmatpush.msra.mxu0 %v2802
        %2840 = vmatpush.msra.mxu0 %v2799
        %2841 = vmatpush.msra.mxu0 %v2798
        %2842 = vmatpush.msra.mxu0 %v2797
        %2843 = vmatmul.f32.gmra.mxu0 %v1935
        %v2844 = vpop.f32.mrf.mxu0
        %v2845 = vadd.f32 0.0, %v2844
        %2846 = vmatmul.f32.gmra.mxu0 %v1938
        %v2847 = vpop.f32.mrf.mxu0
        %v2848 = vadd.f32 0.0, %v2847
        %2849 = vdwg.mxu0
        %v2850 = vmax.f32 %v2822, %v2845
        %v2851 = vmax.f32 %v2825, %v2848
        %v2852 = vadd.f32 %v2850, %v1966
        %v2853 = vadd.f32 %v2851, %v1966
        %v2854 = vmax.f32 %v2852, 0.0
        %v2855 = vmax.f32 %v2853, 0.0
        %v2858 = vrot.slane %v2854, 1
        %v2859 = vrot.slane %v2855, 1
        %v2860 = vsel %vm1286, %v2858, %v2859
        %2861 = vrot.lane.b32.xlu0 %v2860, 84
        %v2862 = vpop.permute.xlu0 %2861
        %2863 = vrot.lane.b32.xlu0 %v2859, 84
        %v2864 = vpop.permute.xlu0 %2863
        %v2867 = vrot.slane %v2854, 2
        %v2868 = vrot.slane %v2855, 2
        %v2869 = vsel %vm1306, %v2867, %v2868
        %2870 = vrot.lane.b32.xlu0 %v2869, 40
        %v2871 = vpop.permute.xlu0 %2870
        %2872 = vrot.lane.b32.xlu0 %v2868, 40
        %v2873 = vpop.permute.xlu0 %2872
        %v2876 = vrot.slane %v2854, 3
        %v2877 = vrot.slane %v2855, 3
        %v2878 = vsel %vm1326, %v2876, %v2877
        %2879 = vrot.lane.b32.xlu0 %v2878, 124
        %v2880 = vpop.permute.xlu0 %2879
        %2881 = vrot.lane.b32.xlu0 %v2877, 124
        %v2882 = vpop.permute.xlu0 %2881
        %v2885 = vrot.slane %v2854, 4
        %v2886 = vrot.slane %v2855, 4
        %v2887 = vsel %vm1346, %v2885, %v2886
        %2888 = vrot.lane.b32.xlu0 %v2887, 80
        %v2889 = vpop.permute.xlu0 %2888
        %2890 = vrot.lane.b32.xlu0 %v2886, 80
        %v2891 = vpop.permute.xlu0 %2890
        %v2894 = vsel %vm2010, %v2854, %v2862
        %v2895 = vsel %vm2010, %v2855, %v2864
        %v2896 = vsel %vm2013, %v2862, %v2871
        %v2897 = vsel %vm2013, %v2864, %v2873
        %v2898 = vsel %vm2016, %v2896, %v2880
        %v2899 = vsel %vm2016, %v2897, %v2882
        %v2900 = vsel %vm2019, %v2880, %v2889
        %v2901 = vsel %vm2019, %v2882, %v2891
        %v2902 = vpack.c.bf16 %v2895, %v2894
        %v2903 = vpack.c.bf16 %v2899, %v2898
        %v2904 = vpack.c.bf16 %v2901, %v2900
        %v2905 = vpack.c.bf16 %v2891, %v2889
        %v2907 = vsel %vm2185, %v2905, 0
        %2909 = vmatpush.bf16.msra.mxu0 %v2139
        %2910 = vmatpush.bf16.msra.mxu0 %v2138
        %2911 = vmatpush.bf16.msra.mxu0 %v2137
        %2912 = vmatpush.bf16.msra.mxu0 %v2136
        %2913 = vmatpush.bf16.msra.mxu0 %v2135
        %2914 = vmatpush.bf16.msra.mxu0 %v2134
        %2915 = vmatpush.bf16.msra.mxu0 %v2133
        %2916 = vmatpush.bf16.msra.mxu0 %v2132
        %2917 = vmatmul.bf16.gmra.mxu0 %v2902
        %v2918 = vpop.f32.mrf.mxu0
        %v2919 = vadd.f32 0.0, %v2918
        %v2920 = vpop.f32.mrf.mxu0
        %v2921 = vadd.f32 0.0, %v2920
        %2922 = vdwg.mxu0
        %2923 = vmatpush.bf16.msra.mxu0 %v2147
        %2924 = vmatpush.bf16.msra.mxu0 %v2146
        %2925 = vmatpush.bf16.msra.mxu0 %v2145
        %2926 = vmatpush.bf16.msra.mxu0 %v2144
        %2927 = vmatpush.bf16.msra.mxu0 %v2143
        %2928 = vmatpush.bf16.msra.mxu0 %v2142
        %2929 = vmatpush.bf16.msra.mxu0 %v2141
        %2930 = vmatpush.bf16.msra.mxu0 %v2140
        %2931 = vmatmul.bf16.gmra.mxu0 %v2903
        %v2932 = vpop.f32.mrf.mxu0
        %v2933 = vadd.f32 %v2919, %v2932
        %v2934 = vpop.f32.mrf.mxu0
        %v2935 = vadd.f32 %v2921, %v2934
        %2936 = vdwg.mxu0
        %2937 = vmatpush.bf16.msra.mxu0 %v2155
        %2938 = vmatpush.bf16.msra.mxu0 %v2154
        %2939 = vmatpush.bf16.msra.mxu0 %v2153
        %2940 = vmatpush.bf16.msra.mxu0 %v2152
        %2941 = vmatpush.bf16.msra.mxu0 %v2151
        %2942 = vmatpush.bf16.msra.mxu0 %v2150
        %2943 = vmatpush.bf16.msra.mxu0 %v2149
        %2944 = vmatpush.bf16.msra.mxu0 %v2148
        %2945 = vmatmul.bf16.gmra.mxu0 %v2904
        %v2946 = vpop.f32.mrf.mxu0
        %v2947 = vadd.f32 %v2933, %v2946
        %v2948 = vpop.f32.mrf.mxu0
        %v2949 = vadd.f32 %v2935, %v2948
        %2950 = vdwg.mxu0
        %2951 = vmatpush.bf16.msra.mxu0 0
        %2952 = vmatpush.bf16.msra.mxu0 0
        %2953 = vmatpush.bf16.msra.mxu0 0
        %2954 = vmatpush.bf16.msra.mxu0 0
        %2955 = vmatpush.bf16.msra.mxu0 0
        %2956 = vmatpush.bf16.msra.mxu0 %v2191
        %2957 = vmatpush.bf16.msra.mxu0 %v2157
        %2958 = vmatpush.bf16.msra.mxu0 %v2156
        %2959 = vmatmul.bf16.gmra.mxu0 %v2907
        %v2960 = vpop.f32.mrf.mxu0
        %v2961 = vadd.f32 %v2947, %v2960
        %v2962 = vpop.f32.mrf.mxu0
        %v2963 = vadd.f32 %v2949, %v2962
        %2964 = vdwg.mxu0
        %2965 = vmatpush.bf16.msra.mxu0 %v2362
        %2966 = vmatpush.bf16.msra.mxu0 %v2361
        %2967 = vmatpush.bf16.msra.mxu0 %v2360
        %2968 = vmatpush.bf16.msra.mxu0 %v2359
        %2969 = vmatpush.bf16.msra.mxu0 %v2358
        %2970 = vmatpush.bf16.msra.mxu0 %v2357
        %2971 = vmatpush.bf16.msra.mxu0 %v2356
        %2972 = vmatpush.bf16.msra.mxu0 %v2355
        %2973 = vmatmul.bf16.gmra.mxu0 %v2902
        %v2974 = vpop.f32.mrf.mxu0
        %v2975 = vadd.f32 0.0, %v2974
        %v2976 = vpop.f32.mrf.mxu0
        %v2977 = vadd.f32 0.0, %v2976
        %2978 = vdwg.mxu0
        %2979 = vmatpush.bf16.msra.mxu0 %v2370
        %2980 = vmatpush.bf16.msra.mxu0 %v2369
        %2981 = vmatpush.bf16.msra.mxu0 %v2368
        %2982 = vmatpush.bf16.msra.mxu0 %v2367
        %2983 = vmatpush.bf16.msra.mxu0 %v2366
        %2984 = vmatpush.bf16.msra.mxu0 %v2365
        %2985 = vmatpush.bf16.msra.mxu0 %v2364
        %2986 = vmatpush.bf16.msra.mxu0 %v2363
        %2987 = vmatmul.bf16.gmra.mxu0 %v2903
        %v2988 = vpop.f32.mrf.mxu0
        %v2989 = vadd.f32 %v2975, %v2988
        %v2990 = vpop.f32.mrf.mxu0
        %v2991 = vadd.f32 %v2977, %v2990
        %2992 = vdwg.mxu0
        %2993 = vmatpush.bf16.msra.mxu0 %v2378
        %2994 = vmatpush.bf16.msra.mxu0 %v2377
        %2995 = vmatpush.bf16.msra.mxu0 %v2376
        %2996 = vmatpush.bf16.msra.mxu0 %v2375
        %2997 = vmatpush.bf16.msra.mxu0 %v2374
        %2998 = vmatpush.bf16.msra.mxu0 %v2373
        %2999 = vmatpush.bf16.msra.mxu0 %v2372
        %3000 = vmatpush.bf16.msra.mxu0 %v2371
        %3001 = vmatmul.bf16.gmra.mxu0 %v2904
        %v3002 = vpop.f32.mrf.mxu0
        %v3003 = vadd.f32 %v2989, %v3002
        %v3004 = vpop.f32.mrf.mxu0
        %v3005 = vadd.f32 %v2991, %v3004
        %3006 = vdwg.mxu0
        %3007 = vmatpush.bf16.msra.mxu0 0
        %3008 = vmatpush.bf16.msra.mxu0 0
        %3009 = vmatpush.bf16.msra.mxu0 0
        %3010 = vmatpush.bf16.msra.mxu0 0
        %3011 = vmatpush.bf16.msra.mxu0 0
        %3012 = vmatpush.bf16.msra.mxu0 %v2409
        %3013 = vmatpush.bf16.msra.mxu0 %v2380
        %3014 = vmatpush.bf16.msra.mxu0 %v2379
        %3015 = vmatmul.bf16.gmra.mxu0 %v2907
        %v3016 = vpop.f32.mrf.mxu0
        %v3017 = vadd.f32 %v3003, %v3016
        %v3018 = vpop.f32.mrf.mxu0
        %v3019 = vadd.f32 %v3005, %v3018
        %3020 = vdwg.mxu0
        %v3021 = vmax.f32 %v2961, %v3017
        %v3022 = vmax.f32 %v2963, %v3019
        %v3024 = vsel %vm2189, %v3022, 0
        %3026 = vmatpush.msra.mxu0 0.0
        %3027 = vmatpush.msra.mxu0 0.0
        %3028 = vmatpush.msra.mxu0 0.0
        %3029 = vmatpush.msra.mxu0 0.0
        %3030 = vmatpush.msra.mxu0 0.0
        %3031 = vmatpush.msra.mxu0 0.0
        %3032 = vmatpush.msra.mxu0 0.0
        %3033 = vmatpush.msra.mxu0 0.0
        %3034 = vmatpush.msra.mxu0 0.0
        %3035 = vmatpush.msra.mxu0 0.0
        %3036 = vmatpush.msra.mxu0 0.0
        %3037 = vmatpush.msra.mxu0 0.0
        %3038 = vmatpush.msra.mxu0 0.0
        %3039 = vmatpush.msra.mxu0 0.0
        %3040 = vmatpush.msra.mxu0 %v3024
        %3041 = vmatpush.msra.mxu0 %v3021
        %3042 = vmatmul.f32.gmra.mxu0 %v2471
        %v3043 = vpop.f32.mrf.mxu0
        %v3044 = vadd.f32 0.0, %v3043
        %3045 = vdwg.mxu0
        %3046 = vmatpush.msra.mxu0 0.0
        %3047 = vmatpush.msra.mxu0 0.0
        %3048 = vmatpush.msra.mxu0 0.0
        %3049 = vmatpush.msra.mxu0 0.0
        %3050 = vmatpush.msra.mxu0 0.0
        %3051 = vmatpush.msra.mxu0 0.0
        %3052 = vmatpush.msra.mxu0 0.0
        %3053 = vmatpush.msra.mxu0 0.0
        %3054 = vmatpush.msra.mxu0 0.0
        %3055 = vmatpush.msra.mxu0 0.0
        %3056 = vmatpush.msra.mxu0 0.0
        %3057 = vmatpush.msra.mxu0 0.0
        %3058 = vmatpush.msra.mxu0 0.0
        %3059 = vmatpush.msra.mxu0 0.0
        %3060 = vmatpush.msra.mxu0 %v3024
        %3061 = vmatpush.msra.mxu0 %v3021
        %3062 = vmatmul.f32.gmra.mxu0 %v2497
        %v3063 = vpop.f32.mrf.mxu0
        %v3064 = vadd.f32 0.0, %v3063
        %3065 = vdwg.mxu0
        %v3066 = vmax.f32 %v3044, %v3064
        %v3067 = vadd.f32 %v3066, %v2521
        %v3068 = vmax.f32 %v3067, 0.0
        %v3070 = vrot.slane %v3068, 1
        %3071 = vrot.lane.b32.xlu0 %v3070, 80
        %v3072 = vpop.permute.xlu0 %3071
        %v3074 = vrot.slane %v3068, 2
        %3075 = vrot.lane.b32.xlu0 %v3074, 32
        %v3076 = vpop.permute.xlu0 %3075
        %v3078 = vrot.slane %v3068, 3
        %3079 = vrot.lane.b32.xlu0 %v3078, 112
        %v3080 = vpop.permute.xlu0 %3079
        %v3082 = vrot.slane %v3068, 4
        %3083 = vrot.lane.b32.xlu0 %v3082, 64
        %v3084 = vpop.permute.xlu0 %3083
        %v3086 = vsel %vm2019, %v3068, %v3072
        %v3087 = vsel %vm982, %v3072, %v3076
        %v3088 = vsel %vm2544, %v3087, %v3080
        %v3089 = vsel %vm1015, %v3080, %v3084
        %v3094 = vrot.slane %v1024, 1
        %v3095 = vrot.slane %v1025, 1
        %v3096 = vsel %vm1286, %v3094, %v3095
        %v3097 = vrot.slane %v1026, 1
        %v3098 = vsel %vm1286, %v3095, %v3097
        %v3099 = vrot.slane %v1027, 1
        %v3100 = vsel %vm1286, %v3097, %v3099
        %3101 = vrot.lane.b32.xlu0 %v3096, 96
        %v3102 = vpop.permute.xlu0 %3101
        %3103 = vrot.lane.b32.xlu0 %v3098, 96
        %v3104 = vpop.permute.xlu0 %3103
        %3105 = vrot.lane.b32.xlu0 %v3100, 96
        %v3106 = vpop.permute.xlu0 %3105
        %3107 = vrot.lane.b32.xlu0 %v3099, 96
        %v3108 = vpop.permute.xlu0 %3107
        %v3113 = vrot.slane %v1024, 2
        %v3114 = vrot.slane %v1025, 2
        %v3115 = vsel %vm1306, %v3113, %v3114
        %v3116 = vrot.slane %v1026, 2
        %v3117 = vsel %vm1306, %v3114, %v3116
        %v3118 = vrot.slane %v1027, 2
        %v3119 = vsel %vm1306, %v3116, %v3118
        %3120 = vrot.lane.b32.xlu0 %v3115, 64
        %v3121 = vpop.permute.xlu0 %3120
        %3122 = vrot.lane.b32.xlu0 %v3117, 64
        %v3123 = vpop.permute.xlu0 %3122
        %3124 = vrot.lane.b32.xlu0 %v3119, 64
        %v3125 = vpop.permute.xlu0 %3124
        %3126 = vrot.lane.b32.xlu0 %v3118, 64
        %v3127 = vpop.permute.xlu0 %3126
        %v3132 = vrot.slane %v1024, 3
        %v3133 = vrot.slane %v1025, 3
        %v3134 = vsel %vm1326, %v3132, %v3133
        %v3135 = vrot.slane %v1026, 3
        %v3136 = vsel %vm1326, %v3133, %v3135
        %v3137 = vrot.slane %v1027, 3
        %v3138 = vsel %vm1326, %v3135, %v3137
        %3139 = vrot.lane.b32.xlu0 %v3134, 32
        %v3140 = vpop.permute.xlu0 %3139
        %3141 = vrot.lane.b32.xlu0 %v3136, 32
        %v3142 = vpop.permute.xlu0 %3141
        %3143 = vrot.lane.b32.xlu0 %v3138, 32
        %v3144 = vpop.permute.xlu0 %3143
        %3145 = vrot.lane.b32.xlu0 %v3137, 32
        %v3146 = vpop.permute.xlu0 %3145
        %v3151 = vrot.slane %v1024, 4
        %v3152 = vrot.slane %v1025, 4
        %v3153 = vsel %vm1346, %v3151, %v3152
        %v3154 = vrot.slane %v1026, 4
        %v3155 = vsel %vm1346, %v3152, %v3154
        %v3156 = vrot.slane %v1027, 4
        %v3157 = vsel %vm1346, %v3154, %v3156
        %v3162 = vsel %vm1358, %v1024, %v3102
        %v3163 = vsel %vm1358, %v1025, %v3104
        %v3164 = vsel %vm1358, %v1026, %v3106
        %v3165 = vsel %vm1358, %v1027, %v3108
        %v3166 = vsel %vm1015, %v3102, %v3121
        %v3167 = vsel %vm1015, %v3104, %v3123
        %v3168 = vsel %vm1015, %v3106, %v3125
        %v3169 = vsel %vm1015, %v3108, %v3127
        %v3170 = vsel %vm982, %v3121, %v3140
        %v3171 = vsel %vm982, %v3123, %v3142
        %v3172 = vsel %vm982, %v3125, %v3144
        %v3173 = vsel %vm982, %v3127, %v3146
        %v3174 = vpack.c.bf16 %v3163, %v3162
        %v3175 = vpack.c.bf16 %v3167, %v3166
        %v3176 = vpack.c.bf16 %v3171, %v3170
        %v3177 = vpack.c.bf16 %v3155, %v3153
        %v3178 = vpack.c.bf16 %v3165, %v3164
        %v3179 = vpack.c.bf16 %v3169, %v3168
        %v3180 = vpack.c.bf16 %v3173, %v3172
        %v3181 = vpack.c.bf16 %v3156, %v3157
        %v3183 = vsel %vm1358, %v3177, 0
        %v3186 = vsel %vm1358, %v3181, 0
        %3188 = vmatpush.bf16.msra.mxu0 %v1506
        %3189 = vmatpush.bf16.msra.mxu0 %v1505
        %3190 = vmatpush.bf16.msra.mxu0 %v1504
        %3191 = vmatpush.bf16.msra.mxu0 %v1503
        %3192 = vmatpush.bf16.msra.mxu0 %v1502
        %3193 = vmatpush.bf16.msra.mxu0 %v1501
        %3194 = vmatpush.bf16.msra.mxu0 %v1500
        %3195 = vmatpush.bf16.msra.mxu0 %v1499
        %3196 = vmatmul.bf16.gmra.mxu0 %v3174
        %v3197 = vpop.f32.mrf.mxu0
        %v3198 = vadd.f32 0.0, %v3197
        %v3199 = vpop.f32.mrf.mxu0
        %v3200 = vadd.f32 0.0, %v3199
        %3201 = vmatmul.bf16.gmra.mxu0 %v3178
        %v3202 = vpop.f32.mrf.mxu0
        %v3203 = vadd.f32 0.0, %v3202
        %v3204 = vpop.f32.mrf.mxu0
        %v3205 = vadd.f32 0.0, %v3204
        %3206 = vdwg.mxu0
        %3207 = vmatpush.bf16.msra.mxu0 %v1514
        %3208 = vmatpush.bf16.msra.mxu0 %v1513
        %3209 = vmatpush.bf16.msra.mxu0 %v1512
        %3210 = vmatpush.bf16.msra.mxu0 %v1511
        %3211 = vmatpush.bf16.msra.mxu0 %v1510
        %3212 = vmatpush.bf16.msra.mxu0 %v1509
        %3213 = vmatpush.bf16.msra.mxu0 %v1508
        %3214 = vmatpush.bf16.msra.mxu0 %v1507
        %3215 = vmatmul.bf16.gmra.mxu0 %v3175
        %v3216 = vpop.f32.mrf.mxu0
        %v3217 = vadd.f32 %v3198, %v3216
        %v3218 = vpop.f32.mrf.mxu0
        %v3219 = vadd.f32 %v3200, %v3218
        %3220 = vmatmul.bf16.gmra.mxu0 %v3179
        %v3221 = vpop.f32.mrf.mxu0
        %v3222 = vadd.f32 %v3203, %v3221
        %v3223 = vpop.f32.mrf.mxu0
        %v3224 = vadd.f32 %v3205, %v3223
        %3225 = vdwg.mxu0
        %3226 = vmatpush.bf16.msra.mxu0 %v1522
        %3227 = vmatpush.bf16.msra.mxu0 %v1521
        %3228 = vmatpush.bf16.msra.mxu0 %v1520
        %3229 = vmatpush.bf16.msra.mxu0 %v1519
        %3230 = vmatpush.bf16.msra.mxu0 %v1518
        %3231 = vmatpush.bf16.msra.mxu0 %v1517
        %3232 = vmatpush.bf16.msra.mxu0 %v1516
        %3233 = vmatpush.bf16.msra.mxu0 %v1515
        %3234 = vmatmul.bf16.gmra.mxu0 %v3176
        %v3235 = vpop.f32.mrf.mxu0
        %v3236 = vadd.f32 %v3217, %v3235
        %v3237 = vpop.f32.mrf.mxu0
        %v3238 = vadd.f32 %v3219, %v3237
        %3239 = vmatmul.bf16.gmra.mxu0 %v3180
        %v3240 = vpop.f32.mrf.mxu0
        %v3241 = vadd.f32 %v3222, %v3240
        %v3242 = vpop.f32.mrf.mxu0
        %v3243 = vadd.f32 %v3224, %v3242
        %3244 = vdwg.mxu0
        %3245 = vmatpush.bf16.msra.mxu0 0
        %3246 = vmatpush.bf16.msra.mxu0 0
        %3247 = vmatpush.bf16.msra.mxu0 %v1528
        %3248 = vmatpush.bf16.msra.mxu0 %v1527
        %3249 = vmatpush.bf16.msra.mxu0 %v1526
        %3250 = vmatpush.bf16.msra.mxu0 %v1525
        %3251 = vmatpush.bf16.msra.mxu0 %v1524
        %3252 = vmatpush.bf16.msra.mxu0 %v1523
        %3253 = vmatmul.bf16.gmra.mxu0 %v3183
        %v3254 = vpop.f32.mrf.mxu0
        %v3255 = vadd.f32 %v3236, %v3254
        %v3256 = vpop.f32.mrf.mxu0
        %v3257 = vadd.f32 %v3238, %v3256
        %3258 = vmatmul.bf16.gmra.mxu0 %v3186
        %v3259 = vpop.f32.mrf.mxu0
        %v3260 = vadd.f32 %v3241, %v3259
        %v3261 = vpop.f32.mrf.mxu0
        %v3262 = vadd.f32 %v3243, %v3261
        %3263 = vdwg.mxu0
        %3264 = vmatpush.bf16.msra.mxu0 %v1768
        %3265 = vmatpush.bf16.msra.mxu0 %v1767
        %3266 = vmatpush.bf16.msra.mxu0 %v1766
        %3267 = vmatpush.bf16.msra.mxu0 %v1765
        %3268 = vmatpush.bf16.msra.mxu0 %v1764
        %3269 = vmatpush.bf16.msra.mxu0 %v1763
        %3270 = vmatpush.bf16.msra.mxu0 %v1762
        %3271 = vmatpush.bf16.msra.mxu0 %v1761
        %3272 = vmatmul.bf16.gmra.mxu0 %v3174
        %v3273 = vpop.f32.mrf.mxu0
        %v3274 = vadd.f32 0.0, %v3273
        %v3275 = vpop.f32.mrf.mxu0
        %v3276 = vadd.f32 0.0, %v3275
        %3277 = vmatmul.bf16.gmra.mxu0 %v3178
        %v3278 = vpop.f32.mrf.mxu0
        %v3279 = vadd.f32 0.0, %v3278
        %v3280 = vpop.f32.mrf.mxu0
        %v3281 = vadd.f32 0.0, %v3280
        %3282 = vdwg.mxu0
        %3283 = vmatpush.bf16.msra.mxu0 %v1776
        %3284 = vmatpush.bf16.msra.mxu0 %v1775
        %3285 = vmatpush.bf16.msra.mxu0 %v1774
        %3286 = vmatpush.bf16.msra.mxu0 %v1773
        %3287 = vmatpush.bf16.msra.mxu0 %v1772
        %3288 = vmatpush.bf16.msra.mxu0 %v1771
        %3289 = vmatpush.bf16.msra.mxu0 %v1770
        %3290 = vmatpush.bf16.msra.mxu0 %v1769
        %3291 = vmatmul.bf16.gmra.mxu0 %v3175
        %v3292 = vpop.f32.mrf.mxu0
        %v3293 = vadd.f32 %v3274, %v3292
        %v3294 = vpop.f32.mrf.mxu0
        %v3295 = vadd.f32 %v3276, %v3294
        %3296 = vmatmul.bf16.gmra.mxu0 %v3179
        %v3297 = vpop.f32.mrf.mxu0
        %v3298 = vadd.f32 %v3279, %v3297
        %v3299 = vpop.f32.mrf.mxu0
        %v3300 = vadd.f32 %v3281, %v3299
        %3301 = vdwg.mxu0
        %3302 = vmatpush.bf16.msra.mxu0 %v1784
        %3303 = vmatpush.bf16.msra.mxu0 %v1783
        %3304 = vmatpush.bf16.msra.mxu0 %v1782
        %3305 = vmatpush.bf16.msra.mxu0 %v1781
        %3306 = vmatpush.bf16.msra.mxu0 %v1780
        %3307 = vmatpush.bf16.msra.mxu0 %v1779
        %3308 = vmatpush.bf16.msra.mxu0 %v1778
        %3309 = vmatpush.bf16.msra.mxu0 %v1777
        %3310 = vmatmul.bf16.gmra.mxu0 %v3176
        %v3311 = vpop.f32.mrf.mxu0
        %v3312 = vadd.f32 %v3293, %v3311
        %v3313 = vpop.f32.mrf.mxu0
        %v3314 = vadd.f32 %v3295, %v3313
        %3315 = vmatmul.bf16.gmra.mxu0 %v3180
        %v3316 = vpop.f32.mrf.mxu0
        %v3317 = vadd.f32 %v3298, %v3316
        %v3318 = vpop.f32.mrf.mxu0
        %v3319 = vadd.f32 %v3300, %v3318
        %3320 = vdwg.mxu0
        %3321 = vmatpush.bf16.msra.mxu0 0
        %3322 = vmatpush.bf16.msra.mxu0 0
        %3323 = vmatpush.bf16.msra.mxu0 %v1790
        %3324 = vmatpush.bf16.msra.mxu0 %v1789
        %3325 = vmatpush.bf16.msra.mxu0 %v1788
        %3326 = vmatpush.bf16.msra.mxu0 %v1787
        %3327 = vmatpush.bf16.msra.mxu0 %v1786
        %3328 = vmatpush.bf16.msra.mxu0 %v1785
        %3329 = vmatmul.bf16.gmra.mxu0 %v3183
        %v3330 = vpop.f32.mrf.mxu0
        %v3331 = vadd.f32 %v3312, %v3330
        %v3332 = vpop.f32.mrf.mxu0
        %v3333 = vadd.f32 %v3314, %v3332
        %3334 = vmatmul.bf16.gmra.mxu0 %v3186
        %v3335 = vpop.f32.mrf.mxu0
        %v3336 = vadd.f32 %v3317, %v3335
        %v3337 = vpop.f32.mrf.mxu0
        %v3338 = vadd.f32 %v3319, %v3337
        %3339 = vdwg.mxu0
        %v3340 = vmax.f32 %v3255, %v3331
        %v3341 = vmax.f32 %v3257, %v3333
        %v3342 = vmax.f32 %v3260, %v3336
        %v3343 = vmax.f32 %v3262, %v3338
        %v3345 = vsel %vm1346, %v3343, 0
        %3347 = vmatpush.msra.mxu0 0.0
        %3348 = vmatpush.msra.mxu0 0.0
        %3349 = vmatpush.msra.mxu0 0.0
        %3350 = vmatpush.msra.mxu0 0.0
        %3351 = vmatpush.msra.mxu0 0.0
        %3352 = vmatpush.msra.mxu0 0.0
        %3353 = vmatpush.msra.mxu0 0.0
        %3354 = vmatpush.msra.mxu0 0.0
        %3355 = vmatpush.msra.mxu0 0.0
        %3356 = vmatpush.msra.mxu0 0.0
        %3357 = vmatpush.msra.mxu0 0.0
        %3358 = vmatpush.msra.mxu0 0.0
        %3359 = vmatpush.msra.mxu0 %v3345
        %3360 = vmatpush.msra.mxu0 %v3342
        %3361 = vmatpush.msra.mxu0 %v3341
        %3362 = vmatpush.msra.mxu0 %v3340
        %3363 = vmatmul.f32.gmra.mxu0 %v1903
        %v3364 = vpop.f32.mrf.mxu0
        %v3365 = vadd.f32 0.0, %v3364
        %3366 = vmatmul.f32.gmra.mxu0 %v1906
        %v3367 = vpop.f32.mrf.mxu0
        %v3368 = vadd.f32 0.0, %v3367
        %3369 = vdwg.mxu0
        %3370 = vmatpush.msra.mxu0 0.0
        %3371 = vmatpush.msra.mxu0 0.0
        %3372 = vmatpush.msra.mxu0 0.0
        %3373 = vmatpush.msra.mxu0 0.0
        %3374 = vmatpush.msra.mxu0 0.0
        %3375 = vmatpush.msra.mxu0 0.0
        %3376 = vmatpush.msra.mxu0 0.0
        %3377 = vmatpush.msra.mxu0 0.0
        %3378 = vmatpush.msra.mxu0 0.0
        %3379 = vmatpush.msra.mxu0 0.0
        %3380 = vmatpush.msra.mxu0 0.0
        %3381 = vmatpush.msra.mxu0 0.0
        %3382 = vmatpush.msra.mxu0 %v3345
        %3383 = vmatpush.msra.mxu0 %v3342
        %3384 = vmatpush.msra.mxu0 %v3341
        %3385 = vmatpush.msra.mxu0 %v3340
        %3386 = vmatmul.f32.gmra.mxu0 %v1935
        %v3387 = vpop.f32.mrf.mxu0
        %v3388 = vadd.f32 0.0, %v3387
        %3389 = vmatmul.f32.gmra.mxu0 %v1938
        %v3390 = vpop.f32.mrf.mxu0
        %v3391 = vadd.f32 0.0, %v3390
        %3392 = vdwg.mxu0
        %v3393 = vmax.f32 %v3365, %v3388
        %v3394 = vmax.f32 %v3368, %v3391
        %v3395 = vadd.f32 %v3393, %v1966
        %v3396 = vadd.f32 %v3394, %v1966
        %v3397 = vmax.f32 %v3395, 0.0
        %v3398 = vmax.f32 %v3396, 0.0
        %v3401 = vrot.slane %v3397, 1
        %v3402 = vrot.slane %v3398, 1
        %v3403 = vsel %vm1286, %v3401, %v3402
        %3404 = vrot.lane.b32.xlu0 %v3403, 84
        %v3405 = vpop.permute.xlu0 %3404
        %3406 = vrot.lane.b32.xlu0 %v3402, 84
        %v3407 = vpop.permute.xlu0 %3406
        %v3410 = vrot.slane %v3397, 2
        %v3411 = vrot.slane %v3398, 2
        %v3412 = vsel %vm1306, %v3410, %v3411
        %3413 = vrot.lane.b32.xlu0 %v3412, 40
        %v3414 = vpop.permute.xlu0 %3413
        %3415 = vrot.lane.b32.xlu0 %v3411, 40
        %v3416 = vpop.permute.xlu0 %3415
        %v3419 = vrot.slane %v3397, 3
        %v3420 = vrot.slane %v3398, 3
        %v3421 = vsel %vm1326, %v3419, %v3420
        %3422 = vrot.lane.b32.xlu0 %v3421, 124
        %v3423 = vpop.permute.xlu0 %3422
        %3424 = vrot.lane.b32.xlu0 %v3420, 124
        %v3425 = vpop.permute.xlu0 %3424
        %v3428 = vrot.slane %v3397, 4
        %v3429 = vrot.slane %v3398, 4
        %v3430 = vsel %vm1346, %v3428, %v3429
        %3431 = vrot.lane.b32.xlu0 %v3430, 80
        %v3432 = vpop.permute.xlu0 %3431
        %3433 = vrot.lane.b32.xlu0 %v3429, 80
        %v3434 = vpop.permute.xlu0 %3433
        %v3437 = vsel %vm2010, %v3397, %v3405
        %v3438 = vsel %vm2010, %v3398, %v3407
        %v3439 = vsel %vm2013, %v3405, %v3414
        %v3440 = vsel %vm2013, %v3407, %v3416
        %v3441 = vsel %vm2016, %v3439, %v3423
        %v3442 = vsel %vm2016, %v3440, %v3425
        %v3443 = vsel %vm2019, %v3423, %v3432
        %v3444 = vsel %vm2019, %v3425, %v3434
        %v3445 = vpack.c.bf16 %v3438, %v3437
        %v3446 = vpack.c.bf16 %v3442, %v3441
        %v3447 = vpack.c.bf16 %v3444, %v3443
        %v3448 = vpack.c.bf16 %v3434, %v3432
        %v3450 = vsel %vm2185, %v3448, 0
        %3452 = vmatpush.bf16.msra.mxu0 %v2139
        %3453 = vmatpush.bf16.msra.mxu0 %v2138
        %3454 = vmatpush.bf16.msra.mxu0 %v2137
        %3455 = vmatpush.bf16.msra.mxu0 %v2136
        %3456 = vmatpush.bf16.msra.mxu0 %v2135
        %3457 = vmatpush.bf16.msra.mxu0 %v2134
        %3458 = vmatpush.bf16.msra.mxu0 %v2133
        %3459 = vmatpush.bf16.msra.mxu0 %v2132
        %3460 = vmatmul.bf16.gmra.mxu0 %v3445
        %v3461 = vpop.f32.mrf.mxu0
        %v3462 = vadd.f32 0.0, %v3461
        %v3463 = vpop.f32.mrf.mxu0
        %v3464 = vadd.f32 0.0, %v3463
        %3465 = vdwg.mxu0
        %3466 = vmatpush.bf16.msra.mxu0 %v2147
        %3467 = vmatpush.bf16.msra.mxu0 %v2146
        %3468 = vmatpush.bf16.msra.mxu0 %v2145
        %3469 = vmatpush.bf16.msra.mxu0 %v2144
        %3470 = vmatpush.bf16.msra.mxu0 %v2143
        %3471 = vmatpush.bf16.msra.mxu0 %v2142
        %3472 = vmatpush.bf16.msra.mxu0 %v2141
        %3473 = vmatpush.bf16.msra.mxu0 %v2140
        %3474 = vmatmul.bf16.gmra.mxu0 %v3446
        %v3475 = vpop.f32.mrf.mxu0
        %v3476 = vadd.f32 %v3462, %v3475
        %v3477 = vpop.f32.mrf.mxu0
        %v3478 = vadd.f32 %v3464, %v3477
        %3479 = vdwg.mxu0
        %3480 = vmatpush.bf16.msra.mxu0 %v2155
        %3481 = vmatpush.bf16.msra.mxu0 %v2154
        %3482 = vmatpush.bf16.msra.mxu0 %v2153
        %3483 = vmatpush.bf16.msra.mxu0 %v2152
        %3484 = vmatpush.bf16.msra.mxu0 %v2151
        %3485 = vmatpush.bf16.msra.mxu0 %v2150
        %3486 = vmatpush.bf16.msra.mxu0 %v2149
        %3487 = vmatpush.bf16.msra.mxu0 %v2148
        %3488 = vmatmul.bf16.gmra.mxu0 %v3447
        %v3489 = vpop.f32.mrf.mxu0
        %v3490 = vadd.f32 %v3476, %v3489
        %v3491 = vpop.f32.mrf.mxu0
        %v3492 = vadd.f32 %v3478, %v3491
        %3493 = vdwg.mxu0
        %3494 = vmatpush.bf16.msra.mxu0 0
        %3495 = vmatpush.bf16.msra.mxu0 0
        %3496 = vmatpush.bf16.msra.mxu0 0
        %3497 = vmatpush.bf16.msra.mxu0 0
        %3498 = vmatpush.bf16.msra.mxu0 0
        %3499 = vmatpush.bf16.msra.mxu0 %v2191
        %3500 = vmatpush.bf16.msra.mxu0 %v2157
        %3501 = vmatpush.bf16.msra.mxu0 %v2156
        %3502 = vmatmul.bf16.gmra.mxu0 %v3450
        %v3503 = vpop.f32.mrf.mxu0
        %v3504 = vadd.f32 %v3490, %v3503
        %v3505 = vpop.f32.mrf.mxu0
        %v3506 = vadd.f32 %v3492, %v3505
        %3507 = vdwg.mxu0
        %3508 = vmatpush.bf16.msra.mxu0 %v2362
        %3509 = vmatpush.bf16.msra.mxu0 %v2361
        %3510 = vmatpush.bf16.msra.mxu0 %v2360
        %3511 = vmatpush.bf16.msra.mxu0 %v2359
        %3512 = vmatpush.bf16.msra.mxu0 %v2358
        %3513 = vmatpush.bf16.msra.mxu0 %v2357
        %3514 = vmatpush.bf16.msra.mxu0 %v2356
        %3515 = vmatpush.bf16.msra.mxu0 %v2355
        %3516 = vmatmul.bf16.gmra.mxu0 %v3445
        %v3517 = vpop.f32.mrf.mxu0
        %v3518 = vadd.f32 0.0, %v3517
        %v3519 = vpop.f32.mrf.mxu0
        %v3520 = vadd.f32 0.0, %v3519
        %3521 = vdwg.mxu0
        %3522 = vmatpush.bf16.msra.mxu0 %v2370
        %3523 = vmatpush.bf16.msra.mxu0 %v2369
        %3524 = vmatpush.bf16.msra.mxu0 %v2368
        %3525 = vmatpush.bf16.msra.mxu0 %v2367
        %3526 = vmatpush.bf16.msra.mxu0 %v2366
        %3527 = vmatpush.bf16.msra.mxu0 %v2365
        %3528 = vmatpush.bf16.msra.mxu0 %v2364
        %3529 = vmatpush.bf16.msra.mxu0 %v2363
        %3530 = vmatmul.bf16.gmra.mxu0 %v3446
        %v3531 = vpop.f32.mrf.mxu0
        %v3532 = vadd.f32 %v3518, %v3531
        %v3533 = vpop.f32.mrf.mxu0
        %v3534 = vadd.f32 %v3520, %v3533
        %3535 = vdwg.mxu0
        %3536 = vmatpush.bf16.msra.mxu0 %v2378
        %3537 = vmatpush.bf16.msra.mxu0 %v2377
        %3538 = vmatpush.bf16.msra.mxu0 %v2376
        %3539 = vmatpush.bf16.msra.mxu0 %v2375
        %3540 = vmatpush.bf16.msra.mxu0 %v2374
        %3541 = vmatpush.bf16.msra.mxu0 %v2373
        %3542 = vmatpush.bf16.msra.mxu0 %v2372
        %3543 = vmatpush.bf16.msra.mxu0 %v2371
        %3544 = vmatmul.bf16.gmra.mxu0 %v3447
        %v3545 = vpop.f32.mrf.mxu0
        %v3546 = vadd.f32 %v3532, %v3545
        %v3547 = vpop.f32.mrf.mxu0
        %v3548 = vadd.f32 %v3534, %v3547
        %3549 = vdwg.mxu0
        %3550 = vmatpush.bf16.msra.mxu0 0
        %3551 = vmatpush.bf16.msra.mxu0 0
        %3552 = vmatpush.bf16.msra.mxu0 0
        %3553 = vmatpush.bf16.msra.mxu0 0
        %3554 = vmatpush.bf16.msra.mxu0 0
        %3555 = vmatpush.bf16.msra.mxu0 %v2409
        %3556 = vmatpush.bf16.msra.mxu0 %v2380
        %3557 = vmatpush.bf16.msra.mxu0 %v2379
        %3558 = vmatmul.bf16.gmra.mxu0 %v3450
        %v3559 = vpop.f32.mrf.mxu0
        %v3560 = vadd.f32 %v3546, %v3559
        %v3561 = vpop.f32.mrf.mxu0
        %v3562 = vadd.f32 %v3548, %v3561
        %3563 = vdwg.mxu0
        %v3564 = vmax.f32 %v3504, %v3560
        %v3565 = vmax.f32 %v3506, %v3562
        %v3567 = vsel %vm2189, %v3565, 0
        %3569 = vmatpush.msra.mxu0 0.0
        %3570 = vmatpush.msra.mxu0 0.0
        %3571 = vmatpush.msra.mxu0 0.0
        %3572 = vmatpush.msra.mxu0 0.0
        %3573 = vmatpush.msra.mxu0 0.0
        %3574 = vmatpush.msra.mxu0 0.0
        %3575 = vmatpush.msra.mxu0 0.0
        %3576 = vmatpush.msra.mxu0 0.0
        %3577 = vmatpush.msra.mxu0 0.0
        %3578 = vmatpush.msra.mxu0 0.0
        %3579 = vmatpush.msra.mxu0 0.0
        %3580 = vmatpush.msra.mxu0 0.0
        %3581 = vmatpush.msra.mxu0 0.0
        %3582 = vmatpush.msra.mxu0 0.0
        %3583 = vmatpush.msra.mxu0 %v3567
        %3584 = vmatpush.msra.mxu0 %v3564
        %3585 = vmatmul.f32.gmra.mxu0 %v2471
        %v3586 = vpop.f32.mrf.mxu0
        %v3587 = vadd.f32 0.0, %v3586
        %3588 = vdwg.mxu0
        %3589 = vmatpush.msra.mxu0 0.0
        %3590 = vmatpush.msra.mxu0 0.0
        %3591 = vmatpush.msra.mxu0 0.0
        %3592 = vmatpush.msra.mxu0 0.0
        %3593 = vmatpush.msra.mxu0 0.0
        %3594 = vmatpush.msra.mxu0 0.0
        %3595 = vmatpush.msra.mxu0 0.0
        %3596 = vmatpush.msra.mxu0 0.0
        %3597 = vmatpush.msra.mxu0 0.0
        %3598 = vmatpush.msra.mxu0 0.0
        %3599 = vmatpush.msra.mxu0 0.0
        %3600 = vmatpush.msra.mxu0 0.0
        %3601 = vmatpush.msra.mxu0 0.0
        %3602 = vmatpush.msra.mxu0 0.0
        %3603 = vmatpush.msra.mxu0 %v3567
        %3604 = vmatpush.msra.mxu0 %v3564
        %3605 = vmatmul.f32.gmra.mxu0 %v2497
        %v3606 = vpop.f32.mrf.mxu0
        %v3607 = vadd.f32 0.0, %v3606
        %3608 = vdwg.mxu0
        %v3609 = vmax.f32 %v3587, %v3607
        %v3610 = vadd.f32 %v3609, %v2521
        %v3611 = vmax.f32 %v3610, 0.0
        %v3613 = vrot.slane %v3611, 1
        %3614 = vrot.lane.b32.xlu0 %v3613, 80
        %v3615 = vpop.permute.xlu0 %3614
        %v3617 = vrot.slane %v3611, 2
        %3618 = vrot.lane.b32.xlu0 %v3617, 32
        %v3619 = vpop.permute.xlu0 %3618
        %v3621 = vrot.slane %v3611, 3
        %3622 = vrot.lane.b32.xlu0 %v3621, 112
        %v3623 = vpop.permute.xlu0 %3622
        %v3625 = vrot.slane %v3611, 4
        %3626 = vrot.lane.b32.xlu0 %v3625, 64
        %v3627 = vpop.permute.xlu0 %3626
        %v3629 = vsel %vm2019, %v3611, %v3615
        %v3630 = vsel %vm982, %v3615, %v3619
        %v3631 = vsel %vm2544, %v3630, %v3623
        %v3632 = vsel %vm1015, %v3623, %v3627
        %v3637 = vrot.slane %v1028, 1
        %v3638 = vrot.slane %v1029, 1
        %v3639 = vsel %vm1286, %v3637, %v3638
        %v3640 = vrot.slane %v1030, 1
        %v3641 = vsel %vm1286, %v3638, %v3640
        %v3642 = vrot.slane %v1031, 1
        %v3643 = vsel %vm1286, %v3640, %v3642
        %3644 = vrot.lane.b32.xlu0 %v3639, 96
        %v3645 = vpop.permute.xlu0 %3644
        %3646 = vrot.lane.b32.xlu0 %v3641, 96
        %v3647 = vpop.permute.xlu0 %3646
        %3648 = vrot.lane.b32.xlu0 %v3643, 96
        %v3649 = vpop.permute.xlu0 %3648
        %3650 = vrot.lane.b32.xlu0 %v3642, 96
        %v3651 = vpop.permute.xlu0 %3650
        %v3656 = vrot.slane %v1028, 2
        %v3657 = vrot.slane %v1029, 2
        %v3658 = vsel %vm1306, %v3656, %v3657
        %v3659 = vrot.slane %v1030, 2
        %v3660 = vsel %vm1306, %v3657, %v3659
        %v3661 = vrot.slane %v1031, 2
        %v3662 = vsel %vm1306, %v3659, %v3661
        %3663 = vrot.lane.b32.xlu0 %v3658, 64
        %v3664 = vpop.permute.xlu0 %3663
        %3665 = vrot.lane.b32.xlu0 %v3660, 64
        %v3666 = vpop.permute.xlu0 %3665
        %3667 = vrot.lane.b32.xlu0 %v3662, 64
        %v3668 = vpop.permute.xlu0 %3667
        %3669 = vrot.lane.b32.xlu0 %v3661, 64
        %v3670 = vpop.permute.xlu0 %3669
        %v3675 = vrot.slane %v1028, 3
        %v3676 = vrot.slane %v1029, 3
        %v3677 = vsel %vm1326, %v3675, %v3676
        %v3678 = vrot.slane %v1030, 3
        %v3679 = vsel %vm1326, %v3676, %v3678
        %v3680 = vrot.slane %v1031, 3
        %v3681 = vsel %vm1326, %v3678, %v3680
        %3682 = vrot.lane.b32.xlu0 %v3677, 32
        %v3683 = vpop.permute.xlu0 %3682
        %3684 = vrot.lane.b32.xlu0 %v3679, 32
        %v3685 = vpop.permute.xlu0 %3684
        %3686 = vrot.lane.b32.xlu0 %v3681, 32
        %v3687 = vpop.permute.xlu0 %3686
        %3688 = vrot.lane.b32.xlu0 %v3680, 32
        %v3689 = vpop.permute.xlu0 %3688
        %v3694 = vrot.slane %v1028, 4
        %v3695 = vrot.slane %v1029, 4
        %v3696 = vsel %vm1346, %v3694, %v3695
        %v3697 = vrot.slane %v1030, 4
        %v3698 = vsel %vm1346, %v3695, %v3697
        %v3699 = vrot.slane %v1031, 4
        %v3700 = vsel %vm1346, %v3697, %v3699
        %v3705 = vsel %vm1358, %v1028, %v3645
        %v3706 = vsel %vm1358, %v1029, %v3647
        %v3707 = vsel %vm1358, %v1030, %v3649
        %v3708 = vsel %vm1358, %v1031, %v3651
        %v3709 = vsel %vm1015, %v3645, %v3664
        %v3710 = vsel %vm1015, %v3647, %v3666
        %v3711 = vsel %vm1015, %v3649, %v3668
        %v3712 = vsel %vm1015, %v3651, %v3670
        %v3713 = vsel %vm982, %v3664, %v3683
        %v3714 = vsel %vm982, %v3666, %v3685
        %v3715 = vsel %vm982, %v3668, %v3687
        %v3716 = vsel %vm982, %v3670, %v3689
        %v3717 = vpack.c.bf16 %v3706, %v3705
        %v3718 = vpack.c.bf16 %v3710, %v3709
        %v3719 = vpack.c.bf16 %v3714, %v3713
        %v3720 = vpack.c.bf16 %v3698, %v3696
        %v3721 = vpack.c.bf16 %v3708, %v3707
        %v3722 = vpack.c.bf16 %v3712, %v3711
        %v3723 = vpack.c.bf16 %v3716, %v3715
        %v3724 = vpack.c.bf16 %v3699, %v3700
        %v3726 = vsel %vm1358, %v3720, 0
        %v3729 = vsel %vm1358, %v3724, 0
        %3731 = vmatpush.bf16.msra.mxu0 %v1506
        %3732 = vmatpush.bf16.msra.mxu0 %v1505
        %3733 = vmatpush.bf16.msra.mxu0 %v1504
        %3734 = vmatpush.bf16.msra.mxu0 %v1503
        %3735 = vmatpush.bf16.msra.mxu0 %v1502
        %3736 = vmatpush.bf16.msra.mxu0 %v1501
        %3737 = vmatpush.bf16.msra.mxu0 %v1500
        %3738 = vmatpush.bf16.msra.mxu0 %v1499
        %3739 = vmatmul.bf16.gmra.mxu0 %v3717
        %v3740 = vpop.f32.mrf.mxu0
        %v3741 = vadd.f32 0.0, %v3740
        %v3742 = vpop.f32.mrf.mxu0
        %v3743 = vadd.f32 0.0, %v3742
        %3744 = vmatmul.bf16.gmra.mxu0 %v3721
        %v3745 = vpop.f32.mrf.mxu0
        %v3746 = vadd.f32 0.0, %v3745
        %v3747 = vpop.f32.mrf.mxu0
        %v3748 = vadd.f32 0.0, %v3747
        %3749 = vdwg.mxu0
        %3750 = vmatpush.bf16.msra.mxu0 %v1514
        %3751 = vmatpush.bf16.msra.mxu0 %v1513
        %3752 = vmatpush.bf16.msra.mxu0 %v1512
        %3753 = vmatpush.bf16.msra.mxu0 %v1511
        %3754 = vmatpush.bf16.msra.mxu0 %v1510
        %3755 = vmatpush.bf16.msra.mxu0 %v1509
        %3756 = vmatpush.bf16.msra.mxu0 %v1508
        %3757 = vmatpush.bf16.msra.mxu0 %v1507
        %3758 = vmatmul.bf16.gmra.mxu0 %v3718
        %v3759 = vpop.f32.mrf.mxu0
        %v3760 = vadd.f32 %v3741, %v3759
        %v3761 = vpop.f32.mrf.mxu0
        %v3762 = vadd.f32 %v3743, %v3761
        %3763 = vmatmul.bf16.gmra.mxu0 %v3722
        %v3764 = vpop.f32.mrf.mxu0
        %v3765 = vadd.f32 %v3746, %v3764
        %v3766 = vpop.f32.mrf.mxu0
        %v3767 = vadd.f32 %v3748, %v3766
        %3768 = vdwg.mxu0
        %3769 = vmatpush.bf16.msra.mxu0 %v1522
        %3770 = vmatpush.bf16.msra.mxu0 %v1521
        %3771 = vmatpush.bf16.msra.mxu0 %v1520
        %3772 = vmatpush.bf16.msra.mxu0 %v1519
        %3773 = vmatpush.bf16.msra.mxu0 %v1518
        %3774 = vmatpush.bf16.msra.mxu0 %v1517
        %3775 = vmatpush.bf16.msra.mxu0 %v1516
        %3776 = vmatpush.bf16.msra.mxu0 %v1515
        %3777 = vmatmul.bf16.gmra.mxu0 %v3719
        %v3778 = vpop.f32.mrf.mxu0
        %v3779 = vadd.f32 %v3760, %v3778
        %v3780 = vpop.f32.mrf.mxu0
        %v3781 = vadd.f32 %v3762, %v3780
        %3782 = vmatmul.bf16.gmra.mxu0 %v3723
        %v3783 = vpop.f32.mrf.mxu0
        %v3784 = vadd.f32 %v3765, %v3783
        %v3785 = vpop.f32.mrf.mxu0
        %v3786 = vadd.f32 %v3767, %v3785
        %3787 = vdwg.mxu0
        %3788 = vmatpush.bf16.msra.mxu0 0
        %3789 = vmatpush.bf16.msra.mxu0 0
        %3790 = vmatpush.bf16.msra.mxu0 %v1528
        %3791 = vmatpush.bf16.msra.mxu0 %v1527
        %3792 = vmatpush.bf16.msra.mxu0 %v1526
        %3793 = vmatpush.bf16.msra.mxu0 %v1525
        %3794 = vmatpush.bf16.msra.mxu0 %v1524
        %3795 = vmatpush.bf16.msra.mxu0 %v1523
        %3796 = vmatmul.bf16.gmra.mxu0 %v3726
        %v3797 = vpop.f32.mrf.mxu0
        %v3798 = vadd.f32 %v3779, %v3797
        %v3799 = vpop.f32.mrf.mxu0
        %v3800 = vadd.f32 %v3781, %v3799
        %3801 = vmatmul.bf16.gmra.mxu0 %v3729
        %v3802 = vpop.f32.mrf.mxu0
        %v3803 = vadd.f32 %v3784, %v3802
        %v3804 = vpop.f32.mrf.mxu0
        %v3805 = vadd.f32 %v3786, %v3804
        %3806 = vdwg.mxu0
        %3807 = vmatpush.bf16.msra.mxu0 %v1768
        %3808 = vmatpush.bf16.msra.mxu0 %v1767
        %3809 = vmatpush.bf16.msra.mxu0 %v1766
        %3810 = vmatpush.bf16.msra.mxu0 %v1765
        %3811 = vmatpush.bf16.msra.mxu0 %v1764
        %3812 = vmatpush.bf16.msra.mxu0 %v1763
        %3813 = vmatpush.bf16.msra.mxu0 %v1762
        %3814 = vmatpush.bf16.msra.mxu0 %v1761
        %3815 = vmatmul.bf16.gmra.mxu0 %v3717
        %v3816 = vpop.f32.mrf.mxu0
        %v3817 = vadd.f32 0.0, %v3816
        %v3818 = vpop.f32.mrf.mxu0
        %v3819 = vadd.f32 0.0, %v3818
        %3820 = vmatmul.bf16.gmra.mxu0 %v3721
        %v3821 = vpop.f32.mrf.mxu0
        %v3822 = vadd.f32 0.0, %v3821
        %v3823 = vpop.f32.mrf.mxu0
        %v3824 = vadd.f32 0.0, %v3823
        %3825 = vdwg.mxu0
        %3826 = vmatpush.bf16.msra.mxu0 %v1776
        %3827 = vmatpush.bf16.msra.mxu0 %v1775
        %3828 = vmatpush.bf16.msra.mxu0 %v1774
        %3829 = vmatpush.bf16.msra.mxu0 %v1773
        %3830 = vmatpush.bf16.msra.mxu0 %v1772
        %3831 = vmatpush.bf16.msra.mxu0 %v1771
        %3832 = vmatpush.bf16.msra.mxu0 %v1770
        %3833 = vmatpush.bf16.msra.mxu0 %v1769
        %3834 = vmatmul.bf16.gmra.mxu0 %v3718
        %v3835 = vpop.f32.mrf.mxu0
        %v3836 = vadd.f32 %v3817, %v3835
        %v3837 = vpop.f32.mrf.mxu0
        %v3838 = vadd.f32 %v3819, %v3837
        %3839 = vmatmul.bf16.gmra.mxu0 %v3722
        %v3840 = vpop.f32.mrf.mxu0
        %v3841 = vadd.f32 %v3822, %v3840
        %v3842 = vpop.f32.mrf.mxu0
        %v3843 = vadd.f32 %v3824, %v3842
        %3844 = vdwg.mxu0
        %3845 = vmatpush.bf16.msra.mxu0 %v1784
        %3846 = vmatpush.bf16.msra.mxu0 %v1783
        %3847 = vmatpush.bf16.msra.mxu0 %v1782
        %3848 = vmatpush.bf16.msra.mxu0 %v1781
        %3849 = vmatpush.bf16.msra.mxu0 %v1780
        %3850 = vmatpush.bf16.msra.mxu0 %v1779
        %3851 = vmatpush.bf16.msra.mxu0 %v1778
        %3852 = vmatpush.bf16.msra.mxu0 %v1777
        %3853 = vmatmul.bf16.gmra.mxu0 %v3719
        %v3854 = vpop.f32.mrf.mxu0
        %v3855 = vadd.f32 %v3836, %v3854
        %v3856 = vpop.f32.mrf.mxu0
        %v3857 = vadd.f32 %v3838, %v3856
        %3858 = vmatmul.bf16.gmra.mxu0 %v3723
        %v3859 = vpop.f32.mrf.mxu0
        %v3860 = vadd.f32 %v3841, %v3859
        %v3861 = vpop.f32.mrf.mxu0
        %v3862 = vadd.f32 %v3843, %v3861
        %3863 = vdwg.mxu0
        %3864 = vmatpush.bf16.msra.mxu0 0
        %3865 = vmatpush.bf16.msra.mxu0 0
        %3866 = vmatpush.bf16.msra.mxu0 %v1790
        %3867 = vmatpush.bf16.msra.mxu0 %v1789
        %3868 = vmatpush.bf16.msra.mxu0 %v1788
        %3869 = vmatpush.bf16.msra.mxu0 %v1787
        %3870 = vmatpush.bf16.msra.mxu0 %v1786
        %3871 = vmatpush.bf16.msra.mxu0 %v1785
        %3872 = vmatmul.bf16.gmra.mxu0 %v3726
        %v3873 = vpop.f32.mrf.mxu0
        %v3874 = vadd.f32 %v3855, %v3873
        %v3875 = vpop.f32.mrf.mxu0
        %v3876 = vadd.f32 %v3857, %v3875
        %3877 = vmatmul.bf16.gmra.mxu0 %v3729
        %v3878 = vpop.f32.mrf.mxu0
        %v3879 = vadd.f32 %v3860, %v3878
        %v3880 = vpop.f32.mrf.mxu0
        %v3881 = vadd.f32 %v3862, %v3880
        %3882 = vdwg.mxu0
        %v3883 = vmax.f32 %v3798, %v3874
        %v3884 = vmax.f32 %v3800, %v3876
        %v3885 = vmax.f32 %v3803, %v3879
        %v3886 = vmax.f32 %v3805, %v3881
        %v3888 = vsel %vm1346, %v3886, 0
        %3890 = vmatpush.msra.mxu0 0.0
        %3891 = vmatpush.msra.mxu0 0.0
        %3892 = vmatpush.msra.mxu0 0.0
        %3893 = vmatpush.msra.mxu0 0.0
        %3894 = vmatpush.msra.mxu0 0.0
        %3895 = vmatpush.msra.mxu0 0.0
        %3896 = vmatpush.msra.mxu0 0.0
        %3897 = vmatpush.msra.mxu0 0.0
        %3898 = vmatpush.msra.mxu0 0.0
        %3899 = vmatpush.msra.mxu0 0.0
        %3900 = vmatpush.msra.mxu0 0.0
        %3901 = vmatpush.msra.mxu0 0.0
        %3902 = vmatpush.msra.mxu0 %v3888
        %3903 = vmatpush.msra.mxu0 %v3885
        %3904 = vmatpush.msra.mxu0 %v3884
        %3905 = vmatpush.msra.mxu0 %v3883
        %3906 = vmatmul.f32.gmra.mxu0 %v1903
        %v3907 = vpop.f32.mrf.mxu0
        %v3908 = vadd.f32 0.0, %v3907
        %3909 = vmatmul.f32.gmra.mxu0 %v1906
        %v3910 = vpop.f32.mrf.mxu0
        %v3911 = vadd.f32 0.0, %v3910
        %3912 = vdwg.mxu0
        %3913 = vmatpush.msra.mxu0 0.0
        %3914 = vmatpush.msra.mxu0 0.0
        %3915 = vmatpush.msra.mxu0 0.0
        %3916 = vmatpush.msra.mxu0 0.0
        %3917 = vmatpush.msra.mxu0 0.0
        %3918 = vmatpush.msra.mxu0 0.0
        %3919 = vmatpush.msra.mxu0 0.0
        %3920 = vmatpush.msra.mxu0 0.0
        %3921 = vmatpush.msra.mxu0 0.0
        %3922 = vmatpush.msra.mxu0 0.0
        %3923 = vmatpush.msra.mxu0 0.0
        %3924 = vmatpush.msra.mxu0 0.0
        %3925 = vmatpush.msra.mxu0 %v3888
        %3926 = vmatpush.msra.mxu0 %v3885
        %3927 = vmatpush.msra.mxu0 %v3884
        %3928 = vmatpush.msra.mxu0 %v3883
        %3929 = vmatmul.f32.gmra.mxu0 %v1935
        %v3930 = vpop.f32.mrf.mxu0
        %v3931 = vadd.f32 0.0, %v3930
        %3932 = vmatmul.f32.gmra.mxu0 %v1938
        %v3933 = vpop.f32.mrf.mxu0
        %v3934 = vadd.f32 0.0, %v3933
        %3935 = vdwg.mxu0
        %v3936 = vmax.f32 %v3908, %v3931
        %v3937 = vmax.f32 %v3911, %v3934
        %v3938 = vadd.f32 %v3936, %v1966
        %v3939 = vadd.f32 %v3937, %v1966
        %v3940 = vmax.f32 %v3938, 0.0
        %v3941 = vmax.f32 %v3939, 0.0
        %v3944 = vrot.slane %v3940, 1
        %v3945 = vrot.slane %v3941, 1
        %v3946 = vsel %vm1286, %v3944, %v3945
        %3947 = vrot.lane.b32.xlu0 %v3946, 84
        %v3948 = vpop.permute.xlu0 %3947
        %3949 = vrot.lane.b32.xlu0 %v3945, 84
        %v3950 = vpop.permute.xlu0 %3949
        %v3953 = vrot.slane %v3940, 2
        %v3954 = vrot.slane %v3941, 2
        %v3955 = vsel %vm1306, %v3953, %v3954
        %3956 = vrot.lane.b32.xlu0 %v3955, 40
        %v3957 = vpop.permute.xlu0 %3956
        %3958 = vrot.lane.b32.xlu0 %v3954, 40
        %v3959 = vpop.permute.xlu0 %3958
        %v3962 = vrot.slane %v3940, 3
        %v3963 = vrot.slane %v3941, 3
        %v3964 = vsel %vm1326, %v3962, %v3963
        %3965 = vrot.lane.b32.xlu0 %v3964, 124
        %v3966 = vpop.permute.xlu0 %3965
        %3967 = vrot.lane.b32.xlu0 %v3963, 124
        %v3968 = vpop.permute.xlu0 %3967
        %v3971 = vrot.slane %v3940, 4
        %v3972 = vrot.slane %v3941, 4
        %v3973 = vsel %vm1346, %v3971, %v3972
        %3974 = vrot.lane.b32.xlu0 %v3973, 80
        %v3975 = vpop.permute.xlu0 %3974
        %3976 = vrot.lane.b32.xlu0 %v3972, 80
        %v3977 = vpop.permute.xlu0 %3976
        %v3980 = vsel %vm2010, %v3940, %v3948
        %v3981 = vsel %vm2010, %v3941, %v3950
        %v3982 = vsel %vm2013, %v3948, %v3957
        %v3983 = vsel %vm2013, %v3950, %v3959
        %v3984 = vsel %vm2016, %v3982, %v3966
        %v3985 = vsel %vm2016, %v3983, %v3968
        %v3986 = vsel %vm2019, %v3966, %v3975
        %v3987 = vsel %vm2019, %v3968, %v3977
        %v3988 = vpack.c.bf16 %v3981, %v3980
        %v3989 = vpack.c.bf16 %v3985, %v3984
        %v3990 = vpack.c.bf16 %v3987, %v3986
        %v3991 = vpack.c.bf16 %v3977, %v3975
        %v3993 = vsel %vm2185, %v3991, 0
        %3995 = vmatpush.bf16.msra.mxu0 %v2139
        %3996 = vmatpush.bf16.msra.mxu0 %v2138
        %3997 = vmatpush.bf16.msra.mxu0 %v2137
        %3998 = vmatpush.bf16.msra.mxu0 %v2136
        %3999 = vmatpush.bf16.msra.mxu0 %v2135
        %4000 = vmatpush.bf16.msra.mxu0 %v2134
        %4001 = vmatpush.bf16.msra.mxu0 %v2133
        %4002 = vmatpush.bf16.msra.mxu0 %v2132
        %4003 = vmatmul.bf16.gmra.mxu0 %v3988
        %v4004 = vpop.f32.mrf.mxu0
        %v4005 = vadd.f32 0.0, %v4004
        %v4006 = vpop.f32.mrf.mxu0
        %v4007 = vadd.f32 0.0, %v4006
        %4008 = vdwg.mxu0
        %4009 = vmatpush.bf16.msra.mxu0 %v2147
        %4010 = vmatpush.bf16.msra.mxu0 %v2146
        %4011 = vmatpush.bf16.msra.mxu0 %v2145
        %4012 = vmatpush.bf16.msra.mxu0 %v2144
        %4013 = vmatpush.bf16.msra.mxu0 %v2143
        %4014 = vmatpush.bf16.msra.mxu0 %v2142
        %4015 = vmatpush.bf16.msra.mxu0 %v2141
        %4016 = vmatpush.bf16.msra.mxu0 %v2140
        %4017 = vmatmul.bf16.gmra.mxu0 %v3989
        %v4018 = vpop.f32.mrf.mxu0
        %v4019 = vadd.f32 %v4005, %v4018
        %v4020 = vpop.f32.mrf.mxu0
        %v4021 = vadd.f32 %v4007, %v4020
        %4022 = vdwg.mxu0
        %4023 = vmatpush.bf16.msra.mxu0 %v2155
        %4024 = vmatpush.bf16.msra.mxu0 %v2154
        %4025 = vmatpush.bf16.msra.mxu0 %v2153
        %4026 = vmatpush.bf16.msra.mxu0 %v2152
        %4027 = vmatpush.bf16.msra.mxu0 %v2151
        %4028 = vmatpush.bf16.msra.mxu0 %v2150
        %4029 = vmatpush.bf16.msra.mxu0 %v2149
        %4030 = vmatpush.bf16.msra.mxu0 %v2148
        %4031 = vmatmul.bf16.gmra.mxu0 %v3990
        %v4032 = vpop.f32.mrf.mxu0
        %v4033 = vadd.f32 %v4019, %v4032
        %v4034 = vpop.f32.mrf.mxu0
        %v4035 = vadd.f32 %v4021, %v4034
        %4036 = vdwg.mxu0
        %4037 = vmatpush.bf16.msra.mxu0 0
        %4038 = vmatpush.bf16.msra.mxu0 0
        %4039 = vmatpush.bf16.msra.mxu0 0
        %4040 = vmatpush.bf16.msra.mxu0 0
        %4041 = vmatpush.bf16.msra.mxu0 0
        %4042 = vmatpush.bf16.msra.mxu0 %v2191
        %4043 = vmatpush.bf16.msra.mxu0 %v2157
        %4044 = vmatpush.bf16.msra.mxu0 %v2156
        %4045 = vmatmul.bf16.gmra.mxu0 %v3993
        %v4046 = vpop.f32.mrf.mxu0
        %v4047 = vadd.f32 %v4033, %v4046
        %v4048 = vpop.f32.mrf.mxu0
        %v4049 = vadd.f32 %v4035, %v4048
        %4050 = vdwg.mxu0
        %4051 = vmatpush.bf16.msra.mxu0 %v2362
        %4052 = vmatpush.bf16.msra.mxu0 %v2361
        %4053 = vmatpush.bf16.msra.mxu0 %v2360
        %4054 = vmatpush.bf16.msra.mxu0 %v2359
        %4055 = vmatpush.bf16.msra.mxu0 %v2358
        %4056 = vmatpush.bf16.msra.mxu0 %v2357
        %4057 = vmatpush.bf16.msra.mxu0 %v2356
        %4058 = vmatpush.bf16.msra.mxu0 %v2355
        %4059 = vmatmul.bf16.gmra.mxu0 %v3988
        %v4060 = vpop.f32.mrf.mxu0
        %v4061 = vadd.f32 0.0, %v4060
        %v4062 = vpop.f32.mrf.mxu0
        %v4063 = vadd.f32 0.0, %v4062
        %4064 = vdwg.mxu0
        %4065 = vmatpush.bf16.msra.mxu0 %v2370
        %4066 = vmatpush.bf16.msra.mxu0 %v2369
        %4067 = vmatpush.bf16.msra.mxu0 %v2368
        %4068 = vmatpush.bf16.msra.mxu0 %v2367
        %4069 = vmatpush.bf16.msra.mxu0 %v2366
        %4070 = vmatpush.bf16.msra.mxu0 %v2365
        %4071 = vmatpush.bf16.msra.mxu0 %v2364
        %4072 = vmatpush.bf16.msra.mxu0 %v2363
        %4073 = vmatmul.bf16.gmra.mxu0 %v3989
        %v4074 = vpop.f32.mrf.mxu0
        %v4075 = vadd.f32 %v4061, %v4074
        %v4076 = vpop.f32.mrf.mxu0
        %v4077 = vadd.f32 %v4063, %v4076
        %4078 = vdwg.mxu0
        %4079 = vmatpush.bf16.msra.mxu0 %v2378
        %4080 = vmatpush.bf16.msra.mxu0 %v2377
        %4081 = vmatpush.bf16.msra.mxu0 %v2376
        %4082 = vmatpush.bf16.msra.mxu0 %v2375
        %4083 = vmatpush.bf16.msra.mxu0 %v2374
        %4084 = vmatpush.bf16.msra.mxu0 %v2373
        %4085 = vmatpush.bf16.msra.mxu0 %v2372
        %4086 = vmatpush.bf16.msra.mxu0 %v2371
        %4087 = vmatmul.bf16.gmra.mxu0 %v3990
        %v4088 = vpop.f32.mrf.mxu0
        %v4089 = vadd.f32 %v4075, %v4088
        %v4090 = vpop.f32.mrf.mxu0
        %v4091 = vadd.f32 %v4077, %v4090
        %4092 = vdwg.mxu0
        %4093 = vmatpush.bf16.msra.mxu0 0
        %4094 = vmatpush.bf16.msra.mxu0 0
        %4095 = vmatpush.bf16.msra.mxu0 0
        %4096 = vmatpush.bf16.msra.mxu0 0
        %4097 = vmatpush.bf16.msra.mxu0 0
        %4098 = vmatpush.bf16.msra.mxu0 %v2409
        %4099 = vmatpush.bf16.msra.mxu0 %v2380
        %4100 = vmatpush.bf16.msra.mxu0 %v2379
        %4101 = vmatmul.bf16.gmra.mxu0 %v3993
        %v4102 = vpop.f32.mrf.mxu0
        %v4103 = vadd.f32 %v4089, %v4102
        %v4104 = vpop.f32.mrf.mxu0
        %v4105 = vadd.f32 %v4091, %v4104
        %4106 = vdwg.mxu0
        %v4107 = vmax.f32 %v4047, %v4103
        %v4108 = vmax.f32 %v4049, %v4105
        %v4110 = vsel %vm2189, %v4108, 0
        %4112 = vmatpush.msra.mxu0 0.0
        %4113 = vmatpush.msra.mxu0 0.0
        %4114 = vmatpush.msra.mxu0 0.0
        %4115 = vmatpush.msra.mxu0 0.0
        %4116 = vmatpush.msra.mxu0 0.0
        %4117 = vmatpush.msra.mxu0 0.0
        %4118 = vmatpush.msra.mxu0 0.0
        %4119 = vmatpush.msra.mxu0 0.0
        %4120 = vmatpush.msra.mxu0 0.0
        %4121 = vmatpush.msra.mxu0 0.0
        %4122 = vmatpush.msra.mxu0 0.0
        %4123 = vmatpush.msra.mxu0 0.0
        %4124 = vmatpush.msra.mxu0 0.0
        %4125 = vmatpush.msra.mxu0 0.0
        %4126 = vmatpush.msra.mxu0 %v4110
        %4127 = vmatpush.msra.mxu0 %v4107
        %4128 = vmatmul.f32.gmra.mxu0 %v2471
        %v4129 = vpop.f32.mrf.mxu0
        %v4130 = vadd.f32 0.0, %v4129
        %4131 = vdwg.mxu0
        %4132 = vmatpush.msra.mxu0 0.0
        %4133 = vmatpush.msra.mxu0 0.0
        %4134 = vmatpush.msra.mxu0 0.0
        %4135 = vmatpush.msra.mxu0 0.0
        %4136 = vmatpush.msra.mxu0 0.0
        %4137 = vmatpush.msra.mxu0 0.0
        %4138 = vmatpush.msra.mxu0 0.0
        %4139 = vmatpush.msra.mxu0 0.0
        %4140 = vmatpush.msra.mxu0 0.0
        %4141 = vmatpush.msra.mxu0 0.0
        %4142 = vmatpush.msra.mxu0 0.0
        %4143 = vmatpush.msra.mxu0 0.0
        %4144 = vmatpush.msra.mxu0 0.0
        %4145 = vmatpush.msra.mxu0 0.0
        %4146 = vmatpush.msra.mxu0 %v4110
        %4147 = vmatpush.msra.mxu0 %v4107
        %4148 = vmatmul.f32.gmra.mxu0 %v2497
        %v4149 = vpop.f32.mrf.mxu0
        %v4150 = vadd.f32 0.0, %v4149
        %4151 = vdwg.mxu0
        %v4152 = vmax.f32 %v4130, %v4150
        %v4153 = vadd.f32 %v4152, %v2521
        %v4154 = vmax.f32 %v4153, 0.0
        %v4156 = vrot.slane %v4154, 1
        %4157 = vrot.lane.b32.xlu0 %v4156, 80
        %v4158 = vpop.permute.xlu0 %4157
        %v4160 = vrot.slane %v4154, 2
        %4161 = vrot.lane.b32.xlu0 %v4160, 32
        %v4162 = vpop.permute.xlu0 %4161
        %v4164 = vrot.slane %v4154, 3
        %4165 = vrot.lane.b32.xlu0 %v4164, 112
        %v4166 = vpop.permute.xlu0 %4165
        %v4168 = vrot.slane %v4154, 4
        %4169 = vrot.lane.b32.xlu0 %v4168, 64
        %v4170 = vpop.permute.xlu0 %4169
        %v4172 = vsel %vm2019, %v4154, %v4158
        %v4173 = vsel %vm982, %v4158, %v4162
        %v4174 = vsel %vm2544, %v4173, %v4166
        %v4175 = vsel %vm1015, %v4166, %v4170
        %v4180 = vrot.slane %v1032, 1
        %v4181 = vrot.slane %v1033, 1
        %v4182 = vsel %vm1286, %v4180, %v4181
        %v4183 = vrot.slane %v1034, 1
        %v4184 = vsel %vm1286, %v4181, %v4183
        %v4185 = vrot.slane %v1035, 1
        %v4186 = vsel %vm1286, %v4183, %v4185
        %4187 = vrot.lane.b32.xlu0 %v4182, 96
        %v4188 = vpop.permute.xlu0 %4187
        %4189 = vrot.lane.b32.xlu0 %v4184, 96
        %v4190 = vpop.permute.xlu0 %4189
        %4191 = vrot.lane.b32.xlu0 %v4186, 96
        %v4192 = vpop.permute.xlu0 %4191
        %4193 = vrot.lane.b32.xlu0 %v4185, 96
        %v4194 = vpop.permute.xlu0 %4193
        %v4199 = vrot.slane %v1032, 2
        %v4200 = vrot.slane %v1033, 2
        %v4201 = vsel %vm1306, %v4199, %v4200
        %v4202 = vrot.slane %v1034, 2
        %v4203 = vsel %vm1306, %v4200, %v4202
        %v4204 = vrot.slane %v1035, 2
        %v4205 = vsel %vm1306, %v4202, %v4204
        %4206 = vrot.lane.b32.xlu0 %v4201, 64
        %v4207 = vpop.permute.xlu0 %4206
        %4208 = vrot.lane.b32.xlu0 %v4203, 64
        %v4209 = vpop.permute.xlu0 %4208
        %4210 = vrot.lane.b32.xlu0 %v4205, 64
        %v4211 = vpop.permute.xlu0 %4210
        %4212 = vrot.lane.b32.xlu0 %v4204, 64
        %v4213 = vpop.permute.xlu0 %4212
        %v4218 = vrot.slane %v1032, 3
        %v4219 = vrot.slane %v1033, 3
        %v4220 = vsel %vm1326, %v4218, %v4219
        %v4221 = vrot.slane %v1034, 3
        %v4222 = vsel %vm1326, %v4219, %v4221
        %v4223 = vrot.slane %v1035, 3
        %v4224 = vsel %vm1326, %v4221, %v4223
        %4225 = vrot.lane.b32.xlu0 %v4220, 32
        %v4226 = vpop.permute.xlu0 %4225
        %4227 = vrot.lane.b32.xlu0 %v4222, 32
        %v4228 = vpop.permute.xlu0 %4227
        %4229 = vrot.lane.b32.xlu0 %v4224, 32
        %v4230 = vpop.permute.xlu0 %4229
        %4231 = vrot.lane.b32.xlu0 %v4223, 32
        %v4232 = vpop.permute.xlu0 %4231
        %v4237 = vrot.slane %v1032, 4
        %v4238 = vrot.slane %v1033, 4
        %v4239 = vsel %vm1346, %v4237, %v4238
        %v4240 = vrot.slane %v1034, 4
        %v4241 = vsel %vm1346, %v4238, %v4240
        %v4242 = vrot.slane %v1035, 4
        %v4243 = vsel %vm1346, %v4240, %v4242
        %v4248 = vsel %vm1358, %v1032, %v4188
        %v4249 = vsel %vm1358, %v1033, %v4190
        %v4250 = vsel %vm1358, %v1034, %v4192
        %v4251 = vsel %vm1358, %v1035, %v4194
        %v4252 = vsel %vm1015, %v4188, %v4207
        %v4253 = vsel %vm1015, %v4190, %v4209
        %v4254 = vsel %vm1015, %v4192, %v4211
        %v4255 = vsel %vm1015, %v4194, %v4213
        %v4256 = vsel %vm982, %v4207, %v4226
        %v4257 = vsel %vm982, %v4209, %v4228
        %v4258 = vsel %vm982, %v4211, %v4230
        %v4259 = vsel %vm982, %v4213, %v4232
        %v4260 = vpack.c.bf16 %v4249, %v4248
        %v4261 = vpack.c.bf16 %v4253, %v4252
        %v4262 = vpack.c.bf16 %v4257, %v4256
        %v4263 = vpack.c.bf16 %v4241, %v4239
        %v4264 = vpack.c.bf16 %v4251, %v4250
        %v4265 = vpack.c.bf16 %v4255, %v4254
        %v4266 = vpack.c.bf16 %v4259, %v4258
        %v4267 = vpack.c.bf16 %v4242, %v4243
        %v4269 = vsel %vm1358, %v4263, 0
        %v4272 = vsel %vm1358, %v4267, 0
        %4274 = vmatpush.bf16.msra.mxu0 %v1506
        %4275 = vmatpush.bf16.msra.mxu0 %v1505
        %4276 = vmatpush.bf16.msra.mxu0 %v1504
        %4277 = vmatpush.bf16.msra.mxu0 %v1503
        %4278 = vmatpush.bf16.msra.mxu0 %v1502
        %4279 = vmatpush.bf16.msra.mxu0 %v1501
        %4280 = vmatpush.bf16.msra.mxu0 %v1500
        %4281 = vmatpush.bf16.msra.mxu0 %v1499
        %4282 = vmatmul.bf16.gmra.mxu0 %v4260
        %v4283 = vpop.f32.mrf.mxu0
        %v4284 = vadd.f32 0.0, %v4283
        %v4285 = vpop.f32.mrf.mxu0
        %v4286 = vadd.f32 0.0, %v4285
        %4287 = vmatmul.bf16.gmra.mxu0 %v4264
        %v4288 = vpop.f32.mrf.mxu0
        %v4289 = vadd.f32 0.0, %v4288
        %v4290 = vpop.f32.mrf.mxu0
        %v4291 = vadd.f32 0.0, %v4290
        %4292 = vdwg.mxu0
        %4293 = vmatpush.bf16.msra.mxu0 %v1514
        %4294 = vmatpush.bf16.msra.mxu0 %v1513
        %4295 = vmatpush.bf16.msra.mxu0 %v1512
        %4296 = vmatpush.bf16.msra.mxu0 %v1511
        %4297 = vmatpush.bf16.msra.mxu0 %v1510
        %4298 = vmatpush.bf16.msra.mxu0 %v1509
        %4299 = vmatpush.bf16.msra.mxu0 %v1508
        %4300 = vmatpush.bf16.msra.mxu0 %v1507
        %4301 = vmatmul.bf16.gmra.mxu0 %v4261
        %v4302 = vpop.f32.mrf.mxu0
        %v4303 = vadd.f32 %v4284, %v4302
        %v4304 = vpop.f32.mrf.mxu0
        %v4305 = vadd.f32 %v4286, %v4304
        %4306 = vmatmul.bf16.gmra.mxu0 %v4265
        %v4307 = vpop.f32.mrf.mxu0
        %v4308 = vadd.f32 %v4289, %v4307
        %v4309 = vpop.f32.mrf.mxu0
        %v4310 = vadd.f32 %v4291, %v4309
        %4311 = vdwg.mxu0
        %4312 = vmatpush.bf16.msra.mxu0 %v1522
        %4313 = vmatpush.bf16.msra.mxu0 %v1521
        %4314 = vmatpush.bf16.msra.mxu0 %v1520
        %4315 = vmatpush.bf16.msra.mxu0 %v1519
        %4316 = vmatpush.bf16.msra.mxu0 %v1518
        %4317 = vmatpush.bf16.msra.mxu0 %v1517
        %4318 = vmatpush.bf16.msra.mxu0 %v1516
        %4319 = vmatpush.bf16.msra.mxu0 %v1515
        %4320 = vmatmul.bf16.gmra.mxu0 %v4262
        %v4321 = vpop.f32.mrf.mxu0
        %v4322 = vadd.f32 %v4303, %v4321
        %v4323 = vpop.f32.mrf.mxu0
        %v4324 = vadd.f32 %v4305, %v4323
        %4325 = vmatmul.bf16.gmra.mxu0 %v4266
        %v4326 = vpop.f32.mrf.mxu0
        %v4327 = vadd.f32 %v4308, %v4326
        %v4328 = vpop.f32.mrf.mxu0
        %v4329 = vadd.f32 %v4310, %v4328
        %4330 = vdwg.mxu0
        %4331 = vmatpush.bf16.msra.mxu0 0
        %4332 = vmatpush.bf16.msra.mxu0 0
        %4333 = vmatpush.bf16.msra.mxu0 %v1528
        %4334 = vmatpush.bf16.msra.mxu0 %v1527
        %4335 = vmatpush.bf16.msra.mxu0 %v1526
        %4336 = vmatpush.bf16.msra.mxu0 %v1525
        %4337 = vmatpush.bf16.msra.mxu0 %v1524
        %4338 = vmatpush.bf16.msra.mxu0 %v1523
        %4339 = vmatmul.bf16.gmra.mxu0 %v4269
        %v4340 = vpop.f32.mrf.mxu0
        %v4341 = vadd.f32 %v4322, %v4340
        %v4342 = vpop.f32.mrf.mxu0
        %v4343 = vadd.f32 %v4324, %v4342
        %4344 = vmatmul.bf16.gmra.mxu0 %v4272
        %v4345 = vpop.f32.mrf.mxu0
        %v4346 = vadd.f32 %v4327, %v4345
        %v4347 = vpop.f32.mrf.mxu0
        %v4348 = vadd.f32 %v4329, %v4347
        %4349 = vdwg.mxu0
        %4350 = vmatpush.bf16.msra.mxu0 %v1768
        %4351 = vmatpush.bf16.msra.mxu0 %v1767
        %4352 = vmatpush.bf16.msra.mxu0 %v1766
        %4353 = vmatpush.bf16.msra.mxu0 %v1765
        %4354 = vmatpush.bf16.msra.mxu0 %v1764
        %4355 = vmatpush.bf16.msra.mxu0 %v1763
        %4356 = vmatpush.bf16.msra.mxu0 %v1762
        %4357 = vmatpush.bf16.msra.mxu0 %v1761
        %4358 = vmatmul.bf16.gmra.mxu0 %v4260
        %v4359 = vpop.f32.mrf.mxu0
        %v4360 = vadd.f32 0.0, %v4359
        %v4361 = vpop.f32.mrf.mxu0
        %v4362 = vadd.f32 0.0, %v4361
        %4363 = vmatmul.bf16.gmra.mxu0 %v4264
        %v4364 = vpop.f32.mrf.mxu0
        %v4365 = vadd.f32 0.0, %v4364
        %v4366 = vpop.f32.mrf.mxu0
        %v4367 = vadd.f32 0.0, %v4366
        %4368 = vdwg.mxu0
        %4369 = vmatpush.bf16.msra.mxu0 %v1776
        %4370 = vmatpush.bf16.msra.mxu0 %v1775
        %4371 = vmatpush.bf16.msra.mxu0 %v1774
        %4372 = vmatpush.bf16.msra.mxu0 %v1773
        %4373 = vmatpush.bf16.msra.mxu0 %v1772
        %4374 = vmatpush.bf16.msra.mxu0 %v1771
        %4375 = vmatpush.bf16.msra.mxu0 %v1770
        %4376 = vmatpush.bf16.msra.mxu0 %v1769
        %4377 = vmatmul.bf16.gmra.mxu0 %v4261
        %v4378 = vpop.f32.mrf.mxu0
        %v4379 = vadd.f32 %v4360, %v4378
        %v4380 = vpop.f32.mrf.mxu0
        %v4381 = vadd.f32 %v4362, %v4380
        %4382 = vmatmul.bf16.gmra.mxu0 %v4265
        %v4383 = vpop.f32.mrf.mxu0
        %v4384 = vadd.f32 %v4365, %v4383
        %v4385 = vpop.f32.mrf.mxu0
        %v4386 = vadd.f32 %v4367, %v4385
        %4387 = vdwg.mxu0
        %4388 = vmatpush.bf16.msra.mxu0 %v1784
        %4389 = vmatpush.bf16.msra.mxu0 %v1783
        %4390 = vmatpush.bf16.msra.mxu0 %v1782
        %4391 = vmatpush.bf16.msra.mxu0 %v1781
        %4392 = vmatpush.bf16.msra.mxu0 %v1780
        %4393 = vmatpush.bf16.msra.mxu0 %v1779
        %4394 = vmatpush.bf16.msra.mxu0 %v1778
        %4395 = vmatpush.bf16.msra.mxu0 %v1777
        %4396 = vmatmul.bf16.gmra.mxu0 %v4262
        %v4397 = vpop.f32.mrf.mxu0
        %v4398 = vadd.f32 %v4379, %v4397
        %v4399 = vpop.f32.mrf.mxu0
        %v4400 = vadd.f32 %v4381, %v4399
        %4401 = vmatmul.bf16.gmra.mxu0 %v4266
        %v4402 = vpop.f32.mrf.mxu0
        %v4403 = vadd.f32 %v4384, %v4402
        %v4404 = vpop.f32.mrf.mxu0
        %v4405 = vadd.f32 %v4386, %v4404
        %4406 = vdwg.mxu0
        %4407 = vmatpush.bf16.msra.mxu0 0
        %4408 = vmatpush.bf16.msra.mxu0 0
        %4409 = vmatpush.bf16.msra.mxu0 %v1790
        %4410 = vmatpush.bf16.msra.mxu0 %v1789
        %4411 = vmatpush.bf16.msra.mxu0 %v1788
        %4412 = vmatpush.bf16.msra.mxu0 %v1787
        %4413 = vmatpush.bf16.msra.mxu0 %v1786
        %4414 = vmatpush.bf16.msra.mxu0 %v1785
        %4415 = vmatmul.bf16.gmra.mxu0 %v4269
        %v4416 = vpop.f32.mrf.mxu0
        %v4417 = vadd.f32 %v4398, %v4416
        %v4418 = vpop.f32.mrf.mxu0
        %v4419 = vadd.f32 %v4400, %v4418
        %4420 = vmatmul.bf16.gmra.mxu0 %v4272
        %v4421 = vpop.f32.mrf.mxu0
        %v4422 = vadd.f32 %v4403, %v4421
        %v4423 = vpop.f32.mrf.mxu0
        %v4424 = vadd.f32 %v4405, %v4423
        %4425 = vdwg.mxu0
        %v4426 = vmax.f32 %v4341, %v4417
        %v4427 = vmax.f32 %v4343, %v4419
        %v4428 = vmax.f32 %v4346, %v4422
        %v4429 = vmax.f32 %v4348, %v4424
        %v4431 = vsel %vm1346, %v4429, 0
        %4433 = vmatpush.msra.mxu0 0.0
        %4434 = vmatpush.msra.mxu0 0.0
        %4435 = vmatpush.msra.mxu0 0.0
        %4436 = vmatpush.msra.mxu0 0.0
        %4437 = vmatpush.msra.mxu0 0.0
        %4438 = vmatpush.msra.mxu0 0.0
        %4439 = vmatpush.msra.mxu0 0.0
        %4440 = vmatpush.msra.mxu0 0.0
        %4441 = vmatpush.msra.mxu0 0.0
        %4442 = vmatpush.msra.mxu0 0.0
        %4443 = vmatpush.msra.mxu0 0.0
        %4444 = vmatpush.msra.mxu0 0.0
        %4445 = vmatpush.msra.mxu0 %v4431
        %4446 = vmatpush.msra.mxu0 %v4428
        %4447 = vmatpush.msra.mxu0 %v4427
        %4448 = vmatpush.msra.mxu0 %v4426
        %4449 = vmatmul.f32.gmra.mxu0 %v1903
        %v4450 = vpop.f32.mrf.mxu0
        %v4451 = vadd.f32 0.0, %v4450
        %4452 = vmatmul.f32.gmra.mxu0 %v1906
        %v4453 = vpop.f32.mrf.mxu0
        %v4454 = vadd.f32 0.0, %v4453
        %4455 = vdwg.mxu0
        %4456 = vmatpush.msra.mxu0 0.0
        %4457 = vmatpush.msra.mxu0 0.0
        %4458 = vmatpush.msra.mxu0 0.0
        %4459 = vmatpush.msra.mxu0 0.0
        %4460 = vmatpush.msra.mxu0 0.0
        %4461 = vmatpush.msra.mxu0 0.0
        %4462 = vmatpush.msra.mxu0 0.0
        %4463 = vmatpush.msra.mxu0 0.0
        %4464 = vmatpush.msra.mxu0 0.0
        %4465 = vmatpush.msra.mxu0 0.0
        %4466 = vmatpush.msra.mxu0 0.0
        %4467 = vmatpush.msra.mxu0 0.0
        %4468 = vmatpush.msra.mxu0 %v4431
        %4469 = vmatpush.msra.mxu0 %v4428
        %4470 = vmatpush.msra.mxu0 %v4427
        %4471 = vmatpush.msra.mxu0 %v4426
        %4472 = vmatmul.f32.gmra.mxu0 %v1935
        %v4473 = vpop.f32.mrf.mxu0
        %v4474 = vadd.f32 0.0, %v4473
        %4475 = vmatmul.f32.gmra.mxu0 %v1938
        %v4476 = vpop.f32.mrf.mxu0
        %v4477 = vadd.f32 0.0, %v4476
        %4478 = vdwg.mxu0
        %v4479 = vmax.f32 %v4451, %v4474
        %v4480 = vmax.f32 %v4454, %v4477
        %v4481 = vadd.f32 %v4479, %v1966
        %v4482 = vadd.f32 %v4480, %v1966
        %v4483 = vmax.f32 %v4481, 0.0
        %v4484 = vmax.f32 %v4482, 0.0
        %v4487 = vrot.slane %v4483, 1
        %v4488 = vrot.slane %v4484, 1
        %v4489 = vsel %vm1286, %v4487, %v4488
        %4490 = vrot.lane.b32.xlu0 %v4489, 84
        %v4491 = vpop.permute.xlu0 %4490
        %4492 = vrot.lane.b32.xlu0 %v4488, 84
        %v4493 = vpop.permute.xlu0 %4492
        %v4496 = vrot.slane %v4483, 2
        %v4497 = vrot.slane %v4484, 2
        %v4498 = vsel %vm1306, %v4496, %v4497
        %4499 = vrot.lane.b32.xlu0 %v4498, 40
        %v4500 = vpop.permute.xlu0 %4499
        %4501 = vrot.lane.b32.xlu0 %v4497, 40
        %v4502 = vpop.permute.xlu0 %4501
        %v4505 = vrot.slane %v4483, 3
        %v4506 = vrot.slane %v4484, 3
        %v4507 = vsel %vm1326, %v4505, %v4506
        %4508 = vrot.lane.b32.xlu0 %v4507, 124
        %v4509 = vpop.permute.xlu0 %4508
        %4510 = vrot.lane.b32.xlu0 %v4506, 124
        %v4511 = vpop.permute.xlu0 %4510
        %v4514 = vrot.slane %v4483, 4
        %v4515 = vrot.slane %v4484, 4
        %v4516 = vsel %vm1346, %v4514, %v4515
        %4517 = vrot.lane.b32.xlu0 %v4516, 80
        %v4518 = vpop.permute.xlu0 %4517
        %4519 = vrot.lane.b32.xlu0 %v4515, 80
        %v4520 = vpop.permute.xlu0 %4519
        %v4523 = vsel %vm2010, %v4483, %v4491
        %v4524 = vsel %vm2010, %v4484, %v4493
        %v4525 = vsel %vm2013, %v4491, %v4500
        %v4526 = vsel %vm2013, %v4493, %v4502
        %v4527 = vsel %vm2016, %v4525, %v4509
        %v4528 = vsel %vm2016, %v4526, %v4511
        %v4529 = vsel %vm2019, %v4509, %v4518
        %v4530 = vsel %vm2019, %v4511, %v4520
        %v4531 = vpack.c.bf16 %v4524, %v4523
        %v4532 = vpack.c.bf16 %v4528, %v4527
        %v4533 = vpack.c.bf16 %v4530, %v4529
        %v4534 = vpack.c.bf16 %v4520, %v4518
        %v4536 = vsel %vm2185, %v4534, 0
        %4538 = vmatpush.bf16.msra.mxu0 %v2139
        %4539 = vmatpush.bf16.msra.mxu0 %v2138
        %4540 = vmatpush.bf16.msra.mxu0 %v2137
        %4541 = vmatpush.bf16.msra.mxu0 %v2136
        %4542 = vmatpush.bf16.msra.mxu0 %v2135
        %4543 = vmatpush.bf16.msra.mxu0 %v2134
        %4544 = vmatpush.bf16.msra.mxu0 %v2133
        %4545 = vmatpush.bf16.msra.mxu0 %v2132
        %4546 = vmatmul.bf16.gmra.mxu0 %v4531
        %v4547 = vpop.f32.mrf.mxu0
        %v4548 = vadd.f32 0.0, %v4547
        %v4549 = vpop.f32.mrf.mxu0
        %v4550 = vadd.f32 0.0, %v4549
        %4551 = vdwg.mxu0
        %4552 = vmatpush.bf16.msra.mxu0 %v2147
        %4553 = vmatpush.bf16.msra.mxu0 %v2146
        %4554 = vmatpush.bf16.msra.mxu0 %v2145
        %4555 = vmatpush.bf16.msra.mxu0 %v2144
        %4556 = vmatpush.bf16.msra.mxu0 %v2143
        %4557 = vmatpush.bf16.msra.mxu0 %v2142
        %4558 = vmatpush.bf16.msra.mxu0 %v2141
        %4559 = vmatpush.bf16.msra.mxu0 %v2140
        %4560 = vmatmul.bf16.gmra.mxu0 %v4532
        %v4561 = vpop.f32.mrf.mxu0
        %v4562 = vadd.f32 %v4548, %v4561
        %v4563 = vpop.f32.mrf.mxu0
        %v4564 = vadd.f32 %v4550, %v4563
        %4565 = vdwg.mxu0
        %4566 = vmatpush.bf16.msra.mxu0 %v2155
        %4567 = vmatpush.bf16.msra.mxu0 %v2154
        %4568 = vmatpush.bf16.msra.mxu0 %v2153
        %4569 = vmatpush.bf16.msra.mxu0 %v2152
        %4570 = vmatpush.bf16.msra.mxu0 %v2151
        %4571 = vmatpush.bf16.msra.mxu0 %v2150
        %4572 = vmatpush.bf16.msra.mxu0 %v2149
        %4573 = vmatpush.bf16.msra.mxu0 %v2148
        %4574 = vmatmul.bf16.gmra.mxu0 %v4533
        %v4575 = vpop.f32.mrf.mxu0
        %v4576 = vadd.f32 %v4562, %v4575
        %v4577 = vpop.f32.mrf.mxu0
        %v4578 = vadd.f32 %v4564, %v4577
        %4579 = vdwg.mxu0
        %4580 = vmatpush.bf16.msra.mxu0 0
        %4581 = vmatpush.bf16.msra.mxu0 0
        %4582 = vmatpush.bf16.msra.mxu0 0
        %4583 = vmatpush.bf16.msra.mxu0 0
        %4584 = vmatpush.bf16.msra.mxu0 0
        %4585 = vmatpush.bf16.msra.mxu0 %v2191
        %4586 = vmatpush.bf16.msra.mxu0 %v2157
        %4587 = vmatpush.bf16.msra.mxu0 %v2156
        %4588 = vmatmul.bf16.gmra.mxu0 %v4536
        %v4589 = vpop.f32.mrf.mxu0
        %v4590 = vadd.f32 %v4576, %v4589
        %v4591 = vpop.f32.mrf.mxu0
        %v4592 = vadd.f32 %v4578, %v4591
        %4593 = vdwg.mxu0
        %4594 = vmatpush.bf16.msra.mxu0 %v2362
        %4595 = vmatpush.bf16.msra.mxu0 %v2361
        %4596 = vmatpush.bf16.msra.mxu0 %v2360
        %4597 = vmatpush.bf16.msra.mxu0 %v2359
        %4598 = vmatpush.bf16.msra.mxu0 %v2358
        %4599 = vmatpush.bf16.msra.mxu0 %v2357
        %4600 = vmatpush.bf16.msra.mxu0 %v2356
        %4601 = vmatpush.bf16.msra.mxu0 %v2355
        %4602 = vmatmul.bf16.gmra.mxu0 %v4531
        %v4603 = vpop.f32.mrf.mxu0
        %v4604 = vadd.f32 0.0, %v4603
        %v4605 = vpop.f32.mrf.mxu0
        %v4606 = vadd.f32 0.0, %v4605
        %4607 = vdwg.mxu0
        %4608 = vmatpush.bf16.msra.mxu0 %v2370
        %4609 = vmatpush.bf16.msra.mxu0 %v2369
        %4610 = vmatpush.bf16.msra.mxu0 %v2368
        %4611 = vmatpush.bf16.msra.mxu0 %v2367
        %4612 = vmatpush.bf16.msra.mxu0 %v2366
        %4613 = vmatpush.bf16.msra.mxu0 %v2365
        %4614 = vmatpush.bf16.msra.mxu0 %v2364
        %4615 = vmatpush.bf16.msra.mxu0 %v2363
        %4616 = vmatmul.bf16.gmra.mxu0 %v4532
        %v4617 = vpop.f32.mrf.mxu0
        %v4618 = vadd.f32 %v4604, %v4617
        %v4619 = vpop.f32.mrf.mxu0
        %v4620 = vadd.f32 %v4606, %v4619
        %4621 = vdwg.mxu0
        %4622 = vmatpush.bf16.msra.mxu0 %v2378
        %4623 = vmatpush.bf16.msra.mxu0 %v2377
        %4624 = vmatpush.bf16.msra.mxu0 %v2376
        %4625 = vmatpush.bf16.msra.mxu0 %v2375
        %4626 = vmatpush.bf16.msra.mxu0 %v2374
        %4627 = vmatpush.bf16.msra.mxu0 %v2373
        %4628 = vmatpush.bf16.msra.mxu0 %v2372
        %4629 = vmatpush.bf16.msra.mxu0 %v2371
        %4630 = vmatmul.bf16.gmra.mxu0 %v4533
        %v4631 = vpop.f32.mrf.mxu0
        %v4632 = vadd.f32 %v4618, %v4631
        %v4633 = vpop.f32.mrf.mxu0
        %v4634 = vadd.f32 %v4620, %v4633
        %4635 = vdwg.mxu0
        %4636 = vmatpush.bf16.msra.mxu0 0
        %4637 = vmatpush.bf16.msra.mxu0 0
        %4638 = vmatpush.bf16.msra.mxu0 0
        %4639 = vmatpush.bf16.msra.mxu0 0
        %4640 = vmatpush.bf16.msra.mxu0 0
        %4641 = vmatpush.bf16.msra.mxu0 %v2409
        %4642 = vmatpush.bf16.msra.mxu0 %v2380
        %4643 = vmatpush.bf16.msra.mxu0 %v2379
        %4644 = vmatmul.bf16.gmra.mxu0 %v4536
        %v4645 = vpop.f32.mrf.mxu0
        %v4646 = vadd.f32 %v4632, %v4645
        %v4647 = vpop.f32.mrf.mxu0
        %v4648 = vadd.f32 %v4634, %v4647
        %4649 = vdwg.mxu0
        %v4650 = vmax.f32 %v4590, %v4646
        %v4651 = vmax.f32 %v4592, %v4648
        %v4653 = vsel %vm2189, %v4651, 0
        %4655 = vmatpush.msra.mxu0 0.0
        %4656 = vmatpush.msra.mxu0 0.0
        %4657 = vmatpush.msra.mxu0 0.0
        %4658 = vmatpush.msra.mxu0 0.0
        %4659 = vmatpush.msra.mxu0 0.0
        %4660 = vmatpush.msra.mxu0 0.0
        %4661 = vmatpush.msra.mxu0 0.0
        %4662 = vmatpush.msra.mxu0 0.0
        %4663 = vmatpush.msra.mxu0 0.0
        %4664 = vmatpush.msra.mxu0 0.0
        %4665 = vmatpush.msra.mxu0 0.0
        %4666 = vmatpush.msra.mxu0 0.0
        %4667 = vmatpush.msra.mxu0 0.0
        %4668 = vmatpush.msra.mxu0 0.0
        %4669 = vmatpush.msra.mxu0 %v4653
        %4670 = vmatpush.msra.mxu0 %v4650
        %4671 = vmatmul.f32.gmra.mxu0 %v2471
        %v4672 = vpop.f32.mrf.mxu0
        %v4673 = vadd.f32 0.0, %v4672
        %4674 = vdwg.mxu0
        %4675 = vmatpush.msra.mxu0 0.0
        %4676 = vmatpush.msra.mxu0 0.0
        %4677 = vmatpush.msra.mxu0 0.0
        %4678 = vmatpush.msra.mxu0 0.0
        %4679 = vmatpush.msra.mxu0 0.0
        %4680 = vmatpush.msra.mxu0 0.0
        %4681 = vmatpush.msra.mxu0 0.0
        %4682 = vmatpush.msra.mxu0 0.0
        %4683 = vmatpush.msra.mxu0 0.0
        %4684 = vmatpush.msra.mxu0 0.0
        %4685 = vmatpush.msra.mxu0 0.0
        %4686 = vmatpush.msra.mxu0 0.0
        %4687 = vmatpush.msra.mxu0 0.0
        %4688 = vmatpush.msra.mxu0 0.0
        %4689 = vmatpush.msra.mxu0 %v4653
        %4690 = vmatpush.msra.mxu0 %v4650
        %4691 = vmatmul.f32.gmra.mxu0 %v2497
        %v4692 = vpop.f32.mrf.mxu0
        %v4693 = vadd.f32 0.0, %v4692
        %4694 = vdwg.mxu0
        %v4695 = vmax.f32 %v4673, %v4693
        %v4696 = vadd.f32 %v4695, %v2521
        %v4697 = vmax.f32 %v4696, 0.0
        %v4699 = vrot.slane %v4697, 1
        %4700 = vrot.lane.b32.xlu0 %v4699, 80
        %v4701 = vpop.permute.xlu0 %4700
        %v4703 = vrot.slane %v4697, 2
        %4704 = vrot.lane.b32.xlu0 %v4703, 32
        %v4705 = vpop.permute.xlu0 %4704
        %v4707 = vrot.slane %v4697, 3
        %4708 = vrot.lane.b32.xlu0 %v4707, 112
        %v4709 = vpop.permute.xlu0 %4708
        %v4711 = vrot.slane %v4697, 4
        %4712 = vrot.lane.b32.xlu0 %v4711, 64
        %v4713 = vpop.permute.xlu0 %4712
        %v4715 = vsel %vm2019, %v4697, %v4701
        %v4716 = vsel %vm982, %v4701, %v4705
        %v4717 = vsel %vm2544, %v4716, %v4709
        %v4718 = vsel %vm1015, %v4709, %v4713
        %v4723 = vrot.slane %v1036, 1
        %v4724 = vrot.slane %v1037, 1
        %v4725 = vsel %vm1286, %v4723, %v4724
        %v4726 = vrot.slane %v1038, 1
        %v4727 = vsel %vm1286, %v4724, %v4726
        %v4728 = vrot.slane %v1039, 1
        %v4729 = vsel %vm1286, %v4726, %v4728
        %4730 = vrot.lane.b32.xlu0 %v4725, 96
        %v4731 = vpop.permute.xlu0 %4730
        %4732 = vrot.lane.b32.xlu0 %v4727, 96
        %v4733 = vpop.permute.xlu0 %4732
        %4734 = vrot.lane.b32.xlu0 %v4729, 96
        %v4735 = vpop.permute.xlu0 %4734
        %4736 = vrot.lane.b32.xlu0 %v4728, 96
        %v4737 = vpop.permute.xlu0 %4736
        %v4742 = vrot.slane %v1036, 2
        %v4743 = vrot.slane %v1037, 2
        %v4744 = vsel %vm1306, %v4742, %v4743
        %v4745 = vrot.slane %v1038, 2
        %v4746 = vsel %vm1306, %v4743, %v4745
        %v4747 = vrot.slane %v1039, 2
        %v4748 = vsel %vm1306, %v4745, %v4747
        %4749 = vrot.lane.b32.xlu0 %v4744, 64
        %v4750 = vpop.permute.xlu0 %4749
        %4751 = vrot.lane.b32.xlu0 %v4746, 64
        %v4752 = vpop.permute.xlu0 %4751
        %4753 = vrot.lane.b32.xlu0 %v4748, 64
        %v4754 = vpop.permute.xlu0 %4753
        %4755 = vrot.lane.b32.xlu0 %v4747, 64
        %v4756 = vpop.permute.xlu0 %4755
        %v4761 = vrot.slane %v1036, 3
        %v4762 = vrot.slane %v1037, 3
        %v4763 = vsel %vm1326, %v4761, %v4762
        %v4764 = vrot.slane %v1038, 3
        %v4765 = vsel %vm1326, %v4762, %v4764
        %v4766 = vrot.slane %v1039, 3
        %v4767 = vsel %vm1326, %v4764, %v4766
        %4768 = vrot.lane.b32.xlu0 %v4763, 32
        %v4769 = vpop.permute.xlu0 %4768
        %4770 = vrot.lane.b32.xlu0 %v4765, 32
        %v4771 = vpop.permute.xlu0 %4770
        %4772 = vrot.lane.b32.xlu0 %v4767, 32
        %v4773 = vpop.permute.xlu0 %4772
        %4774 = vrot.lane.b32.xlu0 %v4766, 32
        %v4775 = vpop.permute.xlu0 %4774
        %v4780 = vrot.slane %v1036, 4
        %v4781 = vrot.slane %v1037, 4
        %v4782 = vsel %vm1346, %v4780, %v4781
        %v4783 = vrot.slane %v1038, 4
        %v4784 = vsel %vm1346, %v4781, %v4783
        %v4785 = vrot.slane %v1039, 4
        %v4786 = vsel %vm1346, %v4783, %v4785
        %v4791 = vsel %vm1358, %v1036, %v4731
        %v4792 = vsel %vm1358, %v1037, %v4733
        %v4793 = vsel %vm1358, %v1038, %v4735
        %v4794 = vsel %vm1358, %v1039, %v4737
        %v4795 = vsel %vm1015, %v4731, %v4750
        %v4796 = vsel %vm1015, %v4733, %v4752
        %v4797 = vsel %vm1015, %v4735, %v4754
        %v4798 = vsel %vm1015, %v4737, %v4756
        %v4799 = vsel %vm982, %v4750, %v4769
        %v4800 = vsel %vm982, %v4752, %v4771
        %v4801 = vsel %vm982, %v4754, %v4773
        %v4802 = vsel %vm982, %v4756, %v4775
        %v4803 = vpack.c.bf16 %v4792, %v4791
        %v4804 = vpack.c.bf16 %v4796, %v4795
        %v4805 = vpack.c.bf16 %v4800, %v4799
        %v4806 = vpack.c.bf16 %v4784, %v4782
        %v4807 = vpack.c.bf16 %v4794, %v4793
        %v4808 = vpack.c.bf16 %v4798, %v4797
        %v4809 = vpack.c.bf16 %v4802, %v4801
        %v4810 = vpack.c.bf16 %v4785, %v4786
        %v4812 = vsel %vm1358, %v4806, 0
        %v4815 = vsel %vm1358, %v4810, 0
        %4817 = vmatpush.bf16.msra.mxu0 %v1506
        %4818 = vmatpush.bf16.msra.mxu0 %v1505
        %4819 = vmatpush.bf16.msra.mxu0 %v1504
        %4820 = vmatpush.bf16.msra.mxu0 %v1503
        %4821 = vmatpush.bf16.msra.mxu0 %v1502
        %4822 = vmatpush.bf16.msra.mxu0 %v1501
        %4823 = vmatpush.bf16.msra.mxu0 %v1500
        %4824 = vmatpush.bf16.msra.mxu0 %v1499
        %4825 = vmatmul.bf16.gmra.mxu0 %v4803
        %v4826 = vpop.f32.mrf.mxu0
        %v4827 = vadd.f32 0.0, %v4826
        %v4828 = vpop.f32.mrf.mxu0
        %v4829 = vadd.f32 0.0, %v4828
        %4830 = vmatmul.bf16.gmra.mxu0 %v4807
        %v4831 = vpop.f32.mrf.mxu0
        %v4832 = vadd.f32 0.0, %v4831
        %v4833 = vpop.f32.mrf.mxu0
        %v4834 = vadd.f32 0.0, %v4833
        %4835 = vdwg.mxu0
        %4836 = vmatpush.bf16.msra.mxu0 %v1514
        %4837 = vmatpush.bf16.msra.mxu0 %v1513
        %4838 = vmatpush.bf16.msra.mxu0 %v1512
        %4839 = vmatpush.bf16.msra.mxu0 %v1511
        %4840 = vmatpush.bf16.msra.mxu0 %v1510
        %4841 = vmatpush.bf16.msra.mxu0 %v1509
        %4842 = vmatpush.bf16.msra.mxu0 %v1508
        %4843 = vmatpush.bf16.msra.mxu0 %v1507
        %4844 = vmatmul.bf16.gmra.mxu0 %v4804
        %v4845 = vpop.f32.mrf.mxu0
        %v4846 = vadd.f32 %v4827, %v4845
        %v4847 = vpop.f32.mrf.mxu0
        %v4848 = vadd.f32 %v4829, %v4847
        %4849 = vmatmul.bf16.gmra.mxu0 %v4808
        %v4850 = vpop.f32.mrf.mxu0
        %v4851 = vadd.f32 %v4832, %v4850
        %v4852 = vpop.f32.mrf.mxu0
        %v4853 = vadd.f32 %v4834, %v4852
        %4854 = vdwg.mxu0
        %4855 = vmatpush.bf16.msra.mxu0 %v1522
        %4856 = vmatpush.bf16.msra.mxu0 %v1521
        %4857 = vmatpush.bf16.msra.mxu0 %v1520
        %4858 = vmatpush.bf16.msra.mxu0 %v1519
        %4859 = vmatpush.bf16.msra.mxu0 %v1518
        %4860 = vmatpush.bf16.msra.mxu0 %v1517
        %4861 = vmatpush.bf16.msra.mxu0 %v1516
        %4862 = vmatpush.bf16.msra.mxu0 %v1515
        %4863 = vmatmul.bf16.gmra.mxu0 %v4805
        %v4864 = vpop.f32.mrf.mxu0
        %v4865 = vadd.f32 %v4846, %v4864
        %v4866 = vpop.f32.mrf.mxu0
        %v4867 = vadd.f32 %v4848, %v4866
        %4868 = vmatmul.bf16.gmra.mxu0 %v4809
        %v4869 = vpop.f32.mrf.mxu0
        %v4870 = vadd.f32 %v4851, %v4869
        %v4871 = vpop.f32.mrf.mxu0
        %v4872 = vadd.f32 %v4853, %v4871
        %4873 = vdwg.mxu0
        %4874 = vmatpush.bf16.msra.mxu0 0
        %4875 = vmatpush.bf16.msra.mxu0 0
        %4876 = vmatpush.bf16.msra.mxu0 %v1528
        %4877 = vmatpush.bf16.msra.mxu0 %v1527
        %4878 = vmatpush.bf16.msra.mxu0 %v1526
        %4879 = vmatpush.bf16.msra.mxu0 %v1525
        %4880 = vmatpush.bf16.msra.mxu0 %v1524
        %4881 = vmatpush.bf16.msra.mxu0 %v1523
        %4882 = vmatmul.bf16.gmra.mxu0 %v4812
        %v4883 = vpop.f32.mrf.mxu0
        %v4884 = vadd.f32 %v4865, %v4883
        %v4885 = vpop.f32.mrf.mxu0
        %v4886 = vadd.f32 %v4867, %v4885
        %4887 = vmatmul.bf16.gmra.mxu0 %v4815
        %v4888 = vpop.f32.mrf.mxu0
        %v4889 = vadd.f32 %v4870, %v4888
        %v4890 = vpop.f32.mrf.mxu0
        %v4891 = vadd.f32 %v4872, %v4890
        %4892 = vdwg.mxu0
        %4893 = vmatpush.bf16.msra.mxu0 %v1768
        %4894 = vmatpush.bf16.msra.mxu0 %v1767
        %4895 = vmatpush.bf16.msra.mxu0 %v1766
        %4896 = vmatpush.bf16.msra.mxu0 %v1765
        %4897 = vmatpush.bf16.msra.mxu0 %v1764
        %4898 = vmatpush.bf16.msra.mxu0 %v1763
        %4899 = vmatpush.bf16.msra.mxu0 %v1762
        %4900 = vmatpush.bf16.msra.mxu0 %v1761
        %4901 = vmatmul.bf16.gmra.mxu0 %v4803
        %v4902 = vpop.f32.mrf.mxu0
        %v4903 = vadd.f32 0.0, %v4902
        %v4904 = vpop.f32.mrf.mxu0
        %v4905 = vadd.f32 0.0, %v4904
        %4906 = vmatmul.bf16.gmra.mxu0 %v4807
        %v4907 = vpop.f32.mrf.mxu0
        %v4908 = vadd.f32 0.0, %v4907
        %v4909 = vpop.f32.mrf.mxu0
        %v4910 = vadd.f32 0.0, %v4909
        %4911 = vdwg.mxu0
        %4912 = vmatpush.bf16.msra.mxu0 %v1776
        %4913 = vmatpush.bf16.msra.mxu0 %v1775
        %4914 = vmatpush.bf16.msra.mxu0 %v1774
        %4915 = vmatpush.bf16.msra.mxu0 %v1773
        %4916 = vmatpush.bf16.msra.mxu0 %v1772
        %4917 = vmatpush.bf16.msra.mxu0 %v1771
        %4918 = vmatpush.bf16.msra.mxu0 %v1770
        %4919 = vmatpush.bf16.msra.mxu0 %v1769
        %4920 = vmatmul.bf16.gmra.mxu0 %v4804
        %v4921 = vpop.f32.mrf.mxu0
        %v4922 = vadd.f32 %v4903, %v4921
        %v4923 = vpop.f32.mrf.mxu0
        %v4924 = vadd.f32 %v4905, %v4923
        %4925 = vmatmul.bf16.gmra.mxu0 %v4808
        %v4926 = vpop.f32.mrf.mxu0
        %v4927 = vadd.f32 %v4908, %v4926
        %v4928 = vpop.f32.mrf.mxu0
        %v4929 = vadd.f32 %v4910, %v4928
        %4930 = vdwg.mxu0
        %4931 = vmatpush.bf16.msra.mxu0 %v1784
        %4932 = vmatpush.bf16.msra.mxu0 %v1783
        %4933 = vmatpush.bf16.msra.mxu0 %v1782
        %4934 = vmatpush.bf16.msra.mxu0 %v1781
        %4935 = vmatpush.bf16.msra.mxu0 %v1780
        %4936 = vmatpush.bf16.msra.mxu0 %v1779
        %4937 = vmatpush.bf16.msra.mxu0 %v1778
        %4938 = vmatpush.bf16.msra.mxu0 %v1777
        %4939 = vmatmul.bf16.gmra.mxu0 %v4805
        %v4940 = vpop.f32.mrf.mxu0
        %v4941 = vadd.f32 %v4922, %v4940
        %v4942 = vpop.f32.mrf.mxu0
        %v4943 = vadd.f32 %v4924, %v4942
        %4944 = vmatmul.bf16.gmra.mxu0 %v4809
        %v4945 = vpop.f32.mrf.mxu0
        %v4946 = vadd.f32 %v4927, %v4945
        %v4947 = vpop.f32.mrf.mxu0
        %v4948 = vadd.f32 %v4929, %v4947
        %4949 = vdwg.mxu0
        %4950 = vmatpush.bf16.msra.mxu0 0
        %4951 = vmatpush.bf16.msra.mxu0 0
        %4952 = vmatpush.bf16.msra.mxu0 %v1790
        %4953 = vmatpush.bf16.msra.mxu0 %v1789
        %4954 = vmatpush.bf16.msra.mxu0 %v1788
        %4955 = vmatpush.bf16.msra.mxu0 %v1787
        %4956 = vmatpush.bf16.msra.mxu0 %v1786
        %4957 = vmatpush.bf16.msra.mxu0 %v1785
        %4958 = vmatmul.bf16.gmra.mxu0 %v4812
        %v4959 = vpop.f32.mrf.mxu0
        %v4960 = vadd.f32 %v4941, %v4959
        %v4961 = vpop.f32.mrf.mxu0
        %v4962 = vadd.f32 %v4943, %v4961
        %4963 = vmatmul.bf16.gmra.mxu0 %v4815
        %v4964 = vpop.f32.mrf.mxu0
        %v4965 = vadd.f32 %v4946, %v4964
        %v4966 = vpop.f32.mrf.mxu0
        %v4967 = vadd.f32 %v4948, %v4966
        %4968 = vdwg.mxu0
        %v4969 = vmax.f32 %v4884, %v4960
        %v4970 = vmax.f32 %v4886, %v4962
        %v4971 = vmax.f32 %v4889, %v4965
        %v4972 = vmax.f32 %v4891, %v4967
        %v4974 = vsel %vm1346, %v4972, 0
        %4976 = vmatpush.msra.mxu0 0.0
        %4977 = vmatpush.msra.mxu0 0.0
        %4978 = vmatpush.msra.mxu0 0.0
        %4979 = vmatpush.msra.mxu0 0.0
        %4980 = vmatpush.msra.mxu0 0.0
        %4981 = vmatpush.msra.mxu0 0.0
        %4982 = vmatpush.msra.mxu0 0.0
        %4983 = vmatpush.msra.mxu0 0.0
        %4984 = vmatpush.msra.mxu0 0.0
        %4985 = vmatpush.msra.mxu0 0.0
        %4986 = vmatpush.msra.mxu0 0.0
        %4987 = vmatpush.msra.mxu0 0.0
        %4988 = vmatpush.msra.mxu0 %v4974
        %4989 = vmatpush.msra.mxu0 %v4971
        %4990 = vmatpush.msra.mxu0 %v4970
        %4991 = vmatpush.msra.mxu0 %v4969
        %4992 = vmatmul.f32.gmra.mxu0 %v1903
        %v4993 = vpop.f32.mrf.mxu0
        %v4994 = vadd.f32 0.0, %v4993
        %4995 = vmatmul.f32.gmra.mxu0 %v1906
        %v4996 = vpop.f32.mrf.mxu0
        %v4997 = vadd.f32 0.0, %v4996
        %4998 = vdwg.mxu0
        %4999 = vmatpush.msra.mxu0 0.0
        %5000 = vmatpush.msra.mxu0 0.0
        %5001 = vmatpush.msra.mxu0 0.0
        %5002 = vmatpush.msra.mxu0 0.0
        %5003 = vmatpush.msra.mxu0 0.0
        %5004 = vmatpush.msra.mxu0 0.0
        %5005 = vmatpush.msra.mxu0 0.0
        %5006 = vmatpush.msra.mxu0 0.0
        %5007 = vmatpush.msra.mxu0 0.0
        %5008 = vmatpush.msra.mxu0 0.0
        %5009 = vmatpush.msra.mxu0 0.0
        %5010 = vmatpush.msra.mxu0 0.0
        %5011 = vmatpush.msra.mxu0 %v4974
        %5012 = vmatpush.msra.mxu0 %v4971
        %5013 = vmatpush.msra.mxu0 %v4970
        %5014 = vmatpush.msra.mxu0 %v4969
        %5015 = vmatmul.f32.gmra.mxu0 %v1935
        %v5016 = vpop.f32.mrf.mxu0
        %v5017 = vadd.f32 0.0, %v5016
        %5018 = vmatmul.f32.gmra.mxu0 %v1938
        %v5019 = vpop.f32.mrf.mxu0
        %v5020 = vadd.f32 0.0, %v5019
        %5021 = vdwg.mxu0
        %v5022 = vmax.f32 %v4994, %v5017
        %v5023 = vmax.f32 %v4997, %v5020
        %v5024 = vadd.f32 %v5022, %v1966
        %v5025 = vadd.f32 %v5023, %v1966
        %v5026 = vmax.f32 %v5024, 0.0
        %v5027 = vmax.f32 %v5025, 0.0
        %v5030 = vrot.slane %v5026, 1
        %v5031 = vrot.slane %v5027, 1
        %v5032 = vsel %vm1286, %v5030, %v5031
        %5033 = vrot.lane.b32.xlu0 %v5032, 84
        %v5034 = vpop.permute.xlu0 %5033
        %5035 = vrot.lane.b32.xlu0 %v5031, 84
        %v5036 = vpop.permute.xlu0 %5035
        %v5039 = vrot.slane %v5026, 2
        %v5040 = vrot.slane %v5027, 2
        %v5041 = vsel %vm1306, %v5039, %v5040
        %5042 = vrot.lane.b32.xlu0 %v5041, 40
        %v5043 = vpop.permute.xlu0 %5042
        %5044 = vrot.lane.b32.xlu0 %v5040, 40
        %v5045 = vpop.permute.xlu0 %5044
        %v5048 = vrot.slane %v5026, 3
        %v5049 = vrot.slane %v5027, 3
        %v5050 = vsel %vm1326, %v5048, %v5049
        %5051 = vrot.lane.b32.xlu0 %v5050, 124
        %v5052 = vpop.permute.xlu0 %5051
        %5053 = vrot.lane.b32.xlu0 %v5049, 124
        %v5054 = vpop.permute.xlu0 %5053
        %v5057 = vrot.slane %v5026, 4
        %v5058 = vrot.slane %v5027, 4
        %v5059 = vsel %vm1346, %v5057, %v5058
        %5060 = vrot.lane.b32.xlu0 %v5059, 80
        %v5061 = vpop.permute.xlu0 %5060
        %5062 = vrot.lane.b32.xlu0 %v5058, 80
        %v5063 = vpop.permute.xlu0 %5062
        %v5066 = vsel %vm2010, %v5026, %v5034
        %v5067 = vsel %vm2010, %v5027, %v5036
        %v5068 = vsel %vm2013, %v5034, %v5043
        %v5069 = vsel %vm2013, %v5036, %v5045
        %v5070 = vsel %vm2016, %v5068, %v5052
        %v5071 = vsel %vm2016, %v5069, %v5054
        %v5072 = vsel %vm2019, %v5052, %v5061
        %v5073 = vsel %vm2019, %v5054, %v5063
        %v5074 = vpack.c.bf16 %v5067, %v5066
        %v5075 = vpack.c.bf16 %v5071, %v5070
        %v5076 = vpack.c.bf16 %v5073, %v5072
        %v5077 = vpack.c.bf16 %v5063, %v5061
        %v5079 = vsel %vm2185, %v5077, 0
        %5081 = vmatpush.bf16.msra.mxu0 %v2139
        %5082 = vmatpush.bf16.msra.mxu0 %v2138
        %5083 = vmatpush.bf16.msra.mxu0 %v2137
        %5084 = vmatpush.bf16.msra.mxu0 %v2136
        %5085 = vmatpush.bf16.msra.mxu0 %v2135
        %5086 = vmatpush.bf16.msra.mxu0 %v2134
        %5087 = vmatpush.bf16.msra.mxu0 %v2133
        %5088 = vmatpush.bf16.msra.mxu0 %v2132
        %5089 = vmatmul.bf16.gmra.mxu0 %v5074
        %v5090 = vpop.f32.mrf.mxu0
        %v5091 = vadd.f32 0.0, %v5090
        %v5092 = vpop.f32.mrf.mxu0
        %v5093 = vadd.f32 0.0, %v5092
        %5094 = vdwg.mxu0
        %5095 = vmatpush.bf16.msra.mxu0 %v2147
        %5096 = vmatpush.bf16.msra.mxu0 %v2146
        %5097 = vmatpush.bf16.msra.mxu0 %v2145
        %5098 = vmatpush.bf16.msra.mxu0 %v2144
        %5099 = vmatpush.bf16.msra.mxu0 %v2143
        %5100 = vmatpush.bf16.msra.mxu0 %v2142
        %5101 = vmatpush.bf16.msra.mxu0 %v2141
        %5102 = vmatpush.bf16.msra.mxu0 %v2140
        %5103 = vmatmul.bf16.gmra.mxu0 %v5075
        %v5104 = vpop.f32.mrf.mxu0
        %v5105 = vadd.f32 %v5091, %v5104
        %v5106 = vpop.f32.mrf.mxu0
        %v5107 = vadd.f32 %v5093, %v5106
        %5108 = vdwg.mxu0
        %5109 = vmatpush.bf16.msra.mxu0 %v2155
        %5110 = vmatpush.bf16.msra.mxu0 %v2154
        %5111 = vmatpush.bf16.msra.mxu0 %v2153
        %5112 = vmatpush.bf16.msra.mxu0 %v2152
        %5113 = vmatpush.bf16.msra.mxu0 %v2151
        %5114 = vmatpush.bf16.msra.mxu0 %v2150
        %5115 = vmatpush.bf16.msra.mxu0 %v2149
        %5116 = vmatpush.bf16.msra.mxu0 %v2148
        %5117 = vmatmul.bf16.gmra.mxu0 %v5076
        %v5118 = vpop.f32.mrf.mxu0
        %v5119 = vadd.f32 %v5105, %v5118
        %v5120 = vpop.f32.mrf.mxu0
        %v5121 = vadd.f32 %v5107, %v5120
        %5122 = vdwg.mxu0
        %5123 = vmatpush.bf16.msra.mxu0 0
        %5124 = vmatpush.bf16.msra.mxu0 0
        %5125 = vmatpush.bf16.msra.mxu0 0
        %5126 = vmatpush.bf16.msra.mxu0 0
        %5127 = vmatpush.bf16.msra.mxu0 0
        %5128 = vmatpush.bf16.msra.mxu0 %v2191
        %5129 = vmatpush.bf16.msra.mxu0 %v2157
        %5130 = vmatpush.bf16.msra.mxu0 %v2156
        %5131 = vmatmul.bf16.gmra.mxu0 %v5079
        %v5132 = vpop.f32.mrf.mxu0
        %v5133 = vadd.f32 %v5119, %v5132
        %v5134 = vpop.f32.mrf.mxu0
        %v5135 = vadd.f32 %v5121, %v5134
        %5136 = vdwg.mxu0
        %5137 = vmatpush.bf16.msra.mxu0 %v2362
        %5138 = vmatpush.bf16.msra.mxu0 %v2361
        %5139 = vmatpush.bf16.msra.mxu0 %v2360
        %5140 = vmatpush.bf16.msra.mxu0 %v2359
        %5141 = vmatpush.bf16.msra.mxu0 %v2358
        %5142 = vmatpush.bf16.msra.mxu0 %v2357
        %5143 = vmatpush.bf16.msra.mxu0 %v2356
        %5144 = vmatpush.bf16.msra.mxu0 %v2355
        %5145 = vmatmul.bf16.gmra.mxu0 %v5074
        %v5146 = vpop.f32.mrf.mxu0
        %v5147 = vadd.f32 0.0, %v5146
        %v5148 = vpop.f32.mrf.mxu0
        %v5149 = vadd.f32 0.0, %v5148
        %5150 = vdwg.mxu0
        %5151 = vmatpush.bf16.msra.mxu0 %v2370
        %5152 = vmatpush.bf16.msra.mxu0 %v2369
        %5153 = vmatpush.bf16.msra.mxu0 %v2368
        %5154 = vmatpush.bf16.msra.mxu0 %v2367
        %5155 = vmatpush.bf16.msra.mxu0 %v2366
        %5156 = vmatpush.bf16.msra.mxu0 %v2365
        %5157 = vmatpush.bf16.msra.mxu0 %v2364
        %5158 = vmatpush.bf16.msra.mxu0 %v2363
        %5159 = vmatmul.bf16.gmra.mxu0 %v5075
        %v5160 = vpop.f32.mrf.mxu0
        %v5161 = vadd.f32 %v5147, %v5160
        %v5162 = vpop.f32.mrf.mxu0
        %v5163 = vadd.f32 %v5149, %v5162
        %5164 = vdwg.mxu0
        %5165 = vmatpush.bf16.msra.mxu0 %v2378
        %5166 = vmatpush.bf16.msra.mxu0 %v2377
        %5167 = vmatpush.bf16.msra.mxu0 %v2376
        %5168 = vmatpush.bf16.msra.mxu0 %v2375
        %5169 = vmatpush.bf16.msra.mxu0 %v2374
        %5170 = vmatpush.bf16.msra.mxu0 %v2373
        %5171 = vmatpush.bf16.msra.mxu0 %v2372
        %5172 = vmatpush.bf16.msra.mxu0 %v2371
        %5173 = vmatmul.bf16.gmra.mxu0 %v5076
        %v5174 = vpop.f32.mrf.mxu0
        %v5175 = vadd.f32 %v5161, %v5174
        %v5176 = vpop.f32.mrf.mxu0
        %v5177 = vadd.f32 %v5163, %v5176
        %5178 = vdwg.mxu0
        %5179 = vmatpush.bf16.msra.mxu0 0
        %5180 = vmatpush.bf16.msra.mxu0 0
        %5181 = vmatpush.bf16.msra.mxu0 0
        %5182 = vmatpush.bf16.msra.mxu0 0
        %5183 = vmatpush.bf16.msra.mxu0 0
        %5184 = vmatpush.bf16.msra.mxu0 %v2409
        %5185 = vmatpush.bf16.msra.mxu0 %v2380
        %5186 = vmatpush.bf16.msra.mxu0 %v2379
        %5187 = vmatmul.bf16.gmra.mxu0 %v5079
        %v5188 = vpop.f32.mrf.mxu0
        %v5189 = vadd.f32 %v5175, %v5188
        %v5190 = vpop.f32.mrf.mxu0
        %v5191 = vadd.f32 %v5177, %v5190
        %5192 = vdwg.mxu0
        %v5193 = vmax.f32 %v5133, %v5189
        %v5194 = vmax.f32 %v5135, %v5191
        %v5196 = vsel %vm2189, %v5194, 0
        %5198 = vmatpush.msra.mxu0 0.0
        %5199 = vmatpush.msra.mxu0 0.0
        %5200 = vmatpush.msra.mxu0 0.0
        %5201 = vmatpush.msra.mxu0 0.0
        %5202 = vmatpush.msra.mxu0 0.0
        %5203 = vmatpush.msra.mxu0 0.0
        %5204 = vmatpush.msra.mxu0 0.0
        %5205 = vmatpush.msra.mxu0 0.0
        %5206 = vmatpush.msra.mxu0 0.0
        %5207 = vmatpush.msra.mxu0 0.0
        %5208 = vmatpush.msra.mxu0 0.0
        %5209 = vmatpush.msra.mxu0 0.0
        %5210 = vmatpush.msra.mxu0 0.0
        %5211 = vmatpush.msra.mxu0 0.0
        %5212 = vmatpush.msra.mxu0 %v5196
        %5213 = vmatpush.msra.mxu0 %v5193
        %5214 = vmatmul.f32.gmra.mxu0 %v2471
        %v5215 = vpop.f32.mrf.mxu0
        %v5216 = vadd.f32 0.0, %v5215
        %5217 = vdwg.mxu0
        %5218 = vmatpush.msra.mxu0 0.0
        %5219 = vmatpush.msra.mxu0 0.0
        %5220 = vmatpush.msra.mxu0 0.0
        %5221 = vmatpush.msra.mxu0 0.0
        %5222 = vmatpush.msra.mxu0 0.0
        %5223 = vmatpush.msra.mxu0 0.0
        %5224 = vmatpush.msra.mxu0 0.0
        %5225 = vmatpush.msra.mxu0 0.0
        %5226 = vmatpush.msra.mxu0 0.0
        %5227 = vmatpush.msra.mxu0 0.0
        %5228 = vmatpush.msra.mxu0 0.0
        %5229 = vmatpush.msra.mxu0 0.0
        %5230 = vmatpush.msra.mxu0 0.0
        %5231 = vmatpush.msra.mxu0 0.0
        %5232 = vmatpush.msra.mxu0 %v5196
        %5233 = vmatpush.msra.mxu0 %v5193
        %5234 = vmatmul.f32.gmra.mxu0 %v2497
        %v5235 = vpop.f32.mrf.mxu0
        %v5236 = vadd.f32 0.0, %v5235
        %5237 = vdwg.mxu0
        %v5238 = vmax.f32 %v5216, %v5236
        %v5239 = vadd.f32 %v5238, %v2521
        %v5240 = vmax.f32 %v5239, 0.0
        %v5242 = vrot.slane %v5240, 1
        %5243 = vrot.lane.b32.xlu0 %v5242, 80
        %v5244 = vpop.permute.xlu0 %5243
        %v5246 = vrot.slane %v5240, 2
        %5247 = vrot.lane.b32.xlu0 %v5246, 32
        %v5248 = vpop.permute.xlu0 %5247
        %v5250 = vrot.slane %v5240, 3
        %5251 = vrot.lane.b32.xlu0 %v5250, 112
        %v5252 = vpop.permute.xlu0 %5251
        %v5254 = vrot.slane %v5240, 4
        %5255 = vrot.lane.b32.xlu0 %v5254, 64
        %v5256 = vpop.permute.xlu0 %5255
        %v5258 = vsel %vm2019, %v5240, %v5244
        %v5259 = vsel %vm982, %v5244, %v5248
        %v5260 = vsel %vm2544, %v5259, %v5252
        %v5261 = vsel %vm1015, %v5252, %v5256
        %v5266 = vrot.slane %v1040, 1
        %v5267 = vrot.slane %v1041, 1
        %v5268 = vsel %vm1286, %v5266, %v5267
        %v5269 = vrot.slane %v1042, 1
        %v5270 = vsel %vm1286, %v5267, %v5269
        %v5271 = vrot.slane %v1043, 1
        %v5272 = vsel %vm1286, %v5269, %v5271
        %5273 = vrot.lane.b32.xlu0 %v5268, 96
        %v5274 = vpop.permute.xlu0 %5273
        %5275 = vrot.lane.b32.xlu0 %v5270, 96
        %v5276 = vpop.permute.xlu0 %5275
        %5277 = vrot.lane.b32.xlu0 %v5272, 96
        %v5278 = vpop.permute.xlu0 %5277
        %5279 = vrot.lane.b32.xlu0 %v5271, 96
        %v5280 = vpop.permute.xlu0 %5279
        %v5285 = vrot.slane %v1040, 2
        %v5286 = vrot.slane %v1041, 2
        %v5287 = vsel %vm1306, %v5285, %v5286
        %v5288 = vrot.slane %v1042, 2
        %v5289 = vsel %vm1306, %v5286, %v5288
        %v5290 = vrot.slane %v1043, 2
        %v5291 = vsel %vm1306, %v5288, %v5290
        %5292 = vrot.lane.b32.xlu0 %v5287, 64
        %v5293 = vpop.permute.xlu0 %5292
        %5294 = vrot.lane.b32.xlu0 %v5289, 64
        %v5295 = vpop.permute.xlu0 %5294
        %5296 = vrot.lane.b32.xlu0 %v5291, 64
        %v5297 = vpop.permute.xlu0 %5296
        %5298 = vrot.lane.b32.xlu0 %v5290, 64
        %v5299 = vpop.permute.xlu0 %5298
        %v5304 = vrot.slane %v1040, 3
        %v5305 = vrot.slane %v1041, 3
        %v5306 = vsel %vm1326, %v5304, %v5305
        %v5307 = vrot.slane %v1042, 3
        %v5308 = vsel %vm1326, %v5305, %v5307
        %v5309 = vrot.slane %v1043, 3
        %v5310 = vsel %vm1326, %v5307, %v5309
        %5311 = vrot.lane.b32.xlu0 %v5306, 32
        %v5312 = vpop.permute.xlu0 %5311
        %5313 = vrot.lane.b32.xlu0 %v5308, 32
        %v5314 = vpop.permute.xlu0 %5313
        %5315 = vrot.lane.b32.xlu0 %v5310, 32
        %v5316 = vpop.permute.xlu0 %5315
        %5317 = vrot.lane.b32.xlu0 %v5309, 32
        %v5318 = vpop.permute.xlu0 %5317
        %v5323 = vrot.slane %v1040, 4
        %v5324 = vrot.slane %v1041, 4
        %v5325 = vsel %vm1346, %v5323, %v5324
        %v5326 = vrot.slane %v1042, 4
        %v5327 = vsel %vm1346, %v5324, %v5326
        %v5328 = vrot.slane %v1043, 4
        %v5329 = vsel %vm1346, %v5326, %v5328
        %v5334 = vsel %vm1358, %v1040, %v5274
        %v5335 = vsel %vm1358, %v1041, %v5276
        %v5336 = vsel %vm1358, %v1042, %v5278
        %v5337 = vsel %vm1358, %v1043, %v5280
        %v5338 = vsel %vm1015, %v5274, %v5293
        %v5339 = vsel %vm1015, %v5276, %v5295
        %v5340 = vsel %vm1015, %v5278, %v5297
        %v5341 = vsel %vm1015, %v5280, %v5299
        %v5342 = vsel %vm982, %v5293, %v5312
        %v5343 = vsel %vm982, %v5295, %v5314
        %v5344 = vsel %vm982, %v5297, %v5316
        %v5345 = vsel %vm982, %v5299, %v5318
        %v5346 = vpack.c.bf16 %v5335, %v5334
        %v5347 = vpack.c.bf16 %v5339, %v5338
        %v5348 = vpack.c.bf16 %v5343, %v5342
        %v5349 = vpack.c.bf16 %v5327, %v5325
        %v5350 = vpack.c.bf16 %v5337, %v5336
        %v5351 = vpack.c.bf16 %v5341, %v5340
        %v5352 = vpack.c.bf16 %v5345, %v5344
        %v5353 = vpack.c.bf16 %v5328, %v5329
        %v5355 = vsel %vm1358, %v5349, 0
        %v5358 = vsel %vm1358, %v5353, 0
        %5360 = vmatpush.bf16.msra.mxu0 %v1506
        %5361 = vmatpush.bf16.msra.mxu0 %v1505
        %5362 = vmatpush.bf16.msra.mxu0 %v1504
        %5363 = vmatpush.bf16.msra.mxu0 %v1503
        %5364 = vmatpush.bf16.msra.mxu0 %v1502
        %5365 = vmatpush.bf16.msra.mxu0 %v1501
        %5366 = vmatpush.bf16.msra.mxu0 %v1500
        %5367 = vmatpush.bf16.msra.mxu0 %v1499
        %5368 = vmatmul.bf16.gmra.mxu0 %v5346
        %v5369 = vpop.f32.mrf.mxu0
        %v5370 = vadd.f32 0.0, %v5369
        %v5371 = vpop.f32.mrf.mxu0
        %v5372 = vadd.f32 0.0, %v5371
        %5373 = vmatmul.bf16.gmra.mxu0 %v5350
        %v5374 = vpop.f32.mrf.mxu0
        %v5375 = vadd.f32 0.0, %v5374
        %v5376 = vpop.f32.mrf.mxu0
        %v5377 = vadd.f32 0.0, %v5376
        %5378 = vdwg.mxu0
        %5379 = vmatpush.bf16.msra.mxu0 %v1514
        %5380 = vmatpush.bf16.msra.mxu0 %v1513
        %5381 = vmatpush.bf16.msra.mxu0 %v1512
        %5382 = vmatpush.bf16.msra.mxu0 %v1511
        %5383 = vmatpush.bf16.msra.mxu0 %v1510
        %5384 = vmatpush.bf16.msra.mxu0 %v1509
        %5385 = vmatpush.bf16.msra.mxu0 %v1508
        %5386 = vmatpush.bf16.msra.mxu0 %v1507
        %5387 = vmatmul.bf16.gmra.mxu0 %v5347
        %v5388 = vpop.f32.mrf.mxu0
        %v5389 = vadd.f32 %v5370, %v5388
        %v5390 = vpop.f32.mrf.mxu0
        %v5391 = vadd.f32 %v5372, %v5390
        %5392 = vmatmul.bf16.gmra.mxu0 %v5351
        %v5393 = vpop.f32.mrf.mxu0
        %v5394 = vadd.f32 %v5375, %v5393
        %v5395 = vpop.f32.mrf.mxu0
        %v5396 = vadd.f32 %v5377, %v5395
        %5397 = vdwg.mxu0
        %5398 = vmatpush.bf16.msra.mxu0 %v1522
        %5399 = vmatpush.bf16.msra.mxu0 %v1521
        %5400 = vmatpush.bf16.msra.mxu0 %v1520
        %5401 = vmatpush.bf16.msra.mxu0 %v1519
        %5402 = vmatpush.bf16.msra.mxu0 %v1518
        %5403 = vmatpush.bf16.msra.mxu0 %v1517
        %5404 = vmatpush.bf16.msra.mxu0 %v1516
        %5405 = vmatpush.bf16.msra.mxu0 %v1515
        %5406 = vmatmul.bf16.gmra.mxu0 %v5348
        %v5407 = vpop.f32.mrf.mxu0
        %v5408 = vadd.f32 %v5389, %v5407
        %v5409 = vpop.f32.mrf.mxu0
        %v5410 = vadd.f32 %v5391, %v5409
        %5411 = vmatmul.bf16.gmra.mxu0 %v5352
        %v5412 = vpop.f32.mrf.mxu0
        %v5413 = vadd.f32 %v5394, %v5412
        %v5414 = vpop.f32.mrf.mxu0
        %v5415 = vadd.f32 %v5396, %v5414
        %5416 = vdwg.mxu0
        %5417 = vmatpush.bf16.msra.mxu0 0
        %5418 = vmatpush.bf16.msra.mxu0 0
        %5419 = vmatpush.bf16.msra.mxu0 %v1528
        %5420 = vmatpush.bf16.msra.mxu0 %v1527
        %5421 = vmatpush.bf16.msra.mxu0 %v1526
        %5422 = vmatpush.bf16.msra.mxu0 %v1525
        %5423 = vmatpush.bf16.msra.mxu0 %v1524
        %5424 = vmatpush.bf16.msra.mxu0 %v1523
        %5425 = vmatmul.bf16.gmra.mxu0 %v5355
        %v5426 = vpop.f32.mrf.mxu0
        %v5427 = vadd.f32 %v5408, %v5426
        %v5428 = vpop.f32.mrf.mxu0
        %v5429 = vadd.f32 %v5410, %v5428
        %5430 = vmatmul.bf16.gmra.mxu0 %v5358
        %v5431 = vpop.f32.mrf.mxu0
        %v5432 = vadd.f32 %v5413, %v5431
        %v5433 = vpop.f32.mrf.mxu0
        %v5434 = vadd.f32 %v5415, %v5433
        %5435 = vdwg.mxu0
        %5436 = vmatpush.bf16.msra.mxu0 %v1768
        %5437 = vmatpush.bf16.msra.mxu0 %v1767
        %5438 = vmatpush.bf16.msra.mxu0 %v1766
        %5439 = vmatpush.bf16.msra.mxu0 %v1765
        %5440 = vmatpush.bf16.msra.mxu0 %v1764
        %5441 = vmatpush.bf16.msra.mxu0 %v1763
        %5442 = vmatpush.bf16.msra.mxu0 %v1762
        %5443 = vmatpush.bf16.msra.mxu0 %v1761
        %5444 = vmatmul.bf16.gmra.mxu0 %v5346
        %v5445 = vpop.f32.mrf.mxu0
        %v5446 = vadd.f32 0.0, %v5445
        %v5447 = vpop.f32.mrf.mxu0
        %v5448 = vadd.f32 0.0, %v5447
        %5449 = vmatmul.bf16.gmra.mxu0 %v5350
        %v5450 = vpop.f32.mrf.mxu0
        %v5451 = vadd.f32 0.0, %v5450
        %v5452 = vpop.f32.mrf.mxu0
        %v5453 = vadd.f32 0.0, %v5452
        %5454 = vdwg.mxu0
        %5455 = vmatpush.bf16.msra.mxu0 %v1776
        %5456 = vmatpush.bf16.msra.mxu0 %v1775
        %5457 = vmatpush.bf16.msra.mxu0 %v1774
        %5458 = vmatpush.bf16.msra.mxu0 %v1773
        %5459 = vmatpush.bf16.msra.mxu0 %v1772
        %5460 = vmatpush.bf16.msra.mxu0 %v1771
        %5461 = vmatpush.bf16.msra.mxu0 %v1770
        %5462 = vmatpush.bf16.msra.mxu0 %v1769
        %5463 = vmatmul.bf16.gmra.mxu0 %v5347
        %v5464 = vpop.f32.mrf.mxu0
        %v5465 = vadd.f32 %v5446, %v5464
        %v5466 = vpop.f32.mrf.mxu0
        %v5467 = vadd.f32 %v5448, %v5466
        %5468 = vmatmul.bf16.gmra.mxu0 %v5351
        %v5469 = vpop.f32.mrf.mxu0
        %v5470 = vadd.f32 %v5451, %v5469
        %v5471 = vpop.f32.mrf.mxu0
        %v5472 = vadd.f32 %v5453, %v5471
        %5473 = vdwg.mxu0
        %5474 = vmatpush.bf16.msra.mxu0 %v1784
        %5475 = vmatpush.bf16.msra.mxu0 %v1783
        %5476 = vmatpush.bf16.msra.mxu0 %v1782
        %5477 = vmatpush.bf16.msra.mxu0 %v1781
        %5478 = vmatpush.bf16.msra.mxu0 %v1780
        %5479 = vmatpush.bf16.msra.mxu0 %v1779
        %5480 = vmatpush.bf16.msra.mxu0 %v1778
        %5481 = vmatpush.bf16.msra.mxu0 %v1777
        %5482 = vmatmul.bf16.gmra.mxu0 %v5348
        %v5483 = vpop.f32.mrf.mxu0
        %v5484 = vadd.f32 %v5465, %v5483
        %v5485 = vpop.f32.mrf.mxu0
        %v5486 = vadd.f32 %v5467, %v5485
        %5487 = vmatmul.bf16.gmra.mxu0 %v5352
        %v5488 = vpop.f32.mrf.mxu0
        %v5489 = vadd.f32 %v5470, %v5488
        %v5490 = vpop.f32.mrf.mxu0
        %v5491 = vadd.f32 %v5472, %v5490
        %5492 = vdwg.mxu0
        %5493 = vmatpush.bf16.msra.mxu0 0
        %5494 = vmatpush.bf16.msra.mxu0 0
        %5495 = vmatpush.bf16.msra.mxu0 %v1790
        %5496 = vmatpush.bf16.msra.mxu0 %v1789
        %5497 = vmatpush.bf16.msra.mxu0 %v1788
        %5498 = vmatpush.bf16.msra.mxu0 %v1787
        %5499 = vmatpush.bf16.msra.mxu0 %v1786
        %5500 = vmatpush.bf16.msra.mxu0 %v1785
        %5501 = vmatmul.bf16.gmra.mxu0 %v5355
        %v5502 = vpop.f32.mrf.mxu0
        %v5503 = vadd.f32 %v5484, %v5502
        %v5504 = vpop.f32.mrf.mxu0
        %v5505 = vadd.f32 %v5486, %v5504
        %5506 = vmatmul.bf16.gmra.mxu0 %v5358
        %v5507 = vpop.f32.mrf.mxu0
        %v5508 = vadd.f32 %v5489, %v5507
        %v5509 = vpop.f32.mrf.mxu0
        %v5510 = vadd.f32 %v5491, %v5509
        %5511 = vdwg.mxu0
        %v5512 = vmax.f32 %v5427, %v5503
        %v5513 = vmax.f32 %v5429, %v5505
        %v5514 = vmax.f32 %v5432, %v5508
        %v5515 = vmax.f32 %v5434, %v5510
        %v5517 = vsel %vm1346, %v5515, 0
        %5519 = vmatpush.msra.mxu0 0.0
        %5520 = vmatpush.msra.mxu0 0.0
        %5521 = vmatpush.msra.mxu0 0.0
        %5522 = vmatpush.msra.mxu0 0.0
        %5523 = vmatpush.msra.mxu0 0.0
        %5524 = vmatpush.msra.mxu0 0.0
        %5525 = vmatpush.msra.mxu0 0.0
        %5526 = vmatpush.msra.mxu0 0.0
        %5527 = vmatpush.msra.mxu0 0.0
        %5528 = vmatpush.msra.mxu0 0.0
        %5529 = vmatpush.msra.mxu0 0.0
        %5530 = vmatpush.msra.mxu0 0.0
        %5531 = vmatpush.msra.mxu0 %v5517
        %5532 = vmatpush.msra.mxu0 %v5514
        %5533 = vmatpush.msra.mxu0 %v5513
        %5534 = vmatpush.msra.mxu0 %v5512
        %5535 = vmatmul.f32.gmra.mxu0 %v1903
        %v5536 = vpop.f32.mrf.mxu0
        %v5537 = vadd.f32 0.0, %v5536
        %5538 = vmatmul.f32.gmra.mxu0 %v1906
        %v5539 = vpop.f32.mrf.mxu0
        %v5540 = vadd.f32 0.0, %v5539
        %5541 = vdwg.mxu0
        %5542 = vmatpush.msra.mxu0 0.0
        %5543 = vmatpush.msra.mxu0 0.0
        %5544 = vmatpush.msra.mxu0 0.0
        %5545 = vmatpush.msra.mxu0 0.0
        %5546 = vmatpush.msra.mxu0 0.0
        %5547 = vmatpush.msra.mxu0 0.0
        %5548 = vmatpush.msra.mxu0 0.0
        %5549 = vmatpush.msra.mxu0 0.0
        %5550 = vmatpush.msra.mxu0 0.0
        %5551 = vmatpush.msra.mxu0 0.0
        %5552 = vmatpush.msra.mxu0 0.0
        %5553 = vmatpush.msra.mxu0 0.0
        %5554 = vmatpush.msra.mxu0 %v5517
        %5555 = vmatpush.msra.mxu0 %v5514
        %5556 = vmatpush.msra.mxu0 %v5513
        %5557 = vmatpush.msra.mxu0 %v5512
        %5558 = vmatmul.f32.gmra.mxu0 %v1935
        %v5559 = vpop.f32.mrf.mxu0
        %v5560 = vadd.f32 0.0, %v5559
        %5561 = vmatmul.f32.gmra.mxu0 %v1938
        %v5562 = vpop.f32.mrf.mxu0
        %v5563 = vadd.f32 0.0, %v5562
        %5564 = vdwg.mxu0
        %v5565 = vmax.f32 %v5537, %v5560
        %v5566 = vmax.f32 %v5540, %v5563
        %v5567 = vadd.f32 %v5565, %v1966
        %v5568 = vadd.f32 %v5566, %v1966
        %v5569 = vmax.f32 %v5567, 0.0
        %v5570 = vmax.f32 %v5568, 0.0
        %v5573 = vrot.slane %v5569, 1
        %v5574 = vrot.slane %v5570, 1
        %v5575 = vsel %vm1286, %v5573, %v5574
        %5576 = vrot.lane.b32.xlu0 %v5575, 84
        %v5577 = vpop.permute.xlu0 %5576
        %5578 = vrot.lane.b32.xlu0 %v5574, 84
        %v5579 = vpop.permute.xlu0 %5578
        %v5582 = vrot.slane %v5569, 2
        %v5583 = vrot.slane %v5570, 2
        %v5584 = vsel %vm1306, %v5582, %v5583
        %5585 = vrot.lane.b32.xlu0 %v5584, 40
        %v5586 = vpop.permute.xlu0 %5585
        %5587 = vrot.lane.b32.xlu0 %v5583, 40
        %v5588 = vpop.permute.xlu0 %5587
        %v5591 = vrot.slane %v5569, 3
        %v5592 = vrot.slane %v5570, 3
        %v5593 = vsel %vm1326, %v5591, %v5592
        %5594 = vrot.lane.b32.xlu0 %v5593, 124
        %v5595 = vpop.permute.xlu0 %5594
        %5596 = vrot.lane.b32.xlu0 %v5592, 124
        %v5597 = vpop.permute.xlu0 %5596
        %v5600 = vrot.slane %v5569, 4
        %v5601 = vrot.slane %v5570, 4
        %v5602 = vsel %vm1346, %v5600, %v5601
        %5603 = vrot.lane.b32.xlu0 %v5602, 80
        %v5604 = vpop.permute.xlu0 %5603
        %5605 = vrot.lane.b32.xlu0 %v5601, 80
        %v5606 = vpop.permute.xlu0 %5605
        %v5609 = vsel %vm2010, %v5569, %v5577
        %v5610 = vsel %vm2010, %v5570, %v5579
        %v5611 = vsel %vm2013, %v5577, %v5586
        %v5612 = vsel %vm2013, %v5579, %v5588
        %v5613 = vsel %vm2016, %v5611, %v5595
        %v5614 = vsel %vm2016, %v5612, %v5597
        %v5615 = vsel %vm2019, %v5595, %v5604
        %v5616 = vsel %vm2019, %v5597, %v5606
        %v5617 = vpack.c.bf16 %v5610, %v5609
        %v5618 = vpack.c.bf16 %v5614, %v5613
        %v5619 = vpack.c.bf16 %v5616, %v5615
        %v5620 = vpack.c.bf16 %v5606, %v5604
        %v5622 = vsel %vm2185, %v5620, 0
        %5624 = vmatpush.bf16.msra.mxu0 %v2139
        %5625 = vmatpush.bf16.msra.mxu0 %v2138
        %5626 = vmatpush.bf16.msra.mxu0 %v2137
        %5627 = vmatpush.bf16.msra.mxu0 %v2136
        %5628 = vmatpush.bf16.msra.mxu0 %v2135
        %5629 = vmatpush.bf16.msra.mxu0 %v2134
        %5630 = vmatpush.bf16.msra.mxu0 %v2133
        %5631 = vmatpush.bf16.msra.mxu0 %v2132
        %5632 = vmatmul.bf16.gmra.mxu0 %v5617
        %v5633 = vpop.f32.mrf.mxu0
        %v5634 = vadd.f32 0.0, %v5633
        %v5635 = vpop.f32.mrf.mxu0
        %v5636 = vadd.f32 0.0, %v5635
        %5637 = vdwg.mxu0
        %5638 = vmatpush.bf16.msra.mxu0 %v2147
        %5639 = vmatpush.bf16.msra.mxu0 %v2146
        %5640 = vmatpush.bf16.msra.mxu0 %v2145
        %5641 = vmatpush.bf16.msra.mxu0 %v2144
        %5642 = vmatpush.bf16.msra.mxu0 %v2143
        %5643 = vmatpush.bf16.msra.mxu0 %v2142
        %5644 = vmatpush.bf16.msra.mxu0 %v2141
        %5645 = vmatpush.bf16.msra.mxu0 %v2140
        %5646 = vmatmul.bf16.gmra.mxu0 %v5618
        %v5647 = vpop.f32.mrf.mxu0
        %v5648 = vadd.f32 %v5634, %v5647
        %v5649 = vpop.f32.mrf.mxu0
        %v5650 = vadd.f32 %v5636, %v5649
        %5651 = vdwg.mxu0
        %5652 = vmatpush.bf16.msra.mxu0 %v2155
        %5653 = vmatpush.bf16.msra.mxu0 %v2154
        %5654 = vmatpush.bf16.msra.mxu0 %v2153
        %5655 = vmatpush.bf16.msra.mxu0 %v2152
        %5656 = vmatpush.bf16.msra.mxu0 %v2151
        %5657 = vmatpush.bf16.msra.mxu0 %v2150
        %5658 = vmatpush.bf16.msra.mxu0 %v2149
        %5659 = vmatpush.bf16.msra.mxu0 %v2148
        %5660 = vmatmul.bf16.gmra.mxu0 %v5619
        %v5661 = vpop.f32.mrf.mxu0
        %v5662 = vadd.f32 %v5648, %v5661
        %v5663 = vpop.f32.mrf.mxu0
        %v5664 = vadd.f32 %v5650, %v5663
        %5665 = vdwg.mxu0
        %5666 = vmatpush.bf16.msra.mxu0 0
        %5667 = vmatpush.bf16.msra.mxu0 0
        %5668 = vmatpush.bf16.msra.mxu0 0
        %5669 = vmatpush.bf16.msra.mxu0 0
        %5670 = vmatpush.bf16.msra.mxu0 0
        %5671 = vmatpush.bf16.msra.mxu0 %v2191
        %5672 = vmatpush.bf16.msra.mxu0 %v2157
        %5673 = vmatpush.bf16.msra.mxu0 %v2156
        %5674 = vmatmul.bf16.gmra.mxu0 %v5622
        %v5675 = vpop.f32.mrf.mxu0
        %v5676 = vadd.f32 %v5662, %v5675
        %v5677 = vpop.f32.mrf.mxu0
        %v5678 = vadd.f32 %v5664, %v5677
        %5679 = vdwg.mxu0
        %5680 = vmatpush.bf16.msra.mxu0 %v2362
        %5681 = vmatpush.bf16.msra.mxu0 %v2361
        %5682 = vmatpush.bf16.msra.mxu0 %v2360
        %5683 = vmatpush.bf16.msra.mxu0 %v2359
        %5684 = vmatpush.bf16.msra.mxu0 %v2358
        %5685 = vmatpush.bf16.msra.mxu0 %v2357
        %5686 = vmatpush.bf16.msra.mxu0 %v2356
        %5687 = vmatpush.bf16.msra.mxu0 %v2355
        %5688 = vmatmul.bf16.gmra.mxu0 %v5617
        %v5689 = vpop.f32.mrf.mxu0
        %v5690 = vadd.f32 0.0, %v5689
        %v5691 = vpop.f32.mrf.mxu0
        %v5692 = vadd.f32 0.0, %v5691
        %5693 = vdwg.mxu0
        %5694 = vmatpush.bf16.msra.mxu0 %v2370
        %5695 = vmatpush.bf16.msra.mxu0 %v2369
        %5696 = vmatpush.bf16.msra.mxu0 %v2368
        %5697 = vmatpush.bf16.msra.mxu0 %v2367
        %5698 = vmatpush.bf16.msra.mxu0 %v2366
        %5699 = vmatpush.bf16.msra.mxu0 %v2365
        %5700 = vmatpush.bf16.msra.mxu0 %v2364
        %5701 = vmatpush.bf16.msra.mxu0 %v2363
        %5702 = vmatmul.bf16.gmra.mxu0 %v5618
        %v5703 = vpop.f32.mrf.mxu0
        %v5704 = vadd.f32 %v5690, %v5703
        %v5705 = vpop.f32.mrf.mxu0
        %v5706 = vadd.f32 %v5692, %v5705
        %5707 = vdwg.mxu0
        %5708 = vmatpush.bf16.msra.mxu0 %v2378
        %5709 = vmatpush.bf16.msra.mxu0 %v2377
        %5710 = vmatpush.bf16.msra.mxu0 %v2376
        %5711 = vmatpush.bf16.msra.mxu0 %v2375
        %5712 = vmatpush.bf16.msra.mxu0 %v2374
        %5713 = vmatpush.bf16.msra.mxu0 %v2373
        %5714 = vmatpush.bf16.msra.mxu0 %v2372
        %5715 = vmatpush.bf16.msra.mxu0 %v2371
        %5716 = vmatmul.bf16.gmra.mxu0 %v5619
        %v5717 = vpop.f32.mrf.mxu0
        %v5718 = vadd.f32 %v5704, %v5717
        %v5719 = vpop.f32.mrf.mxu0
        %v5720 = vadd.f32 %v5706, %v5719
        %5721 = vdwg.mxu0
        %5722 = vmatpush.bf16.msra.mxu0 0
        %5723 = vmatpush.bf16.msra.mxu0 0
        %5724 = vmatpush.bf16.msra.mxu0 0
        %5725 = vmatpush.bf16.msra.mxu0 0
        %5726 = vmatpush.bf16.msra.mxu0 0
        %5727 = vmatpush.bf16.msra.mxu0 %v2409
        %5728 = vmatpush.bf16.msra.mxu0 %v2380
        %5729 = vmatpush.bf16.msra.mxu0 %v2379
        %5730 = vmatmul.bf16.gmra.mxu0 %v5622
        %v5731 = vpop.f32.mrf.mxu0
        %v5732 = vadd.f32 %v5718, %v5731
        %v5733 = vpop.f32.mrf.mxu0
        %v5734 = vadd.f32 %v5720, %v5733
        %5735 = vdwg.mxu0
        %v5736 = vmax.f32 %v5676, %v5732
        %v5737 = vmax.f32 %v5678, %v5734
        %v5739 = vsel %vm2189, %v5737, 0
        %5741 = vmatpush.msra.mxu0 0.0
        %5742 = vmatpush.msra.mxu0 0.0
        %5743 = vmatpush.msra.mxu0 0.0
        %5744 = vmatpush.msra.mxu0 0.0
        %5745 = vmatpush.msra.mxu0 0.0
        %5746 = vmatpush.msra.mxu0 0.0
        %5747 = vmatpush.msra.mxu0 0.0
        %5748 = vmatpush.msra.mxu0 0.0
        %5749 = vmatpush.msra.mxu0 0.0
        %5750 = vmatpush.msra.mxu0 0.0
        %5751 = vmatpush.msra.mxu0 0.0
        %5752 = vmatpush.msra.mxu0 0.0
        %5753 = vmatpush.msra.mxu0 0.0
        %5754 = vmatpush.msra.mxu0 0.0
        %5755 = vmatpush.msra.mxu0 %v5739
        %5756 = vmatpush.msra.mxu0 %v5736
        %5757 = vmatmul.f32.gmra.mxu0 %v2471
        %v5758 = vpop.f32.mrf.mxu0
        %v5759 = vadd.f32 0.0, %v5758
        %5760 = vdwg.mxu0
        %5761 = vmatpush.msra.mxu0 0.0
        %5762 = vmatpush.msra.mxu0 0.0
        %5763 = vmatpush.msra.mxu0 0.0
        %5764 = vmatpush.msra.mxu0 0.0
        %5765 = vmatpush.msra.mxu0 0.0
        %5766 = vmatpush.msra.mxu0 0.0
        %5767 = vmatpush.msra.mxu0 0.0
        %5768 = vmatpush.msra.mxu0 0.0
        %5769 = vmatpush.msra.mxu0 0.0
        %5770 = vmatpush.msra.mxu0 0.0
        %5771 = vmatpush.msra.mxu0 0.0
        %5772 = vmatpush.msra.mxu0 0.0
        %5773 = vmatpush.msra.mxu0 0.0
        %5774 = vmatpush.msra.mxu0 0.0
        %5775 = vmatpush.msra.mxu0 %v5739
        %5776 = vmatpush.msra.mxu0 %v5736
        %5777 = vmatmul.f32.gmra.mxu0 %v2497
        %v5778 = vpop.f32.mrf.mxu0
        %v5779 = vadd.f32 0.0, %v5778
        %5780 = vdwg.mxu0
        %v5781 = vmax.f32 %v5759, %v5779
        %v5782 = vadd.f32 %v5781, %v2521
        %v5783 = vmax.f32 %v5782, 0.0
        %v5785 = vrot.slane %v5783, 1
        %5786 = vrot.lane.b32.xlu0 %v5785, 80
        %v5787 = vpop.permute.xlu0 %5786
        %v5789 = vrot.slane %v5783, 2
        %5790 = vrot.lane.b32.xlu0 %v5789, 32
        %v5791 = vpop.permute.xlu0 %5790
        %v5793 = vrot.slane %v5783, 3
        %5794 = vrot.lane.b32.xlu0 %v5793, 112
        %v5795 = vpop.permute.xlu0 %5794
        %v5797 = vrot.slane %v5783, 4
        %5798 = vrot.lane.b32.xlu0 %v5797, 64
        %v5799 = vpop.permute.xlu0 %5798
        %v5801 = vsel %vm2019, %v5783, %v5787
        %v5802 = vsel %vm982, %v5787, %v5791
        %v5803 = vsel %vm2544, %v5802, %v5795
        %v5804 = vsel %vm1015, %v5795, %v5799
        %v5809 = vrot.slane %v1044, 1
        %v5810 = vrot.slane %v1045, 1
        %v5811 = vsel %vm1286, %v5809, %v5810
        %v5812 = vrot.slane %v1046, 1
        %v5813 = vsel %vm1286, %v5810, %v5812
        %v5814 = vrot.slane %v1047, 1
        %v5815 = vsel %vm1286, %v5812, %v5814
        %5816 = vrot.lane.b32.xlu0 %v5811, 96
        %v5817 = vpop.permute.xlu0 %5816
        %5818 = vrot.lane.b32.xlu0 %v5813, 96
        %v5819 = vpop.permute.xlu0 %5818
        %5820 = vrot.lane.b32.xlu0 %v5815, 96
        %v5821 = vpop.permute.xlu0 %5820
        %5822 = vrot.lane.b32.xlu0 %v5814, 96
        %v5823 = vpop.permute.xlu0 %5822
        %v5828 = vrot.slane %v1044, 2
        %v5829 = vrot.slane %v1045, 2
        %v5830 = vsel %vm1306, %v5828, %v5829
        %v5831 = vrot.slane %v1046, 2
        %v5832 = vsel %vm1306, %v5829, %v5831
        %v5833 = vrot.slane %v1047, 2
        %v5834 = vsel %vm1306, %v5831, %v5833
        %5835 = vrot.lane.b32.xlu0 %v5830, 64
        %v5836 = vpop.permute.xlu0 %5835
        %5837 = vrot.lane.b32.xlu0 %v5832, 64
        %v5838 = vpop.permute.xlu0 %5837
        %5839 = vrot.lane.b32.xlu0 %v5834, 64
        %v5840 = vpop.permute.xlu0 %5839
        %5841 = vrot.lane.b32.xlu0 %v5833, 64
        %v5842 = vpop.permute.xlu0 %5841
        %v5847 = vrot.slane %v1044, 3
        %v5848 = vrot.slane %v1045, 3
        %v5849 = vsel %vm1326, %v5847, %v5848
        %v5850 = vrot.slane %v1046, 3
        %v5851 = vsel %vm1326, %v5848, %v5850
        %v5852 = vrot.slane %v1047, 3
        %v5853 = vsel %vm1326, %v5850, %v5852
        %5854 = vrot.lane.b32.xlu0 %v5849, 32
        %v5855 = vpop.permute.xlu0 %5854
        %5856 = vrot.lane.b32.xlu0 %v5851, 32
        %v5857 = vpop.permute.xlu0 %5856
        %5858 = vrot.lane.b32.xlu0 %v5853, 32
        %v5859 = vpop.permute.xlu0 %5858
        %5860 = vrot.lane.b32.xlu0 %v5852, 32
        %v5861 = vpop.permute.xlu0 %5860
        %v5866 = vrot.slane %v1044, 4
        %v5867 = vrot.slane %v1045, 4
        %v5868 = vsel %vm1346, %v5866, %v5867
        %v5869 = vrot.slane %v1046, 4
        %v5870 = vsel %vm1346, %v5867, %v5869
        %v5871 = vrot.slane %v1047, 4
        %v5872 = vsel %vm1346, %v5869, %v5871
        %v5877 = vsel %vm1358, %v1044, %v5817
        %v5878 = vsel %vm1358, %v1045, %v5819
        %v5879 = vsel %vm1358, %v1046, %v5821
        %v5880 = vsel %vm1358, %v1047, %v5823
        %v5881 = vsel %vm1015, %v5817, %v5836
        %v5882 = vsel %vm1015, %v5819, %v5838
        %v5883 = vsel %vm1015, %v5821, %v5840
        %v5884 = vsel %vm1015, %v5823, %v5842
        %v5885 = vsel %vm982, %v5836, %v5855
        %v5886 = vsel %vm982, %v5838, %v5857
        %v5887 = vsel %vm982, %v5840, %v5859
        %v5888 = vsel %vm982, %v5842, %v5861
        %v5889 = vpack.c.bf16 %v5878, %v5877
        %v5890 = vpack.c.bf16 %v5882, %v5881
        %v5891 = vpack.c.bf16 %v5886, %v5885
        %v5892 = vpack.c.bf16 %v5870, %v5868
        %v5893 = vpack.c.bf16 %v5880, %v5879
        %v5894 = vpack.c.bf16 %v5884, %v5883
        %v5895 = vpack.c.bf16 %v5888, %v5887
        %v5896 = vpack.c.bf16 %v5871, %v5872
        %v5898 = vsel %vm1358, %v5892, 0
        %v5901 = vsel %vm1358, %v5896, 0
        %5903 = vmatpush.bf16.msra.mxu0 %v1506
        %5904 = vmatpush.bf16.msra.mxu0 %v1505
        %5905 = vmatpush.bf16.msra.mxu0 %v1504
        %5906 = vmatpush.bf16.msra.mxu0 %v1503
        %5907 = vmatpush.bf16.msra.mxu0 %v1502
        %5908 = vmatpush.bf16.msra.mxu0 %v1501
        %5909 = vmatpush.bf16.msra.mxu0 %v1500
        %5910 = vmatpush.bf16.msra.mxu0 %v1499
        %5911 = vmatmul.bf16.gmra.mxu0 %v5889
        %v5912 = vpop.f32.mrf.mxu0
        %v5913 = vadd.f32 0.0, %v5912
        %v5914 = vpop.f32.mrf.mxu0
        %v5915 = vadd.f32 0.0, %v5914
        %5916 = vmatmul.bf16.gmra.mxu0 %v5893
        %v5917 = vpop.f32.mrf.mxu0
        %v5918 = vadd.f32 0.0, %v5917
        %v5919 = vpop.f32.mrf.mxu0
        %v5920 = vadd.f32 0.0, %v5919
        %5921 = vdwg.mxu0
        %5922 = vmatpush.bf16.msra.mxu0 %v1514
        %5923 = vmatpush.bf16.msra.mxu0 %v1513
        %5924 = vmatpush.bf16.msra.mxu0 %v1512
        %5925 = vmatpush.bf16.msra.mxu0 %v1511
        %5926 = vmatpush.bf16.msra.mxu0 %v1510
        %5927 = vmatpush.bf16.msra.mxu0 %v1509
        %5928 = vmatpush.bf16.msra.mxu0 %v1508
        %5929 = vmatpush.bf16.msra.mxu0 %v1507
        %5930 = vmatmul.bf16.gmra.mxu0 %v5890
        %v5931 = vpop.f32.mrf.mxu0
        %v5932 = vadd.f32 %v5913, %v5931
        %v5933 = vpop.f32.mrf.mxu0
        %v5934 = vadd.f32 %v5915, %v5933
        %5935 = vmatmul.bf16.gmra.mxu0 %v5894
        %v5936 = vpop.f32.mrf.mxu0
        %v5937 = vadd.f32 %v5918, %v5936
        %v5938 = vpop.f32.mrf.mxu0
        %v5939 = vadd.f32 %v5920, %v5938
        %5940 = vdwg.mxu0
        %5941 = vmatpush.bf16.msra.mxu0 %v1522
        %5942 = vmatpush.bf16.msra.mxu0 %v1521
        %5943 = vmatpush.bf16.msra.mxu0 %v1520
        %5944 = vmatpush.bf16.msra.mxu0 %v1519
        %5945 = vmatpush.bf16.msra.mxu0 %v1518
        %5946 = vmatpush.bf16.msra.mxu0 %v1517
        %5947 = vmatpush.bf16.msra.mxu0 %v1516
        %5948 = vmatpush.bf16.msra.mxu0 %v1515
        %5949 = vmatmul.bf16.gmra.mxu0 %v5891
        %v5950 = vpop.f32.mrf.mxu0
        %v5951 = vadd.f32 %v5932, %v5950
        %v5952 = vpop.f32.mrf.mxu0
        %v5953 = vadd.f32 %v5934, %v5952
        %5954 = vmatmul.bf16.gmra.mxu0 %v5895
        %v5955 = vpop.f32.mrf.mxu0
        %v5956 = vadd.f32 %v5937, %v5955
        %v5957 = vpop.f32.mrf.mxu0
        %v5958 = vadd.f32 %v5939, %v5957
        %5959 = vdwg.mxu0
        %5960 = vmatpush.bf16.msra.mxu0 0
        %5961 = vmatpush.bf16.msra.mxu0 0
        %5962 = vmatpush.bf16.msra.mxu0 %v1528
        %5963 = vmatpush.bf16.msra.mxu0 %v1527
        %5964 = vmatpush.bf16.msra.mxu0 %v1526
        %5965 = vmatpush.bf16.msra.mxu0 %v1525
        %5966 = vmatpush.bf16.msra.mxu0 %v1524
        %5967 = vmatpush.bf16.msra.mxu0 %v1523
        %5968 = vmatmul.bf16.gmra.mxu0 %v5898
        %v5969 = vpop.f32.mrf.mxu0
        %v5970 = vadd.f32 %v5951, %v5969
        %v5971 = vpop.f32.mrf.mxu0
        %v5972 = vadd.f32 %v5953, %v5971
        %5973 = vmatmul.bf16.gmra.mxu0 %v5901
        %v5974 = vpop.f32.mrf.mxu0
        %v5975 = vadd.f32 %v5956, %v5974
        %v5976 = vpop.f32.mrf.mxu0
        %v5977 = vadd.f32 %v5958, %v5976
        %5978 = vdwg.mxu0
        %5979 = vmatpush.bf16.msra.mxu0 %v1768
        %5980 = vmatpush.bf16.msra.mxu0 %v1767
        %5981 = vmatpush.bf16.msra.mxu0 %v1766
        %5982 = vmatpush.bf16.msra.mxu0 %v1765
        %5983 = vmatpush.bf16.msra.mxu0 %v1764
        %5984 = vmatpush.bf16.msra.mxu0 %v1763
        %5985 = vmatpush.bf16.msra.mxu0 %v1762
        %5986 = vmatpush.bf16.msra.mxu0 %v1761
        %5987 = vmatmul.bf16.gmra.mxu0 %v5889
        %v5988 = vpop.f32.mrf.mxu0
        %v5989 = vadd.f32 0.0, %v5988
        %v5990 = vpop.f32.mrf.mxu0
        %v5991 = vadd.f32 0.0, %v5990
        %5992 = vmatmul.bf16.gmra.mxu0 %v5893
        %v5993 = vpop.f32.mrf.mxu0
        %v5994 = vadd.f32 0.0, %v5993
        %v5995 = vpop.f32.mrf.mxu0
        %v5996 = vadd.f32 0.0, %v5995
        %5997 = vdwg.mxu0
        %5998 = vmatpush.bf16.msra.mxu0 %v1776
        %5999 = vmatpush.bf16.msra.mxu0 %v1775
        %6000 = vmatpush.bf16.msra.mxu0 %v1774
        %6001 = vmatpush.bf16.msra.mxu0 %v1773
        %6002 = vmatpush.bf16.msra.mxu0 %v1772
        %6003 = vmatpush.bf16.msra.mxu0 %v1771
        %6004 = vmatpush.bf16.msra.mxu0 %v1770
        %6005 = vmatpush.bf16.msra.mxu0 %v1769
        %6006 = vmatmul.bf16.gmra.mxu0 %v5890
        %v6007 = vpop.f32.mrf.mxu0
        %v6008 = vadd.f32 %v5989, %v6007
        %v6009 = vpop.f32.mrf.mxu0
        %v6010 = vadd.f32 %v5991, %v6009
        %6011 = vmatmul.bf16.gmra.mxu0 %v5894
        %v6012 = vpop.f32.mrf.mxu0
        %v6013 = vadd.f32 %v5994, %v6012
        %v6014 = vpop.f32.mrf.mxu0
        %v6015 = vadd.f32 %v5996, %v6014
        %6016 = vdwg.mxu0
        %6017 = vmatpush.bf16.msra.mxu0 %v1784
        %6018 = vmatpush.bf16.msra.mxu0 %v1783
        %6019 = vmatpush.bf16.msra.mxu0 %v1782
        %6020 = vmatpush.bf16.msra.mxu0 %v1781
        %6021 = vmatpush.bf16.msra.mxu0 %v1780
        %6022 = vmatpush.bf16.msra.mxu0 %v1779
        %6023 = vmatpush.bf16.msra.mxu0 %v1778
        %6024 = vmatpush.bf16.msra.mxu0 %v1777
        %6025 = vmatmul.bf16.gmra.mxu0 %v5891
        %v6026 = vpop.f32.mrf.mxu0
        %v6027 = vadd.f32 %v6008, %v6026
        %v6028 = vpop.f32.mrf.mxu0
        %v6029 = vadd.f32 %v6010, %v6028
        %6030 = vmatmul.bf16.gmra.mxu0 %v5895
        %v6031 = vpop.f32.mrf.mxu0
        %v6032 = vadd.f32 %v6013, %v6031
        %v6033 = vpop.f32.mrf.mxu0
        %v6034 = vadd.f32 %v6015, %v6033
        %6035 = vdwg.mxu0
        %6036 = vmatpush.bf16.msra.mxu0 0
        %6037 = vmatpush.bf16.msra.mxu0 0
        %6038 = vmatpush.bf16.msra.mxu0 %v1790
        %6039 = vmatpush.bf16.msra.mxu0 %v1789
        %6040 = vmatpush.bf16.msra.mxu0 %v1788
        %6041 = vmatpush.bf16.msra.mxu0 %v1787
        %6042 = vmatpush.bf16.msra.mxu0 %v1786
        %6043 = vmatpush.bf16.msra.mxu0 %v1785
        %6044 = vmatmul.bf16.gmra.mxu0 %v5898
        %v6045 = vpop.f32.mrf.mxu0
        %v6046 = vadd.f32 %v6027, %v6045
        %v6047 = vpop.f32.mrf.mxu0
        %v6048 = vadd.f32 %v6029, %v6047
        %6049 = vmatmul.bf16.gmra.mxu0 %v5901
        %v6050 = vpop.f32.mrf.mxu0
        %v6051 = vadd.f32 %v6032, %v6050
        %v6052 = vpop.f32.mrf.mxu0
        %v6053 = vadd.f32 %v6034, %v6052
        %6054 = vdwg.mxu0
        %v6055 = vmax.f32 %v5970, %v6046
        %v6056 = vmax.f32 %v5972, %v6048
        %v6057 = vmax.f32 %v5975, %v6051
        %v6058 = vmax.f32 %v5977, %v6053
        %v6060 = vsel %vm1346, %v6058, 0
        %6062 = vmatpush.msra.mxu0 0.0
        %6063 = vmatpush.msra.mxu0 0.0
        %6064 = vmatpush.msra.mxu0 0.0
        %6065 = vmatpush.msra.mxu0 0.0
        %6066 = vmatpush.msra.mxu0 0.0
        %6067 = vmatpush.msra.mxu0 0.0
        %6068 = vmatpush.msra.mxu0 0.0
        %6069 = vmatpush.msra.mxu0 0.0
        %6070 = vmatpush.msra.mxu0 0.0
        %6071 = vmatpush.msra.mxu0 0.0
        %6072 = vmatpush.msra.mxu0 0.0
        %6073 = vmatpush.msra.mxu0 0.0
        %6074 = vmatpush.msra.mxu0 %v6060
        %6075 = vmatpush.msra.mxu0 %v6057
        %6076 = vmatpush.msra.mxu0 %v6056
        %6077 = vmatpush.msra.mxu0 %v6055
        %6078 = vmatmul.f32.gmra.mxu0 %v1903
        %v6079 = vpop.f32.mrf.mxu0
        %v6080 = vadd.f32 0.0, %v6079
        %6081 = vmatmul.f32.gmra.mxu0 %v1906
        %v6082 = vpop.f32.mrf.mxu0
        %v6083 = vadd.f32 0.0, %v6082
        %6084 = vdwg.mxu0
        %6085 = vmatpush.msra.mxu0 0.0
        %6086 = vmatpush.msra.mxu0 0.0
        %6087 = vmatpush.msra.mxu0 0.0
        %6088 = vmatpush.msra.mxu0 0.0
        %6089 = vmatpush.msra.mxu0 0.0
        %6090 = vmatpush.msra.mxu0 0.0
        %6091 = vmatpush.msra.mxu0 0.0
        %6092 = vmatpush.msra.mxu0 0.0
        %6093 = vmatpush.msra.mxu0 0.0
        %6094 = vmatpush.msra.mxu0 0.0
        %6095 = vmatpush.msra.mxu0 0.0
        %6096 = vmatpush.msra.mxu0 0.0
        %6097 = vmatpush.msra.mxu0 %v6060
        %6098 = vmatpush.msra.mxu0 %v6057
        %6099 = vmatpush.msra.mxu0 %v6056
        %6100 = vmatpush.msra.mxu0 %v6055
        %6101 = vmatmul.f32.gmra.mxu0 %v1935
        %v6102 = vpop.f32.mrf.mxu0
        %v6103 = vadd.f32 0.0, %v6102
        %6104 = vmatmul.f32.gmra.mxu0 %v1938
        %v6105 = vpop.f32.mrf.mxu0
        %v6106 = vadd.f32 0.0, %v6105
        %6107 = vdwg.mxu0
        %v6108 = vmax.f32 %v6080, %v6103
        %v6109 = vmax.f32 %v6083, %v6106
        %v6110 = vadd.f32 %v6108, %v1966
        %v6111 = vadd.f32 %v6109, %v1966
        %v6112 = vmax.f32 %v6110, 0.0
        %v6113 = vmax.f32 %v6111, 0.0
        %v6116 = vrot.slane %v6112, 1
        %v6117 = vrot.slane %v6113, 1
        %v6118 = vsel %vm1286, %v6116, %v6117
        %6119 = vrot.lane.b32.xlu0 %v6118, 84
        %v6120 = vpop.permute.xlu0 %6119
        %6121 = vrot.lane.b32.xlu0 %v6117, 84
        %v6122 = vpop.permute.xlu0 %6121
        %v6125 = vrot.slane %v6112, 2
        %v6126 = vrot.slane %v6113, 2
        %v6127 = vsel %vm1306, %v6125, %v6126
        %6128 = vrot.lane.b32.xlu0 %v6127, 40
        %v6129 = vpop.permute.xlu0 %6128
        %6130 = vrot.lane.b32.xlu0 %v6126, 40
        %v6131 = vpop.permute.xlu0 %6130
        %v6134 = vrot.slane %v6112, 3
        %v6135 = vrot.slane %v6113, 3
        %v6136 = vsel %vm1326, %v6134, %v6135
        %6137 = vrot.lane.b32.xlu0 %v6136, 124
        %v6138 = vpop.permute.xlu0 %6137
        %6139 = vrot.lane.b32.xlu0 %v6135, 124
        %v6140 = vpop.permute.xlu0 %6139
        %v6143 = vrot.slane %v6112, 4
        %v6144 = vrot.slane %v6113, 4
        %v6145 = vsel %vm1346, %v6143, %v6144
        %6146 = vrot.lane.b32.xlu0 %v6145, 80
        %v6147 = vpop.permute.xlu0 %6146
        %6148 = vrot.lane.b32.xlu0 %v6144, 80
        %v6149 = vpop.permute.xlu0 %6148
        %v6152 = vsel %vm2010, %v6112, %v6120
        %v6153 = vsel %vm2010, %v6113, %v6122
        %v6154 = vsel %vm2013, %v6120, %v6129
        %v6155 = vsel %vm2013, %v6122, %v6131
        %v6156 = vsel %vm2016, %v6154, %v6138
        %v6157 = vsel %vm2016, %v6155, %v6140
        %v6158 = vsel %vm2019, %v6138, %v6147
        %v6159 = vsel %vm2019, %v6140, %v6149
        %v6160 = vpack.c.bf16 %v6153, %v6152
        %v6161 = vpack.c.bf16 %v6157, %v6156
        %v6162 = vpack.c.bf16 %v6159, %v6158
        %v6163 = vpack.c.bf16 %v6149, %v6147
        %v6165 = vsel %vm2185, %v6163, 0
        %6167 = vmatpush.bf16.msra.mxu0 %v2139
        %6168 = vmatpush.bf16.msra.mxu0 %v2138
        %6169 = vmatpush.bf16.msra.mxu0 %v2137
        %6170 = vmatpush.bf16.msra.mxu0 %v2136
        %6171 = vmatpush.bf16.msra.mxu0 %v2135
        %6172 = vmatpush.bf16.msra.mxu0 %v2134
        %6173 = vmatpush.bf16.msra.mxu0 %v2133
        %6174 = vmatpush.bf16.msra.mxu0 %v2132
        %6175 = vmatmul.bf16.gmra.mxu0 %v6160
        %v6176 = vpop.f32.mrf.mxu0
        %v6177 = vadd.f32 0.0, %v6176
        %v6178 = vpop.f32.mrf.mxu0
        %v6179 = vadd.f32 0.0, %v6178
        %6180 = vdwg.mxu0
        %6181 = vmatpush.bf16.msra.mxu0 %v2147
        %6182 = vmatpush.bf16.msra.mxu0 %v2146
        %6183 = vmatpush.bf16.msra.mxu0 %v2145
        %6184 = vmatpush.bf16.msra.mxu0 %v2144
        %6185 = vmatpush.bf16.msra.mxu0 %v2143
        %6186 = vmatpush.bf16.msra.mxu0 %v2142
        %6187 = vmatpush.bf16.msra.mxu0 %v2141
        %6188 = vmatpush.bf16.msra.mxu0 %v2140
        %6189 = vmatmul.bf16.gmra.mxu0 %v6161
        %v6190 = vpop.f32.mrf.mxu0
        %v6191 = vadd.f32 %v6177, %v6190
        %v6192 = vpop.f32.mrf.mxu0
        %v6193 = vadd.f32 %v6179, %v6192
        %6194 = vdwg.mxu0
        %6195 = vmatpush.bf16.msra.mxu0 %v2155
        %6196 = vmatpush.bf16.msra.mxu0 %v2154
        %6197 = vmatpush.bf16.msra.mxu0 %v2153
        %6198 = vmatpush.bf16.msra.mxu0 %v2152
        %6199 = vmatpush.bf16.msra.mxu0 %v2151
        %6200 = vmatpush.bf16.msra.mxu0 %v2150
        %6201 = vmatpush.bf16.msra.mxu0 %v2149
        %6202 = vmatpush.bf16.msra.mxu0 %v2148
        %6203 = vmatmul.bf16.gmra.mxu0 %v6162
        %v6204 = vpop.f32.mrf.mxu0
        %v6205 = vadd.f32 %v6191, %v6204
        %v6206 = vpop.f32.mrf.mxu0
        %v6207 = vadd.f32 %v6193, %v6206
        %6208 = vdwg.mxu0
        %6209 = vmatpush.bf16.msra.mxu0 0
        %6210 = vmatpush.bf16.msra.mxu0 0
        %6211 = vmatpush.bf16.msra.mxu0 0
        %6212 = vmatpush.bf16.msra.mxu0 0
        %6213 = vmatpush.bf16.msra.mxu0 0
        %6214 = vmatpush.bf16.msra.mxu0 %v2191
        %6215 = vmatpush.bf16.msra.mxu0 %v2157
        %6216 = vmatpush.bf16.msra.mxu0 %v2156
        %6217 = vmatmul.bf16.gmra.mxu0 %v6165
        %v6218 = vpop.f32.mrf.mxu0
        %v6219 = vadd.f32 %v6205, %v6218
        %v6220 = vpop.f32.mrf.mxu0
        %v6221 = vadd.f32 %v6207, %v6220
        %6222 = vdwg.mxu0
        %6223 = vmatpush.bf16.msra.mxu0 %v2362
        %6224 = vmatpush.bf16.msra.mxu0 %v2361
        %6225 = vmatpush.bf16.msra.mxu0 %v2360
        %6226 = vmatpush.bf16.msra.mxu0 %v2359
        %6227 = vmatpush.bf16.msra.mxu0 %v2358
        %6228 = vmatpush.bf16.msra.mxu0 %v2357
        %6229 = vmatpush.bf16.msra.mxu0 %v2356
        %6230 = vmatpush.bf16.msra.mxu0 %v2355
        %6231 = vmatmul.bf16.gmra.mxu0 %v6160
        %v6232 = vpop.f32.mrf.mxu0
        %v6233 = vadd.f32 0.0, %v6232
        %v6234 = vpop.f32.mrf.mxu0
        %v6235 = vadd.f32 0.0, %v6234
        %6236 = vdwg.mxu0
        %6237 = vmatpush.bf16.msra.mxu0 %v2370
        %6238 = vmatpush.bf16.msra.mxu0 %v2369
        %6239 = vmatpush.bf16.msra.mxu0 %v2368
        %6240 = vmatpush.bf16.msra.mxu0 %v2367
        %6241 = vmatpush.bf16.msra.mxu0 %v2366
        %6242 = vmatpush.bf16.msra.mxu0 %v2365
        %6243 = vmatpush.bf16.msra.mxu0 %v2364
        %6244 = vmatpush.bf16.msra.mxu0 %v2363
        %6245 = vmatmul.bf16.gmra.mxu0 %v6161
        %v6246 = vpop.f32.mrf.mxu0
        %v6247 = vadd.f32 %v6233, %v6246
        %v6248 = vpop.f32.mrf.mxu0
        %v6249 = vadd.f32 %v6235, %v6248
        %6250 = vdwg.mxu0
        %6251 = vmatpush.bf16.msra.mxu0 %v2378
        %6252 = vmatpush.bf16.msra.mxu0 %v2377
        %6253 = vmatpush.bf16.msra.mxu0 %v2376
        %6254 = vmatpush.bf16.msra.mxu0 %v2375
        %6255 = vmatpush.bf16.msra.mxu0 %v2374
        %6256 = vmatpush.bf16.msra.mxu0 %v2373
        %6257 = vmatpush.bf16.msra.mxu0 %v2372
        %6258 = vmatpush.bf16.msra.mxu0 %v2371
        %6259 = vmatmul.bf16.gmra.mxu0 %v6162
        %v6260 = vpop.f32.mrf.mxu0
        %v6261 = vadd.f32 %v6247, %v6260
        %v6262 = vpop.f32.mrf.mxu0
        %v6263 = vadd.f32 %v6249, %v6262
        %6264 = vdwg.mxu0
        %6265 = vmatpush.bf16.msra.mxu0 0
        %6266 = vmatpush.bf16.msra.mxu0 0
        %6267 = vmatpush.bf16.msra.mxu0 0
        %6268 = vmatpush.bf16.msra.mxu0 0
        %6269 = vmatpush.bf16.msra.mxu0 0
        %6270 = vmatpush.bf16.msra.mxu0 %v2409
        %6271 = vmatpush.bf16.msra.mxu0 %v2380
        %6272 = vmatpush.bf16.msra.mxu0 %v2379
        %6273 = vmatmul.bf16.gmra.mxu0 %v6165
        %v6274 = vpop.f32.mrf.mxu0
        %v6275 = vadd.f32 %v6261, %v6274
        %v6276 = vpop.f32.mrf.mxu0
        %v6277 = vadd.f32 %v6263, %v6276
        %6278 = vdwg.mxu0
        %v6279 = vmax.f32 %v6219, %v6275
        %v6280 = vmax.f32 %v6221, %v6277
        %v6282 = vsel %vm2189, %v6280, 0
        %6284 = vmatpush.msra.mxu0 0.0
        %6285 = vmatpush.msra.mxu0 0.0
        %6286 = vmatpush.msra.mxu0 0.0
        %6287 = vmatpush.msra.mxu0 0.0
        %6288 = vmatpush.msra.mxu0 0.0
        %6289 = vmatpush.msra.mxu0 0.0
        %6290 = vmatpush.msra.mxu0 0.0
        %6291 = vmatpush.msra.mxu0 0.0
        %6292 = vmatpush.msra.mxu0 0.0
        %6293 = vmatpush.msra.mxu0 0.0
        %6294 = vmatpush.msra.mxu0 0.0
        %6295 = vmatpush.msra.mxu0 0.0
        %6296 = vmatpush.msra.mxu0 0.0
        %6297 = vmatpush.msra.mxu0 0.0
        %6298 = vmatpush.msra.mxu0 %v6282
        %6299 = vmatpush.msra.mxu0 %v6279
        %6300 = vmatmul.f32.gmra.mxu0 %v2471
        %v6301 = vpop.f32.mrf.mxu0
        %v6302 = vadd.f32 0.0, %v6301
        %6303 = vdwg.mxu0
        %6304 = vmatpush.msra.mxu0 0.0
        %6305 = vmatpush.msra.mxu0 0.0
        %6306 = vmatpush.msra.mxu0 0.0
        %6307 = vmatpush.msra.mxu0 0.0
        %6308 = vmatpush.msra.mxu0 0.0
        %6309 = vmatpush.msra.mxu0 0.0
        %6310 = vmatpush.msra.mxu0 0.0
        %6311 = vmatpush.msra.mxu0 0.0
        %6312 = vmatpush.msra.mxu0 0.0
        %6313 = vmatpush.msra.mxu0 0.0
        %6314 = vmatpush.msra.mxu0 0.0
        %6315 = vmatpush.msra.mxu0 0.0
        %6316 = vmatpush.msra.mxu0 0.0
        %6317 = vmatpush.msra.mxu0 0.0
        %6318 = vmatpush.msra.mxu0 %v6282
        %6319 = vmatpush.msra.mxu0 %v6279
        %6320 = vmatmul.f32.gmra.mxu0 %v2497
        %v6321 = vpop.f32.mrf.mxu0
        %v6322 = vadd.f32 0.0, %v6321
        %6323 = vdwg.mxu0
        %v6324 = vmax.f32 %v6302, %v6322
        %v6325 = vadd.f32 %v6324, %v2521
        %v6326 = vmax.f32 %v6325, 0.0
        %v6328 = vrot.slane %v6326, 1
        %6329 = vrot.lane.b32.xlu0 %v6328, 80
        %v6330 = vpop.permute.xlu0 %6329
        %v6332 = vrot.slane %v6326, 2
        %6333 = vrot.lane.b32.xlu0 %v6332, 32
        %v6334 = vpop.permute.xlu0 %6333
        %v6336 = vrot.slane %v6326, 3
        %6337 = vrot.lane.b32.xlu0 %v6336, 112
        %v6338 = vpop.permute.xlu0 %6337
        %v6340 = vrot.slane %v6326, 4
        %6341 = vrot.lane.b32.xlu0 %v6340, 64
        %v6342 = vpop.permute.xlu0 %6341
        %v6344 = vsel %vm2019, %v6326, %v6330
        %v6345 = vsel %vm982, %v6330, %v6334
        %v6346 = vsel %vm2544, %v6345, %v6338
        %v6347 = vsel %vm1015, %v6338, %v6342
        %v6351 = vrot.slane %v3086, 7
        %v6352 = vrot.slane %v3088, 7
        %v6353 = vrot.slane %v3089, 7
        %v6354 = vrot.slane %v3084, 7
        %v6362 = vrot.slane %v3629, 6
        %v6363 = vrot.slane %v3631, 6
        %v6364 = vrot.slane %v3632, 6
        %v6365 = vrot.slane %v3627, 6
        %v6373 = vrot.slane %v4172, 5
        %v6374 = vrot.slane %v4174, 5
        %v6375 = vrot.slane %v4175, 5
        %v6376 = vrot.slane %v4170, 5
        %v6384 = vrot.slane %v4715, 4
        %v6385 = vrot.slane %v4717, 4
        %v6386 = vrot.slane %v4718, 4
        %v6387 = vrot.slane %v4713, 4
        %v6395 = vrot.slane %v5258, 3
        %v6396 = vrot.slane %v5260, 3
        %v6397 = vrot.slane %v5261, 3
        %v6398 = vrot.slane %v5256, 3
        %v6406 = vrot.slane %v5801, 2
        %v6407 = vrot.slane %v5803, 2
        %v6408 = vrot.slane %v5804, 2
        %v6409 = vrot.slane %v5799, 2
        %v6417 = vrot.slane %v6344, 1
        %v6418 = vrot.slane %v6346, 1
        %v6419 = vrot.slane %v6347, 1
        %v6420 = vrot.slane %v6342, 1
        %vm6425 = vcmask 1040384
        %v6426 = vsel %vm6425, %v2542, %v6351
        %v6427 = vsel %vm6425, %v2545, %v6352
        %v6428 = vsel %vm6425, %v2546, %v6353
        %v6429 = vsel %vm6425, %v2540, %v6354
        %v6430 = vsel %vm2189, %v6426, %v6362
        %v6431 = vsel %vm2189, %v6427, %v6363
        %v6432 = vsel %vm2189, %v6428, %v6364
        %v6433 = vsel %vm2189, %v6429, %v6365
        %vm6434 = vcmask 1042432
        %v6435 = vsel %vm6434, %v6430, %v6373
        %v6436 = vsel %vm6434, %v6431, %v6374
        %v6437 = vsel %vm6434, %v6432, %v6375
        %v6438 = vsel %vm6434, %v6433, %v6376
        %v6439 = vsel %vm1346, %v6435, %v6384
        %v6440 = vsel %vm1346, %v6436, %v6385
        %v6441 = vsel %vm1346, %v6437, %v6386
        %v6442 = vsel %vm1346, %v6438, %v6387
        %v6443 = vsel %vm1326, %v6439, %v6395
        %v6444 = vsel %vm1326, %v6440, %v6396
        %v6445 = vsel %vm1326, %v6441, %v6397
        %v6446 = vsel %vm1326, %v6442, %v6398
        %v6447 = vsel %vm1306, %v6443, %v6406
        %v6448 = vsel %vm1306, %v6444, %v6407
        %v6449 = vsel %vm1306, %v6445, %v6408
        %v6450 = vsel %vm1306, %v6446, %v6409
        %v6451 = vsel %vm1286, %v6447, %v6417
        %v6452 = vsel %vm1286, %v6448, %v6418
        %v6453 = vsel %vm1286, %v6449, %v6419
        %v6454 = vsel %vm1286, %v6450, %v6420
        %v6455 = vpack.c.bf16 %v6451, %v6451
        %v6456 = vpack.c.bf16 %v6452, %v6452
        %v6457 = vpack.c.bf16 %v6453, %v6453
        %v6458 = vpack.c.bf16 %v6454, %v6454
        %v6459 = vld [vmem:[#allocation2] sm:$0xf]
        %v6460 = vld [vmem:[#allocation2 + $0x4] sm:$0xf]
        %v6461 = vld [vmem:[#allocation2 + $0x8] sm:$0xf]
        %v6462 = vld [vmem:[#allocation2 + $0xc] sm:$0xf]
        %v6463 = vld [vmem:[#allocation2 + $0x10] sm:$0xf]
        %v6464 = vld [vmem:[#allocation2 + $0x14] sm:$0xf]
        %v6465 = vld [vmem:[#allocation2 + $0x18] sm:$0xf]
        %v6466 = vld [vmem:[#allocation2 + $0x1c] sm:$0xf]
        %v6467 = vld [vmem:[#allocation2 + $0x20] sm:$0xf]
        %v6468 = vld [vmem:[#allocation2 + $0x24] sm:$0xf]
        %v6469 = vld [vmem:[#allocation2 + $0x28] sm:$0xf]
        %v6470 = vld [vmem:[#allocation2 + $0x2c] sm:$0xf]
        %v6471 = vld [vmem:[#allocation2 + $0x30] sm:$0xf]
        %v6472 = vld [vmem:[#allocation2 + $0x34] sm:$0xf]
        %v6473 = vld [vmem:[#allocation2 + $0x38] sm:$0xf]
        %v6474 = vld [vmem:[#allocation2 + $0x3c] sm:$0xf]
        %v6475 = vld [vmem:[#allocation2 + $0x40] sm:$0xf]
        %v6476 = vld [vmem:[#allocation2 + $0x44] sm:$0xf]
        %v6477 = vld [vmem:[#allocation2 + $0x48] sm:$0xf]
        %v6478 = vld [vmem:[#allocation2 + $0x4c] sm:$0xf]
        %v6479 = vld [vmem:[#allocation2 + $0x50] sm:$0xf]
        %v6480 = vld [vmem:[#allocation2 + $0x54] sm:$0xf]
        %v6481 = vld [vmem:[#allocation2 + $0x58] sm:$0xf]
        %v6482 = vld [vmem:[#allocation2 + $0x5c] sm:$0xf]
        %v6483 = vld [vmem:[#allocation2 + $0x60] sm:$0xf]
        %v6484 = vld [vmem:[#allocation2 + $0x64] sm:$0xf]
        %v6485 = vld [vmem:[#allocation2 + $0x68] sm:$0xf]
        %v6486 = vld [vmem:[#allocation2 + $0x6c] sm:$0xf]
        %v6487 = vld [vmem:[#allocation2 + $0x70] sm:$0xf]
        %v6488 = vld [vmem:[#allocation2 + $0x74] sm:$0xf]
        %v6489 = vld [vmem:[#allocation2 + $0x78] sm:$0xf]
        %v6490 = vld [vmem:[#allocation2 + $0x7c] sm:$0xf]
        %v6491 = vld [vmem:[#allocation2 + $0x80] sm:$0xf]
        %v6492 = vld [vmem:[#allocation2 + $0x84] sm:$0xf]
        %v6493 = vld [vmem:[#allocation2 + $0x88] sm:$0xf]
        %v6494 = vld [vmem:[#allocation2 + $0x8c] sm:$0xf]
        %v6495 = vld [vmem:[#allocation2 + $0x90] sm:$0xf]
        %v6496 = vld [vmem:[#allocation2 + $0x94] sm:$0xf]
        %v6497 = vld [vmem:[#allocation2 + $0x98] sm:$0xf]
        %v6498 = vld [vmem:[#allocation2 + $0x9c] sm:$0xf]
        %v6499 = vld [vmem:[#allocation2 + $0xa0] sm:$0xf]
        %v6500 = vld [vmem:[#allocation2 + $0xa4] sm:$0xf]
        %v6501 = vld [vmem:[#allocation2 + $0xa8] sm:$0xf]
        %v6502 = vld [vmem:[#allocation2 + $0xac] sm:$0xf]
        %v6503 = vld [vmem:[#allocation2 + $0xb0] sm:$0xf]
        %v6504 = vld [vmem:[#allocation2 + $0xb4] sm:$0xf]
        %v6505 = vld [vmem:[#allocation2 + $0xb8] sm:$0xf]
        %v6506 = vld [vmem:[#allocation2 + $0xbc] sm:$0xf]
        %v6507 = vld [vmem:[#allocation2 + $0xc0] sm:$0xf]
        %v6508 = vld [vmem:[#allocation2 + $0xc4] sm:$0xf]
        %v6509 = vld [vmem:[%s8] sm:$0x1]
        %v6511 = vperm.slane %v6509, 0
        %v6563 = vunpack.c.l.b16 %v6459
        %v6564 = vunpack.c.l.b16 %v6460
        %v6565 = vunpack.c.l.b16 %v6461
        %v6566 = vunpack.c.l.b16 %v6462
        %v6567 = vunpack.c.l.b16 %v6463
        %v6568 = vunpack.c.l.b16 %v6464
        %v6569 = vunpack.c.l.b16 %v6465
        %v6570 = vunpack.c.l.b16 %v6466
        %v6571 = vunpack.c.l.b16 %v6467
        %v6572 = vunpack.c.l.b16 %v6468
        %v6573 = vunpack.c.l.b16 %v6469
        %v6574 = vunpack.c.l.b16 %v6470
        %v6575 = vunpack.c.l.b16 %v6471
        %v6576 = vunpack.c.l.b16 %v6472
        %v6577 = vunpack.c.l.b16 %v6473
        %v6578 = vunpack.c.l.b16 %v6474
        %v6579 = vunpack.c.l.b16 %v6475
        %v6580 = vunpack.c.l.b16 %v6476
        %v6581 = vunpack.c.l.b16 %v6477
        %v6582 = vunpack.c.l.b16 %v6478
        %v6583 = vunpack.c.l.b16 %v6479
        %v6584 = vunpack.c.l.b16 %v6480
        %v6585 = vunpack.c.l.b16 %v6481
        %v6586 = vunpack.c.l.b16 %v6482
        %v6587 = vunpack.c.l.b16 %v6483
        %v6588 = vunpack.c.l.b16 %v6484
        %v6589 = vunpack.c.l.b16 %v6485
        %v6590 = vunpack.c.l.b16 %v6486
        %v6591 = vunpack.c.l.b16 %v6487
        %v6592 = vunpack.c.l.b16 %v6488
        %v6593 = vunpack.c.l.b16 %v6489
        %v6594 = vunpack.c.l.b16 %v6490
        %v6595 = vunpack.c.l.b16 %v6491
        %v6596 = vunpack.c.l.b16 %v6492
        %v6597 = vunpack.c.l.b16 %v6493
        %v6598 = vunpack.c.l.b16 %v6494
        %v6599 = vunpack.c.l.b16 %v6495
        %v6600 = vunpack.c.l.b16 %v6496
        %v6601 = vunpack.c.l.b16 %v6497
        %v6602 = vunpack.c.l.b16 %v6498
        %v6603 = vunpack.c.l.b16 %v6499
        %v6604 = vunpack.c.l.b16 %v6500
        %v6605 = vunpack.c.l.b16 %v6501
        %v6606 = vunpack.c.l.b16 %v6502
        %v6607 = vunpack.c.l.b16 %v6503
        %v6608 = vunpack.c.l.b16 %v6504
        %v6609 = vunpack.c.l.b16 %v6505
        %v6610 = vunpack.c.l.b16 %v6506
        %v6611 = vunpack.c.l.b16 %v6507
        %v6612 = vunpack.c.l.b16 %v6508
        %v6613 = vpack.c.b16 %v6564, %v6563
        %v6614 = vpack.c.b16 %v6566, %v6565
        %v6615 = vpack.c.b16 %v6568, %v6567
        %v6616 = vpack.c.b16 %v6570, %v6569
        %v6617 = vpack.c.b16 %v6572, %v6571
        %v6618 = vpack.c.b16 %v6574, %v6573
        %v6619 = vpack.c.b16 %v6576, %v6575
        %v6620 = vpack.c.b16 %v6578, %v6577
        %v6621 = vpack.c.b16 %v6580, %v6579
        %v6622 = vpack.c.b16 %v6582, %v6581
        %v6623 = vpack.c.b16 %v6584, %v6583
        %v6624 = vpack.c.b16 %v6586, %v6585
        %v6625 = vpack.c.b16 %v6588, %v6587
        %v6626 = vpack.c.b16 %v6590, %v6589
        %v6627 = vpack.c.b16 %v6592, %v6591
        %v6628 = vpack.c.b16 %v6594, %v6593
        %v6629 = vpack.c.b16 %v6596, %v6595
        %v6630 = vpack.c.b16 %v6598, %v6597
        %v6631 = vpack.c.b16 %v6600, %v6599
        %v6632 = vpack.c.b16 %v6602, %v6601
        %v6633 = vpack.c.b16 %v6604, %v6603
        %v6634 = vpack.c.b16 %v6606, %v6605
        %v6635 = vpack.c.b16 %v6608, %v6607
        %v6636 = vpack.c.b16 %v6610, %v6609
        %v6637 = vpack.c.b16 %v6612, %v6611
        %vm6663 = vcmask 130048
        %v6665 = vsel %vm6663, %v6458, 0
        %6667 = vmatpush.bf16.msra.mxu0 %v6620
        %6668 = vmatpush.bf16.msra.mxu0 %v6619
        %6669 = vmatpush.bf16.msra.mxu0 %v6618
        %6670 = vmatpush.bf16.msra.mxu0 %v6617
        %6671 = vmatpush.bf16.msra.mxu0 %v6616
        %6672 = vmatpush.bf16.msra.mxu0 %v6615
        %6673 = vmatpush.bf16.msra.mxu0 %v6614
        %6674 = vmatpush.bf16.msra.mxu0 %v6613
        %6675 = vmatmul.bf16.gmra.mxu0 %v6455
        %v6676 = vpop.f32.mrf.mxu0
        %v6677 = vadd.f32 %v6511, %v6676
        %v6678 = vpop.f32.mrf.mxu0
        %6679 = vdwg.mxu0
        %6680 = vmatpush.bf16.msra.mxu0 %v6628
        %6681 = vmatpush.bf16.msra.mxu0 %v6627
        %6682 = vmatpush.bf16.msra.mxu0 %v6626
        %6683 = vmatpush.bf16.msra.mxu0 %v6625
        %6684 = vmatpush.bf16.msra.mxu0 %v6624
        %6685 = vmatpush.bf16.msra.mxu0 %v6623
        %6686 = vmatpush.bf16.msra.mxu0 %v6622
        %6687 = vmatpush.bf16.msra.mxu0 %v6621
        %6688 = vmatmul.bf16.gmra.mxu0 %v6456
        %v6689 = vpop.f32.mrf.mxu0
        %v6690 = vadd.f32 %v6677, %v6689
        %v6691 = vpop.f32.mrf.mxu0
        %6692 = vdwg.mxu0
        %6693 = vmatpush.bf16.msra.mxu0 %v6636
        %6694 = vmatpush.bf16.msra.mxu0 %v6635
        %6695 = vmatpush.bf16.msra.mxu0 %v6634
        %6696 = vmatpush.bf16.msra.mxu0 %v6633
        %6697 = vmatpush.bf16.msra.mxu0 %v6632
        %6698 = vmatpush.bf16.msra.mxu0 %v6631
        %6699 = vmatpush.bf16.msra.mxu0 %v6630
        %6700 = vmatpush.bf16.msra.mxu0 %v6629
        %6701 = vmatmul.bf16.gmra.mxu0 %v6457
        %v6702 = vpop.f32.mrf.mxu0
        %v6703 = vadd.f32 %v6690, %v6702
        %v6704 = vpop.f32.mrf.mxu0
        %6705 = vdwg.mxu0
        %6706 = vmatpush.bf16.msra.mxu0 0
        %6707 = vmatpush.bf16.msra.mxu0 0
        %6708 = vmatpush.bf16.msra.mxu0 0
        %6709 = vmatpush.bf16.msra.mxu0 0
        %6710 = vmatpush.bf16.msra.mxu0 0
        %6711 = vmatpush.bf16.msra.mxu0 0
        %6712 = vmatpush.bf16.msra.mxu0 0
        %6713 = vmatpush.bf16.msra.mxu0 %v6637
        %6714 = vmatmul.bf16.gmra.mxu0 %v6665
        %v6715 = vpop.f32.mrf.mxu0
        %v6716 = vadd.f32 %v6703, %v6715
        %v6717 = vpop.f32.mrf.mxu0
        %6718 = vdwg.mxu0
        %v6719 = vmax.f32 %v6716, 0.0
        %v6720 = vpack.c.bf16 %v6719, %v6719
        %v6721 = vld [vmem:[%s9] sm:$0xf]
        %v6722 = vld [vmem:[%s9 + $0x4] sm:$0xf]
        %v6723 = vld [vmem:[%s9 + $0x8] sm:$0xf]
        %v6724 = vld [vmem:[%s9 + $0xc] sm:$0xf]
        %v6725 = vld [vmem:[%s9 + $0x10] sm:$0xf]
        %v6726 = vld [vmem:[%s9 + $0x14] sm:$0xf]
        %v6727 = vld [vmem:[%s9 + $0x18] sm:$0xf]
        %v6728 = vld [vmem:[%s9 + $0x1c] sm:$0xf]
        %v6729 = vld [vmem:[%s9 + $0x20] sm:$0xf]
        %v6730 = vld [vmem:[%s9 + $0x24] sm:$0xf]
        %v6731 = vld [vmem:[%s9 + $0x28] sm:$0xf]
        %v6732 = vld [vmem:[%s9 + $0x2c] sm:$0xf]
        %v6733 = vld [vmem:[%s9 + $0x30] sm:$0xf]
        %v6734 = vld [vmem:[%s9 + $0x34] sm:$0xf]
        %v6735 = vld [vmem:[%s9 + $0x38] sm:$0xf]
        %v6736 = vld [vmem:[#allocation5] sm:$0x1]
        %v6738 = vperm.slane %v6736, 0
        %v6755 = vunpack.c.l.b16 %v6721
        %v6756 = vunpack.c.l.b16 %v6722
        %v6757 = vunpack.c.l.b16 %v6723
        %v6758 = vunpack.c.l.b16 %v6724
        %v6759 = vunpack.c.l.b16 %v6725
        %v6760 = vunpack.c.l.b16 %v6726
        %v6761 = vunpack.c.l.b16 %v6727
        %v6762 = vunpack.c.l.b16 %v6728
        %v6763 = vunpack.c.l.b16 %v6729
        %v6764 = vunpack.c.l.b16 %v6730
        %v6765 = vunpack.c.l.b16 %v6731
        %v6766 = vunpack.c.l.b16 %v6732
        %v6767 = vunpack.c.l.b16 %v6733
        %v6768 = vunpack.c.l.b16 %v6734
        %v6769 = vunpack.c.l.b16 %v6735
        %v6770 = vpack.c.b16 %v6756, %v6755
        %v6771 = vpack.c.b16 %v6758, %v6757
        %v6772 = vpack.c.b16 %v6760, %v6759
        %v6773 = vpack.c.b16 %v6762, %v6761
        %v6774 = vpack.c.b16 %v6764, %v6763
        %v6775 = vpack.c.b16 %v6766, %v6765
        %v6776 = vpack.c.b16 %v6768, %v6767
        %v6777 = vpack.c.b16 %v6769, %v6769
        %vm6785 = vcmask 982016
        %v6787 = vsel %vm6785, %v6720, 0
        %v6790 = vsel %vm1346, %v6777, 0
        %6792 = vmatpush.bf16.msra.mxu0 %v6790
        %6793 = vmatpush.bf16.msra.mxu0 %v6776
        %6794 = vmatpush.bf16.msra.mxu0 %v6775
        %6795 = vmatpush.bf16.msra.mxu0 %v6774
        %6796 = vmatpush.bf16.msra.mxu0 %v6773
        %6797 = vmatpush.bf16.msra.mxu0 %v6772
        %6798 = vmatpush.bf16.msra.mxu0 %v6771
        %6799 = vmatpush.bf16.msra.mxu0 %v6770
        %6800 = vmatmul.bf16.gmra.mxu0 %v6787
        %v6801 = vpop.f32.mrf.mxu0
        %v6802 = vadd.f32 %v6738, %v6801
        %v6803 = vpop.f32.mrf.mxu0
        %6804 = vdwg.mxu0
        %v6805 = vmax.f32 %v6802, 0.0
        %v6806 = vpack.c.bf16 %v6805, %v6805
        %v6807 = vld [vmem:[%s11] sm:$0xf]
        %v6808 = vld [vmem:[%s11 + $0x4] sm:$0xf]
        %v6809 = vld [vmem:[%s11 + $0x8] sm:$0xf]
        %v6810 = vld [vmem:[%s11 + $0xc] sm:$0xf]
        %v6811 = vld [vmem:[%s11 + $0x10] sm:$0xf]
        %v6812 = vld [vmem:[%s11 + $0x14] sm:$0xf]
        %v6813 = vld [vmem:[%s11 + $0x18] sm:$0xf]
        %v6814 = vld [vmem:[%s11 + $0x1c] sm:$0xf]
        %v6815 = vld [vmem:[%s11 + $0x20] sm:$0xf]
        %v6816 = vld [vmem:[%s11 + $0x24] sm:$0xf]
        %v6817 = vld [vmem:[%s11 + $0x28] sm:$0x3]
        %v6818 = vld [vmem:[#allocation7] sm:$0x1]
        %v6820 = vperm.slane %v6818, 0
        %v6833 = vunpack.c.l.b16 %v6807
        %v6834 = vunpack.c.l.b16 %v6808
        %v6835 = vunpack.c.l.b16 %v6809
        %v6836 = vunpack.c.l.b16 %v6810
        %v6837 = vunpack.c.l.b16 %v6811
        %v6838 = vunpack.c.l.b16 %v6812
        %v6839 = vunpack.c.l.b16 %v6813
        %v6840 = vunpack.c.l.b16 %v6814
        %v6841 = vunpack.c.l.b16 %v6815
        %v6842 = vunpack.c.l.b16 %v6816
        %v6843 = vunpack.c.l.b16 %v6817
        %v6844 = vpack.c.b16 %v6834, %v6833
        %v6845 = vpack.c.b16 %v6836, %v6835
        %v6846 = vpack.c.b16 %v6838, %v6837
        %v6847 = vpack.c.b16 %v6840, %v6839
        %v6848 = vpack.c.b16 %v6842, %v6841
        %v6849 = vpack.c.b16 %v6843, %v6843
        %v6856 = vsel %vm2010, %v6806, 0
        %v6859 = vsel %vm2189, %v6849, 0
        %6861 = vmatpush.bf16.msra.mxu0 0
        %6862 = vmatpush.bf16.msra.mxu0 0
        %6863 = vmatpush.bf16.msra.mxu0 %v6859
        %6864 = vmatpush.bf16.msra.mxu0 %v6848
        %6865 = vmatpush.bf16.msra.mxu0 %v6847
        %6866 = vmatpush.bf16.msra.mxu0 %v6846
        %6867 = vmatpush.bf16.msra.mxu0 %v6845
        %6868 = vmatpush.bf16.msra.mxu0 %v6844
        %6869 = vmatmul.bf16.gmra.mxu0 %v6856
        %v6870 = vpop.f32.mrf.mxu0
        %v6871 = vadd.f32 %v6820, %v6870
        %v6872 = vpop.f32.mrf.mxu0
        %6873 = vdwg.mxu0
        %vm6874 = vcmask 121856
        %6875 = vst.msk [vmem:[%s621] sm:$0xff] %vm6874, %v6871
        %s6876 = sand.u32 %s404, 1
        %s6877 = scalar_lea.sflag [#allocation4], %s6876
        %s6878 = sand.u32 %s404, 1
        %s6879 = smul.addr %s6878, 8
        %s6880 = scalar_lea.vmem [#allocation11], %s6879
        // Predicated region
        $region109: #{net_forward.1} parent=87 // pred_check
          %p6881 = pneg %p414
        $region110: #{net_forward.1} parent=87 // pred_check_branch
          %6883 = sbr.rel (%p6881) target = $region112
        $region111: #{net_forward.1} parent=87 // pred_region
          %6885 = vsyncadd %s6877, 0
          %s6886 = smul.addr %s34, 8
          %s6887 = scalar_lea.hbm %s17, %s6886
          %s6889 = sshll.u32 %s6880, 4
          %s6890 = int_to_ptr.vmem [resolvable:$true] %s6889
          %s6891 = sshll.u32 %s6887, 4
          %s6892 = int_to_ptr.hbm [resolvable:$true] %s6891
          %6894 = dma.vmem_to_hbm [thread:$0]  %s6890, 128, %s6892, %s6877
        $region112: #{net_forward.1} parent=87 // pred_fallthru
          _
      $region88: #{net_forward.1} parent=5 // pred_fallthru
        _
      %p6895 = scmp.le.s32.totalorder 2, %s29
      // Predicated region
      $region113: #{net_forward.1} parent=5 // pred_check
        %p6896 = pneg %p6895
      $region114: #{net_forward.1} parent=5 // pred_check_branch
        %6898 = sbr.rel (%p6896) target = $region116
      $region115: #{net_forward.1} parent=5 // pred_region
        %s6899 = ssub.s32 %s29, 2
        // Predicated region
        $region117: #{net_forward.1} parent=115 // pred_check
          %p6900 = pneg %p420
        $region118: #{net_forward.1} parent=115 // pred_check_branch
          %6902 = sbr.rel (%p6900) target = $region120
        $region119: #{net_forward.1} parent=115 // pred_region
          %s6903 = sand.u32 %s405, 1
          %s6904 = scalar_lea.sflag [#allocation4], %s6903
          %s6905 = sand.u32 %s405, 1
          %s6906 = smul.addr %s6905, 8
          %s6907 = scalar_lea.vmem [#allocation11], %s6906
          %6909 = dma.done %s6904, 128
        $region120: #{net_forward.1} parent=115 // pred_fallthru
          _
      $region116: #{net_forward.1} parent=5 // pred_fallthru
        _
    $region6: #{net_forward.1} parent=1 // loop_footer
      %s33 = sadd.s32 1, %s29
    $region7: #{net_forward.1} parent=1 // loop_footer_branch
      %28 = sbr.rel target = $region3
    $region8: #{net_forward.1} parent=1 // loop_exit
      _
    %6910 = vsyncpa [#allocation3], 1
    %s6911 = scalar_lea.sflag [#allocation3], 1
    %6912 = vsyncpa %s6911, 1
    %6913 = vsyncpa [#allocation6], 1
    %6914 = vsyncpa [#allocation9], 1
    %6915 = vsyncpa [#allocation4], 1
    %s6916 = scalar_lea.sflag [#allocation4], 1
    %6917 = vsyncpa %s6916, 1

</llo_original>
